<compile_context>
chip_gen: v7x
topology: tpu7x:2x2x1
jax: 0.10.0
libtpu: 0.0.40
codegen_flags: <defaults>
</compile_context>

<pallas_src>
import functools
import math

import jax
import jax.numpy as jnp
from jax import lax
from jax.experimental import pallas as pl
from jax.experimental.pallas import tpu as pltpu


_C0 = 96                      # real stem channel count
_C0P = 128                    # lane-padded stem channel count
_VMEM_LIMIT = 32 * 1024 * 1024  # explicit scoped-VMEM budget (v7x-safe)


# -----------------------------------------------------------------------------
# In-kernel helpers (f32 epilogue math on every generation)
# -----------------------------------------------------------------------------
def _layernorm(x, gamma, beta, inv_c, eps):
    """One-pass LayerNorm over the last dim.

    `inv_c` must be 1 / (number of REAL channels).  With lane padding the
    padded columns of x / gamma / beta are exactly zero, so the sums are
    unchanged and padded outputs stay exactly zero.
    """
    mean = jnp.sum(x, axis=-1, keepdims=True) * inv_c
    ex2 = jnp.sum(x * x, axis=-1, keepdims=True) * inv_c
    var = jnp.maximum(ex2 - mean * mean, 0.0)     # guard cancellation
    return (x - mean) * (lax.rsqrt(var + eps) * gamma) + beta


def _gelu(x):
    # Exact (erf-based) GELU, matching torch.nn.GELU() default.
    return 0.5 * x * (1.0 + lax.erf(x * (1.0 / math.sqrt(2.0))))


# -----------------------------------------------------------------------------
# Kernel A: stem conv (k4 s4) as matmul + bias + LN + GELU
#   bf16 MXU operands, f32 accumulation / epilogue, lane-padded 128-wide output
# -----------------------------------------------------------------------------
def _stem_kernel(x_ref, w_ref, b_ref, g_ref, bt_ref, o_ref, *, inv_c, eps):
    acc = jnp.dot(x_ref[...], w_ref[...], preferred_element_type=jnp.float32)
    acc = acc + b_ref[...]
    acc = _gelu(_layernorm(acc, g_ref[...], bt_ref[...], inv_c, eps))
    o_ref[...] = acc.astype(o_ref.dtype)


def stem_conv_ln_gelu(x2d_bf16, w_bf16, b, gamma, beta, *, c_real, eps):
    M, K = x2d_bf16.shape
    Cp = w_bf16.shape[1]                      # 128 (lane padded)
    # Row tile: 256 floor, larger tiles for larger inputs, >= 2 grid steps.
    if M <= 512:
        tm = min(256, M)
    elif M <= 8192:
        tm = 512
    else:
        tm = 1024
    grid = (pl.cdiv(M, tm),)
    return pl.pallas_call(
        functools.partial(_stem_kernel, inv_c=1.0 / c_real, eps=eps),
        out_shape=jax.ShapeDtypeStruct((M, Cp), jnp.bfloat16),
        grid_spec=pltpu.PrefetchScalarGridSpec(
            num_scalar_prefetch=0,
            grid=grid,
            in_specs=[
                pl.BlockSpec((tm, K), lambda i: (i, 0)),   # im2col row tile
                pl.BlockSpec((K, Cp), lambda i: (0, 0)),   # w1 (bf16, padded)
                pl.BlockSpec((1, Cp), lambda i: (0, 0)),   # bias   (f32)
                pl.BlockSpec((1, Cp), lambda i: (0, 0)),   # gamma  (f32)
                pl.BlockSpec((1, Cp), lambda i: (0, 0)),   # beta   (f32)
            ],
            out_specs=pl.BlockSpec((tm, Cp), lambda i: (i, 0)),
        ),
        compiler_params=pltpu.CompilerParams(
            dimension_semantics=("parallel",),
            vmem_limit_bytes=_VMEM_LIMIT),
    )(x2d_bf16, w_bf16, b, gamma, beta)


# -----------------------------------------------------------------------------
# Kernel B: layers 2-4 fused, with the layer-2 tap gather done IN-KERNEL
#   layer 2: k8/s4 conv = 4 accumulating dots over static row offsets of the
#            blocked stem output (no patches tensor, no XLA concat)
#   layer 3: 1x1 conv + LN + GELU
#   layer 4: 1x1 conv + bias
# -----------------------------------------------------------------------------
def _tail_kernel(p_ref, w2_ref, g2_ref, bt2_ref, w3_ref, g3_ref, bt3_ref,
                 w4_ref, b4_ref, o_ref, *, wb, m_step, inv_c1, inv_c2,
                 eps2, eps3):
    # Output flat row f (= h2*WB + w2, per image) reads stem block rows
    # f + s for tap shifts s in {0, 1, WB, WB+1}.  Rows whose w2 == WB-1 are
    # junk (wrap into the next block row) and are discarded by the wrapper.
    acc = jnp.dot(p_ref[pl.ds(0, m_step), :], w2_ref[0],
                  preferred_element_type=jnp.float32)
    for t, s in ((1, 1), (2, wb), (3, wb + 1)):
        acc = acc + jnp.dot(p_ref[pl.ds(s, m_step), :], w2_ref[t],
                            preferred_element_type=jnp.float32)
    a = _gelu(_layernorm(acc, g2_ref[...], bt2_ref[...], inv_c1, eps2))
    # Layer 3: 1x1 conv (no bias) + LN + GELU.
    a = jnp.dot(a.astype(jnp.bfloat16), w3_ref[...],
                preferred_element_type=jnp.float32)
    a = _gelu(_layernorm(a, g3_ref[...], bt3_ref[...], inv_c2, eps3))
    # Layer 4: 1x1 conv + bias (no LN / GELU).
    a = jnp.dot(a.astype(jnp.bfloat16), w4_ref[...],
                preferred_element_type=jnp.float32)
    a = a + b4_ref[...]
    # Rows [m_step, rows_blk) can never be valid outputs: zero-fill the block
    # (lane-dense, aligned store), then overwrite the computed rows.
    o_ref[...] = jnp.zeros(o_ref.shape, o_ref.dtype)
    o_ref[pl.ds(0, m_step), :] = a.astype(o_ref.dtype)


def tail_layers_fused(h1_blocked, p2, p3, p4, *, r_img, wb, nb, eps2, eps3):
    R, K2 = h1_blocked.shape                  # R = N * HB * WB, K2 = 16 * 128
    C1 = p2["w"].shape[-1]
    C2 = p3["w"].shape[-1]
    C3 = p4["w"].shape[-1]
    rows_blk = nb * r_img                     # stem rows handled per grid step
    m_step = rows_blk - (wb + 1)              # layer-2..4 matmul M per step
    grid = (R // rows_blk,)
    return pl.pallas_call(
        functools.partial(_tail_kernel, wb=wb, m_step=m_step,
                          inv_c1=1.0 / C1, inv_c2=1.0 / C2,
                          eps2=eps2, eps3=eps3),
        out_shape=jax.ShapeDtypeStruct((R, C3), jnp.float32),
        grid_spec=pltpu.PrefetchScalarGridSpec(
            num_scalar_prefetch=0,
            grid=grid,
            in_specs=[
                pl.BlockSpec((rows_blk, K2), lambda i: (i, 0)),   # stem block
                pl.BlockSpec((4, K2, C1), lambda i: (0, 0, 0)),   # w2 taps
                pl.BlockSpec((1, C1), lambda i: (0, 0)),          # gamma2
                pl.BlockSpec((1, C1), lambda i: (0, 0)),          # beta2
                pl.BlockSpec((C1, C2), lambda i: (0, 0)),         # w3
                pl.BlockSpec((1, C2), lambda i: (0, 0)),          # gamma3
                pl.BlockSpec((1, C2), lambda i: (0, 0)),          # beta3
                pl.BlockSpec((C2, C3), lambda i: (0, 0)),         # w4
                pl.BlockSpec((1, C3), lambda i: (0, 0)),          # b4
            ],
            out_specs=pl.BlockSpec((rows_blk, C3), lambda i: (i, 0)),
        ),
        compiler_params=pltpu.CompilerParams(
            dimension_semantics=("parallel",),
            vmem_limit_bytes=_VMEM_LIMIT),
    )(h1_blocked, p2["w"], p2["gamma"], p2["beta"],
      p3["w"], p3["gamma"], p3["beta"], p4["w"], p4["b"])


# -----------------------------------------------------------------------------
# Encoder forward (convnext backbone):
#   Conv(3->96, k4 s4, bias) -> LN(1e-6) -> GELU
#   Conv(96->96*m0, k8 s4)   -> LN(1e-6) -> GELU
#   Conv(->96*m1, k1)        -> LN(1e-5) -> GELU
#   Conv(->96*m2, k1, bias)
# -----------------------------------------------------------------------------
@jax.jit
def encoder_forward(x_nchw, params):
    p1, p2, p3, p4 = params
    N, Cin, H, W = x_nchw.shape
    assert Cin == 3 and H % 16 == 0 and W % 16 == 0 and H >= 32 and W >= 32
    HB, WB = H // 16, W // 16                 # 4x4 blocks of stem pixels
    Ho2, Wo2 = HB - 1, WB - 1                 # spatial size after k8/s4 conv
    R_img = HB * WB
    C0p = p1["w"].shape[1]                    # 128 (lane padded)
    C3 = p4["w"].shape[-1]

    # bf16 BEFORE the XLA layout passes (halves the transpose/reshape bytes).
    x = jnp.transpose(x_nchw.astype(jnp.bfloat16), (0, 2, 3, 1))   # NHWC
    # Stem im2col (k == stride == 4): pure reshape + transpose.  Rows come out
    # in (n, hb, wb, hi, wi) order so the later reshape into the blocked
    # (N*HB*WB, 16*C0p) layout is a free row-major (metadata-only) reshape.
    xp = x.reshape(N, HB, 4, 4, WB, 4, 4, Cin)         # n hb hi ph wb wi pw c
    xp = xp.transpose(0, 1, 4, 2, 5, 3, 6, 7)          # n hb wb hi wi ph pw c
    xp = xp.reshape(N * R_img * 16, 4 * 4 * Cin)

    h1 = stem_conv_ln_gelu(xp, p1["w"], p1["b"], p1["gamma"], p1["beta"],
                           c_real=_C0, eps=1e-6)       # (N*R_img*16, 128) bf16

    # Free reshape to the blocked layout consumed by the fused tail kernel.
    h1b = h1.reshape(N * R_img, 16 * C0p)

    # Flatten batch into the matmul M dimension, but keep >= 2 grid steps
    # (v7x megacore) whenever N >= 2.  The fallback nb=N (one step, full-dim
    # block) is always layout-legal.
    if N % 2 == 0 and ((N // 2) * R_img) % 16 == 0:
        nb = N // 2
    else:
        nb = N
    out_flat = tail_layers_fused(h1b, p2, p3, p4, r_img=R_img, wb=WB, nb=nb,
                                 eps2=1e-6, eps3=1e-5)  # (N*R_img, C3) f32

    # Valid layer-2 output rows per image are f = h2*WB + w2 with h2 < Ho2,
    # w2 < Wo2 -> cheap strided slice fused with the final transpose.
    out = out_flat.reshape(N, HB, WB, C3)[:, :Ho2, :Wo2, :]
    return jnp.transpose(out, (0, 3, 1, 2))             # NHWC -> NCHW


# -----------------------------------------------------------------------------
# Parameter init (weights stored directly in the matmul layouts used above,
# matmul weights pre-cast to bf16, lane padding baked in with exact zeros)
# -----------------------------------------------------------------------------
def init_encoder_params(key, planes_multipliers):
    m0, m1, m2 = planes_multipliers
    C0, C0p = _C0, _C0P
    C1, C2, C3 = 96 * m0, 96 * m1, 96 * m2

    def dense(k, shape, fan_in):
        return jax.random.normal(k, shape, jnp.float32) / math.sqrt(fan_in)

    def vec(k, c, scale, base):
        return base + scale * jax.random.normal(k, (1, c), jnp.float32)

    def lane_pad(a):                          # pad last dim C0 -> C0p with 0
        return jnp.pad(a, ((0, 0), (0, C0p - C0)))

    ks = jax.random.split(key, 12)
    # Layer 1 weight rows: (ph, pw, cin) order; padded output columns are 0.
    p1 = dict(
        w=lane_pad(dense(ks[0], (4 * 4 * 3, C0), 4 * 4 * 3)).astype(jnp.bfloat16),
        b=lane_pad(vec(ks[1], C0, 0.1, 0.0)),
        gamma=lane_pad(vec(ks[2], C0, 0.1, 1.0)),
        beta=lane_pad(vec(ks[3], C0, 0.1, 0.0)))
    # Layer 2 weight: tap-major (dh, dw) x rows ((hi*4+wi)*C0p + c); rows with
    # c >= 96 are exactly zero (they multiply the zero-padded stem lanes).
    w2 = dense(ks[4], (4, 16, C0, C1), 2 * 2 * 4 * 4 * C0)
    w2 = jnp.pad(w2, ((0, 0), (0, 0), (0, C0p - C0), (0, 0)))
    p2 = dict(
        w=w2.reshape(4, 16 * C0p, C1).astype(jnp.bfloat16),
        gamma=vec(ks[5], C1, 0.1, 1.0),
        beta=vec(ks[6], C1, 0.1, 0.0))
    p3 = dict(
        w=dense(ks[7], (C1, C2), C1).astype(jnp.bfloat16),
        gamma=vec(ks[8], C2, 0.1, 1.0),
        beta=vec(ks[9], C2, 0.1, 0.0))
    p4 = dict(
        w=dense(ks[10], (C2, C3), C2).astype(jnp.bfloat16),
        b=vec(ks[11], C3, 0.1, 0.0))
    return [p1, p2, p3, p4]


# -----------------------------------------------------------------------------
# Pure-JAX (f32, no Pallas) reference for the sanity check
# -----------------------------------------------------------------------------
def _ref_forward(x_nchw, params):
    p1, p2, p3, p4 = params
    C0, C0p = _C0, _C0P
    C1 = p2["w"].shape[-1]
    C2 = p3["w"].shape[-1]
    C3 = p4["w"].shape[-1]

    def conv(x, w4d, s):
        return lax.conv_general_dilated(
            x, w4d, window_strides=(s, s), padding="VALID",
            dimension_numbers=("NHWC", "HWIO", "NHWC"),
            precision=lax.Precision.HIGHEST)

    def ln(x, g, b, eps):
        m = jnp.mean(x, axis=-1, keepdims=True)
        v = jnp.mean(jnp.square(x - m), axis=-1, keepdims=True)
        return ((x - m) * lax.rsqrt(v + eps) * g.reshape(1, 1, 1, -1)
                + b.reshape(1, 1, 1, -1))

    def gelu(x):
        return 0.5 * x * (1.0 + lax.erf(x / math.sqrt(2.0)))

    x = jnp.transpose(x_nchw, (0, 2, 3, 1)).astype(jnp.float32)
    # layer 1 (drop the lane padding)
    w1 = p1["w"].astype(jnp.float32)[:, :C0].reshape(4, 4, 3, C0)
    x = conv(x, w1, 4) + p1["b"][:, :C0].reshape(1, 1, 1, C0)
    x = gelu(ln(x, p1["gamma"][:, :C0], p1["beta"][:, :C0], 1e-6))
    # layer 2: rebuild HWIO weight from the tap-major, lane-padded storage
    w2 = p2["w"].astype(jnp.float32).reshape(2, 2, 4, 4, C0p, C1)
    w2 = w2[:, :, :, :, :C0, :].transpose(0, 2, 1, 3, 4, 5).reshape(8, 8, C0, C1)
    x = gelu(ln(conv(x, w2, 4), p2["gamma"], p2["beta"], 1e-6))
    # layer 3
    w3 = p3["w"].astype(jnp.float32).reshape(1, 1, C1, C2)
    x = gelu(ln(conv(x, w3, 1), p3["gamma"], p3["beta"], 1e-5))
    # layer 4
    w4 = p4["w"].astype(jnp.float32).reshape(1, 1, C2, C3)
    x = conv(x, w4, 1) + p4["b"].reshape(1, 1, 1, C3)
    return jnp.transpose(x, (0, 3, 1, 2))


if __name__ == "__main__":
    planes_multipliers = (1, 2, 4)           # channels: 96 -> 96 -> 192 -> 384
    key = jax.random.PRNGKey(0)
    kp, kx = jax.random.split(key)
    params = init_encoder_params(kp, planes_multipliers)

    # Input: batch=2, 3 channels, 64x64 spatial (NCHW, like the PyTorch module).
    x = jax.random.normal(kx, (2, 3, 64, 64), dtype=jnp.float32)

    out = jax.block_until_ready(encoder_forward(x, params))
    assert out.shape == (2, 96 * planes_multipliers[2], 3, 3), out.shape

    ref = jax.block_until_ready(_ref_forward(x, params))
    max_abs = float(jnp.max(jnp.abs(out - ref)))
    rel_l2 = float(jnp.linalg.norm(out - ref) / jnp.linalg.norm(ref))
    # bf16 MXU operands / bf16 intermediate activations vs. the f32 reference.
    assert max_abs < 1e-1 and rel_l2 < 3e-2, (max_abs, rel_l2)

    print("KERNEL_OK")
</pallas_src>

<mosaic_0001>
module attributes {stable_mosaic.version = 11 : i64} {
  func.func @_stem_kernel(%arg0: i32, %arg1: memref<256x48xbf16, #tpu.memory_space<vmem>>, %arg2: memref<48x128xbf16, #tpu.memory_space<vmem>>, %arg3: memref<1x128xf32, #tpu.memory_space<vmem>>, %arg4: memref<1x128xf32, #tpu.memory_space<vmem>>, %arg5: memref<1x128xf32, #tpu.memory_space<vmem>>, %arg6: memref<256x128xbf16, #tpu.memory_space<vmem>>) attributes {dimension_semantics = [#tpu.dimension_semantics<parallel>], iteration_bounds = array<i64: 2>, scalar_prefetch = 0 : i64, scratch_operands = 0 : i64, tpu.core_type = #tpu.core_type<tc>, window_params = [{transform_indices = @transform_0, window_bounds = array<i64: 256, 48>}, {pipeline_mode = #tpu.pipeline_mode<synchronous>, transform_indices = @transform_1, window_bounds = array<i64: 48, 128>}, {pipeline_mode = #tpu.pipeline_mode<synchronous>, transform_indices = @transform_2, window_bounds = array<i64: 1, 128>}, {pipeline_mode = #tpu.pipeline_mode<synchronous>, transform_indices = @transform_3, window_bounds = array<i64: 1, 128>}, {pipeline_mode = #tpu.pipeline_mode<synchronous>, transform_indices = @transform_4, window_bounds = array<i64: 1, 128>}, {transform_indices = @transform_5, window_bounds = array<i64: 256, 128>}]} {
    %c0 = arith.constant 0 : index
    %c0_0 = arith.constant 0 : index
    %0 = vector.load %arg1[%c0, %c0_0] : memref<256x48xbf16, #tpu.memory_space<vmem>>, vector<256x48xbf16>
    %c0_1 = arith.constant 0 : index
    %c0_2 = arith.constant 0 : index
    %1 = vector.load %arg2[%c0_1, %c0_2] : memref<48x128xbf16, #tpu.memory_space<vmem>>, vector<48x128xbf16>
    %cst = arith.constant dense<0.000000e+00> : vector<256x128xf32>
    %2 = tpu.matmul %0, %1, %cst {dimension_numbers = #tpu.dot_dimension_numbers<[1], [0], [0], [1], [0, 0, 1, 1], [], []>} : vector<256x48xbf16>, vector<48x128xbf16>, vector<256x128xf32> -> vector<256x128xf32>
    %c0_3 = arith.constant 0 : index
    %c0_4 = arith.constant 0 : index
    %3 = vector.load %arg3[%c0_3, %c0_4] : memref<1x128xf32, #tpu.memory_space<vmem>>, vector<1x128xf32>
    %4 = vector.broadcast %3 : vector<1x128xf32> to vector<256x128xf32>
    %5 = arith.addf %2, %4 : vector<256x128xf32>
    %c0_5 = arith.constant 0 : index
    %c0_6 = arith.constant 0 : index
    %6 = vector.load %arg4[%c0_5, %c0_6] : memref<1x128xf32, #tpu.memory_space<vmem>>, vector<1x128xf32>
    %c0_7 = arith.constant 0 : index
    %c0_8 = arith.constant 0 : index
    %7 = vector.load %arg5[%c0_7, %c0_8] : memref<1x128xf32, #tpu.memory_space<vmem>>, vector<1x128xf32>
    %cst_9 = arith.constant dense<0.000000e+00> : vector<256xf32>
    %8 = vector.multi_reduction <add>, %5, %cst_9 [1] : vector<256x128xf32> to vector<256xf32>
    %9 = vector.shape_cast %8 : vector<256xf32> to vector<256x1xf32>
    %cst_10 = arith.constant 0.010416667 : f32
    %10 = vector.broadcast %cst_10 : f32 to vector<256x1xf32>
    %11 = arith.mulf %9, %10 : vector<256x1xf32>
    %12 = arith.mulf %5, %5 : vector<256x128xf32>
    %cst_11 = arith.constant dense<0.000000e+00> : vector<256xf32>
    %13 = vector.multi_reduction <add>, %12, %cst_11 [1] : vector<256x128xf32> to vector<256xf32>
    %14 = vector.shape_cast %13 : vector<256xf32> to vector<256x1xf32>
    %cst_12 = arith.constant 0.010416667 : f32
    %15 = vector.broadcast %cst_12 : f32 to vector<256x1xf32>
    %16 = arith.mulf %14, %15 : vector<256x1xf32>
    %17 = arith.mulf %11, %11 : vector<256x1xf32>
    %18 = arith.subf %16, %17 : vector<256x1xf32>
    %cst_13 = arith.constant 0.000000e+00 : f32
    %19 = vector.broadcast %cst_13 : f32 to vector<256x1xf32>
    %20 = arith.maximumf %18, %19 : vector<256x1xf32>
    %21 = vector.broadcast %11 : vector<256x1xf32> to vector<256x128xf32>
    %22 = arith.subf %5, %21 : vector<256x128xf32>
    %cst_14 = arith.constant 9.99999997E-7 : f32
    %23 = vector.broadcast %cst_14 : f32 to vector<256x1xf32>
    %24 = arith.addf %20, %23 : vector<256x1xf32>
    %25 = math.rsqrt %24 : vector<256x1xf32>
    %26 = vector.broadcast %25 : vector<256x1xf32> to vector<256x128xf32>
    %27 = vector.broadcast %6 : vector<1x128xf32> to vector<256x128xf32>
    %28 = arith.mulf %26, %27 : vector<256x128xf32>
    %29 = arith.mulf %22, %28 : vector<256x128xf32>
    %30 = vector.broadcast %7 : vector<1x128xf32> to vector<256x128xf32>
    %31 = arith.addf %29, %30 : vector<256x128xf32>
    %cst_15 = arith.constant 5.000000e-01 : f32
    %32 = vector.broadcast %cst_15 : f32 to vector<256x128xf32>
    %33 = arith.mulf %32, %31 : vector<256x128xf32>
    %cst_16 = arith.constant 0.707106769 : f32
    %34 = vector.broadcast %cst_16 : f32 to vector<256x128xf32>
    %35 = arith.mulf %31, %34 : vector<256x128xf32>
    %36 = math.erf %35 : vector<256x128xf32>
    %cst_17 = arith.constant 1.000000e+00 : f32
    %37 = vector.broadcast %cst_17 : f32 to vector<256x128xf32>
    %38 = arith.addf %37, %36 : vector<256x128xf32>
    %39 = arith.mulf %33, %38 : vector<256x128xf32>
    %40 = arith.truncf %39 : vector<256x128xf32> to vector<256x128xbf16>
    %c0_18 = arith.constant 0 : index
    %c0_19 = arith.constant 0 : index
    %41 = vector.load %arg6[%c0_18, %c0_19] : memref<256x128xbf16, #tpu.memory_space<vmem>>, vector<256x128xbf16>
    tpu.vector_store %arg6[%c0_18, %c0_19], %40 {strides = array<i32>} : memref<256x128xbf16, #tpu.memory_space<vmem>>, vector<256x128xbf16>,
    return
  }
  func.func @transform_0(%arg0: i32) -> (i32, i32) {
    %c0_i32 = arith.constant 0 : i32
    %c0_i32_0 = arith.constant 0 : i32
    return %arg0, %c0_i32 : i32, i32
  }
  func.func @transform_1(%arg0: i32) -> (i32, i32) {
    %c0_i32 = arith.constant 0 : i32
    %c0_i32_0 = arith.constant 0 : i32
    %c0_i32_1 = arith.constant 0 : i32
    return %c0_i32, %c0_i32_0 : i32, i32
  }
  func.func @transform_2(%arg0: i32) -> (i32, i32) {
    %c0_i32 = arith.constant 0 : i32
    %c0_i32_0 = arith.constant 0 : i32
    %c0_i32_1 = arith.constant 0 : i32
    return %c0_i32, %c0_i32_0 : i32, i32
  }
  func.func @transform_3(%arg0: i32) -> (i32, i32) {
    %c0_i32 = arith.constant 0 : i32
    %c0_i32_0 = arith.constant 0 : i32
    %c0_i32_1 = arith.constant 0 : i32
    return %c0_i32, %c0_i32_0 : i32, i32
  }
  func.func @transform_4(%arg0: i32) -> (i32, i32) {
    %c0_i32 = arith.constant 0 : i32
    %c0_i32_0 = arith.constant 0 : i32
    %c0_i32_1 = arith.constant 0 : i32
    return %c0_i32, %c0_i32_0 : i32, i32
  }
  func.func @transform_5(%arg0: i32) -> (i32, i32) {
    %c0_i32 = arith.constant 0 : i32
    %c0_i32_0 = arith.constant 0 : i32
    return %arg0, %c0_i32 : i32, i32
  }
}

module attributes {stable_mosaic.version = 11 : i64} {
  func.func @_tail_kernel(%arg0: i32, %arg1: memref<16x2048xbf16, #tpu.memory_space<vmem>>, %arg2: memref<4x2048x96xbf16, #tpu.memory_space<vmem>>, %arg3: memref<1x96xf32, #tpu.memory_space<vmem>>, %arg4: memref<1x96xf32, #tpu.memory_space<vmem>>, %arg5: memref<96x192xbf16, #tpu.memory_space<vmem>>, %arg6: memref<1x192xf32, #tpu.memory_space<vmem>>, %arg7: memref<1x192xf32, #tpu.memory_space<vmem>>, %arg8: memref<192x384xbf16, #tpu.memory_space<vmem>>, %arg9: memref<1x384xf32, #tpu.memory_space<vmem>>, %arg10: memref<16x384xf32, #tpu.memory_space<vmem>>) attributes {dimension_semantics = [#tpu.dimension_semantics<parallel>], iteration_bounds = array<i64: 2>, scalar_prefetch = 0 : i64, scratch_operands = 0 : i64, tpu.core_type = #tpu.core_type<tc>, window_params = [{transform_indices = @transform_0, window_bounds = array<i64: 16, 2048>}, {pipeline_mode = #tpu.pipeline_mode<synchronous>, transform_indices = @transform_1, window_bounds = array<i64: 4, 2048, 96>}, {pipeline_mode = #tpu.pipeline_mode<synchronous>, transform_indices = @transform_2, window_bounds = array<i64: 1, 96>}, {pipeline_mode = #tpu.pipeline_mode<synchronous>, transform_indices = @transform_3, window_bounds = array<i64: 1, 96>}, {pipeline_mode = #tpu.pipeline_mode<synchronous>, transform_indices = @transform_4, window_bounds = array<i64: 96, 192>}, {pipeline_mode = #tpu.pipeline_mode<synchronous>, transform_indices = @transform_5, window_bounds = array<i64: 1, 192>}, {pipeline_mode = #tpu.pipeline_mode<synchronous>, transform_indices = @transform_6, window_bounds = array<i64: 1, 192>}, {pipeline_mode = #tpu.pipeline_mode<synchronous>, transform_indices = @transform_7, window_bounds = array<i64: 192, 384>}, {pipeline_mode = #tpu.pipeline_mode<synchronous>, transform_indices = @transform_8, window_bounds = array<i64: 1, 384>}, {transform_indices = @transform_9, window_bounds = array<i64: 16, 384>}]} {
    %c0 = arith.constant 0 : index
    %c0_0 = arith.constant 0 : index
    %0 = vector.load %arg1[%c0, %c0_0] : memref<16x2048xbf16, #tpu.memory_space<vmem>>, vector<11x2048xbf16>
    %c0_1 = arith.constant 0 : index
    %c0_2 = arith.constant 0 : index
    %c0_3 = arith.constant 0 : index
    %1 = vector.load %arg2[%c0_1, %c0_2, %c0_3] : memref<4x2048x96xbf16, #tpu.memory_space<vmem>>, vector<1x2048x96xbf16>
    %2 = vector.shape_cast %1 : vector<1x2048x96xbf16> to vector<2048x96xbf16>
    %cst = arith.constant dense<0.000000e+00> : vector<11x96xf32>
    %3 = tpu.matmul %0, %2, %cst {dimension_numbers = #tpu.dot_dimension_numbers<[1], [0], [0], [1], [0, 0, 1, 1], [], []>} : vector<11x2048xbf16>, vector<2048x96xbf16>, vector<11x96xf32> -> vector<11x96xf32>
    %c1 = arith.constant 1 : index
    %c0_4 = arith.constant 0 : index
    %4 = vector.load %arg1[%c1, %c0_4] : memref<16x2048xbf16, #tpu.memory_space<vmem>>, vector<11x2048xbf16>
    %c1_5 = arith.constant 1 : index
    %c0_6 = arith.constant 0 : index
    %c0_7 = arith.constant 0 : index
    %5 = vector.load %arg2[%c1_5, %c0_6, %c0_7] : memref<4x2048x96xbf16, #tpu.memory_space<vmem>>, vector<1x2048x96xbf16>
    %6 = vector.shape_cast %5 : vector<1x2048x96xbf16> to vector<2048x96xbf16>
    %cst_8 = arith.constant dense<0.000000e+00> : vector<11x96xf32>
    %7 = tpu.matmul %4, %6, %cst_8 {dimension_numbers = #tpu.dot_dimension_numbers<[1], [0], [0], [1], [0, 0, 1, 1], [], []>} : vector<11x2048xbf16>, vector<2048x96xbf16>, vector<11x96xf32> -> vector<11x96xf32>
    %8 = arith.addf %3, %7 : vector<11x96xf32>
    %c4 = arith.constant 4 : index
    %c0_9 = arith.constant 0 : index
    %9 = vector.load %arg1[%c4, %c0_9] : memref<16x2048xbf16, #tpu.memory_space<vmem>>, vector<11x2048xbf16>
    %c2 = arith.constant 2 : index
    %c0_10 = arith.constant 0 : index
    %c0_11 = arith.constant 0 : index
    %10 = vector.load %arg2[%c2, %c0_10, %c0_11] : memref<4x2048x96xbf16, #tpu.memory_space<vmem>>, vector<1x2048x96xbf16>
    %11 = vector.shape_cast %10 : vector<1x2048x96xbf16> to vector<2048x96xbf16>
    %cst_12 = arith.constant dense<0.000000e+00> : vector<11x96xf32>
    %12 = tpu.matmul %9, %11, %cst_12 {dimension_numbers = #tpu.dot_dimension_numbers<[1], [0], [0], [1], [0, 0, 1, 1], [], []>} : vector<11x2048xbf16>, vector<2048x96xbf16>, vector<11x96xf32> -> vector<11x96xf32>
    %13 = arith.addf %8, %12 : vector<11x96xf32>
    %c5 = arith.constant 5 : index
    %c0_13 = arith.constant 0 : index
    %14 = vector.load %arg1[%c5, %c0_13] : memref<16x2048xbf16, #tpu.memory_space<vmem>>, vector<11x2048xbf16>
    %c3 = arith.constant 3 : index
    %c0_14 = arith.constant 0 : index
    %c0_15 = arith.constant 0 : index
    %15 = vector.load %arg2[%c3, %c0_14, %c0_15] : memref<4x2048x96xbf16, #tpu.memory_space<vmem>>, vector<1x2048x96xbf16>
    %16 = vector.shape_cast %15 : vector<1x2048x96xbf16> to vector<2048x96xbf16>
    %cst_16 = arith.constant dense<0.000000e+00> : vector<11x96xf32>
    %17 = tpu.matmul %14, %16, %cst_16 {dimension_numbers = #tpu.dot_dimension_numbers<[1], [0], [0], [1], [0, 0, 1, 1], [], []>} : vector<11x2048xbf16>, vector<2048x96xbf16>, vector<11x96xf32> -> vector<11x96xf32>
    %18 = arith.addf %13, %17 : vector<11x96xf32>
    %c0_17 = arith.constant 0 : index
    %c0_18 = arith.constant 0 : index
    %19 = vector.load %arg3[%c0_17, %c0_18] : memref<1x96xf32, #tpu.memory_space<vmem>>, vector<1x96xf32>
    %c0_19 = arith.constant 0 : index
    %c0_20 = arith.constant 0 : index
    %20 = vector.load %arg4[%c0_19, %c0_20] : memref<1x96xf32, #tpu.memory_space<vmem>>, vector<1x96xf32>
    %cst_21 = arith.constant dense<0.000000e+00> : vector<11xf32>
    %21 = vector.multi_reduction <add>, %18, %cst_21 [1] : vector<11x96xf32> to vector<11xf32>
    %22 = vector.shape_cast %21 : vector<11xf32> to vector<11x1xf32>
    %cst_22 = arith.constant 0.010416667 : f32
    %23 = vector.broadcast %cst_22 : f32 to vector<11x1xf32>
    %24 = arith.mulf %22, %23 : vector<11x1xf32>
    %25 = arith.mulf %18, %18 : vector<11x96xf32>
    %cst_23 = arith.constant dense<0.000000e+00> : vector<11xf32>
    %26 = vector.multi_reduction <add>, %25, %cst_23 [1] : vector<11x96xf32> to vector<11xf32>
    %27 = vector.shape_cast %26 : vector<11xf32> to vector<11x1xf32>
    %cst_24 = arith.constant 0.010416667 : f32
    %28 = vector.broadcast %cst_24 : f32 to vector<11x1xf32>
    %29 = arith.mulf %27, %28 : vector<11x1xf32>
    %30 = arith.mulf %24, %24 : vector<11x1xf32>
    %31 = arith.subf %29, %30 : vector<11x1xf32>
    %cst_25 = arith.constant 0.000000e+00 : f32
    %32 = vector.broadcast %cst_25 : f32 to vector<11x1xf32>
    %33 = arith.maximumf %31, %32 : vector<11x1xf32>
    %34 = vector.broadcast %24 : vector<11x1xf32> to vector<11x96xf32>
    %35 = arith.subf %18, %34 : vector<11x96xf32>
    %cst_26 = arith.constant 9.99999997E-7 : f32
    %36 = vector.broadcast %cst_26 : f32 to vector<11x1xf32>
    %37 = arith.addf %33, %36 : vector<11x1xf32>
    %38 = math.rsqrt %37 : vector<11x1xf32>
    %39 = vector.broadcast %38 : vector<11x1xf32> to vector<11x96xf32>
    %40 = vector.broadcast %19 : vector<1x96xf32> to vector<11x96xf32>
    %41 = arith.mulf %39, %40 : vector<11x96xf32>
    %42 = arith.mulf %35, %41 : vector<11x96xf32>
    %43 = vector.broadcast %20 : vector<1x96xf32> to vector<11x96xf32>
    %44 = arith.addf %42, %43 : vector<11x96xf32>
    %cst_27 = arith.constant 5.000000e-01 : f32
    %45 = vector.broadcast %cst_27 : f32 to vector<11x96xf32>
    %46 = arith.mulf %45, %44 : vector<11x96xf32>
    %cst_28 = arith.constant 0.707106769 : f32
    %47 = vector.broadcast %cst_28 : f32 to vector<11x96xf32>
    %48 = arith.mulf %44, %47 : vector<11x96xf32>
    %49 = math.erf %48 : vector<11x96xf32>
    %cst_29 = arith.constant 1.000000e+00 : f32
    %50 = vector.broadcast %cst_29 : f32 to vector<11x96xf32>
    %51 = arith.addf %50, %49 : vector<11x96xf32>
    %52 = arith.mulf %46, %51 : vector<11x96xf32>
    %53 = arith.truncf %52 : vector<11x96xf32> to vector<11x96xbf16>
    %c0_30 = arith.constant 0 : index
    %c0_31 = arith.constant 0 : index
    %54 = vector.load %arg5[%c0_30, %c0_31] : memref<96x192xbf16, #tpu.memory_space<vmem>>, vector<96x192xbf16>
    %cst_32 = arith.constant dense<0.000000e+00> : vector<11x192xf32>
    %55 = tpu.matmul %53, %54, %cst_32 {dimension_numbers = #tpu.dot_dimension_numbers<[1], [0], [0], [1], [0, 0, 1, 1], [], []>} : vector<11x96xbf16>, vector<96x192xbf16>, vector<11x192xf32> -> vector<11x192xf32>
    %c0_33 = arith.constant 0 : index
    %c0_34 = arith.constant 0 : index
    %56 = vector.load %arg6[%c0_33, %c0_34] : memref<1x192xf32, #tpu.memory_space<vmem>>, vector<1x192xf32>
    %c0_35 = arith.constant 0 : index
    %c0_36 = arith.constant 0 : index
    %57 = vector.load %arg7[%c0_35, %c0_36] : memref<1x192xf32, #tpu.memory_space<vmem>>, vector<1x192xf32>
    %cst_37 = arith.constant dense<0.000000e+00> : vector<11xf32>
    %58 = vector.multi_reduction <add>, %55, %cst_37 [1] : vector<11x192xf32> to vector<11xf32>
    %59 = vector.shape_cast %58 : vector<11xf32> to vector<11x1xf32>
    %cst_38 = arith.constant 0.00520833349 : f32
    %60 = vector.broadcast %cst_38 : f32 to vector<11x1xf32>
    %61 = arith.mulf %59, %60 : vector<11x1xf32>
    %62 = arith.mulf %55, %55 : vector<11x192xf32>
    %cst_39 = arith.constant dense<0.000000e+00> : vector<11xf32>
    %63 = vector.multi_reduction <add>, %62, %cst_39 [1] : vector<11x192xf32> to vector<11xf32>
    %64 = vector.shape_cast %63 : vector<11xf32> to vector<11x1xf32>
    %cst_40 = arith.constant 0.00520833349 : f32
    %65 = vector.broadcast %cst_40 : f32 to vector<11x1xf32>
    %66 = arith.mulf %64, %65 : vector<11x1xf32>
    %67 = arith.mulf %61, %61 : vector<11x1xf32>
    %68 = arith.subf %66, %67 : vector<11x1xf32>
    %cst_41 = arith.constant 0.000000e+00 : f32
    %69 = vector.broadcast %cst_41 : f32 to vector<11x1xf32>
    %70 = arith.maximumf %68, %69 : vector<11x1xf32>
    %71 = vector.broadcast %61 : vector<11x1xf32> to vector<11x192xf32>
    %72 = arith.subf %55, %71 : vector<11x192xf32>
    %cst_42 = arith.constant 9.99999974E-6 : f32
    %73 = vector.broadcast %cst_42 : f32 to vector<11x1xf32>
    %74 = arith.addf %70, %73 : vector<11x1xf32>
    %75 = math.rsqrt %74 : vector<11x1xf32>
    %76 = vector.broadcast %75 : vector<11x1xf32> to vector<11x192xf32>
    %77 = vector.broadcast %56 : vector<1x192xf32> to vector<11x192xf32>
    %78 = arith.mulf %76, %77 : vector<11x192xf32>
    %79 = arith.mulf %72, %78 : vector<11x192xf32>
    %80 = vector.broadcast %57 : vector<1x192xf32> to vector<11x192xf32>
    %81 = arith.addf %79, %80 : vector<11x192xf32>
    %cst_43 = arith.constant 5.000000e-01 : f32
    %82 = vector.broadcast %cst_43 : f32 to vector<11x192xf32>
    %83 = arith.mulf %82, %81 : vector<11x192xf32>
    %cst_44 = arith.constant 0.707106769 : f32
    %84 = vector.broadcast %cst_44 : f32 to vector<11x192xf32>
    %85 = arith.mulf %81, %84 : vector<11x192xf32>
    %86 = math.erf %85 : vector<11x192xf32>
    %cst_45 = arith.constant 1.000000e+00 : f32
    %87 = vector.broadcast %cst_45 : f32 to vector<11x192xf32>
    %88 = arith.addf %87, %86 : vector<11x192xf32>
    %89 = arith.mulf %83, %88 : vector<11x192xf32>
    %90 = arith.truncf %89 : vector<11x192xf32> to vector<11x192xbf16>
    %c0_46 = arith.constant 0 : index
    %c0_47 = arith.constant 0 : index
    %91 = vector.load %arg8[%c0_46, %c0_47] : memref<192x384xbf16, #tpu.memory_space<vmem>>, vector<192x384xbf16>
    %cst_48 = arith.constant dense<0.000000e+00> : vector<11x384xf32>
    %92 = tpu.matmul %90, %91, %cst_48 {dimension_numbers = #tpu.dot_dimension_numbers<[1], [0], [0], [1], [0, 0, 1, 1], [], []>} : vector<11x192xbf16>, vector<192x384xbf16>, vector<11x384xf32> -> vector<11x384xf32>
    %c0_49 = arith.constant 0 : index
    %c0_50 = arith.constant 0 : index
    %93 = vector.load %arg9[%c0_49, %c0_50] : memref<1x384xf32, #tpu.memory_space<vmem>>, vector<1x384xf32>
    %94 = vector.broadcast %93 : vector<1x384xf32> to vector<11x384xf32>
    %95 = arith.addf %92, %94 : vector<11x384xf32>
    %cst_51 = arith.constant 0.000000e+00 : f32
    %96 = vector.broadcast %cst_51 : f32 to vector<16x384xf32>
    %c0_52 = arith.constant 0 : index
    %c0_53 = arith.constant 0 : index
    %97 = vector.load %arg10[%c0_52, %c0_53] : memref<16x384xf32, #tpu.memory_space<vmem>>, vector<16x384xf32>
    tpu.vector_store %arg10[%c0_52, %c0_53], %96 {strides = array<i32>} : memref<16x384xf32, #tpu.memory_space<vmem>>, vector<16x384xf32>,
    %c0_54 = arith.constant 0 : index
    %c0_55 = arith.constant 0 : index
    %98 = vector.load %arg10[%c0_54, %c0_55] : memref<16x384xf32, #tpu.memory_space<vmem>>, vector<11x384xf32>
    tpu.vector_store %arg10[%c0_54, %c0_55], %95 {strides = array<i32>} : memref<16x384xf32, #tpu.memory_space<vmem>>, vector<11x384xf32>,
    return
  }
  func.func @transform_0(%arg0: i32) -> (i32, i32) {
    %c0_i32 = arith.constant 0 : i32
    %c0_i32_0 = arith.constant 0 : i32
    return %arg0, %c0_i32 : i32, i32
  }
  func.func @transform_1(%arg0: i32) -> (i32, i32, i32) {
    %c0_i32 = arith.constant 0 : i32
    %c0_i32_0 = arith.constant 0 : i32
    %c0_i32_1 = arith.constant 0 : i32
    %c0_i32_2 = arith.constant 0 : i32
    return %c0_i32, %c0_i32_0, %c0_i32_1 : i32, i32, i32
  }
  func.func @transform_2(%arg0: i32) -> (i32, i32) {
    %c0_i32 = arith.constant 0 : i32
    %c0_i32_0 = arith.constant 0 : i32
    %c0_i32_1 = arith.constant 0 : i32
    return %c0_i32, %c0_i32_0 : i32, i32
  }
  func.func @transform_3(%arg0: i32) -> (i32, i32) {
    %c0_i32 = arith.constant 0 : i32
    %c0_i32_0 = arith.constant 0 : i32
    %c0_i32_1 = arith.constant 0 : i32
    return %c0_i32, %c0_i32_0 : i32, i32
  }
  func.func @transform_4(%arg0: i32) -> (i32, i32) {
    %c0_i32 = arith.constant 0 : i32
    %c0_i32_0 = arith.constant 0 : i32
    %c0_i32_1 = arith.constant 0 : i32
    return %c0_i32, %c0_i32_0 : i32, i32
  }
  func.func @transform_5(%arg0: i32) -> (i32, i32) {
    %c0_i32 = arith.constant 0 : i32
    %c0_i32_0 = arith.constant 0 : i32
    %c0_i32_1 = arith.constant 0 : i32
    return %c0_i32, %c0_i32_0 : i32, i32
  }
  func.func @transform_6(%arg0: i32) -> (i32, i32) {
    %c0_i32 = arith.constant 0 : i32
    %c0_i32_0 = arith.constant 0 : i32
    %c0_i32_1 = arith.constant 0 : i32
    return %c0_i32, %c0_i32_0 : i32, i32
  }
  func.func @transform_7(%arg0: i32) -> (i32, i32) {
    %c0_i32 = arith.constant 0 : i32
    %c0_i32_0 = arith.constant 0 : i32
    %c0_i32_1 = arith.constant 0 : i32
    return %c0_i32, %c0_i32_0 : i32, i32
  }
  func.func @transform_8(%arg0: i32) -> (i32, i32) {
    %c0_i32 = arith.constant 0 : i32
    %c0_i32_0 = arith.constant 0 : i32
    %c0_i32_1 = arith.constant 0 : i32
    return %c0_i32, %c0_i32_0 : i32, i32
  }
  func.func @transform_9(%arg0: i32) -> (i32, i32) {
    %c0_i32 = arith.constant 0 : i32
    %c0_i32_0 = arith.constant 0 : i32
    return %arg0, %c0_i32 : i32, i32
  }
}

</mosaic_0001>

<llo_original>
// kernel: encoder_forward.2
$region0: #{encoder_forward.2}
  #allocation0 [shape = 'u32[]', space=smem, size = 0x4, offset = 0x4, fixed_abs, tag = 'smem constant byte address 0x4 - core index']
  #allocation1 [shape = 'u32[144,128]{1,0:T(1,128)}', space=vmem, size = 0x12000, scoped, tag = 'internal scratch']
  %s0 = inlined_call_operand.vmem [shape: bf16[512,48], index: 0, kind: input, shape index: {}]
  %s1 = inlined_call_operand.vmem [shape: bf16[48,128], index: 1, kind: input, shape index: {}]
  %s2 = inlined_call_operand.vmem [shape: f32[1,128], index: 2, kind: input, shape index: {}]
  %s3 = inlined_call_operand.vmem [shape: f32[1,128], index: 3, kind: input, shape index: {}]
  %s4 = inlined_call_operand.vmem [shape: f32[1,128], index: 4, kind: input, shape index: {}]
  %s5 = inlined_call_operand.vmem [shape: bf16[512,128], index: 5, kind: output, shape index: {}]
  %s6 = sld [smem:[#allocation0]]
  $region53: #{encoder_forward.2} parent=0
    _
  %s8 = ssub.s32 1, %s6
  %s9 = scalar_select 0, %s8, %s6
  loop: start=0, step=1, limit=4
  $region2: #{encoder_forward.2} parent=0 // loop_pre_header
    _
  $region3: #{encoder_forward.2} parent=0 // loop_header
    %s11 = sphi 0, %s15
    %p12 = scmp.ge.s32.totalorder %s11, 4
    %s21 = sphi 0, %s23
    %s24 = sphi 0, %s21
    %s25 = sphi 0, %s24
    %s41 = sphi 0, %s25
    %s45 = sphi 0, %s45
    %s47 = sphi 0, %s45
    %s48 = sphi 0, %s47
    %s62 = sphi 0, %s48
    %s66 = sphi 0, %s66
    %s68 = sphi 0, %s66
    %s69 = sphi 0, %s68
    %s83 = sphi 0, %s69
    %s87 = sphi 0, %s87
    %s89 = sphi 0, %s87
    %s90 = sphi 0, %s89
    %s104 = sphi 0, %s90
    %s108 = sphi 0, %s108
    %s110 = sphi 0, %s108
    %s111 = sphi 0, %s110
    %s125 = sphi 0, %s111
    %s131 = sphi 0, %s133
    %s134 = sphi 0, %s131
    %s135 = sphi 0, %s134
    %s151 = sphi 0, %s135
  $region4: #{encoder_forward.2} parent=0 // loop_header_branch
    %14 = sbr.rel (%p12) target = $region8
  $region5: #{encoder_forward.2} parent=0 // loop_body
    %s16 = ssub.s32 %s11, 1
    %s17 = ssub.s32 %s11, 2
    %s18 = sadd.s32 %s11, 1
    %s19 = ssub.s32 %s11, %s18
    %p20 = scmp.eq.s32.totalorder %s19, 0
    %s22 = sadd.s32 %s21, 1
    %s23 = scalar_select %p20, %s21, %s22
    %p26 = pneg %p20
    %p27 = scmp.eq.s32.totalorder %s11, 1
    %p28 = por %p26, %p27
    %p29 = scmp.ne.s32.totalorder %s21, %s24
    %p30 = scmp.eq.s32.totalorder %s11, 0
    %p31 = por %p29, %p30
    %p32 = scmp.ne.s32.totalorder %s21, %s24
    %p33 = scmp.eq.s32.totalorder %s16, 1
    %p34 = por %p32, %p33
    %p35 = scmp.ne.s32.totalorder %s24, %s25
    %p36 = scmp.eq.s32.totalorder %s16, 0
    %p37 = por %p35, %p36
    %p38 = scmp.ne.s32.totalorder %s24, %s25
    %p39 = scmp.eq.s32.totalorder %s17, 1
    %p40 = por %p38, %p39
    %p42 = scmp.ne.s32.totalorder %s25, %s41
    %p43 = scmp.eq.s32.totalorder %s17, 0
    %p44 = por %p42, %p43
    %s46 = sadd.s32 %s45, 1
    %p49 = scmp.eq.s32.totalorder %s11, 1
    %p50 = scmp.ne.s32.totalorder %s45, %s47
    %p51 = scmp.eq.s32.totalorder %s11, 0
    %p52 = por %p50, %p51
    %p53 = scmp.ne.s32.totalorder %s45, %s47
    %p54 = scmp.eq.s32.totalorder %s16, 1
    %p55 = por %p53, %p54
    %p56 = scmp.ne.s32.totalorder %s47, %s48
    %p57 = scmp.eq.s32.totalorder %s16, 0
    %p58 = por %p56, %p57
    %p59 = scmp.ne.s32.totalorder %s47, %s48
    %p60 = scmp.eq.s32.totalorder %s17, 1
    %p61 = por %p59, %p60
    %p63 = scmp.ne.s32.totalorder %s48, %s62
    %p64 = scmp.eq.s32.totalorder %s17, 0
    %p65 = por %p63, %p64
    %s67 = sadd.s32 %s66, 1
    %p70 = scmp.eq.s32.totalorder %s11, 1
    %p71 = scmp.ne.s32.totalorder %s66, %s68
    %p72 = scmp.eq.s32.totalorder %s11, 0
    %p73 = por %p71, %p72
    %p74 = scmp.ne.s32.totalorder %s66, %s68
    %p75 = scmp.eq.s32.totalorder %s16, 1
    %p76 = por %p74, %p75
    %p77 = scmp.ne.s32.totalorder %s68, %s69
    %p78 = scmp.eq.s32.totalorder %s16, 0
    %p79 = por %p77, %p78
    %p80 = scmp.ne.s32.totalorder %s68, %s69
    %p81 = scmp.eq.s32.totalorder %s17, 1
    %p82 = por %p80, %p81
    %p84 = scmp.ne.s32.totalorder %s69, %s83
    %p85 = scmp.eq.s32.totalorder %s17, 0
    %p86 = por %p84, %p85
    %s88 = sadd.s32 %s87, 1
    %p91 = scmp.eq.s32.totalorder %s11, 1
    %p92 = scmp.ne.s32.totalorder %s87, %s89
    %p93 = scmp.eq.s32.totalorder %s11, 0
    %p94 = por %p92, %p93
    %p95 = scmp.ne.s32.totalorder %s87, %s89
    %p96 = scmp.eq.s32.totalorder %s16, 1
    %p97 = por %p95, %p96
    %p98 = scmp.ne.s32.totalorder %s89, %s90
    %p99 = scmp.eq.s32.totalorder %s16, 0
    %p100 = por %p98, %p99
    %p101 = scmp.ne.s32.totalorder %s89, %s90
    %p102 = scmp.eq.s32.totalorder %s17, 1
    %p103 = por %p101, %p102
    %p105 = scmp.ne.s32.totalorder %s90, %s104
    %p106 = scmp.eq.s32.totalorder %s17, 0
    %p107 = por %p105, %p106
    %s109 = sadd.s32 %s108, 1
    %p112 = scmp.eq.s32.totalorder %s11, 1
    %p113 = scmp.ne.s32.totalorder %s108, %s110
    %p114 = scmp.eq.s32.totalorder %s11, 0
    %p115 = por %p113, %p114
    %p116 = scmp.ne.s32.totalorder %s108, %s110
    %p117 = scmp.eq.s32.totalorder %s16, 1
    %p118 = por %p116, %p117
    %p119 = scmp.ne.s32.totalorder %s110, %s111
    %p120 = scmp.eq.s32.totalorder %s16, 0
    %p121 = por %p119, %p120
    %p122 = scmp.ne.s32.totalorder %s110, %s111
    %p123 = scmp.eq.s32.totalorder %s17, 1
    %p124 = por %p122, %p123
    %p126 = scmp.ne.s32.totalorder %s111, %s125
    %p127 = scmp.eq.s32.totalorder %s17, 0
    %p128 = por %p126, %p127
    %s129 = ssub.s32 %s11, %s18
    %p130 = scmp.eq.s32.totalorder %s129, 0
    %s132 = sadd.s32 %s131, 1
    %s133 = scalar_select %p130, %s131, %s132
    %p136 = pneg %p130
    %p137 = scmp.eq.s32.totalorder %s11, 1
    %p138 = por %p136, %p137
    %p139 = scmp.ne.s32.totalorder %s131, %s134
    %p140 = scmp.eq.s32.totalorder %s11, 0
    %p141 = por %p139, %p140
    %p142 = scmp.ne.s32.totalorder %s131, %s134
    %p143 = scmp.eq.s32.totalorder %s16, 1
    %p144 = por %p142, %p143
    %p145 = scmp.ne.s32.totalorder %s134, %s135
    %p146 = scmp.eq.s32.totalorder %s16, 0
    %p147 = por %p145, %p146
    %p148 = scmp.ne.s32.totalorder %s134, %s135
    %p149 = scmp.eq.s32.totalorder %s17, 1
    %p150 = por %p148, %p149
    %p152 = scmp.ne.s32.totalorder %s135, %s151
    %p153 = scmp.eq.s32.totalorder %s17, 0
    %p154 = por %p152, %p153
    %p155 = scmp.le.s32.totalorder 1, %s11
    %p156 = scmp.lt.s32.totalorder %s11, 3
    %p157 = pnand %p155, %p156
    %p158 = pneg %p157
    // Predicated region
    $region9: #{encoder_forward.2} parent=5 // pred_check
      _
    $region10: #{encoder_forward.2} parent=5 // pred_check_branch
      %160 = sbr.rel (%p157) target = $region12
    $region11: #{encoder_forward.2} parent=5 // pred_region
      %s161 = ssub.s32 %s11, 1
      // Predicated region
      $region13: #{encoder_forward.2} parent=11 // pred_check
        %p162 = pneg %p58
      $region14: #{encoder_forward.2} parent=11 // pred_check_branch
        %164 = sbr.rel (%p162) target = $region16
      $region15: #{encoder_forward.2} parent=11 // pred_region
        _
      $region16: #{encoder_forward.2} parent=11 // pred_fallthru
        _
      // Predicated region
      $region17: #{encoder_forward.2} parent=11 // pred_check
        %p165 = pneg %p79
      $region18: #{encoder_forward.2} parent=11 // pred_check_branch
        %167 = sbr.rel (%p165) target = $region20
      $region19: #{encoder_forward.2} parent=11 // pred_region
        _
      $region20: #{encoder_forward.2} parent=11 // pred_fallthru
        _
      // Predicated region
      $region21: #{encoder_forward.2} parent=11 // pred_check
        %p168 = pneg %p100
      $region22: #{encoder_forward.2} parent=11 // pred_check_branch
        %170 = sbr.rel (%p168) target = $region24
      $region23: #{encoder_forward.2} parent=11 // pred_region
        _
      $region24: #{encoder_forward.2} parent=11 // pred_fallthru
        _
      // Predicated region
      $region25: #{encoder_forward.2} parent=11 // pred_check
        %p171 = pneg %p121
      $region26: #{encoder_forward.2} parent=11 // pred_check_branch
        %173 = sbr.rel (%p171) target = $region28
      $region27: #{encoder_forward.2} parent=11 // pred_region
        _
      $region28: #{encoder_forward.2} parent=11 // pred_fallthru
        _
    $region12: #{encoder_forward.2} parent=5 // pred_fallthru
      _
    %p174 = scmp.lt.s32.totalorder %s11, 2
    // Predicated region
    $region29: #{encoder_forward.2} parent=5 // pred_check
      %p175 = pneg %p174
    $region30: #{encoder_forward.2} parent=5 // pred_check_branch
      %177 = sbr.rel (%p175) target = $region32
    $region31: #{encoder_forward.2} parent=5 // pred_region
      // Predicated region
      $region33: #{encoder_forward.2} parent=31 // pred_check
        %p178 = pneg %p31
      $region34: #{encoder_forward.2} parent=31 // pred_check_branch
        %180 = sbr.rel (%p178) target = $region36
      $region35: #{encoder_forward.2} parent=31 // pred_region
        %s181 = smul.u32 32, %s11
        %p182 = scmp.lt.s32.totalorder %s181, 63
        %s183 = scalar_select %p182, %s181, 63
        %s184 = smul.addr %s183, 4
        %s185 = scalar_lea.vmem %s0, %s184
        %s186 = smul.u32 32, %s11
      $region36: #{encoder_forward.2} parent=31 // pred_fallthru
        _
    $region32: #{encoder_forward.2} parent=5 // pred_fallthru
      _
    %p187 = scmp.le.s32.totalorder 1, %s11
    %p188 = scmp.lt.s32.totalorder %s11, 3
    %p189 = pnand %p187, %p188
    %p190 = pneg %p189
    // Predicated region
    $region37: #{encoder_forward.2} parent=5 // pred_check
      _
    $region38: #{encoder_forward.2} parent=5 // pred_check_branch
      %192 = sbr.rel (%p189) target = $region40
    $region39: #{encoder_forward.2} parent=5 // pred_region
      %s193 = ssub.s32 %s11, 1
      %s194 = smul.u32 32, %s16
      %p195 = scmp.lt.s32.totalorder %s194, 63
      %s196 = scalar_select %p195, %s194, 63
      %s197 = smul.addr %s196, 4
      %s198 = scalar_lea.vmem %s0, %s197
      %p199 = pneg %p37
      %p200 = pneg %p34
      %p201 = pneg %p58
      %p202 = pneg %p55
      %p203 = pneg %p79
      %p204 = pneg %p76
      %p205 = pneg %p100
      %p206 = pneg %p97
      %p207 = pneg %p121
      %p208 = pneg %p118
      %p209 = pneg %p147
      %p210 = pneg %p144
      %s211 = smul.u32 32, %s16
      %p212 = scmp.lt.s32.totalorder %s211, 63
      %s213 = scalar_select %p212, %s211, 63
      %s214 = smul.addr %s213, 4
      %s215 = scalar_lea.vmem %s5, %s214
      %s216 = smul.u32 32, %s16
      %p217 = scmp.lt.s32.totalorder %s216, 63
      %s218 = scalar_select %p217, %s216, 63
      %s219 = smul.addr %s218, 4
      %s220 = scalar_lea.vmem %s0, %s219
      %s221 = smul.u32 32, %s16
      %s222 = smul.u32 32, %s16
      %p223 = scmp.lt.s32.totalorder %s222, 63
      %s224 = scalar_select %p223, %s222, 63
      %s225 = smul.addr %s224, 4
      %s226 = scalar_lea.vmem %s5, %s225
      %s227 = smul.u32 32, %s16
      %v229 = vld [vmem:[%s220] sm:$0xf]
      %v230 = vld [vmem:[%s220 + $0x4] sm:$0xf]
      %v231 = vld [vmem:[%s220 + $0x8] sm:$0xf]
      %v232 = vld [vmem:[%s220 + $0xc] sm:$0xf]
      %v233 = vld [vmem:[%s220 + $0x10] sm:$0xf]
      %v234 = vld [vmem:[%s220 + $0x14] sm:$0xf]
      %v235 = vld [vmem:[%s220 + $0x18] sm:$0xf]
      %v236 = vld [vmem:[%s220 + $0x1c] sm:$0xf]
      %v237 = vld [vmem:[%s220 + $0x20] sm:$0xf]
      %v238 = vld [vmem:[%s220 + $0x24] sm:$0xf]
      %v239 = vld [vmem:[%s220 + $0x28] sm:$0xf]
      %v240 = vld [vmem:[%s220 + $0x2c] sm:$0xf]
      %v241 = vld [vmem:[%s220 + $0x30] sm:$0xf]
      %v242 = vld [vmem:[%s220 + $0x34] sm:$0xf]
      %v243 = vld [vmem:[%s220 + $0x38] sm:$0xf]
      %v244 = vld [vmem:[%s220 + $0x3c] sm:$0xf]
      %v245 = vld [vmem:[%s220 + $0x40] sm:$0xf]
      %v246 = vld [vmem:[%s220 + $0x44] sm:$0xf]
      %v247 = vld [vmem:[%s220 + $0x48] sm:$0xf]
      %v248 = vld [vmem:[%s220 + $0x4c] sm:$0xf]
      %v249 = vld [vmem:[%s220 + $0x50] sm:$0xf]
      %v250 = vld [vmem:[%s220 + $0x54] sm:$0xf]
      %v251 = vld [vmem:[%s220 + $0x58] sm:$0xf]
      %v252 = vld [vmem:[%s220 + $0x5c] sm:$0xf]
      %v253 = vld [vmem:[%s220 + $0x60] sm:$0xf]
      %v254 = vld [vmem:[%s220 + $0x64] sm:$0xf]
      %v255 = vld [vmem:[%s220 + $0x68] sm:$0xf]
      %v256 = vld [vmem:[%s220 + $0x6c] sm:$0xf]
      %v257 = vld [vmem:[%s220 + $0x70] sm:$0xf]
      %v258 = vld [vmem:[%s220 + $0x74] sm:$0xf]
      %v259 = vld [vmem:[%s220 + $0x78] sm:$0xf]
      %v260 = vld [vmem:[%s220 + $0x7c] sm:$0xf]
      %v261 = vld [vmem:[%s1] sm:$0xf]
      %v262 = vld [vmem:[%s1 + $0x4] sm:$0xf]
      %v263 = vld [vmem:[%s1 + $0x8] sm:$0xf]
      %v264 = vld [vmem:[%s1 + $0xc] sm:$0xf]
      %v265 = vld [vmem:[%s1 + $0x10] sm:$0xf]
      %v266 = vld [vmem:[%s1 + $0x14] sm:$0xf]
      %v267 = vld [vmem:[%s2] sm:$0x1]
      %v269 = vlaneseq
      %v270 = vshrl.u32 %v269, 7
      %v271 = vsub.s32 0, %v270
      %v272 = vrot.slane %v267, %v271
      %v306 = vunpack.c.l.b16 %v229
      %v307 = vunpack.c.l.b16 %v230
      %v308 = vunpack.c.l.b16 %v231
      %v309 = vunpack.c.l.b16 %v232
      %v310 = vunpack.c.l.b16 %v233
      %v311 = vunpack.c.l.b16 %v234
      %v312 = vunpack.c.l.b16 %v235
      %v313 = vunpack.c.l.b16 %v236
      %v314 = vunpack.c.l.b16 %v237
      %v315 = vunpack.c.l.b16 %v238
      %v316 = vunpack.c.l.b16 %v239
      %v317 = vunpack.c.l.b16 %v240
      %v318 = vunpack.c.l.b16 %v241
      %v319 = vunpack.c.l.b16 %v242
      %v320 = vunpack.c.l.b16 %v243
      %v321 = vunpack.c.l.b16 %v244
      %v322 = vunpack.c.l.b16 %v245
      %v323 = vunpack.c.l.b16 %v246
      %v324 = vunpack.c.l.b16 %v247
      %v325 = vunpack.c.l.b16 %v248
      %v326 = vunpack.c.l.b16 %v249
      %v327 = vunpack.c.l.b16 %v250
      %v328 = vunpack.c.l.b16 %v251
      %v329 = vunpack.c.l.b16 %v252
      %v330 = vunpack.c.l.b16 %v253
      %v331 = vunpack.c.l.b16 %v254
      %v332 = vunpack.c.l.b16 %v255
      %v333 = vunpack.c.l.b16 %v256
      %v334 = vunpack.c.l.b16 %v257
      %v335 = vunpack.c.l.b16 %v258
      %v336 = vunpack.c.l.b16 %v259
      %v337 = vunpack.c.l.b16 %v260
      %v338 = vpack.c.b16 %v307, %v306
      %v339 = vpack.c.b16 %v309, %v308
      %v340 = vpack.c.b16 %v311, %v310
      %v341 = vpack.c.b16 %v313, %v312
      %v342 = vpack.c.b16 %v315, %v314
      %v343 = vpack.c.b16 %v317, %v316
      %v344 = vpack.c.b16 %v319, %v318
      %v345 = vpack.c.b16 %v321, %v320
      %v346 = vpack.c.b16 %v323, %v322
      %v347 = vpack.c.b16 %v325, %v324
      %v348 = vpack.c.b16 %v327, %v326
      %v349 = vpack.c.b16 %v329, %v328
      %v350 = vpack.c.b16 %v331, %v330
      %v351 = vpack.c.b16 %v333, %v332
      %v352 = vpack.c.b16 %v335, %v334
      %v353 = vpack.c.b16 %v337, %v336
      %v360 = vunpack.c.l.b16 %v261
      %v361 = vunpack.c.l.b16 %v262
      %v362 = vunpack.c.l.b16 %v263
      %v363 = vunpack.c.l.b16 %v264
      %v364 = vunpack.c.l.b16 %v265
      %v365 = vunpack.c.l.b16 %v266
      %v366 = vpack.c.b16 %v361, %v360
      %v367 = vpack.c.b16 %v363, %v362
      %v368 = vpack.c.b16 %v365, %v364
      %vm372 = vcmask 392192
      %v374 = vsel %vm372, %v338, 0
      %v377 = vsel %vm372, %v339, 0
      %v380 = vsel %vm372, %v340, 0
      %v383 = vsel %vm372, %v341, 0
      %v386 = vsel %vm372, %v342, 0
      %v389 = vsel %vm372, %v343, 0
      %v392 = vsel %vm372, %v344, 0
      %v395 = vsel %vm372, %v345, 0
      %v398 = vsel %vm372, %v346, 0
      %v401 = vsel %vm372, %v347, 0
      %v404 = vsel %vm372, %v348, 0
      %v407 = vsel %vm372, %v349, 0
      %v410 = vsel %vm372, %v350, 0
      %v413 = vsel %vm372, %v351, 0
      %v416 = vsel %vm372, %v352, 0
      %v419 = vsel %vm372, %v353, 0
      %421 = vmatprep.subr.bf16.mxu0 0
      %422 = vmatpush1.bf16.msra.mxu0 %v366
      %423 = vmatprep.subr.bf16.mxu0 0
      %424 = vmatpush1.bf16.msra.mxu0 %v367
      %425 = vmatprep.subr.bf16.mxu0 0
      %426 = vmatpush1.bf16.msra.mxu0 %v368
      %427 = vmatprep.subr.bf16.mxu0 0
      %428 = vmatpush1.bf16.msra.mxu0 0
      %429 = vmatprep.subr.bf16.mxu0 0
      %430 = vmatpush1.bf16.msra.mxu0 0
      %431 = vmatprep.subr.bf16.mxu0 0
      %432 = vmatpush1.bf16.msra.mxu0 0
      %433 = vmatprep.subr.bf16.mxu0 0
      %434 = vmatpush1.bf16.msra.mxu0 0
      %435 = vmatprep.subr.bf16.mxu0 0
      %436 = vmatpush1.bf16.msra.mxu0 0
      %437 = vmatprep.subr.bf16.mxu0 0
      %438 = vmatpush1.bf16.msra.mxu0 0
      %439 = vmatprep.subr.bf16.mxu0 0
      %440 = vmatpush1.bf16.msra.mxu0 0
      %441 = vmatprep.subr.bf16.mxu0 0
      %442 = vmatpush1.bf16.msra.mxu0 0
      %443 = vmatprep.subr.bf16.mxu0 0
      %444 = vmatpush1.bf16.msra.mxu0 0
      %445 = vmatprep.subr.bf16.mxu0 0
      %446 = vmatpush1.bf16.msra.mxu0 0
      %447 = vmatprep.subr.bf16.mxu0 0
      %448 = vmatpush1.bf16.msra.mxu0 0
      %449 = vmatprep.subr.bf16.mxu0 0
      %450 = vmatpush1.bf16.msra.mxu0 0
      %451 = vmatprep.subr.bf16.mxu0 0
      %452 = vmatpush1.bf16.msra.mxu0 0
      %453 = vmatprep.mubr.bf16.mxu0 0
      %454 = vmatmul.mubr.bf16.gmra.mrb[0].mxu0 %v374
      %v455 = vpop.f32.mrb[0].mxu0
      %v456 = vadd.f32 %v272, %v455
      %v457 = vpop.f32.mrb[0].mxu0
      %v458 = vpop.f32.mrb[0].mxu0
      %v459 = vadd.f32 %v272, %v458
      %v460 = vpop.f32.mrb[0].mxu0
      %461 = vmatprep.mubr.bf16.mxu0 0
      %462 = vmatmul.mubr.bf16.gmra.mrb[0].mxu0 %v377
      %v463 = vpop.f32.mrb[0].mxu0
      %v464 = vadd.f32 %v272, %v463
      %v465 = vpop.f32.mrb[0].mxu0
      %v466 = vpop.f32.mrb[0].mxu0
      %v467 = vadd.f32 %v272, %v466
      %v468 = vpop.f32.mrb[0].mxu0
      %469 = vmatprep.mubr.bf16.mxu0 0
      %470 = vmatmul.mubr.bf16.gmra.mrb[0].mxu0 %v380
      %v471 = vpop.f32.mrb[0].mxu0
      %v472 = vadd.f32 %v272, %v471
      %v473 = vpop.f32.mrb[0].mxu0
      %v474 = vpop.f32.mrb[0].mxu0
      %v475 = vadd.f32 %v272, %v474
      %v476 = vpop.f32.mrb[0].mxu0
      %477 = vmatprep.mubr.bf16.mxu0 0
      %478 = vmatmul.mubr.bf16.gmra.mrb[0].mxu0 %v383
      %v479 = vpop.f32.mrb[0].mxu0
      %v480 = vadd.f32 %v272, %v479
      %v481 = vpop.f32.mrb[0].mxu0
      %v482 = vpop.f32.mrb[0].mxu0
      %v483 = vadd.f32 %v272, %v482
      %v484 = vpop.f32.mrb[0].mxu0
      %485 = vmatprep.mubr.bf16.mxu0 0
      %486 = vmatmul.mubr.bf16.gmra.mrb[0].mxu0 %v386
      %v487 = vpop.f32.mrb[0].mxu0
      %v488 = vadd.f32 %v272, %v487
      %v489 = vpop.f32.mrb[0].mxu0
      %v490 = vpop.f32.mrb[0].mxu0
      %v491 = vadd.f32 %v272, %v490
      %v492 = vpop.f32.mrb[0].mxu0
      %493 = vmatprep.mubr.bf16.mxu0 0
      %494 = vmatmul.mubr.bf16.gmra.mrb[0].mxu0 %v389
      %v495 = vpop.f32.mrb[0].mxu0
      %v496 = vadd.f32 %v272, %v495
      %v497 = vpop.f32.mrb[0].mxu0
      %v498 = vpop.f32.mrb[0].mxu0
      %v499 = vadd.f32 %v272, %v498
      %v500 = vpop.f32.mrb[0].mxu0
      %501 = vmatprep.mubr.bf16.mxu0 0
      %502 = vmatmul.mubr.bf16.gmra.mrb[0].mxu0 %v392
      %v503 = vpop.f32.mrb[0].mxu0
      %v504 = vadd.f32 %v272, %v503
      %v505 = vpop.f32.mrb[0].mxu0
      %v506 = vpop.f32.mrb[0].mxu0
      %v507 = vadd.f32 %v272, %v506
      %v508 = vpop.f32.mrb[0].mxu0
      %509 = vmatprep.mubr.bf16.mxu0 0
      %510 = vmatmul.mubr.bf16.gmra.mrb[0].mxu0 %v395
      %v511 = vpop.f32.mrb[0].mxu0
      %v512 = vadd.f32 %v272, %v511
      %v513 = vpop.f32.mrb[0].mxu0
      %v514 = vpop.f32.mrb[0].mxu0
      %v515 = vadd.f32 %v272, %v514
      %v516 = vpop.f32.mrb[0].mxu0
      %517 = vmatprep.mubr.bf16.mxu0 0
      %518 = vmatmul.mubr.bf16.gmra.mrb[0].mxu0 %v398
      %v519 = vpop.f32.mrb[0].mxu0
      %v520 = vadd.f32 %v272, %v519
      %v521 = vpop.f32.mrb[0].mxu0
      %v522 = vpop.f32.mrb[0].mxu0
      %v523 = vadd.f32 %v272, %v522
      %v524 = vpop.f32.mrb[0].mxu0
      %525 = vmatprep.mubr.bf16.mxu0 0
      %526 = vmatmul.mubr.bf16.gmra.mrb[0].mxu0 %v401
      %v527 = vpop.f32.mrb[0].mxu0
      %v528 = vadd.f32 %v272, %v527
      %v529 = vpop.f32.mrb[0].mxu0
      %v530 = vpop.f32.mrb[0].mxu0
      %v531 = vadd.f32 %v272, %v530
      %v532 = vpop.f32.mrb[0].mxu0
      %533 = vmatprep.mubr.bf16.mxu0 0
      %534 = vmatmul.mubr.bf16.gmra.mrb[0].mxu0 %v404
      %v535 = vpop.f32.mrb[0].mxu0
      %v536 = vadd.f32 %v272, %v535
      %v537 = vpop.f32.mrb[0].mxu0
      %v538 = vpop.f32.mrb[0].mxu0
      %v539 = vadd.f32 %v272, %v538
      %v540 = vpop.f32.mrb[0].mxu0
      %541 = vmatprep.mubr.bf16.mxu0 0
      %542 = vmatmul.mubr.bf16.gmra.mrb[0].mxu0 %v407
      %v543 = vpop.f32.mrb[0].mxu0
      %v544 = vadd.f32 %v272, %v543
      %v545 = vpop.f32.mrb[0].mxu0
      %v546 = vpop.f32.mrb[0].mxu0
      %v547 = vadd.f32 %v272, %v546
      %v548 = vpop.f32.mrb[0].mxu0
      %549 = vmatprep.mubr.bf16.mxu0 0
      %550 = vmatmul.mubr.bf16.gmra.mrb[0].mxu0 %v410
      %v551 = vpop.f32.mrb[0].mxu0
      %v552 = vadd.f32 %v272, %v551
      %v553 = vpop.f32.mrb[0].mxu0
      %v554 = vpop.f32.mrb[0].mxu0
      %v555 = vadd.f32 %v272, %v554
      %v556 = vpop.f32.mrb[0].mxu0
      %557 = vmatprep.mubr.bf16.mxu0 0
      %558 = vmatmul.mubr.bf16.gmra.mrb[0].mxu0 %v413
      %v559 = vpop.f32.mrb[0].mxu0
      %v560 = vadd.f32 %v272, %v559
      %v561 = vpop.f32.mrb[0].mxu0
      %v562 = vpop.f32.mrb[0].mxu0
      %v563 = vadd.f32 %v272, %v562
      %v564 = vpop.f32.mrb[0].mxu0
      %565 = vmatprep.mubr.bf16.mxu0 0
      %566 = vmatmul.mubr.bf16.gmra.mrb[0].mxu0 %v416
      %v567 = vpop.f32.mrb[0].mxu0
      %v568 = vadd.f32 %v272, %v567
      %v569 = vpop.f32.mrb[0].mxu0
      %v570 = vpop.f32.mrb[0].mxu0
      %v571 = vadd.f32 %v272, %v570
      %v572 = vpop.f32.mrb[0].mxu0
      %573 = vmatprep.mubr.bf16.mxu0 0
      %574 = vmatmul.mubr.bf16.gmra.mrb[0].mxu0 %v419
      %v575 = vpop.f32.mrb[0].mxu0
      %v576 = vadd.f32 %v272, %v575
      %v577 = vpop.f32.mrb[0].mxu0
      %v578 = vpop.f32.mrb[0].mxu0
      %v579 = vadd.f32 %v272, %v578
      %v580 = vpop.f32.mrb[0].mxu0
      %581 = vdwg.mxu0
      %v582 = vld [vmem:[%s3] sm:$0x1]
      %v583 = vld [vmem:[%s4] sm:$0x1]
      %584 = vadd.xlane.f32.xlu0 %v456
      %v585 = vpop.xlane.xlu0 %584
      %586 = vadd.xlane.f32.xlu0 %v459
      %v587 = vpop.xlane.xlu0 %586
      %588 = vadd.xlane.f32.xlu0 %v464
      %v589 = vpop.xlane.xlu0 %588
      %590 = vadd.xlane.f32.xlu0 %v467
      %v591 = vpop.xlane.xlu0 %590
      %592 = vadd.xlane.f32.xlu0 %v472
      %v593 = vpop.xlane.xlu0 %592
      %594 = vadd.xlane.f32.xlu0 %v475
      %v595 = vpop.xlane.xlu0 %594
      %596 = vadd.xlane.f32.xlu0 %v480
      %v597 = vpop.xlane.xlu0 %596
      %598 = vadd.xlane.f32.xlu0 %v483
      %v599 = vpop.xlane.xlu0 %598
      %600 = vadd.xlane.f32.xlu0 %v488
      %v601 = vpop.xlane.xlu0 %600
      %602 = vadd.xlane.f32.xlu0 %v491
      %v603 = vpop.xlane.xlu0 %602
      %604 = vadd.xlane.f32.xlu0 %v496
      %v605 = vpop.xlane.xlu0 %604
      %606 = vadd.xlane.f32.xlu0 %v499
      %v607 = vpop.xlane.xlu0 %606
      %608 = vadd.xlane.f32.xlu0 %v504
      %v609 = vpop.xlane.xlu0 %608
      %610 = vadd.xlane.f32.xlu0 %v507
      %v611 = vpop.xlane.xlu0 %610
      %612 = vadd.xlane.f32.xlu0 %v512
      %v613 = vpop.xlane.xlu0 %612
      %614 = vadd.xlane.f32.xlu0 %v515
      %v615 = vpop.xlane.xlu0 %614
      %616 = vadd.xlane.f32.xlu0 %v520
      %v617 = vpop.xlane.xlu0 %616
      %618 = vadd.xlane.f32.xlu0 %v523
      %v619 = vpop.xlane.xlu0 %618
      %620 = vadd.xlane.f32.xlu0 %v528
      %v621 = vpop.xlane.xlu0 %620
      %622 = vadd.xlane.f32.xlu0 %v531
      %v623 = vpop.xlane.xlu0 %622
      %624 = vadd.xlane.f32.xlu0 %v536
      %v625 = vpop.xlane.xlu0 %624
      %626 = vadd.xlane.f32.xlu0 %v539
      %v627 = vpop.xlane.xlu0 %626
      %628 = vadd.xlane.f32.xlu0 %v544
      %v629 = vpop.xlane.xlu0 %628
      %630 = vadd.xlane.f32.xlu0 %v547
      %v631 = vpop.xlane.xlu0 %630
      %632 = vadd.xlane.f32.xlu0 %v552
      %v633 = vpop.xlane.xlu0 %632
      %634 = vadd.xlane.f32.xlu0 %v555
      %v635 = vpop.xlane.xlu0 %634
      %636 = vadd.xlane.f32.xlu0 %v560
      %v637 = vpop.xlane.xlu0 %636
      %638 = vadd.xlane.f32.xlu0 %v563
      %v639 = vpop.xlane.xlu0 %638
      %640 = vadd.xlane.f32.xlu0 %v568
      %v641 = vpop.xlane.xlu0 %640
      %642 = vadd.xlane.f32.xlu0 %v571
      %v643 = vpop.xlane.xlu0 %642
      %644 = vadd.xlane.f32.xlu0 %v576
      %v645 = vpop.xlane.xlu0 %644
      %646 = vadd.xlane.f32.xlu0 %v579
      %v647 = vpop.xlane.xlu0 %646
      %v648 = vmul.f32 %v585, 0.010416667
      %v649 = vmul.f32 %v587, 0.010416667
      %v650 = vmul.f32 %v589, 0.010416667
      %v651 = vmul.f32 %v591, 0.010416667
      %v652 = vmul.f32 %v593, 0.010416667
      %v653 = vmul.f32 %v595, 0.010416667
      %v654 = vmul.f32 %v597, 0.010416667
      %v655 = vmul.f32 %v599, 0.010416667
      %v656 = vmul.f32 %v601, 0.010416667
      %v657 = vmul.f32 %v603, 0.010416667
      %v658 = vmul.f32 %v605, 0.010416667
      %v659 = vmul.f32 %v607, 0.010416667
      %v660 = vmul.f32 %v609, 0.010416667
      %v661 = vmul.f32 %v611, 0.010416667
      %v662 = vmul.f32 %v613, 0.010416667
      %v663 = vmul.f32 %v615, 0.010416667
      %v664 = vmul.f32 %v617, 0.010416667
      %v665 = vmul.f32 %v619, 0.010416667
      %v666 = vmul.f32 %v621, 0.010416667
      %v667 = vmul.f32 %v623, 0.010416667
      %v668 = vmul.f32 %v625, 0.010416667
      %v669 = vmul.f32 %v627, 0.010416667
      %v670 = vmul.f32 %v629, 0.010416667
      %v671 = vmul.f32 %v631, 0.010416667
      %v672 = vmul.f32 %v633, 0.010416667
      %v673 = vmul.f32 %v635, 0.010416667
      %v674 = vmul.f32 %v637, 0.010416667
      %v675 = vmul.f32 %v639, 0.010416667
      %v676 = vmul.f32 %v641, 0.010416667
      %v677 = vmul.f32 %v643, 0.010416667
      %v678 = vmul.f32 %v645, 0.010416667
      %v679 = vmul.f32 %v647, 0.010416667
      %v680 = vmul.f32 %v456, %v456
      %v681 = vmul.f32 %v459, %v459
      %v682 = vmul.f32 %v464, %v464
      %v683 = vmul.f32 %v467, %v467
      %v684 = vmul.f32 %v472, %v472
      %v685 = vmul.f32 %v475, %v475
      %v686 = vmul.f32 %v480, %v480
      %v687 = vmul.f32 %v483, %v483
      %v688 = vmul.f32 %v488, %v488
      %v689 = vmul.f32 %v491, %v491
      %v690 = vmul.f32 %v496, %v496
      %v691 = vmul.f32 %v499, %v499
      %v692 = vmul.f32 %v504, %v504
      %v693 = vmul.f32 %v507, %v507
      %v694 = vmul.f32 %v512, %v512
      %v695 = vmul.f32 %v515, %v515
      %v696 = vmul.f32 %v520, %v520
      %v697 = vmul.f32 %v523, %v523
      %v698 = vmul.f32 %v528, %v528
      %v699 = vmul.f32 %v531, %v531
      %v700 = vmul.f32 %v536, %v536
      %v701 = vmul.f32 %v539, %v539
      %v702 = vmul.f32 %v544, %v544
      %v703 = vmul.f32 %v547, %v547
      %v704 = vmul.f32 %v552, %v552
      %v705 = vmul.f32 %v555, %v555
      %v706 = vmul.f32 %v560, %v560
      %v707 = vmul.f32 %v563, %v563
      %v708 = vmul.f32 %v568, %v568
      %v709 = vmul.f32 %v571, %v571
      %v710 = vmul.f32 %v576, %v576
      %v711 = vmul.f32 %v579, %v579
      %712 = vadd.xlane.f32.xlu0 %v680
      %v713 = vpop.xlane.xlu0 %712
      %714 = vadd.xlane.f32.xlu0 %v681
      %v715 = vpop.xlane.xlu0 %714
      %716 = vadd.xlane.f32.xlu0 %v682
      %v717 = vpop.xlane.xlu0 %716
      %718 = vadd.xlane.f32.xlu0 %v683
      %v719 = vpop.xlane.xlu0 %718
      %720 = vadd.xlane.f32.xlu0 %v684
      %v721 = vpop.xlane.xlu0 %720
      %722 = vadd.xlane.f32.xlu0 %v685
      %v723 = vpop.xlane.xlu0 %722
      %724 = vadd.xlane.f32.xlu0 %v686
      %v725 = vpop.xlane.xlu0 %724
      %726 = vadd.xlane.f32.xlu0 %v687
      %v727 = vpop.xlane.xlu0 %726
      %728 = vadd.xlane.f32.xlu0 %v688
      %v729 = vpop.xlane.xlu0 %728
      %730 = vadd.xlane.f32.xlu0 %v689
      %v731 = vpop.xlane.xlu0 %730
      %732 = vadd.xlane.f32.xlu0 %v690
      %v733 = vpop.xlane.xlu0 %732
      %734 = vadd.xlane.f32.xlu0 %v691
      %v735 = vpop.xlane.xlu0 %734
      %736 = vadd.xlane.f32.xlu0 %v692
      %v737 = vpop.xlane.xlu0 %736
      %738 = vadd.xlane.f32.xlu0 %v693
      %v739 = vpop.xlane.xlu0 %738
      %740 = vadd.xlane.f32.xlu0 %v694
      %v741 = vpop.xlane.xlu0 %740
      %742 = vadd.xlane.f32.xlu0 %v695
      %v743 = vpop.xlane.xlu0 %742
      %744 = vadd.xlane.f32.xlu0 %v696
      %v745 = vpop.xlane.xlu0 %744
      %746 = vadd.xlane.f32.xlu0 %v697
      %v747 = vpop.xlane.xlu0 %746
      %748 = vadd.xlane.f32.xlu0 %v698
      %v749 = vpop.xlane.xlu0 %748
      %750 = vadd.xlane.f32.xlu0 %v699
      %v751 = vpop.xlane.xlu0 %750
      %752 = vadd.xlane.f32.xlu0 %v700
      %v753 = vpop.xlane.xlu0 %752
      %754 = vadd.xlane.f32.xlu0 %v701
      %v755 = vpop.xlane.xlu0 %754
      %756 = vadd.xlane.f32.xlu0 %v702
      %v757 = vpop.xlane.xlu0 %756
      %758 = vadd.xlane.f32.xlu0 %v703
      %v759 = vpop.xlane.xlu0 %758
      %760 = vadd.xlane.f32.xlu0 %v704
      %v761 = vpop.xlane.xlu0 %760
      %762 = vadd.xlane.f32.xlu0 %v705
      %v763 = vpop.xlane.xlu0 %762
      %764 = vadd.xlane.f32.xlu0 %v706
      %v765 = vpop.xlane.xlu0 %764
      %766 = vadd.xlane.f32.xlu0 %v707
      %v767 = vpop.xlane.xlu0 %766
      %768 = vadd.xlane.f32.xlu0 %v708
      %v769 = vpop.xlane.xlu0 %768
      %770 = vadd.xlane.f32.xlu0 %v709
      %v771 = vpop.xlane.xlu0 %770
      %772 = vadd.xlane.f32.xlu0 %v710
      %v773 = vpop.xlane.xlu0 %772
      %774 = vadd.xlane.f32.xlu0 %v711
      %v775 = vpop.xlane.xlu0 %774
      %v776 = vmul.f32 %v713, 0.010416667
      %v777 = vmul.f32 %v715, 0.010416667
      %v778 = vmul.f32 %v717, 0.010416667
      %v779 = vmul.f32 %v719, 0.010416667
      %v780 = vmul.f32 %v721, 0.010416667
      %v781 = vmul.f32 %v723, 0.010416667
      %v782 = vmul.f32 %v725, 0.010416667
      %v783 = vmul.f32 %v727, 0.010416667
      %v784 = vmul.f32 %v729, 0.010416667
      %v785 = vmul.f32 %v731, 0.010416667
      %v786 = vmul.f32 %v733, 0.010416667
      %v787 = vmul.f32 %v735, 0.010416667
      %v788 = vmul.f32 %v737, 0.010416667
      %v789 = vmul.f32 %v739, 0.010416667
      %v790 = vmul.f32 %v741, 0.010416667
      %v791 = vmul.f32 %v743, 0.010416667
      %v792 = vmul.f32 %v745, 0.010416667
      %v793 = vmul.f32 %v747, 0.010416667
      %v794 = vmul.f32 %v749, 0.010416667
      %v795 = vmul.f32 %v751, 0.010416667
      %v796 = vmul.f32 %v753, 0.010416667
      %v797 = vmul.f32 %v755, 0.010416667
      %v798 = vmul.f32 %v757, 0.010416667
      %v799 = vmul.f32 %v759, 0.010416667
      %v800 = vmul.f32 %v761, 0.010416667
      %v801 = vmul.f32 %v763, 0.010416667
      %v802 = vmul.f32 %v765, 0.010416667
      %v803 = vmul.f32 %v767, 0.010416667
      %v804 = vmul.f32 %v769, 0.010416667
      %v805 = vmul.f32 %v771, 0.010416667
      %v806 = vmul.f32 %v773, 0.010416667
      %v807 = vmul.f32 %v775, 0.010416667
      %v808 = vmul.f32 %v648, %v648
      %v809 = vmul.f32 %v649, %v649
      %v810 = vmul.f32 %v650, %v650
      %v811 = vmul.f32 %v651, %v651
      %v812 = vmul.f32 %v652, %v652
      %v813 = vmul.f32 %v653, %v653
      %v814 = vmul.f32 %v654, %v654
      %v815 = vmul.f32 %v655, %v655
      %v816 = vmul.f32 %v656, %v656
      %v817 = vmul.f32 %v657, %v657
      %v818 = vmul.f32 %v658, %v658
      %v819 = vmul.f32 %v659, %v659
      %v820 = vmul.f32 %v660, %v660
      %v821 = vmul.f32 %v661, %v661
      %v822 = vmul.f32 %v662, %v662
      %v823 = vmul.f32 %v663, %v663
      %v824 = vmul.f32 %v664, %v664
      %v825 = vmul.f32 %v665, %v665
      %v826 = vmul.f32 %v666, %v666
      %v827 = vmul.f32 %v667, %v667
      %v828 = vmul.f32 %v668, %v668
      %v829 = vmul.f32 %v669, %v669
      %v830 = vmul.f32 %v670, %v670
      %v831 = vmul.f32 %v671, %v671
      %v832 = vmul.f32 %v672, %v672
      %v833 = vmul.f32 %v673, %v673
      %v834 = vmul.f32 %v674, %v674
      %v835 = vmul.f32 %v675, %v675
      %v836 = vmul.f32 %v676, %v676
      %v837 = vmul.f32 %v677, %v677
      %v838 = vmul.f32 %v678, %v678
      %v839 = vmul.f32 %v679, %v679
      %v840 = vsub.f32 %v776, %v808
      %v841 = vsub.f32 %v777, %v809
      %v842 = vsub.f32 %v778, %v810
      %v843 = vsub.f32 %v779, %v811
      %v844 = vsub.f32 %v780, %v812
      %v845 = vsub.f32 %v781, %v813
      %v846 = vsub.f32 %v782, %v814
      %v847 = vsub.f32 %v783, %v815
      %v848 = vsub.f32 %v784, %v816
      %v849 = vsub.f32 %v785, %v817
      %v850 = vsub.f32 %v786, %v818
      %v851 = vsub.f32 %v787, %v819
      %v852 = vsub.f32 %v788, %v820
      %v853 = vsub.f32 %v789, %v821
      %v854 = vsub.f32 %v790, %v822
      %v855 = vsub.f32 %v791, %v823
      %v856 = vsub.f32 %v792, %v824
      %v857 = vsub.f32 %v793, %v825
      %v858 = vsub.f32 %v794, %v826
      %v859 = vsub.f32 %v795, %v827
      %v860 = vsub.f32 %v796, %v828
      %v861 = vsub.f32 %v797, %v829
      %v862 = vsub.f32 %v798, %v830
      %v863 = vsub.f32 %v799, %v831
      %v864 = vsub.f32 %v800, %v832
      %v865 = vsub.f32 %v801, %v833
      %v866 = vsub.f32 %v802, %v834
      %v867 = vsub.f32 %v803, %v835
      %v868 = vsub.f32 %v804, %v836
      %v869 = vsub.f32 %v805, %v837
      %v870 = vsub.f32 %v806, %v838
      %v871 = vsub.f32 %v807, %v839
      %v872 = vmax.f32 %v840, 0.0
      %v873 = vmax.f32 %v841, 0.0
      %v874 = vmax.f32 %v842, 0.0
      %v875 = vmax.f32 %v843, 0.0
      %v876 = vmax.f32 %v844, 0.0
      %v877 = vmax.f32 %v845, 0.0
      %v878 = vmax.f32 %v846, 0.0
      %v879 = vmax.f32 %v847, 0.0
      %v880 = vmax.f32 %v848, 0.0
      %v881 = vmax.f32 %v849, 0.0
      %v882 = vmax.f32 %v850, 0.0
      %v883 = vmax.f32 %v851, 0.0
      %v884 = vmax.f32 %v852, 0.0
      %v885 = vmax.f32 %v853, 0.0
      %v886 = vmax.f32 %v854, 0.0
      %v887 = vmax.f32 %v855, 0.0
      %v888 = vmax.f32 %v856, 0.0
      %v889 = vmax.f32 %v857, 0.0
      %v890 = vmax.f32 %v858, 0.0
      %v891 = vmax.f32 %v859, 0.0
      %v892 = vmax.f32 %v860, 0.0
      %v893 = vmax.f32 %v861, 0.0
      %v894 = vmax.f32 %v862, 0.0
      %v895 = vmax.f32 %v863, 0.0
      %v896 = vmax.f32 %v864, 0.0
      %v897 = vmax.f32 %v865, 0.0
      %v898 = vmax.f32 %v866, 0.0
      %v899 = vmax.f32 %v867, 0.0
      %v900 = vmax.f32 %v868, 0.0
      %v901 = vmax.f32 %v869, 0.0
      %v902 = vmax.f32 %v870, 0.0
      %v903 = vmax.f32 %v871, 0.0
      %v904 = vsub.f32 %v456, %v648
      %v905 = vsub.f32 %v459, %v649
      %v906 = vsub.f32 %v464, %v650
      %v907 = vsub.f32 %v467, %v651
      %v908 = vsub.f32 %v472, %v652
      %v909 = vsub.f32 %v475, %v653
      %v910 = vsub.f32 %v480, %v654
      %v911 = vsub.f32 %v483, %v655
      %v912 = vsub.f32 %v488, %v656
      %v913 = vsub.f32 %v491, %v657
      %v914 = vsub.f32 %v496, %v658
      %v915 = vsub.f32 %v499, %v659
      %v916 = vsub.f32 %v504, %v660
      %v917 = vsub.f32 %v507, %v661
      %v918 = vsub.f32 %v512, %v662
      %v919 = vsub.f32 %v515, %v663
      %v920 = vsub.f32 %v520, %v664
      %v921 = vsub.f32 %v523, %v665
      %v922 = vsub.f32 %v528, %v666
      %v923 = vsub.f32 %v531, %v667
      %v924 = vsub.f32 %v536, %v668
      %v925 = vsub.f32 %v539, %v669
      %v926 = vsub.f32 %v544, %v670
      %v927 = vsub.f32 %v547, %v671
      %v928 = vsub.f32 %v552, %v672
      %v929 = vsub.f32 %v555, %v673
      %v930 = vsub.f32 %v560, %v674
      %v931 = vsub.f32 %v563, %v675
      %v932 = vsub.f32 %v568, %v676
      %v933 = vsub.f32 %v571, %v677
      %v934 = vsub.f32 %v576, %v678
      %v935 = vsub.f32 %v579, %v679
      %v936 = vadd.f32 %v872, 1e-06
      %v937 = vadd.f32 %v873, 1e-06
      %v938 = vadd.f32 %v874, 1e-06
      %v939 = vadd.f32 %v875, 1e-06
      %v940 = vadd.f32 %v876, 1e-06
      %v941 = vadd.f32 %v877, 1e-06
      %v942 = vadd.f32 %v878, 1e-06
      %v943 = vadd.f32 %v879, 1e-06
      %v944 = vadd.f32 %v880, 1e-06
      %v945 = vadd.f32 %v881, 1e-06
      %v946 = vadd.f32 %v882, 1e-06
      %v947 = vadd.f32 %v883, 1e-06
      %v948 = vadd.f32 %v884, 1e-06
      %v949 = vadd.f32 %v885, 1e-06
      %v950 = vadd.f32 %v886, 1e-06
      %v951 = vadd.f32 %v887, 1e-06
      %v952 = vadd.f32 %v888, 1e-06
      %v953 = vadd.f32 %v889, 1e-06
      %v954 = vadd.f32 %v890, 1e-06
      %v955 = vadd.f32 %v891, 1e-06
      %v956 = vadd.f32 %v892, 1e-06
      %v957 = vadd.f32 %v893, 1e-06
      %v958 = vadd.f32 %v894, 1e-06
      %v959 = vadd.f32 %v895, 1e-06
      %v960 = vadd.f32 %v896, 1e-06
      %v961 = vadd.f32 %v897, 1e-06
      %v962 = vadd.f32 %v898, 1e-06
      %v963 = vadd.f32 %v899, 1e-06
      %v964 = vadd.f32 %v900, 1e-06
      %v965 = vadd.f32 %v901, 1e-06
      %v966 = vadd.f32 %v902, 1e-06
      %v967 = vadd.f32 %v903, 1e-06
      %v968 = vrsqrt.pop %v936
      %v969 = vrsqrt.pop %v937
      %v970 = vrsqrt.pop %v938
      %v971 = vrsqrt.pop %v939
      %v972 = vrsqrt.pop %v940
      %v973 = vrsqrt.pop %v941
      %v974 = vrsqrt.pop %v942
      %v975 = vrsqrt.pop %v943
      %v976 = vrsqrt.pop %v944
      %v977 = vrsqrt.pop %v945
      %v978 = vrsqrt.pop %v946
      %v979 = vrsqrt.pop %v947
      %v980 = vrsqrt.pop %v948
      %v981 = vrsqrt.pop %v949
      %v982 = vrsqrt.pop %v950
      %v983 = vrsqrt.pop %v951
      %v984 = vrsqrt.pop %v952
      %v985 = vrsqrt.pop %v953
      %v986 = vrsqrt.pop %v954
      %v987 = vrsqrt.pop %v955
      %v988 = vrsqrt.pop %v956
      %v989 = vrsqrt.pop %v957
      %v990 = vrsqrt.pop %v958
      %v991 = vrsqrt.pop %v959
      %v992 = vrsqrt.pop %v960
      %v993 = vrsqrt.pop %v961
      %v994 = vrsqrt.pop %v962
      %v995 = vrsqrt.pop %v963
      %v996 = vrsqrt.pop %v964
      %v997 = vrsqrt.pop %v965
      %v998 = vrsqrt.pop %v966
      %v999 = vrsqrt.pop %v967
      %v1001 = vlaneseq
      %v1002 = vshrl.u32 %v1001, 7
      %v1003 = vsub.s32 0, %v1002
      %v1004 = vrot.slane %v582, %v1003
      %v1006 = vmul.f32 %v968, %v1004
      %v1007 = vmul.f32 %v969, %v1004
      %v1008 = vmul.f32 %v970, %v1004
      %v1009 = vmul.f32 %v971, %v1004
      %v1010 = vmul.f32 %v972, %v1004
      %v1011 = vmul.f32 %v973, %v1004
      %v1012 = vmul.f32 %v974, %v1004
      %v1013 = vmul.f32 %v975, %v1004
      %v1014 = vmul.f32 %v976, %v1004
      %v1015 = vmul.f32 %v977, %v1004
      %v1016 = vmul.f32 %v978, %v1004
      %v1017 = vmul.f32 %v979, %v1004
      %v1018 = vmul.f32 %v980, %v1004
      %v1019 = vmul.f32 %v981, %v1004
      %v1020 = vmul.f32 %v982, %v1004
      %v1021 = vmul.f32 %v983, %v1004
      %v1022 = vmul.f32 %v984, %v1004
      %v1023 = vmul.f32 %v985, %v1004
      %v1024 = vmul.f32 %v986, %v1004
      %v1025 = vmul.f32 %v987, %v1004
      %v1026 = vmul.f32 %v988, %v1004
      %v1027 = vmul.f32 %v989, %v1004
      %v1028 = vmul.f32 %v990, %v1004
      %v1029 = vmul.f32 %v991, %v1004
      %v1030 = vmul.f32 %v992, %v1004
      %v1031 = vmul.f32 %v993, %v1004
      %v1032 = vmul.f32 %v994, %v1004
      %v1033 = vmul.f32 %v995, %v1004
      %v1034 = vmul.f32 %v996, %v1004
      %v1035 = vmul.f32 %v997, %v1004
      %v1036 = vmul.f32 %v998, %v1004
      %v1037 = vmul.f32 %v999, %v1004
      %v1038 = vmul.f32 %v904, %v1006
      %v1039 = vmul.f32 %v905, %v1007
      %v1040 = vmul.f32 %v906, %v1008
      %v1041 = vmul.f32 %v907, %v1009
      %v1042 = vmul.f32 %v908, %v1010
      %v1043 = vmul.f32 %v909, %v1011
      %v1044 = vmul.f32 %v910, %v1012
      %v1045 = vmul.f32 %v911, %v1013
      %v1046 = vmul.f32 %v912, %v1014
      %v1047 = vmul.f32 %v913, %v1015
      %v1048 = vmul.f32 %v914, %v1016
      %v1049 = vmul.f32 %v915, %v1017
      %v1050 = vmul.f32 %v916, %v1018
      %v1051 = vmul.f32 %v917, %v1019
      %v1052 = vmul.f32 %v918, %v1020
      %v1053 = vmul.f32 %v919, %v1021
      %v1054 = vmul.f32 %v920, %v1022
      %v1055 = vmul.f32 %v921, %v1023
      %v1056 = vmul.f32 %v922, %v1024
      %v1057 = vmul.f32 %v923, %v1025
      %v1058 = vmul.f32 %v924, %v1026
      %v1059 = vmul.f32 %v925, %v1027
      %v1060 = vmul.f32 %v926, %v1028
      %v1061 = vmul.f32 %v927, %v1029
      %v1062 = vmul.f32 %v928, %v1030
      %v1063 = vmul.f32 %v929, %v1031
      %v1064 = vmul.f32 %v930, %v1032
      %v1065 = vmul.f32 %v931, %v1033
      %v1066 = vmul.f32 %v932, %v1034
      %v1067 = vmul.f32 %v933, %v1035
      %v1068 = vmul.f32 %v934, %v1036
      %v1069 = vmul.f32 %v935, %v1037
      %v1071 = vlaneseq
      %v1072 = vshrl.u32 %v1071, 7
      %v1073 = vsub.s32 0, %v1072
      %v1074 = vrot.slane %v583, %v1073
      %v1076 = vadd.f32 %v1038, %v1074
      %v1077 = vadd.f32 %v1039, %v1074
      %v1078 = vadd.f32 %v1040, %v1074
      %v1079 = vadd.f32 %v1041, %v1074
      %v1080 = vadd.f32 %v1042, %v1074
      %v1081 = vadd.f32 %v1043, %v1074
      %v1082 = vadd.f32 %v1044, %v1074
      %v1083 = vadd.f32 %v1045, %v1074
      %v1084 = vadd.f32 %v1046, %v1074
      %v1085 = vadd.f32 %v1047, %v1074
      %v1086 = vadd.f32 %v1048, %v1074
      %v1087 = vadd.f32 %v1049, %v1074
      %v1088 = vadd.f32 %v1050, %v1074
      %v1089 = vadd.f32 %v1051, %v1074
      %v1090 = vadd.f32 %v1052, %v1074
      %v1091 = vadd.f32 %v1053, %v1074
      %v1092 = vadd.f32 %v1054, %v1074
      %v1093 = vadd.f32 %v1055, %v1074
      %v1094 = vadd.f32 %v1056, %v1074
      %v1095 = vadd.f32 %v1057, %v1074
      %v1096 = vadd.f32 %v1058, %v1074
      %v1097 = vadd.f32 %v1059, %v1074
      %v1098 = vadd.f32 %v1060, %v1074
      %v1099 = vadd.f32 %v1061, %v1074
      %v1100 = vadd.f32 %v1062, %v1074
      %v1101 = vadd.f32 %v1063, %v1074
      %v1102 = vadd.f32 %v1064, %v1074
      %v1103 = vadd.f32 %v1065, %v1074
      %v1104 = vadd.f32 %v1066, %v1074
      %v1105 = vadd.f32 %v1067, %v1074
      %v1106 = vadd.f32 %v1068, %v1074
      %v1107 = vadd.f32 %v1069, %v1074
      %v1108 = vmul.f32 %v1076, 0.5
      %v1109 = vmul.f32 %v1077, 0.5
      %v1110 = vmul.f32 %v1078, 0.5
      %v1111 = vmul.f32 %v1079, 0.5
      %v1112 = vmul.f32 %v1080, 0.5
      %v1113 = vmul.f32 %v1081, 0.5
      %v1114 = vmul.f32 %v1082, 0.5
      %v1115 = vmul.f32 %v1083, 0.5
      %v1116 = vmul.f32 %v1084, 0.5
      %v1117 = vmul.f32 %v1085, 0.5
      %v1118 = vmul.f32 %v1086, 0.5
      %v1119 = vmul.f32 %v1087, 0.5
      %v1120 = vmul.f32 %v1088, 0.5
      %v1121 = vmul.f32 %v1089, 0.5
      %v1122 = vmul.f32 %v1090, 0.5
      %v1123 = vmul.f32 %v1091, 0.5
      %v1124 = vmul.f32 %v1092, 0.5
      %v1125 = vmul.f32 %v1093, 0.5
      %v1126 = vmul.f32 %v1094, 0.5
      %v1127 = vmul.f32 %v1095, 0.5
      %v1128 = vmul.f32 %v1096, 0.5
      %v1129 = vmul.f32 %v1097, 0.5
      %v1130 = vmul.f32 %v1098, 0.5
      %v1131 = vmul.f32 %v1099, 0.5
      %v1132 = vmul.f32 %v1100, 0.5
      %v1133 = vmul.f32 %v1101, 0.5
      %v1134 = vmul.f32 %v1102, 0.5
      %v1135 = vmul.f32 %v1103, 0.5
      %v1136 = vmul.f32 %v1104, 0.5
      %v1137 = vmul.f32 %v1105, 0.5
      %v1138 = vmul.f32 %v1106, 0.5
      %v1139 = vmul.f32 %v1107, 0.5
      %v1140 = vmul.f32 %v1076, 0.70710677
      %v1141 = vmul.f32 %v1077, 0.70710677
      %v1142 = vmul.f32 %v1078, 0.70710677
      %v1143 = vmul.f32 %v1079, 0.70710677
      %v1144 = vmul.f32 %v1080, 0.70710677
      %v1145 = vmul.f32 %v1081, 0.70710677
      %v1146 = vmul.f32 %v1082, 0.70710677
      %v1147 = vmul.f32 %v1083, 0.70710677
      %v1148 = vmul.f32 %v1084, 0.70710677
      %v1149 = vmul.f32 %v1085, 0.70710677
      %v1150 = vmul.f32 %v1086, 0.70710677
      %v1151 = vmul.f32 %v1087, 0.70710677
      %v1152 = vmul.f32 %v1088, 0.70710677
      %v1153 = vmul.f32 %v1089, 0.70710677
      %v1154 = vmul.f32 %v1090, 0.70710677
      %v1155 = vmul.f32 %v1091, 0.70710677
      %v1156 = vmul.f32 %v1092, 0.70710677
      %v1157 = vmul.f32 %v1093, 0.70710677
      %v1158 = vmul.f32 %v1094, 0.70710677
      %v1159 = vmul.f32 %v1095, 0.70710677
      %v1160 = vmul.f32 %v1096, 0.70710677
      %v1161 = vmul.f32 %v1097, 0.70710677
      %v1162 = vmul.f32 %v1098, 0.70710677
      %v1163 = vmul.f32 %v1099, 0.70710677
      %v1164 = vmul.f32 %v1100, 0.70710677
      %v1165 = vmul.f32 %v1101, 0.70710677
      %v1166 = vmul.f32 %v1102, 0.70710677
      %v1167 = vmul.f32 %v1103, 0.70710677
      %v1168 = vmul.f32 %v1104, 0.70710677
      %v1169 = vmul.f32 %v1105, 0.70710677
      %v1170 = vmul.f32 %v1106, 0.70710677
      %v1171 = vmul.f32 %v1107, 0.70710677
      %v1172 = verf.f32.pop %v1140
      %v1173 = verf.f32.pop %v1141
      %v1174 = verf.f32.pop %v1142
      %v1175 = verf.f32.pop %v1143
      %v1176 = verf.f32.pop %v1144
      %v1177 = verf.f32.pop %v1145
      %v1178 = verf.f32.pop %v1146
      %v1179 = verf.f32.pop %v1147
      %v1180 = verf.f32.pop %v1148
      %v1181 = verf.f32.pop %v1149
      %v1182 = verf.f32.pop %v1150
      %v1183 = verf.f32.pop %v1151
      %v1184 = verf.f32.pop %v1152
      %v1185 = verf.f32.pop %v1153
      %v1186 = verf.f32.pop %v1154
      %v1187 = verf.f32.pop %v1155
      %v1188 = verf.f32.pop %v1156
      %v1189 = verf.f32.pop %v1157
      %v1190 = verf.f32.pop %v1158
      %v1191 = verf.f32.pop %v1159
      %v1192 = verf.f32.pop %v1160
      %v1193 = verf.f32.pop %v1161
      %v1194 = verf.f32.pop %v1162
      %v1195 = verf.f32.pop %v1163
      %v1196 = verf.f32.pop %v1164
      %v1197 = verf.f32.pop %v1165
      %v1198 = verf.f32.pop %v1166
      %v1199 = verf.f32.pop %v1167
      %v1200 = verf.f32.pop %v1168
      %v1201 = verf.f32.pop %v1169
      %v1202 = verf.f32.pop %v1170
      %v1203 = verf.f32.pop %v1171
      %v1204 = vadd.f32 %v1172, 1.0
      %v1205 = vadd.f32 %v1173, 1.0
      %v1206 = vadd.f32 %v1174, 1.0
      %v1207 = vadd.f32 %v1175, 1.0
      %v1208 = vadd.f32 %v1176, 1.0
      %v1209 = vadd.f32 %v1177, 1.0
      %v1210 = vadd.f32 %v1178, 1.0
      %v1211 = vadd.f32 %v1179, 1.0
      %v1212 = vadd.f32 %v1180, 1.0
      %v1213 = vadd.f32 %v1181, 1.0
      %v1214 = vadd.f32 %v1182, 1.0
      %v1215 = vadd.f32 %v1183, 1.0
      %v1216 = vadd.f32 %v1184, 1.0
      %v1217 = vadd.f32 %v1185, 1.0
      %v1218 = vadd.f32 %v1186, 1.0
      %v1219 = vadd.f32 %v1187, 1.0
      %v1220 = vadd.f32 %v1188, 1.0
      %v1221 = vadd.f32 %v1189, 1.0
      %v1222 = vadd.f32 %v1190, 1.0
      %v1223 = vadd.f32 %v1191, 1.0
      %v1224 = vadd.f32 %v1192, 1.0
      %v1225 = vadd.f32 %v1193, 1.0
      %v1226 = vadd.f32 %v1194, 1.0
      %v1227 = vadd.f32 %v1195, 1.0
      %v1228 = vadd.f32 %v1196, 1.0
      %v1229 = vadd.f32 %v1197, 1.0
      %v1230 = vadd.f32 %v1198, 1.0
      %v1231 = vadd.f32 %v1199, 1.0
      %v1232 = vadd.f32 %v1200, 1.0
      %v1233 = vadd.f32 %v1201, 1.0
      %v1234 = vadd.f32 %v1202, 1.0
      %v1235 = vadd.f32 %v1203, 1.0
      %v1236 = vmul.f32 %v1108, %v1204
      %v1237 = vmul.f32 %v1109, %v1205
      %v1238 = vmul.f32 %v1110, %v1206
      %v1239 = vmul.f32 %v1111, %v1207
      %v1240 = vmul.f32 %v1112, %v1208
      %v1241 = vmul.f32 %v1113, %v1209
      %v1242 = vmul.f32 %v1114, %v1210
      %v1243 = vmul.f32 %v1115, %v1211
      %v1244 = vmul.f32 %v1116, %v1212
      %v1245 = vmul.f32 %v1117, %v1213
      %v1246 = vmul.f32 %v1118, %v1214
      %v1247 = vmul.f32 %v1119, %v1215
      %v1248 = vmul.f32 %v1120, %v1216
      %v1249 = vmul.f32 %v1121, %v1217
      %v1250 = vmul.f32 %v1122, %v1218
      %v1251 = vmul.f32 %v1123, %v1219
      %v1252 = vmul.f32 %v1124, %v1220
      %v1253 = vmul.f32 %v1125, %v1221
      %v1254 = vmul.f32 %v1126, %v1222
      %v1255 = vmul.f32 %v1127, %v1223
      %v1256 = vmul.f32 %v1128, %v1224
      %v1257 = vmul.f32 %v1129, %v1225
      %v1258 = vmul.f32 %v1130, %v1226
      %v1259 = vmul.f32 %v1131, %v1227
      %v1260 = vmul.f32 %v1132, %v1228
      %v1261 = vmul.f32 %v1133, %v1229
      %v1262 = vmul.f32 %v1134, %v1230
      %v1263 = vmul.f32 %v1135, %v1231
      %v1264 = vmul.f32 %v1136, %v1232
      %v1265 = vmul.f32 %v1137, %v1233
      %v1266 = vmul.f32 %v1138, %v1234
      %v1267 = vmul.f32 %v1139, %v1235
      %v1268 = vpack.c.bf16 %v1237, %v1236
      %v1269 = vpack.c.bf16 %v1239, %v1238
      %v1270 = vpack.c.bf16 %v1241, %v1240
      %v1271 = vpack.c.bf16 %v1243, %v1242
      %v1272 = vpack.c.bf16 %v1245, %v1244
      %v1273 = vpack.c.bf16 %v1247, %v1246
      %v1274 = vpack.c.bf16 %v1249, %v1248
      %v1275 = vpack.c.bf16 %v1251, %v1250
      %v1276 = vpack.c.bf16 %v1253, %v1252
      %v1277 = vpack.c.bf16 %v1255, %v1254
      %v1278 = vpack.c.bf16 %v1257, %v1256
      %v1279 = vpack.c.bf16 %v1259, %v1258
      %v1280 = vpack.c.bf16 %v1261, %v1260
      %v1281 = vpack.c.bf16 %v1263, %v1262
      %v1282 = vpack.c.bf16 %v1265, %v1264
      %v1283 = vpack.c.bf16 %v1267, %v1266
      %v1300 = vunpack.c.l.b16 %v1268
      %v1301 = vunpack.c.h.b16 %v1268
      %v1302 = vunpack.c.l.b16 %v1269
      %v1303 = vunpack.c.h.b16 %v1269
      %v1304 = vunpack.c.l.b16 %v1270
      %v1305 = vunpack.c.h.b16 %v1270
      %v1306 = vunpack.c.l.b16 %v1271
      %v1307 = vunpack.c.h.b16 %v1271
      %v1308 = vunpack.c.l.b16 %v1272
      %v1309 = vunpack.c.h.b16 %v1272
      %v1310 = vunpack.c.l.b16 %v1273
      %v1311 = vunpack.c.h.b16 %v1273
      %v1312 = vunpack.c.l.b16 %v1274
      %v1313 = vunpack.c.h.b16 %v1274
      %v1314 = vunpack.c.l.b16 %v1275
      %v1315 = vunpack.c.h.b16 %v1275
      %v1316 = vunpack.c.l.b16 %v1276
      %v1317 = vunpack.c.h.b16 %v1276
      %v1318 = vunpack.c.l.b16 %v1277
      %v1319 = vunpack.c.h.b16 %v1277
      %v1320 = vunpack.c.l.b16 %v1278
      %v1321 = vunpack.c.h.b16 %v1278
      %v1322 = vunpack.c.l.b16 %v1279
      %v1323 = vunpack.c.h.b16 %v1279
      %v1324 = vunpack.c.l.b16 %v1280
      %v1325 = vunpack.c.h.b16 %v1280
      %v1326 = vunpack.c.l.b16 %v1281
      %v1327 = vunpack.c.h.b16 %v1281
      %v1328 = vunpack.c.l.b16 %v1282
      %v1329 = vunpack.c.h.b16 %v1282
      %v1330 = vunpack.c.l.b16 %v1283
      %v1331 = vunpack.c.h.b16 %v1283
      %v1332 = vpack.c.b16 %v1300, %v1300
      %v1333 = vpack.c.b16 %v1301, %v1301
      %v1334 = vpack.c.b16 %v1302, %v1302
      %v1335 = vpack.c.b16 %v1303, %v1303
      %v1336 = vpack.c.b16 %v1304, %v1304
      %v1337 = vpack.c.b16 %v1305, %v1305
      %v1338 = vpack.c.b16 %v1306, %v1306
      %v1339 = vpack.c.b16 %v1307, %v1307
      %v1340 = vpack.c.b16 %v1308, %v1308
      %v1341 = vpack.c.b16 %v1309, %v1309
      %v1342 = vpack.c.b16 %v1310, %v1310
      %v1343 = vpack.c.b16 %v1311, %v1311
      %v1344 = vpack.c.b16 %v1312, %v1312
      %v1345 = vpack.c.b16 %v1313, %v1313
      %v1346 = vpack.c.b16 %v1314, %v1314
      %v1347 = vpack.c.b16 %v1315, %v1315
      %v1348 = vpack.c.b16 %v1316, %v1316
      %v1349 = vpack.c.b16 %v1317, %v1317
      %v1350 = vpack.c.b16 %v1318, %v1318
      %v1351 = vpack.c.b16 %v1319, %v1319
      %v1352 = vpack.c.b16 %v1320, %v1320
      %v1353 = vpack.c.b16 %v1321, %v1321
      %v1354 = vpack.c.b16 %v1322, %v1322
      %v1355 = vpack.c.b16 %v1323, %v1323
      %v1356 = vpack.c.b16 %v1324, %v1324
      %v1357 = vpack.c.b16 %v1325, %v1325
      %v1358 = vpack.c.b16 %v1326, %v1326
      %v1359 = vpack.c.b16 %v1327, %v1327
      %v1360 = vpack.c.b16 %v1328, %v1328
      %v1361 = vpack.c.b16 %v1329, %v1329
      %v1362 = vpack.c.b16 %v1330, %v1330
      %v1363 = vpack.c.b16 %v1331, %v1331
      %1396 = vst [vmem:[%s226] sm:$0xf] %v1332
      %1397 = vst [vmem:[%s226 + $0x4] sm:$0xf] %v1333
      %1398 = vst [vmem:[%s226 + $0x8] sm:$0xf] %v1334
      %1399 = vst [vmem:[%s226 + $0xc] sm:$0xf] %v1335
      %1400 = vst [vmem:[%s226 + $0x10] sm:$0xf] %v1336
      %1401 = vst [vmem:[%s226 + $0x14] sm:$0xf] %v1337
      %1402 = vst [vmem:[%s226 + $0x18] sm:$0xf] %v1338
      %1403 = vst [vmem:[%s226 + $0x1c] sm:$0xf] %v1339
      %1404 = vst [vmem:[%s226 + $0x20] sm:$0xf] %v1340
      %1405 = vst [vmem:[%s226 + $0x24] sm:$0xf] %v1341
      %1406 = vst [vmem:[%s226 + $0x28] sm:$0xf] %v1342
      %1407 = vst [vmem:[%s226 + $0x2c] sm:$0xf] %v1343
      %1408 = vst [vmem:[%s226 + $0x30] sm:$0xf] %v1344
      %1409 = vst [vmem:[%s226 + $0x34] sm:$0xf] %v1345
      %1410 = vst [vmem:[%s226 + $0x38] sm:$0xf] %v1346
      %1411 = vst [vmem:[%s226 + $0x3c] sm:$0xf] %v1347
      %1412 = vst [vmem:[%s226 + $0x40] sm:$0xf] %v1348
      %1413 = vst [vmem:[%s226 + $0x44] sm:$0xf] %v1349
      %1414 = vst [vmem:[%s226 + $0x48] sm:$0xf] %v1350
      %1415 = vst [vmem:[%s226 + $0x4c] sm:$0xf] %v1351
      %1416 = vst [vmem:[%s226 + $0x50] sm:$0xf] %v1352
      %1417 = vst [vmem:[%s226 + $0x54] sm:$0xf] %v1353
      %1418 = vst [vmem:[%s226 + $0x58] sm:$0xf] %v1354
      %1419 = vst [vmem:[%s226 + $0x5c] sm:$0xf] %v1355
      %1420 = vst [vmem:[%s226 + $0x60] sm:$0xf] %v1356
      %1421 = vst [vmem:[%s226 + $0x64] sm:$0xf] %v1357
      %1422 = vst [vmem:[%s226 + $0x68] sm:$0xf] %v1358
      %1423 = vst [vmem:[%s226 + $0x6c] sm:$0xf] %v1359
      %1424 = vst [vmem:[%s226 + $0x70] sm:$0xf] %v1360
      %1425 = vst [vmem:[%s226 + $0x74] sm:$0xf] %v1361
      %1426 = vst [vmem:[%s226 + $0x78] sm:$0xf] %v1362
      %1427 = vst [vmem:[%s226 + $0x7c] sm:$0xf] %v1363
      %s1428 = smul.u32 32, %s16
      %p1429 = scmp.lt.s32.totalorder %s1428, 63
      %s1430 = scalar_select %p1429, %s1428, 63
      %s1431 = smul.addr %s1430, 4
      %s1432 = scalar_lea.vmem %s5, %s1431
      // Predicated region
      $region41: #{encoder_forward.2} parent=39 // pred_check
        %p1433 = pneg %p144
      $region42: #{encoder_forward.2} parent=39 // pred_check_branch
        %1435 = sbr.rel (%p1433) target = $region44
      $region43: #{encoder_forward.2} parent=39 // pred_region
        %s1436 = smul.u32 32, %s16
      $region44: #{encoder_forward.2} parent=39 // pred_fallthru
        _
    $region40: #{encoder_forward.2} parent=5 // pred_fallthru
      _
    %p1437 = scmp.le.s32.totalorder 2, %s11
    // Predicated region
    $region45: #{encoder_forward.2} parent=5 // pred_check
      %p1438 = pneg %p1437
    $region46: #{encoder_forward.2} parent=5 // pred_check_branch
      %1440 = sbr.rel (%p1438) target = $region48
    $region47: #{encoder_forward.2} parent=5 // pred_region
      %s1441 = ssub.s32 %s11, 2
      // Predicated region
      $region49: #{encoder_forward.2} parent=47 // pred_check
        %p1442 = pneg %p150
      $region50: #{encoder_forward.2} parent=47 // pred_check_branch
        %1444 = sbr.rel (%p1442) target = $region52
      $region51: #{encoder_forward.2} parent=47 // pred_region
        %s1445 = smul.u32 32, %s17
        %p1446 = scmp.lt.s32.totalorder %s1445, 63
        %s1447 = scalar_select %p1446, %s1445, 63
        %s1448 = smul.addr %s1447, 4
        %s1449 = scalar_lea.vmem %s5, %s1448
      $region52: #{encoder_forward.2} parent=47 // pred_fallthru
        _
    $region48: #{encoder_forward.2} parent=5 // pred_fallthru
      _
  $region6: #{encoder_forward.2} parent=0 // loop_footer
    %s15 = sadd.s32 1, %s11
  $region7: #{encoder_forward.2} parent=0 // loop_footer_branch
    %10 = sbr.rel target = $region3
  $region8: #{encoder_forward.2} parent=0 // loop_exit
    _

// kernel: encoder_forward.3
$region0: #{encoder_forward.3}
  #allocation0 [shape = 'u32[]', space=smem, size = 0x4, offset = 0x4, fixed_abs, tag = 'smem constant byte address 0x4 - core index']
  #allocation1 [shape = 'u32[144,128]{1,0:T(1,128)}', space=vmem, size = 0x12000, scoped, tag = 'internal scratch']
  %s0 = inlined_call_operand.vmem [shape: bf16[32,2048], index: 0, kind: input, shape index: {}]
  %s1 = inlined_call_operand.vmem [shape: bf16[4,2048,96], index: 1, kind: input, shape index: {}]
  %s2 = inlined_call_operand.vmem [shape: f32[1,96], index: 2, kind: input, shape index: {}]
  %s3 = inlined_call_operand.vmem [shape: f32[1,96], index: 3, kind: input, shape index: {}]
  %s4 = inlined_call_operand.vmem [shape: bf16[96,192], index: 4, kind: input, shape index: {}]
  %s5 = inlined_call_operand.vmem [shape: f32[1,192], index: 5, kind: input, shape index: {}]
  %s6 = inlined_call_operand.vmem [shape: f32[1,192], index: 6, kind: input, shape index: {}]
  %s7 = inlined_call_operand.vmem [shape: bf16[192,384], index: 7, kind: input, shape index: {}]
  %s8 = inlined_call_operand.vmem [shape: f32[1,384], index: 8, kind: input, shape index: {}]
  %s9 = inlined_call_operand.vmem [shape: f32[32,384], index: 9, kind: output, shape index: {}]
  %s10 = sld [smem:[#allocation0]]
  $region69: #{encoder_forward.3} parent=0
    _
  %s12 = ssub.s32 1, %s10
  %s13 = scalar_select 0, %s12, %s10
  loop: start=0, step=1, limit=4
  $region2: #{encoder_forward.3} parent=0 // loop_pre_header
    _
  $region3: #{encoder_forward.3} parent=0 // loop_header
    %s15 = sphi 0, %s19
    %p16 = scmp.ge.s32.totalorder %s15, 4
    %s25 = sphi 0, %s27
    %s28 = sphi 0, %s25
    %s29 = sphi 0, %s28
    %s45 = sphi 0, %s29
    %s49 = sphi 0, %s49
    %s51 = sphi 0, %s49
    %s52 = sphi 0, %s51
    %s66 = sphi 0, %s52
    %s70 = sphi 0, %s70
    %s72 = sphi 0, %s70
    %s73 = sphi 0, %s72
    %s87 = sphi 0, %s73
    %s91 = sphi 0, %s91
    %s93 = sphi 0, %s91
    %s94 = sphi 0, %s93
    %s108 = sphi 0, %s94
    %s112 = sphi 0, %s112
    %s114 = sphi 0, %s112
    %s115 = sphi 0, %s114
    %s129 = sphi 0, %s115
    %s133 = sphi 0, %s133
    %s135 = sphi 0, %s133
    %s136 = sphi 0, %s135
    %s150 = sphi 0, %s136
    %s154 = sphi 0, %s154
    %s156 = sphi 0, %s154
    %s157 = sphi 0, %s156
    %s171 = sphi 0, %s157
    %s175 = sphi 0, %s175
    %s177 = sphi 0, %s175
    %s178 = sphi 0, %s177
    %s192 = sphi 0, %s178
    %s196 = sphi 0, %s196
    %s198 = sphi 0, %s196
    %s199 = sphi 0, %s198
    %s213 = sphi 0, %s199
    %s219 = sphi 0, %s221
    %s222 = sphi 0, %s219
    %s223 = sphi 0, %s222
    %s239 = sphi 0, %s223
  $region4: #{encoder_forward.3} parent=0 // loop_header_branch
    %18 = sbr.rel (%p16) target = $region8
  $region5: #{encoder_forward.3} parent=0 // loop_body
    %s20 = ssub.s32 %s15, 1
    %s21 = ssub.s32 %s15, 2
    %s22 = sadd.s32 %s15, 1
    %s23 = ssub.s32 %s15, %s22
    %p24 = scmp.eq.s32.totalorder %s23, 0
    %s26 = sadd.s32 %s25, 1
    %s27 = scalar_select %p24, %s25, %s26
    %p30 = pneg %p24
    %p31 = scmp.eq.s32.totalorder %s15, 1
    %p32 = por %p30, %p31
    %p33 = scmp.ne.s32.totalorder %s25, %s28
    %p34 = scmp.eq.s32.totalorder %s15, 0
    %p35 = por %p33, %p34
    %p36 = scmp.ne.s32.totalorder %s25, %s28
    %p37 = scmp.eq.s32.totalorder %s20, 1
    %p38 = por %p36, %p37
    %p39 = scmp.ne.s32.totalorder %s28, %s29
    %p40 = scmp.eq.s32.totalorder %s20, 0
    %p41 = por %p39, %p40
    %p42 = scmp.ne.s32.totalorder %s28, %s29
    %p43 = scmp.eq.s32.totalorder %s21, 1
    %p44 = por %p42, %p43
    %p46 = scmp.ne.s32.totalorder %s29, %s45
    %p47 = scmp.eq.s32.totalorder %s21, 0
    %p48 = por %p46, %p47
    %s50 = sadd.s32 %s49, 1
    %p53 = scmp.eq.s32.totalorder %s15, 1
    %p54 = scmp.ne.s32.totalorder %s49, %s51
    %p55 = scmp.eq.s32.totalorder %s15, 0
    %p56 = por %p54, %p55
    %p57 = scmp.ne.s32.totalorder %s49, %s51
    %p58 = scmp.eq.s32.totalorder %s20, 1
    %p59 = por %p57, %p58
    %p60 = scmp.ne.s32.totalorder %s51, %s52
    %p61 = scmp.eq.s32.totalorder %s20, 0
    %p62 = por %p60, %p61
    %p63 = scmp.ne.s32.totalorder %s51, %s52
    %p64 = scmp.eq.s32.totalorder %s21, 1
    %p65 = por %p63, %p64
    %p67 = scmp.ne.s32.totalorder %s52, %s66
    %p68 = scmp.eq.s32.totalorder %s21, 0
    %p69 = por %p67, %p68
    %s71 = sadd.s32 %s70, 1
    %p74 = scmp.eq.s32.totalorder %s15, 1
    %p75 = scmp.ne.s32.totalorder %s70, %s72
    %p76 = scmp.eq.s32.totalorder %s15, 0
    %p77 = por %p75, %p76
    %p78 = scmp.ne.s32.totalorder %s70, %s72
    %p79 = scmp.eq.s32.totalorder %s20, 1
    %p80 = por %p78, %p79
    %p81 = scmp.ne.s32.totalorder %s72, %s73
    %p82 = scmp.eq.s32.totalorder %s20, 0
    %p83 = por %p81, %p82
    %p84 = scmp.ne.s32.totalorder %s72, %s73
    %p85 = scmp.eq.s32.totalorder %s21, 1
    %p86 = por %p84, %p85
    %p88 = scmp.ne.s32.totalorder %s73, %s87
    %p89 = scmp.eq.s32.totalorder %s21, 0
    %p90 = por %p88, %p89
    %s92 = sadd.s32 %s91, 1
    %p95 = scmp.eq.s32.totalorder %s15, 1
    %p96 = scmp.ne.s32.totalorder %s91, %s93
    %p97 = scmp.eq.s32.totalorder %s15, 0
    %p98 = por %p96, %p97
    %p99 = scmp.ne.s32.totalorder %s91, %s93
    %p100 = scmp.eq.s32.totalorder %s20, 1
    %p101 = por %p99, %p100
    %p102 = scmp.ne.s32.totalorder %s93, %s94
    %p103 = scmp.eq.s32.totalorder %s20, 0
    %p104 = por %p102, %p103
    %p105 = scmp.ne.s32.totalorder %s93, %s94
    %p106 = scmp.eq.s32.totalorder %s21, 1
    %p107 = por %p105, %p106
    %p109 = scmp.ne.s32.totalorder %s94, %s108
    %p110 = scmp.eq.s32.totalorder %s21, 0
    %p111 = por %p109, %p110
    %s113 = sadd.s32 %s112, 1
    %p116 = scmp.eq.s32.totalorder %s15, 1
    %p117 = scmp.ne.s32.totalorder %s112, %s114
    %p118 = scmp.eq.s32.totalorder %s15, 0
    %p119 = por %p117, %p118
    %p120 = scmp.ne.s32.totalorder %s112, %s114
    %p121 = scmp.eq.s32.totalorder %s20, 1
    %p122 = por %p120, %p121
    %p123 = scmp.ne.s32.totalorder %s114, %s115
    %p124 = scmp.eq.s32.totalorder %s20, 0
    %p125 = por %p123, %p124
    %p126 = scmp.ne.s32.totalorder %s114, %s115
    %p127 = scmp.eq.s32.totalorder %s21, 1
    %p128 = por %p126, %p127
    %p130 = scmp.ne.s32.totalorder %s115, %s129
    %p131 = scmp.eq.s32.totalorder %s21, 0
    %p132 = por %p130, %p131
    %s134 = sadd.s32 %s133, 1
    %p137 = scmp.eq.s32.totalorder %s15, 1
    %p138 = scmp.ne.s32.totalorder %s133, %s135
    %p139 = scmp.eq.s32.totalorder %s15, 0
    %p140 = por %p138, %p139
    %p141 = scmp.ne.s32.totalorder %s133, %s135
    %p142 = scmp.eq.s32.totalorder %s20, 1
    %p143 = por %p141, %p142
    %p144 = scmp.ne.s32.totalorder %s135, %s136
    %p145 = scmp.eq.s32.totalorder %s20, 0
    %p146 = por %p144, %p145
    %p147 = scmp.ne.s32.totalorder %s135, %s136
    %p148 = scmp.eq.s32.totalorder %s21, 1
    %p149 = por %p147, %p148
    %p151 = scmp.ne.s32.totalorder %s136, %s150
    %p152 = scmp.eq.s32.totalorder %s21, 0
    %p153 = por %p151, %p152
    %s155 = sadd.s32 %s154, 1
    %p158 = scmp.eq.s32.totalorder %s15, 1
    %p159 = scmp.ne.s32.totalorder %s154, %s156
    %p160 = scmp.eq.s32.totalorder %s15, 0
    %p161 = por %p159, %p160
    %p162 = scmp.ne.s32.totalorder %s154, %s156
    %p163 = scmp.eq.s32.totalorder %s20, 1
    %p164 = por %p162, %p163
    %p165 = scmp.ne.s32.totalorder %s156, %s157
    %p166 = scmp.eq.s32.totalorder %s20, 0
    %p167 = por %p165, %p166
    %p168 = scmp.ne.s32.totalorder %s156, %s157
    %p169 = scmp.eq.s32.totalorder %s21, 1
    %p170 = por %p168, %p169
    %p172 = scmp.ne.s32.totalorder %s157, %s171
    %p173 = scmp.eq.s32.totalorder %s21, 0
    %p174 = por %p172, %p173
    %s176 = sadd.s32 %s175, 1
    %p179 = scmp.eq.s32.totalorder %s15, 1
    %p180 = scmp.ne.s32.totalorder %s175, %s177
    %p181 = scmp.eq.s32.totalorder %s15, 0
    %p182 = por %p180, %p181
    %p183 = scmp.ne.s32.totalorder %s175, %s177
    %p184 = scmp.eq.s32.totalorder %s20, 1
    %p185 = por %p183, %p184
    %p186 = scmp.ne.s32.totalorder %s177, %s178
    %p187 = scmp.eq.s32.totalorder %s20, 0
    %p188 = por %p186, %p187
    %p189 = scmp.ne.s32.totalorder %s177, %s178
    %p190 = scmp.eq.s32.totalorder %s21, 1
    %p191 = por %p189, %p190
    %p193 = scmp.ne.s32.totalorder %s178, %s192
    %p194 = scmp.eq.s32.totalorder %s21, 0
    %p195 = por %p193, %p194
    %s197 = sadd.s32 %s196, 1
    %p200 = scmp.eq.s32.totalorder %s15, 1
    %p201 = scmp.ne.s32.totalorder %s196, %s198
    %p202 = scmp.eq.s32.totalorder %s15, 0
    %p203 = por %p201, %p202
    %p204 = scmp.ne.s32.totalorder %s196, %s198
    %p205 = scmp.eq.s32.totalorder %s20, 1
    %p206 = por %p204, %p205
    %p207 = scmp.ne.s32.totalorder %s198, %s199
    %p208 = scmp.eq.s32.totalorder %s20, 0
    %p209 = por %p207, %p208
    %p210 = scmp.ne.s32.totalorder %s198, %s199
    %p211 = scmp.eq.s32.totalorder %s21, 1
    %p212 = por %p210, %p211
    %p214 = scmp.ne.s32.totalorder %s199, %s213
    %p215 = scmp.eq.s32.totalorder %s21, 0
    %p216 = por %p214, %p215
    %s217 = ssub.s32 %s15, %s22
    %p218 = scmp.eq.s32.totalorder %s217, 0
    %s220 = sadd.s32 %s219, 1
    %s221 = scalar_select %p218, %s219, %s220
    %p224 = pneg %p218
    %p225 = scmp.eq.s32.totalorder %s15, 1
    %p226 = por %p224, %p225
    %p227 = scmp.ne.s32.totalorder %s219, %s222
    %p228 = scmp.eq.s32.totalorder %s15, 0
    %p229 = por %p227, %p228
    %p230 = scmp.ne.s32.totalorder %s219, %s222
    %p231 = scmp.eq.s32.totalorder %s20, 1
    %p232 = por %p230, %p231
    %p233 = scmp.ne.s32.totalorder %s222, %s223
    %p234 = scmp.eq.s32.totalorder %s20, 0
    %p235 = por %p233, %p234
    %p236 = scmp.ne.s32.totalorder %s222, %s223
    %p237 = scmp.eq.s32.totalorder %s21, 1
    %p238 = por %p236, %p237
    %p240 = scmp.ne.s32.totalorder %s223, %s239
    %p241 = scmp.eq.s32.totalorder %s21, 0
    %p242 = por %p240, %p241
    %p243 = scmp.le.s32.totalorder 1, %s15
    %p244 = scmp.lt.s32.totalorder %s15, 3
    %p245 = pnand %p243, %p244
    %p246 = pneg %p245
    // Predicated region
    $region9: #{encoder_forward.3} parent=5 // pred_check
      _
    $region10: #{encoder_forward.3} parent=5 // pred_check_branch
      %248 = sbr.rel (%p245) target = $region12
    $region11: #{encoder_forward.3} parent=5 // pred_region
      %s249 = ssub.s32 %s15, 1
      // Predicated region
      $region13: #{encoder_forward.3} parent=11 // pred_check
        %p250 = pneg %p62
      $region14: #{encoder_forward.3} parent=11 // pred_check_branch
        %252 = sbr.rel (%p250) target = $region16
      $region15: #{encoder_forward.3} parent=11 // pred_region
        _
      $region16: #{encoder_forward.3} parent=11 // pred_fallthru
        _
      // Predicated region
      $region17: #{encoder_forward.3} parent=11 // pred_check
        %p253 = pneg %p83
      $region18: #{encoder_forward.3} parent=11 // pred_check_branch
        %255 = sbr.rel (%p253) target = $region20
      $region19: #{encoder_forward.3} parent=11 // pred_region
        _
      $region20: #{encoder_forward.3} parent=11 // pred_fallthru
        _
      // Predicated region
      $region21: #{encoder_forward.3} parent=11 // pred_check
        %p256 = pneg %p104
      $region22: #{encoder_forward.3} parent=11 // pred_check_branch
        %258 = sbr.rel (%p256) target = $region24
      $region23: #{encoder_forward.3} parent=11 // pred_region
        _
      $region24: #{encoder_forward.3} parent=11 // pred_fallthru
        _
      // Predicated region
      $region25: #{encoder_forward.3} parent=11 // pred_check
        %p259 = pneg %p125
      $region26: #{encoder_forward.3} parent=11 // pred_check_branch
        %261 = sbr.rel (%p259) target = $region28
      $region27: #{encoder_forward.3} parent=11 // pred_region
        _
      $region28: #{encoder_forward.3} parent=11 // pred_fallthru
        _
      // Predicated region
      $region29: #{encoder_forward.3} parent=11 // pred_check
        %p262 = pneg %p146
      $region30: #{encoder_forward.3} parent=11 // pred_check_branch
        %264 = sbr.rel (%p262) target = $region32
      $region31: #{encoder_forward.3} parent=11 // pred_region
        _
      $region32: #{encoder_forward.3} parent=11 // pred_fallthru
        _
      // Predicated region
      $region33: #{encoder_forward.3} parent=11 // pred_check
        %p265 = pneg %p167
      $region34: #{encoder_forward.3} parent=11 // pred_check_branch
        %267 = sbr.rel (%p265) target = $region36
      $region35: #{encoder_forward.3} parent=11 // pred_region
        _
      $region36: #{encoder_forward.3} parent=11 // pred_fallthru
        _
      // Predicated region
      $region37: #{encoder_forward.3} parent=11 // pred_check
        %p268 = pneg %p188
      $region38: #{encoder_forward.3} parent=11 // pred_check_branch
        %270 = sbr.rel (%p268) target = $region40
      $region39: #{encoder_forward.3} parent=11 // pred_region
        _
      $region40: #{encoder_forward.3} parent=11 // pred_fallthru
        _
      // Predicated region
      $region41: #{encoder_forward.3} parent=11 // pred_check
        %p271 = pneg %p209
      $region42: #{encoder_forward.3} parent=11 // pred_check_branch
        %273 = sbr.rel (%p271) target = $region44
      $region43: #{encoder_forward.3} parent=11 // pred_region
        _
      $region44: #{encoder_forward.3} parent=11 // pred_fallthru
        _
    $region12: #{encoder_forward.3} parent=5 // pred_fallthru
      _
    %p274 = scmp.lt.s32.totalorder %s15, 2
    // Predicated region
    $region45: #{encoder_forward.3} parent=5 // pred_check
      %p275 = pneg %p274
    $region46: #{encoder_forward.3} parent=5 // pred_check_branch
      %277 = sbr.rel (%p275) target = $region48
    $region47: #{encoder_forward.3} parent=5 // pred_region
      // Predicated region
      $region49: #{encoder_forward.3} parent=47 // pred_check
        %p278 = pneg %p35
      $region50: #{encoder_forward.3} parent=47 // pred_check_branch
        %280 = sbr.rel (%p278) target = $region52
      $region51: #{encoder_forward.3} parent=47 // pred_region
        %s281 = smul.u32 2, %s15
        %p282 = scmp.lt.s32.totalorder %s281, 3
        %s283 = scalar_select %p282, %s281, 3
        %s284 = smul.addr %s283, 16
        %s285 = smul.addr %s284, 4
        %s286 = scalar_lea.vmem %s0, %s285
        %s287 = smul.u32 2, %s15
      $region52: #{encoder_forward.3} parent=47 // pred_fallthru
        _
    $region48: #{encoder_forward.3} parent=5 // pred_fallthru
      _
    %p288 = scmp.le.s32.totalorder 1, %s15
    %p289 = scmp.lt.s32.totalorder %s15, 3
    %p290 = pnand %p288, %p289
    %p291 = pneg %p290
    // Predicated region
    $region53: #{encoder_forward.3} parent=5 // pred_check
      _
    $region54: #{encoder_forward.3} parent=5 // pred_check_branch
      %293 = sbr.rel (%p290) target = $region56
    $region55: #{encoder_forward.3} parent=5 // pred_region
      %s294 = ssub.s32 %s15, 1
      %s295 = smul.u32 2, %s20
      %p296 = scmp.lt.s32.totalorder %s295, 3
      %s297 = scalar_select %p296, %s295, 3
      %s298 = smul.addr %s297, 16
      %s299 = smul.addr %s298, 4
      %s300 = scalar_lea.vmem %s0, %s299
      %p301 = pneg %p41
      %p302 = pneg %p38
      %p303 = pneg %p62
      %p304 = pneg %p59
      %p305 = pneg %p83
      %p306 = pneg %p80
      %p307 = pneg %p104
      %p308 = pneg %p101
      %p309 = pneg %p125
      %p310 = pneg %p122
      %p311 = pneg %p146
      %p312 = pneg %p143
      %p313 = pneg %p167
      %p314 = pneg %p164
      %p315 = pneg %p188
      %p316 = pneg %p185
      %p317 = pneg %p209
      %p318 = pneg %p206
      %p319 = pneg %p235
      %p320 = pneg %p232
      %s321 = smul.u32 2, %s20
      %p322 = scmp.lt.s32.totalorder %s321, 3
      %s323 = scalar_select %p322, %s321, 3
      %s324 = smul.addr %s323, 3
      %s325 = smul.addr %s324, 8
      %s326 = scalar_lea.vmem %s9, %s325
      %s327 = smul.u32 2, %s20
      %p328 = scmp.lt.s32.totalorder %s327, 3
      %s329 = scalar_select %p328, %s327, 3
      %s330 = smul.addr %s329, 16
      %s331 = smul.addr %s330, 4
      %s332 = scalar_lea.vmem %s0, %s331
      %s333 = smul.u32 2, %s20
      %s334 = smul.u32 2, %s20
      %p335 = scmp.lt.s32.totalorder %s334, 3
      %s336 = scalar_select %p335, %s334, 3
      %s337 = smul.addr %s336, 3
      %s338 = smul.addr %s337, 8
      %s339 = scalar_lea.vmem %s9, %s338
      %s340 = smul.u32 2, %s20
      %v342 = vld [vmem:[%s332] sm:$0xff]
      %v343 = vld [vmem:[%s332 + $0x8] sm:$0xff]
      %v344 = vld [vmem:[%s332 + $0x10] sm:$0xff]
      %v345 = vld [vmem:[%s332 + $0x18] sm:$0xff]
      %v346 = vld [vmem:[%s332 + $0x20] sm:$0xff]
      %v347 = vld [vmem:[%s332 + $0x28] sm:$0xff]
      %v348 = vld [vmem:[%s332 + $0x30] sm:$0xff]
      %v349 = vld [vmem:[%s332 + $0x38] sm:$0xff]
      %v350 = vld [vmem:[%s332 + $0x40] sm:$0x33]
      %v351 = vld [vmem:[%s332 + $0x48] sm:$0x33]
      %v352 = vld [vmem:[%s332 + $0x50] sm:$0x33]
      %v353 = vld [vmem:[%s332 + $0x58] sm:$0x33]
      %v354 = vld [vmem:[%s332 + $0x60] sm:$0x33]
      %v355 = vld [vmem:[%s332 + $0x68] sm:$0x33]
      %v356 = vld [vmem:[%s332 + $0x70] sm:$0x33]
      %v357 = vld [vmem:[%s332 + $0x78] sm:$0x33]
      %v358 = vld [vmem:[%s1] sm:$0xf]
      %v359 = vld [vmem:[%s1 + $0x4] sm:$0xf]
      %v360 = vld [vmem:[%s1 + $0x8] sm:$0xf]
      %v361 = vld [vmem:[%s1 + $0xc] sm:$0xf]
      %v362 = vld [vmem:[%s1 + $0x10] sm:$0xf]
      %v363 = vld [vmem:[%s1 + $0x14] sm:$0xf]
      %v364 = vld [vmem:[%s1 + $0x18] sm:$0xf]
      %v365 = vld [vmem:[%s1 + $0x1c] sm:$0xf]
      %v366 = vld [vmem:[%s1 + $0x20] sm:$0xf]
      %v367 = vld [vmem:[%s1 + $0x24] sm:$0xf]
      %v368 = vld [vmem:[%s1 + $0x28] sm:$0xf]
      %v369 = vld [vmem:[%s1 + $0x2c] sm:$0xf]
      %v370 = vld [vmem:[%s1 + $0x30] sm:$0xf]
      %v371 = vld [vmem:[%s1 + $0x34] sm:$0xf]
      %v372 = vld [vmem:[%s1 + $0x38] sm:$0xf]
      %v373 = vld [vmem:[%s1 + $0x3c] sm:$0xf]
      %v374 = vld [vmem:[%s1 + $0x40] sm:$0xf]
      %v375 = vld [vmem:[%s1 + $0x44] sm:$0xf]
      %v376 = vld [vmem:[%s1 + $0x48] sm:$0xf]
      %v377 = vld [vmem:[%s1 + $0x4c] sm:$0xf]
      %v378 = vld [vmem:[%s1 + $0x50] sm:$0xf]
      %v379 = vld [vmem:[%s1 + $0x54] sm:$0xf]
      %v380 = vld [vmem:[%s1 + $0x58] sm:$0xf]
      %v381 = vld [vmem:[%s1 + $0x5c] sm:$0xf]
      %v382 = vld [vmem:[%s1 + $0x60] sm:$0xf]
      %v383 = vld [vmem:[%s1 + $0x64] sm:$0xf]
      %v384 = vld [vmem:[%s1 + $0x68] sm:$0xf]
      %v385 = vld [vmem:[%s1 + $0x6c] sm:$0xf]
      %v386 = vld [vmem:[%s1 + $0x70] sm:$0xf]
      %v387 = vld [vmem:[%s1 + $0x74] sm:$0xf]
      %v388 = vld [vmem:[%s1 + $0x78] sm:$0xf]
      %v389 = vld [vmem:[%s1 + $0x7c] sm:$0xf]
      %v390 = vld [vmem:[%s1 + $0x80] sm:$0xf]
      %v391 = vld [vmem:[%s1 + $0x84] sm:$0xf]
      %v392 = vld [vmem:[%s1 + $0x88] sm:$0xf]
      %v393 = vld [vmem:[%s1 + $0x8c] sm:$0xf]
      %v394 = vld [vmem:[%s1 + $0x90] sm:$0xf]
      %v395 = vld [vmem:[%s1 + $0x94] sm:$0xf]
      %v396 = vld [vmem:[%s1 + $0x98] sm:$0xf]
      %v397 = vld [vmem:[%s1 + $0x9c] sm:$0xf]
      %v398 = vld [vmem:[%s1 + $0xa0] sm:$0xf]
      %v399 = vld [vmem:[%s1 + $0xa4] sm:$0xf]
      %v400 = vld [vmem:[%s1 + $0xa8] sm:$0xf]
      %v401 = vld [vmem:[%s1 + $0xac] sm:$0xf]
      %v402 = vld [vmem:[%s1 + $0xb0] sm:$0xf]
      %v403 = vld [vmem:[%s1 + $0xb4] sm:$0xf]
      %v404 = vld [vmem:[%s1 + $0xb8] sm:$0xf]
      %v405 = vld [vmem:[%s1 + $0xbc] sm:$0xf]
      %v406 = vld [vmem:[%s1 + $0xc0] sm:$0xf]
      %v407 = vld [vmem:[%s1 + $0xc4] sm:$0xf]
      %v408 = vld [vmem:[%s1 + $0xc8] sm:$0xf]
      %v409 = vld [vmem:[%s1 + $0xcc] sm:$0xf]
      %v410 = vld [vmem:[%s1 + $0xd0] sm:$0xf]
      %v411 = vld [vmem:[%s1 + $0xd4] sm:$0xf]
      %v412 = vld [vmem:[%s1 + $0xd8] sm:$0xf]
      %v413 = vld [vmem:[%s1 + $0xdc] sm:$0xf]
      %v414 = vld [vmem:[%s1 + $0xe0] sm:$0xf]
      %v415 = vld [vmem:[%s1 + $0xe4] sm:$0xf]
      %v416 = vld [vmem:[%s1 + $0xe8] sm:$0xf]
      %v417 = vld [vmem:[%s1 + $0xec] sm:$0xf]
      %v418 = vld [vmem:[%s1 + $0xf0] sm:$0xf]
      %v419 = vld [vmem:[%s1 + $0xf4] sm:$0xf]
      %v420 = vld [vmem:[%s1 + $0xf8] sm:$0xf]
      %v421 = vld [vmem:[%s1 + $0xfc] sm:$0xf]
      %v422 = vld [vmem:[%s1 + $0x100] sm:$0xf]
      %v423 = vld [vmem:[%s1 + $0x104] sm:$0xf]
      %v424 = vld [vmem:[%s1 + $0x108] sm:$0xf]
      %v425 = vld [vmem:[%s1 + $0x10c] sm:$0xf]
      %v426 = vld [vmem:[%s1 + $0x110] sm:$0xf]
      %v427 = vld [vmem:[%s1 + $0x114] sm:$0xf]
      %v428 = vld [vmem:[%s1 + $0x118] sm:$0xf]
      %v429 = vld [vmem:[%s1 + $0x11c] sm:$0xf]
      %v430 = vld [vmem:[%s1 + $0x120] sm:$0xf]
      %v431 = vld [vmem:[%s1 + $0x124] sm:$0xf]
      %v432 = vld [vmem:[%s1 + $0x128] sm:$0xf]
      %v433 = vld [vmem:[%s1 + $0x12c] sm:$0xf]
      %v434 = vld [vmem:[%s1 + $0x130] sm:$0xf]
      %v435 = vld [vmem:[%s1 + $0x134] sm:$0xf]
      %v436 = vld [vmem:[%s1 + $0x138] sm:$0xf]
      %v437 = vld [vmem:[%s1 + $0x13c] sm:$0xf]
      %v438 = vld [vmem:[%s1 + $0x140] sm:$0xf]
      %v439 = vld [vmem:[%s1 + $0x144] sm:$0xf]
      %v440 = vld [vmem:[%s1 + $0x148] sm:$0xf]
      %v441 = vld [vmem:[%s1 + $0x14c] sm:$0xf]
      %v442 = vld [vmem:[%s1 + $0x150] sm:$0xf]
      %v443 = vld [vmem:[%s1 + $0x154] sm:$0xf]
      %v444 = vld [vmem:[%s1 + $0x158] sm:$0xf]
      %v445 = vld [vmem:[%s1 + $0x15c] sm:$0xf]
      %v446 = vld [vmem:[%s1 + $0x160] sm:$0xf]
      %v447 = vld [vmem:[%s1 + $0x164] sm:$0xf]
      %v448 = vld [vmem:[%s1 + $0x168] sm:$0xf]
      %v449 = vld [vmem:[%s1 + $0x16c] sm:$0xf]
      %v450 = vld [vmem:[%s1 + $0x170] sm:$0xf]
      %v451 = vld [vmem:[%s1 + $0x174] sm:$0xf]
      %v452 = vld [vmem:[%s1 + $0x178] sm:$0xf]
      %v453 = vld [vmem:[%s1 + $0x17c] sm:$0xf]
      %v454 = vld [vmem:[%s1 + $0x180] sm:$0xf]
      %v455 = vld [vmem:[%s1 + $0x184] sm:$0xf]
      %v456 = vld [vmem:[%s1 + $0x188] sm:$0xf]
      %v457 = vld [vmem:[%s1 + $0x18c] sm:$0xf]
      %v458 = vld [vmem:[%s1 + $0x190] sm:$0xf]
      %v459 = vld [vmem:[%s1 + $0x194] sm:$0xf]
      %v460 = vld [vmem:[%s1 + $0x198] sm:$0xf]
      %v461 = vld [vmem:[%s1 + $0x19c] sm:$0xf]
      %v462 = vld [vmem:[%s1 + $0x1a0] sm:$0xf]
      %v463 = vld [vmem:[%s1 + $0x1a4] sm:$0xf]
      %v464 = vld [vmem:[%s1 + $0x1a8] sm:$0xf]
      %v465 = vld [vmem:[%s1 + $0x1ac] sm:$0xf]
      %v466 = vld [vmem:[%s1 + $0x1b0] sm:$0xf]
      %v467 = vld [vmem:[%s1 + $0x1b4] sm:$0xf]
      %v468 = vld [vmem:[%s1 + $0x1b8] sm:$0xf]
      %v469 = vld [vmem:[%s1 + $0x1bc] sm:$0xf]
      %v470 = vld [vmem:[%s1 + $0x1c0] sm:$0xf]
      %v471 = vld [vmem:[%s1 + $0x1c4] sm:$0xf]
      %v472 = vld [vmem:[%s1 + $0x1c8] sm:$0xf]
      %v473 = vld [vmem:[%s1 + $0x1cc] sm:$0xf]
      %v474 = vld [vmem:[%s1 + $0x1d0] sm:$0xf]
      %v475 = vld [vmem:[%s1 + $0x1d4] sm:$0xf]
      %v476 = vld [vmem:[%s1 + $0x1d8] sm:$0xf]
      %v477 = vld [vmem:[%s1 + $0x1dc] sm:$0xf]
      %v478 = vld [vmem:[%s1 + $0x1e0] sm:$0xf]
      %v479 = vld [vmem:[%s1 + $0x1e4] sm:$0xf]
      %v480 = vld [vmem:[%s1 + $0x1e8] sm:$0xf]
      %v481 = vld [vmem:[%s1 + $0x1ec] sm:$0xf]
      %v482 = vld [vmem:[%s1 + $0x1f0] sm:$0xf]
      %v483 = vld [vmem:[%s1 + $0x1f4] sm:$0xf]
      %v484 = vld [vmem:[%s1 + $0x1f8] sm:$0xf]
      %v485 = vld [vmem:[%s1 + $0x1fc] sm:$0xf]
      %v486 = vld [vmem:[%s1 + $0x200] sm:$0xf]
      %v487 = vld [vmem:[%s1 + $0x204] sm:$0xf]
      %v488 = vld [vmem:[%s1 + $0x208] sm:$0xf]
      %v489 = vld [vmem:[%s1 + $0x20c] sm:$0xf]
      %v490 = vld [vmem:[%s1 + $0x210] sm:$0xf]
      %v491 = vld [vmem:[%s1 + $0x214] sm:$0xf]
      %v492 = vld [vmem:[%s1 + $0x218] sm:$0xf]
      %v493 = vld [vmem:[%s1 + $0x21c] sm:$0xf]
      %v494 = vld [vmem:[%s1 + $0x220] sm:$0xf]
      %v495 = vld [vmem:[%s1 + $0x224] sm:$0xf]
      %v496 = vld [vmem:[%s1 + $0x228] sm:$0xf]
      %v497 = vld [vmem:[%s1 + $0x22c] sm:$0xf]
      %v498 = vld [vmem:[%s1 + $0x230] sm:$0xf]
      %v499 = vld [vmem:[%s1 + $0x234] sm:$0xf]
      %v500 = vld [vmem:[%s1 + $0x238] sm:$0xf]
      %v501 = vld [vmem:[%s1 + $0x23c] sm:$0xf]
      %v502 = vld [vmem:[%s1 + $0x240] sm:$0xf]
      %v503 = vld [vmem:[%s1 + $0x244] sm:$0xf]
      %v504 = vld [vmem:[%s1 + $0x248] sm:$0xf]
      %v505 = vld [vmem:[%s1 + $0x24c] sm:$0xf]
      %v506 = vld [vmem:[%s1 + $0x250] sm:$0xf]
      %v507 = vld [vmem:[%s1 + $0x254] sm:$0xf]
      %v508 = vld [vmem:[%s1 + $0x258] sm:$0xf]
      %v509 = vld [vmem:[%s1 + $0x25c] sm:$0xf]
      %v510 = vld [vmem:[%s1 + $0x260] sm:$0xf]
      %v511 = vld [vmem:[%s1 + $0x264] sm:$0xf]
      %v512 = vld [vmem:[%s1 + $0x268] sm:$0xf]
      %v513 = vld [vmem:[%s1 + $0x26c] sm:$0xf]
      %v514 = vld [vmem:[%s1 + $0x270] sm:$0xf]
      %v515 = vld [vmem:[%s1 + $0x274] sm:$0xf]
      %v516 = vld [vmem:[%s1 + $0x278] sm:$0xf]
      %v517 = vld [vmem:[%s1 + $0x27c] sm:$0xf]
      %v518 = vld [vmem:[%s1 + $0x280] sm:$0xf]
      %v519 = vld [vmem:[%s1 + $0x284] sm:$0xf]
      %v520 = vld [vmem:[%s1 + $0x288] sm:$0xf]
      %v521 = vld [vmem:[%s1 + $0x28c] sm:$0xf]
      %v522 = vld [vmem:[%s1 + $0x290] sm:$0xf]
      %v523 = vld [vmem:[%s1 + $0x294] sm:$0xf]
      %v524 = vld [vmem:[%s1 + $0x298] sm:$0xf]
      %v525 = vld [vmem:[%s1 + $0x29c] sm:$0xf]
      %v526 = vld [vmem:[%s1 + $0x2a0] sm:$0xf]
      %v527 = vld [vmem:[%s1 + $0x2a4] sm:$0xf]
      %v528 = vld [vmem:[%s1 + $0x2a8] sm:$0xf]
      %v529 = vld [vmem:[%s1 + $0x2ac] sm:$0xf]
      %v530 = vld [vmem:[%s1 + $0x2b0] sm:$0xf]
      %v531 = vld [vmem:[%s1 + $0x2b4] sm:$0xf]
      %v532 = vld [vmem:[%s1 + $0x2b8] sm:$0xf]
      %v533 = vld [vmem:[%s1 + $0x2bc] sm:$0xf]
      %v534 = vld [vmem:[%s1 + $0x2c0] sm:$0xf]
      %v535 = vld [vmem:[%s1 + $0x2c4] sm:$0xf]
      %v536 = vld [vmem:[%s1 + $0x2c8] sm:$0xf]
      %v537 = vld [vmem:[%s1 + $0x2cc] sm:$0xf]
      %v538 = vld [vmem:[%s1 + $0x2d0] sm:$0xf]
      %v539 = vld [vmem:[%s1 + $0x2d4] sm:$0xf]
      %v540 = vld [vmem:[%s1 + $0x2d8] sm:$0xf]
      %v541 = vld [vmem:[%s1 + $0x2dc] sm:$0xf]
      %v542 = vld [vmem:[%s1 + $0x2e0] sm:$0xf]
      %v543 = vld [vmem:[%s1 + $0x2e4] sm:$0xf]
      %v544 = vld [vmem:[%s1 + $0x2e8] sm:$0xf]
      %v545 = vld [vmem:[%s1 + $0x2ec] sm:$0xf]
      %v546 = vld [vmem:[%s1 + $0x2f0] sm:$0xf]
      %v547 = vld [vmem:[%s1 + $0x2f4] sm:$0xf]
      %v548 = vld [vmem:[%s1 + $0x2f8] sm:$0xf]
      %v549 = vld [vmem:[%s1 + $0x2fc] sm:$0xf]
      %v550 = vld [vmem:[%s1 + $0x300] sm:$0xf]
      %v551 = vld [vmem:[%s1 + $0x304] sm:$0xf]
      %v552 = vld [vmem:[%s1 + $0x308] sm:$0xf]
      %v553 = vld [vmem:[%s1 + $0x30c] sm:$0xf]
      %v554 = vld [vmem:[%s1 + $0x310] sm:$0xf]
      %v555 = vld [vmem:[%s1 + $0x314] sm:$0xf]
      %v556 = vld [vmem:[%s1 + $0x318] sm:$0xf]
      %v557 = vld [vmem:[%s1 + $0x31c] sm:$0xf]
      %v558 = vld [vmem:[%s1 + $0x320] sm:$0xf]
      %v559 = vld [vmem:[%s1 + $0x324] sm:$0xf]
      %v560 = vld [vmem:[%s1 + $0x328] sm:$0xf]
      %v561 = vld [vmem:[%s1 + $0x32c] sm:$0xf]
      %v562 = vld [vmem:[%s1 + $0x330] sm:$0xf]
      %v563 = vld [vmem:[%s1 + $0x334] sm:$0xf]
      %v564 = vld [vmem:[%s1 + $0x338] sm:$0xf]
      %v565 = vld [vmem:[%s1 + $0x33c] sm:$0xf]
      %v566 = vld [vmem:[%s1 + $0x340] sm:$0xf]
      %v567 = vld [vmem:[%s1 + $0x344] sm:$0xf]
      %v568 = vld [vmem:[%s1 + $0x348] sm:$0xf]
      %v569 = vld [vmem:[%s1 + $0x34c] sm:$0xf]
      %v570 = vld [vmem:[%s1 + $0x350] sm:$0xf]
      %v571 = vld [vmem:[%s1 + $0x354] sm:$0xf]
      %v572 = vld [vmem:[%s1 + $0x358] sm:$0xf]
      %v573 = vld [vmem:[%s1 + $0x35c] sm:$0xf]
      %v574 = vld [vmem:[%s1 + $0x360] sm:$0xf]
      %v575 = vld [vmem:[%s1 + $0x364] sm:$0xf]
      %v576 = vld [vmem:[%s1 + $0x368] sm:$0xf]
      %v577 = vld [vmem:[%s1 + $0x36c] sm:$0xf]
      %v578 = vld [vmem:[%s1 + $0x370] sm:$0xf]
      %v579 = vld [vmem:[%s1 + $0x374] sm:$0xf]
      %v580 = vld [vmem:[%s1 + $0x378] sm:$0xf]
      %v581 = vld [vmem:[%s1 + $0x37c] sm:$0xf]
      %v582 = vld [vmem:[%s1 + $0x380] sm:$0xf]
      %v583 = vld [vmem:[%s1 + $0x384] sm:$0xf]
      %v584 = vld [vmem:[%s1 + $0x388] sm:$0xf]
      %v585 = vld [vmem:[%s1 + $0x38c] sm:$0xf]
      %v586 = vld [vmem:[%s1 + $0x390] sm:$0xf]
      %v587 = vld [vmem:[%s1 + $0x394] sm:$0xf]
      %v588 = vld [vmem:[%s1 + $0x398] sm:$0xf]
      %v589 = vld [vmem:[%s1 + $0x39c] sm:$0xf]
      %v590 = vld [vmem:[%s1 + $0x3a0] sm:$0xf]
      %v591 = vld [vmem:[%s1 + $0x3a4] sm:$0xf]
      %v592 = vld [vmem:[%s1 + $0x3a8] sm:$0xf]
      %v593 = vld [vmem:[%s1 + $0x3ac] sm:$0xf]
      %v594 = vld [vmem:[%s1 + $0x3b0] sm:$0xf]
      %v595 = vld [vmem:[%s1 + $0x3b4] sm:$0xf]
      %v596 = vld [vmem:[%s1 + $0x3b8] sm:$0xf]
      %v597 = vld [vmem:[%s1 + $0x3bc] sm:$0xf]
      %v598 = vld [vmem:[%s1 + $0x3c0] sm:$0xf]
      %v599 = vld [vmem:[%s1 + $0x3c4] sm:$0xf]
      %v600 = vld [vmem:[%s1 + $0x3c8] sm:$0xf]
      %v601 = vld [vmem:[%s1 + $0x3cc] sm:$0xf]
      %v602 = vld [vmem:[%s1 + $0x3d0] sm:$0xf]
      %v603 = vld [vmem:[%s1 + $0x3d4] sm:$0xf]
      %v604 = vld [vmem:[%s1 + $0x3d8] sm:$0xf]
      %v605 = vld [vmem:[%s1 + $0x3dc] sm:$0xf]
      %v606 = vld [vmem:[%s1 + $0x3e0] sm:$0xf]
      %v607 = vld [vmem:[%s1 + $0x3e4] sm:$0xf]
      %v608 = vld [vmem:[%s1 + $0x3e8] sm:$0xf]
      %v609 = vld [vmem:[%s1 + $0x3ec] sm:$0xf]
      %v610 = vld [vmem:[%s1 + $0x3f0] sm:$0xf]
      %v611 = vld [vmem:[%s1 + $0x3f4] sm:$0xf]
      %v612 = vld [vmem:[%s1 + $0x3f8] sm:$0xf]
      %v613 = vld [vmem:[%s1 + $0x3fc] sm:$0xf]
      %s614 = scalar_lea.vmem %s1, 1024
      %v615 = vld [vmem:[%s614] sm:$0xf]
      %v616 = vld [vmem:[%s614 + $0x4] sm:$0xf]
      %v617 = vld [vmem:[%s614 + $0x8] sm:$0xf]
      %v618 = vld [vmem:[%s614 + $0xc] sm:$0xf]
      %v619 = vld [vmem:[%s614 + $0x10] sm:$0xf]
      %v620 = vld [vmem:[%s614 + $0x14] sm:$0xf]
      %v621 = vld [vmem:[%s614 + $0x18] sm:$0xf]
      %v622 = vld [vmem:[%s614 + $0x1c] sm:$0xf]
      %v623 = vld [vmem:[%s614 + $0x20] sm:$0xf]
      %v624 = vld [vmem:[%s614 + $0x24] sm:$0xf]
      %v625 = vld [vmem:[%s614 + $0x28] sm:$0xf]
      %v626 = vld [vmem:[%s614 + $0x2c] sm:$0xf]
      %v627 = vld [vmem:[%s614 + $0x30] sm:$0xf]
      %v628 = vld [vmem:[%s614 + $0x34] sm:$0xf]
      %v629 = vld [vmem:[%s614 + $0x38] sm:$0xf]
      %v630 = vld [vmem:[%s614 + $0x3c] sm:$0xf]
      %v631 = vld [vmem:[%s614 + $0x40] sm:$0xf]
      %v632 = vld [vmem:[%s614 + $0x44] sm:$0xf]
      %v633 = vld [vmem:[%s614 + $0x48] sm:$0xf]
      %v634 = vld [vmem:[%s614 + $0x4c] sm:$0xf]
      %v635 = vld [vmem:[%s614 + $0x50] sm:$0xf]
      %v636 = vld [vmem:[%s614 + $0x54] sm:$0xf]
      %v637 = vld [vmem:[%s614 + $0x58] sm:$0xf]
      %v638 = vld [vmem:[%s614 + $0x5c] sm:$0xf]
      %v639 = vld [vmem:[%s614 + $0x60] sm:$0xf]
      %v640 = vld [vmem:[%s614 + $0x64] sm:$0xf]
      %v641 = vld [vmem:[%s614 + $0x68] sm:$0xf]
      %v642 = vld [vmem:[%s614 + $0x6c] sm:$0xf]
      %v643 = vld [vmem:[%s614 + $0x70] sm:$0xf]
      %v644 = vld [vmem:[%s614 + $0x74] sm:$0xf]
      %v645 = vld [vmem:[%s614 + $0x78] sm:$0xf]
      %v646 = vld [vmem:[%s614 + $0x7c] sm:$0xf]
      %v647 = vld [vmem:[%s614 + $0x80] sm:$0xf]
      %v648 = vld [vmem:[%s614 + $0x84] sm:$0xf]
      %v649 = vld [vmem:[%s614 + $0x88] sm:$0xf]
      %v650 = vld [vmem:[%s614 + $0x8c] sm:$0xf]
      %v651 = vld [vmem:[%s614 + $0x90] sm:$0xf]
      %v652 = vld [vmem:[%s614 + $0x94] sm:$0xf]
      %v653 = vld [vmem:[%s614 + $0x98] sm:$0xf]
      %v654 = vld [vmem:[%s614 + $0x9c] sm:$0xf]
      %v655 = vld [vmem:[%s614 + $0xa0] sm:$0xf]
      %v656 = vld [vmem:[%s614 + $0xa4] sm:$0xf]
      %v657 = vld [vmem:[%s614 + $0xa8] sm:$0xf]
      %v658 = vld [vmem:[%s614 + $0xac] sm:$0xf]
      %v659 = vld [vmem:[%s614 + $0xb0] sm:$0xf]
      %v660 = vld [vmem:[%s614 + $0xb4] sm:$0xf]
      %v661 = vld [vmem:[%s614 + $0xb8] sm:$0xf]
      %v662 = vld [vmem:[%s614 + $0xbc] sm:$0xf]
      %v663 = vld [vmem:[%s614 + $0xc0] sm:$0xf]
      %v664 = vld [vmem:[%s614 + $0xc4] sm:$0xf]
      %v665 = vld [vmem:[%s614 + $0xc8] sm:$0xf]
      %v666 = vld [vmem:[%s614 + $0xcc] sm:$0xf]
      %v667 = vld [vmem:[%s614 + $0xd0] sm:$0xf]
      %v668 = vld [vmem:[%s614 + $0xd4] sm:$0xf]
      %v669 = vld [vmem:[%s614 + $0xd8] sm:$0xf]
      %v670 = vld [vmem:[%s614 + $0xdc] sm:$0xf]
      %v671 = vld [vmem:[%s614 + $0xe0] sm:$0xf]
      %v672 = vld [vmem:[%s614 + $0xe4] sm:$0xf]
      %v673 = vld [vmem:[%s614 + $0xe8] sm:$0xf]
      %v674 = vld [vmem:[%s614 + $0xec] sm:$0xf]
      %v675 = vld [vmem:[%s614 + $0xf0] sm:$0xf]
      %v676 = vld [vmem:[%s614 + $0xf4] sm:$0xf]
      %v677 = vld [vmem:[%s614 + $0xf8] sm:$0xf]
      %v678 = vld [vmem:[%s614 + $0xfc] sm:$0xf]
      %v679 = vld [vmem:[%s614 + $0x100] sm:$0xf]
      %v680 = vld [vmem:[%s614 + $0x104] sm:$0xf]
      %v681 = vld [vmem:[%s614 + $0x108] sm:$0xf]
      %v682 = vld [vmem:[%s614 + $0x10c] sm:$0xf]
      %v683 = vld [vmem:[%s614 + $0x110] sm:$0xf]
      %v684 = vld [vmem:[%s614 + $0x114] sm:$0xf]
      %v685 = vld [vmem:[%s614 + $0x118] sm:$0xf]
      %v686 = vld [vmem:[%s614 + $0x11c] sm:$0xf]
      %v687 = vld [vmem:[%s614 + $0x120] sm:$0xf]
      %v688 = vld [vmem:[%s614 + $0x124] sm:$0xf]
      %v689 = vld [vmem:[%s614 + $0x128] sm:$0xf]
      %v690 = vld [vmem:[%s614 + $0x12c] sm:$0xf]
      %v691 = vld [vmem:[%s614 + $0x130] sm:$0xf]
      %v692 = vld [vmem:[%s614 + $0x134] sm:$0xf]
      %v693 = vld [vmem:[%s614 + $0x138] sm:$0xf]
      %v694 = vld [vmem:[%s614 + $0x13c] sm:$0xf]
      %v695 = vld [vmem:[%s614 + $0x140] sm:$0xf]
      %v696 = vld [vmem:[%s614 + $0x144] sm:$0xf]
      %v697 = vld [vmem:[%s614 + $0x148] sm:$0xf]
      %v698 = vld [vmem:[%s614 + $0x14c] sm:$0xf]
      %v699 = vld [vmem:[%s614 + $0x150] sm:$0xf]
      %v700 = vld [vmem:[%s614 + $0x154] sm:$0xf]
      %v701 = vld [vmem:[%s614 + $0x158] sm:$0xf]
      %v702 = vld [vmem:[%s614 + $0x15c] sm:$0xf]
      %v703 = vld [vmem:[%s614 + $0x160] sm:$0xf]
      %v704 = vld [vmem:[%s614 + $0x164] sm:$0xf]
      %v705 = vld [vmem:[%s614 + $0x168] sm:$0xf]
      %v706 = vld [vmem:[%s614 + $0x16c] sm:$0xf]
      %v707 = vld [vmem:[%s614 + $0x170] sm:$0xf]
      %v708 = vld [vmem:[%s614 + $0x174] sm:$0xf]
      %v709 = vld [vmem:[%s614 + $0x178] sm:$0xf]
      %v710 = vld [vmem:[%s614 + $0x17c] sm:$0xf]
      %v711 = vld [vmem:[%s614 + $0x180] sm:$0xf]
      %v712 = vld [vmem:[%s614 + $0x184] sm:$0xf]
      %v713 = vld [vmem:[%s614 + $0x188] sm:$0xf]
      %v714 = vld [vmem:[%s614 + $0x18c] sm:$0xf]
      %v715 = vld [vmem:[%s614 + $0x190] sm:$0xf]
      %v716 = vld [vmem:[%s614 + $0x194] sm:$0xf]
      %v717 = vld [vmem:[%s614 + $0x198] sm:$0xf]
      %v718 = vld [vmem:[%s614 + $0x19c] sm:$0xf]
      %v719 = vld [vmem:[%s614 + $0x1a0] sm:$0xf]
      %v720 = vld [vmem:[%s614 + $0x1a4] sm:$0xf]
      %v721 = vld [vmem:[%s614 + $0x1a8] sm:$0xf]
      %v722 = vld [vmem:[%s614 + $0x1ac] sm:$0xf]
      %v723 = vld [vmem:[%s614 + $0x1b0] sm:$0xf]
      %v724 = vld [vmem:[%s614 + $0x1b4] sm:$0xf]
      %v725 = vld [vmem:[%s614 + $0x1b8] sm:$0xf]
      %v726 = vld [vmem:[%s614 + $0x1bc] sm:$0xf]
      %v727 = vld [vmem:[%s614 + $0x1c0] sm:$0xf]
      %v728 = vld [vmem:[%s614 + $0x1c4] sm:$0xf]
      %v729 = vld [vmem:[%s614 + $0x1c8] sm:$0xf]
      %v730 = vld [vmem:[%s614 + $0x1cc] sm:$0xf]
      %v731 = vld [vmem:[%s614 + $0x1d0] sm:$0xf]
      %v732 = vld [vmem:[%s614 + $0x1d4] sm:$0xf]
      %v733 = vld [vmem:[%s614 + $0x1d8] sm:$0xf]
      %v734 = vld [vmem:[%s614 + $0x1dc] sm:$0xf]
      %v735 = vld [vmem:[%s614 + $0x1e0] sm:$0xf]
      %v736 = vld [vmem:[%s614 + $0x1e4] sm:$0xf]
      %v737 = vld [vmem:[%s614 + $0x1e8] sm:$0xf]
      %v738 = vld [vmem:[%s614 + $0x1ec] sm:$0xf]
      %v739 = vld [vmem:[%s614 + $0x1f0] sm:$0xf]
      %v740 = vld [vmem:[%s614 + $0x1f4] sm:$0xf]
      %v741 = vld [vmem:[%s614 + $0x1f8] sm:$0xf]
      %v742 = vld [vmem:[%s614 + $0x1fc] sm:$0xf]
      %v743 = vld [vmem:[%s614 + $0x200] sm:$0xf]
      %v744 = vld [vmem:[%s614 + $0x204] sm:$0xf]
      %v745 = vld [vmem:[%s614 + $0x208] sm:$0xf]
      %v746 = vld [vmem:[%s614 + $0x20c] sm:$0xf]
      %v747 = vld [vmem:[%s614 + $0x210] sm:$0xf]
      %v748 = vld [vmem:[%s614 + $0x214] sm:$0xf]
      %v749 = vld [vmem:[%s614 + $0x218] sm:$0xf]
      %v750 = vld [vmem:[%s614 + $0x21c] sm:$0xf]
      %v751 = vld [vmem:[%s614 + $0x220] sm:$0xf]
      %v752 = vld [vmem:[%s614 + $0x224] sm:$0xf]
      %v753 = vld [vmem:[%s614 + $0x228] sm:$0xf]
      %v754 = vld [vmem:[%s614 + $0x22c] sm:$0xf]
      %v755 = vld [vmem:[%s614 + $0x230] sm:$0xf]
      %v756 = vld [vmem:[%s614 + $0x234] sm:$0xf]
      %v757 = vld [vmem:[%s614 + $0x238] sm:$0xf]
      %v758 = vld [vmem:[%s614 + $0x23c] sm:$0xf]
      %v759 = vld [vmem:[%s614 + $0x240] sm:$0xf]
      %v760 = vld [vmem:[%s614 + $0x244] sm:$0xf]
      %v761 = vld [vmem:[%s614 + $0x248] sm:$0xf]
      %v762 = vld [vmem:[%s614 + $0x24c] sm:$0xf]
      %v763 = vld [vmem:[%s614 + $0x250] sm:$0xf]
      %v764 = vld [vmem:[%s614 + $0x254] sm:$0xf]
      %v765 = vld [vmem:[%s614 + $0x258] sm:$0xf]
      %v766 = vld [vmem:[%s614 + $0x25c] sm:$0xf]
      %v767 = vld [vmem:[%s614 + $0x260] sm:$0xf]
      %v768 = vld [vmem:[%s614 + $0x264] sm:$0xf]
      %v769 = vld [vmem:[%s614 + $0x268] sm:$0xf]
      %v770 = vld [vmem:[%s614 + $0x26c] sm:$0xf]
      %v771 = vld [vmem:[%s614 + $0x270] sm:$0xf]
      %v772 = vld [vmem:[%s614 + $0x274] sm:$0xf]
      %v773 = vld [vmem:[%s614 + $0x278] sm:$0xf]
      %v774 = vld [vmem:[%s614 + $0x27c] sm:$0xf]
      %v775 = vld [vmem:[%s614 + $0x280] sm:$0xf]
      %v776 = vld [vmem:[%s614 + $0x284] sm:$0xf]
      %v777 = vld [vmem:[%s614 + $0x288] sm:$0xf]
      %v778 = vld [vmem:[%s614 + $0x28c] sm:$0xf]
      %v779 = vld [vmem:[%s614 + $0x290] sm:$0xf]
      %v780 = vld [vmem:[%s614 + $0x294] sm:$0xf]
      %v781 = vld [vmem:[%s614 + $0x298] sm:$0xf]
      %v782 = vld [vmem:[%s614 + $0x29c] sm:$0xf]
      %v783 = vld [vmem:[%s614 + $0x2a0] sm:$0xf]
      %v784 = vld [vmem:[%s614 + $0x2a4] sm:$0xf]
      %v785 = vld [vmem:[%s614 + $0x2a8] sm:$0xf]
      %v786 = vld [vmem:[%s614 + $0x2ac] sm:$0xf]
      %v787 = vld [vmem:[%s614 + $0x2b0] sm:$0xf]
      %v788 = vld [vmem:[%s614 + $0x2b4] sm:$0xf]
      %v789 = vld [vmem:[%s614 + $0x2b8] sm:$0xf]
      %v790 = vld [vmem:[%s614 + $0x2bc] sm:$0xf]
      %v791 = vld [vmem:[%s614 + $0x2c0] sm:$0xf]
      %v792 = vld [vmem:[%s614 + $0x2c4] sm:$0xf]
      %v793 = vld [vmem:[%s614 + $0x2c8] sm:$0xf]
      %v794 = vld [vmem:[%s614 + $0x2cc] sm:$0xf]
      %v795 = vld [vmem:[%s614 + $0x2d0] sm:$0xf]
      %v796 = vld [vmem:[%s614 + $0x2d4] sm:$0xf]
      %v797 = vld [vmem:[%s614 + $0x2d8] sm:$0xf]
      %v798 = vld [vmem:[%s614 + $0x2dc] sm:$0xf]
      %v799 = vld [vmem:[%s614 + $0x2e0] sm:$0xf]
      %v800 = vld [vmem:[%s614 + $0x2e4] sm:$0xf]
      %v801 = vld [vmem:[%s614 + $0x2e8] sm:$0xf]
      %v802 = vld [vmem:[%s614 + $0x2ec] sm:$0xf]
      %v803 = vld [vmem:[%s614 + $0x2f0] sm:$0xf]
      %v804 = vld [vmem:[%s614 + $0x2f4] sm:$0xf]
      %v805 = vld [vmem:[%s614 + $0x2f8] sm:$0xf]
      %v806 = vld [vmem:[%s614 + $0x2fc] sm:$0xf]
      %v807 = vld [vmem:[%s614 + $0x300] sm:$0xf]
      %v808 = vld [vmem:[%s614 + $0x304] sm:$0xf]
      %v809 = vld [vmem:[%s614 + $0x308] sm:$0xf]
      %v810 = vld [vmem:[%s614 + $0x30c] sm:$0xf]
      %v811 = vld [vmem:[%s614 + $0x310] sm:$0xf]
      %v812 = vld [vmem:[%s614 + $0x314] sm:$0xf]
      %v813 = vld [vmem:[%s614 + $0x318] sm:$0xf]
      %v814 = vld [vmem:[%s614 + $0x31c] sm:$0xf]
      %v815 = vld [vmem:[%s614 + $0x320] sm:$0xf]
      %v816 = vld [vmem:[%s614 + $0x324] sm:$0xf]
      %v817 = vld [vmem:[%s614 + $0x328] sm:$0xf]
      %v818 = vld [vmem:[%s614 + $0x32c] sm:$0xf]
      %v819 = vld [vmem:[%s614 + $0x330] sm:$0xf]
      %v820 = vld [vmem:[%s614 + $0x334] sm:$0xf]
      %v821 = vld [vmem:[%s614 + $0x338] sm:$0xf]
      %v822 = vld [vmem:[%s614 + $0x33c] sm:$0xf]
      %v823 = vld [vmem:[%s614 + $0x340] sm:$0xf]
      %v824 = vld [vmem:[%s614 + $0x344] sm:$0xf]
      %v825 = vld [vmem:[%s614 + $0x348] sm:$0xf]
      %v826 = vld [vmem:[%s614 + $0x34c] sm:$0xf]
      %v827 = vld [vmem:[%s614 + $0x350] sm:$0xf]
      %v828 = vld [vmem:[%s614 + $0x354] sm:$0xf]
      %v829 = vld [vmem:[%s614 + $0x358] sm:$0xf]
      %v830 = vld [vmem:[%s614 + $0x35c] sm:$0xf]
      %v831 = vld [vmem:[%s614 + $0x360] sm:$0xf]
      %v832 = vld [vmem:[%s614 + $0x364] sm:$0xf]
      %v833 = vld [vmem:[%s614 + $0x368] sm:$0xf]
      %v834 = vld [vmem:[%s614 + $0x36c] sm:$0xf]
      %v835 = vld [vmem:[%s614 + $0x370] sm:$0xf]
      %v836 = vld [vmem:[%s614 + $0x374] sm:$0xf]
      %v837 = vld [vmem:[%s614 + $0x378] sm:$0xf]
      %v838 = vld [vmem:[%s614 + $0x37c] sm:$0xf]
      %v839 = vld [vmem:[%s614 + $0x380] sm:$0xf]
      %v840 = vld [vmem:[%s614 + $0x384] sm:$0xf]
      %v841 = vld [vmem:[%s614 + $0x388] sm:$0xf]
      %v842 = vld [vmem:[%s614 + $0x38c] sm:$0xf]
      %v843 = vld [vmem:[%s614 + $0x390] sm:$0xf]
      %v844 = vld [vmem:[%s614 + $0x394] sm:$0xf]
      %v845 = vld [vmem:[%s614 + $0x398] sm:$0xf]
      %v846 = vld [vmem:[%s614 + $0x39c] sm:$0xf]
      %v847 = vld [vmem:[%s614 + $0x3a0] sm:$0xf]
      %v848 = vld [vmem:[%s614 + $0x3a4] sm:$0xf]
      %v849 = vld [vmem:[%s614 + $0x3a8] sm:$0xf]
      %v850 = vld [vmem:[%s614 + $0x3ac] sm:$0xf]
      %v851 = vld [vmem:[%s614 + $0x3b0] sm:$0xf]
      %v852 = vld [vmem:[%s614 + $0x3b4] sm:$0xf]
      %v853 = vld [vmem:[%s614 + $0x3b8] sm:$0xf]
      %v854 = vld [vmem:[%s614 + $0x3bc] sm:$0xf]
      %v855 = vld [vmem:[%s614 + $0x3c0] sm:$0xf]
      %v856 = vld [vmem:[%s614 + $0x3c4] sm:$0xf]
      %v857 = vld [vmem:[%s614 + $0x3c8] sm:$0xf]
      %v858 = vld [vmem:[%s614 + $0x3cc] sm:$0xf]
      %v859 = vld [vmem:[%s614 + $0x3d0] sm:$0xf]
      %v860 = vld [vmem:[%s614 + $0x3d4] sm:$0xf]
      %v861 = vld [vmem:[%s614 + $0x3d8] sm:$0xf]
      %v862 = vld [vmem:[%s614 + $0x3dc] sm:$0xf]
      %v863 = vld [vmem:[%s614 + $0x3e0] sm:$0xf]
      %v864 = vld [vmem:[%s614 + $0x3e4] sm:$0xf]
      %v865 = vld [vmem:[%s614 + $0x3e8] sm:$0xf]
      %v866 = vld [vmem:[%s614 + $0x3ec] sm:$0xf]
      %v867 = vld [vmem:[%s614 + $0x3f0] sm:$0xf]
      %v868 = vld [vmem:[%s614 + $0x3f4] sm:$0xf]
      %v869 = vld [vmem:[%s614 + $0x3f8] sm:$0xf]
      %v870 = vld [vmem:[%s614 + $0x3fc] sm:$0xf]
      %v887 = vunpack.c.l.b16 %v342
      %v888 = vunpack.c.h.b16 %v342
      %v889 = vunpack.c.l.b16 %v343
      %v890 = vunpack.c.h.b16 %v343
      %v891 = vunpack.c.l.b16 %v344
      %v892 = vunpack.c.h.b16 %v344
      %v893 = vunpack.c.l.b16 %v345
      %v894 = vunpack.c.h.b16 %v345
      %v895 = vunpack.c.l.b16 %v346
      %v896 = vunpack.c.h.b16 %v346
      %v897 = vunpack.c.l.b16 %v347
      %v898 = vunpack.c.h.b16 %v347
      %v899 = vunpack.c.l.b16 %v348
      %v900 = vunpack.c.h.b16 %v348
      %v901 = vunpack.c.l.b16 %v349
      %v902 = vunpack.c.h.b16 %v349
      %v903 = vunpack.c.l.b16 %v350
      %v904 = vunpack.c.h.b16 %v350
      %v905 = vunpack.c.l.b16 %v351
      %v906 = vunpack.c.h.b16 %v351
      %v907 = vunpack.c.l.b16 %v352
      %v908 = vunpack.c.h.b16 %v352
      %v909 = vunpack.c.l.b16 %v353
      %v910 = vunpack.c.h.b16 %v353
      %v911 = vunpack.c.l.b16 %v354
      %v912 = vunpack.c.h.b16 %v354
      %v913 = vunpack.c.l.b16 %v355
      %v914 = vunpack.c.h.b16 %v355
      %v915 = vunpack.c.l.b16 %v356
      %v916 = vunpack.c.h.b16 %v356
      %v917 = vunpack.c.l.b16 %v357
      %v918 = vunpack.c.h.b16 %v357
      %v919 = vpack.c.b16 %v903, %v887
      %v920 = vpack.c.b16 %v904, %v888
      %v921 = vpack.c.b16 %v905, %v889
      %v922 = vpack.c.b16 %v906, %v890
      %v923 = vpack.c.b16 %v907, %v891
      %v924 = vpack.c.b16 %v908, %v892
      %v925 = vpack.c.b16 %v909, %v893
      %v926 = vpack.c.b16 %v910, %v894
      %v927 = vpack.c.b16 %v911, %v895
      %v928 = vpack.c.b16 %v912, %v896
      %v929 = vpack.c.b16 %v913, %v897
      %v930 = vpack.c.b16 %v914, %v898
      %v931 = vpack.c.b16 %v915, %v899
      %v932 = vpack.c.b16 %v916, %v900
      %v933 = vpack.c.b16 %v917, %v901
      %v934 = vpack.c.b16 %v918, %v902
      %v936 = vshrl.u32 %v919, 16
      %v938 = vshll.u32 %v919, 16
      %v940 = vrot.slane %v938, 1
      %v941 = vor.u32 %v936, %v940
      %v943 = vshrl.u32 %v920, 16
      %v945 = vshll.u32 %v920, 16
      %v947 = vrot.slane %v945, 1
      %v948 = vor.u32 %v943, %v947
      %v950 = vshrl.u32 %v921, 16
      %v952 = vshll.u32 %v921, 16
      %v954 = vrot.slane %v952, 1
      %v955 = vor.u32 %v950, %v954
      %v957 = vshrl.u32 %v922, 16
      %v959 = vshll.u32 %v922, 16
      %v961 = vrot.slane %v959, 1
      %v962 = vor.u32 %v957, %v961
      %v964 = vshrl.u32 %v923, 16
      %v966 = vshll.u32 %v923, 16
      %v968 = vrot.slane %v966, 1
      %v969 = vor.u32 %v964, %v968
      %v971 = vshrl.u32 %v924, 16
      %v973 = vshll.u32 %v924, 16
      %v975 = vrot.slane %v973, 1
      %v976 = vor.u32 %v971, %v975
      %v978 = vshrl.u32 %v925, 16
      %v980 = vshll.u32 %v925, 16
      %v982 = vrot.slane %v980, 1
      %v983 = vor.u32 %v978, %v982
      %v985 = vshrl.u32 %v926, 16
      %v987 = vshll.u32 %v926, 16
      %v989 = vrot.slane %v987, 1
      %v990 = vor.u32 %v985, %v989
      %v992 = vshrl.u32 %v927, 16
      %v994 = vshll.u32 %v927, 16
      %v996 = vrot.slane %v994, 1
      %v997 = vor.u32 %v992, %v996
      %v999 = vshrl.u32 %v928, 16
      %v1001 = vshll.u32 %v928, 16
      %v1003 = vrot.slane %v1001, 1
      %v1004 = vor.u32 %v999, %v1003
      %v1006 = vshrl.u32 %v929, 16
      %v1008 = vshll.u32 %v929, 16
      %v1010 = vrot.slane %v1008, 1
      %v1011 = vor.u32 %v1006, %v1010
      %v1013 = vshrl.u32 %v930, 16
      %v1015 = vshll.u32 %v930, 16
      %v1017 = vrot.slane %v1015, 1
      %v1018 = vor.u32 %v1013, %v1017
      %v1020 = vshrl.u32 %v931, 16
      %v1022 = vshll.u32 %v931, 16
      %v1024 = vrot.slane %v1022, 1
      %v1025 = vor.u32 %v1020, %v1024
      %v1027 = vshrl.u32 %v932, 16
      %v1029 = vshll.u32 %v932, 16
      %v1031 = vrot.slane %v1029, 1
      %v1032 = vor.u32 %v1027, %v1031
      %v1034 = vshrl.u32 %v933, 16
      %v1036 = vshll.u32 %v933, 16
      %v1038 = vrot.slane %v1036, 1
      %v1039 = vor.u32 %v1034, %v1038
      %v1041 = vshrl.u32 %v934, 16
      %v1043 = vshll.u32 %v934, 16
      %v1045 = vrot.slane %v1043, 1
      %v1046 = vor.u32 %v1041, %v1045
      %v1319 = vunpack.c.l.b16 %v615
      %v1320 = vunpack.c.l.b16 %v616
      %v1321 = vunpack.c.l.b16 %v617
      %v1322 = vunpack.c.l.b16 %v618
      %v1323 = vunpack.c.l.b16 %v619
      %v1324 = vunpack.c.l.b16 %v620
      %v1325 = vunpack.c.l.b16 %v621
      %v1326 = vunpack.c.l.b16 %v622
      %v1327 = vunpack.c.l.b16 %v623
      %v1328 = vunpack.c.l.b16 %v624
      %v1329 = vunpack.c.l.b16 %v625
      %v1330 = vunpack.c.l.b16 %v626
      %v1331 = vunpack.c.l.b16 %v627
      %v1332 = vunpack.c.l.b16 %v628
      %v1333 = vunpack.c.l.b16 %v629
      %v1334 = vunpack.c.l.b16 %v630
      %v1335 = vunpack.c.l.b16 %v631
      %v1336 = vunpack.c.l.b16 %v632
      %v1337 = vunpack.c.l.b16 %v633
      %v1338 = vunpack.c.l.b16 %v634
      %v1339 = vunpack.c.l.b16 %v635
      %v1340 = vunpack.c.l.b16 %v636
      %v1341 = vunpack.c.l.b16 %v637
      %v1342 = vunpack.c.l.b16 %v638
      %v1343 = vunpack.c.l.b16 %v639
      %v1344 = vunpack.c.l.b16 %v640
      %v1345 = vunpack.c.l.b16 %v641
      %v1346 = vunpack.c.l.b16 %v642
      %v1347 = vunpack.c.l.b16 %v643
      %v1348 = vunpack.c.l.b16 %v644
      %v1349 = vunpack.c.l.b16 %v645
      %v1350 = vunpack.c.l.b16 %v646
      %v1351 = vunpack.c.l.b16 %v647
      %v1352 = vunpack.c.l.b16 %v648
      %v1353 = vunpack.c.l.b16 %v649
      %v1354 = vunpack.c.l.b16 %v650
      %v1355 = vunpack.c.l.b16 %v651
      %v1356 = vunpack.c.l.b16 %v652
      %v1357 = vunpack.c.l.b16 %v653
      %v1358 = vunpack.c.l.b16 %v654
      %v1359 = vunpack.c.l.b16 %v655
      %v1360 = vunpack.c.l.b16 %v656
      %v1361 = vunpack.c.l.b16 %v657
      %v1362 = vunpack.c.l.b16 %v658
      %v1363 = vunpack.c.l.b16 %v659
      %v1364 = vunpack.c.l.b16 %v660
      %v1365 = vunpack.c.l.b16 %v661
      %v1366 = vunpack.c.l.b16 %v662
      %v1367 = vunpack.c.l.b16 %v663
      %v1368 = vunpack.c.l.b16 %v664
      %v1369 = vunpack.c.l.b16 %v665
      %v1370 = vunpack.c.l.b16 %v666
      %v1371 = vunpack.c.l.b16 %v667
      %v1372 = vunpack.c.l.b16 %v668
      %v1373 = vunpack.c.l.b16 %v669
      %v1374 = vunpack.c.l.b16 %v670
      %v1375 = vunpack.c.l.b16 %v671
      %v1376 = vunpack.c.l.b16 %v672
      %v1377 = vunpack.c.l.b16 %v673
      %v1378 = vunpack.c.l.b16 %v674
      %v1379 = vunpack.c.l.b16 %v675
      %v1380 = vunpack.c.l.b16 %v676
      %v1381 = vunpack.c.l.b16 %v677
      %v1382 = vunpack.c.l.b16 %v678
      %v1383 = vunpack.c.l.b16 %v679
      %v1384 = vunpack.c.l.b16 %v680
      %v1385 = vunpack.c.l.b16 %v681
      %v1386 = vunpack.c.l.b16 %v682
      %v1387 = vunpack.c.l.b16 %v683
      %v1388 = vunpack.c.l.b16 %v684
      %v1389 = vunpack.c.l.b16 %v685
      %v1390 = vunpack.c.l.b16 %v686
      %v1391 = vunpack.c.l.b16 %v687
      %v1392 = vunpack.c.l.b16 %v688
      %v1393 = vunpack.c.l.b16 %v689
      %v1394 = vunpack.c.l.b16 %v690
      %v1395 = vunpack.c.l.b16 %v691
      %v1396 = vunpack.c.l.b16 %v692
      %v1397 = vunpack.c.l.b16 %v693
      %v1398 = vunpack.c.l.b16 %v694
      %v1399 = vunpack.c.l.b16 %v695
      %v1400 = vunpack.c.l.b16 %v696
      %v1401 = vunpack.c.l.b16 %v697
      %v1402 = vunpack.c.l.b16 %v698
      %v1403 = vunpack.c.l.b16 %v699
      %v1404 = vunpack.c.l.b16 %v700
      %v1405 = vunpack.c.l.b16 %v701
      %v1406 = vunpack.c.l.b16 %v702
      %v1407 = vunpack.c.l.b16 %v703
      %v1408 = vunpack.c.l.b16 %v704
      %v1409 = vunpack.c.l.b16 %v705
      %v1410 = vunpack.c.l.b16 %v706
      %v1411 = vunpack.c.l.b16 %v707
      %v1412 = vunpack.c.l.b16 %v708
      %v1413 = vunpack.c.l.b16 %v709
      %v1414 = vunpack.c.l.b16 %v710
      %v1415 = vunpack.c.l.b16 %v711
      %v1416 = vunpack.c.l.b16 %v712
      %v1417 = vunpack.c.l.b16 %v713
      %v1418 = vunpack.c.l.b16 %v714
      %v1419 = vunpack.c.l.b16 %v715
      %v1420 = vunpack.c.l.b16 %v716
      %v1421 = vunpack.c.l.b16 %v717
      %v1422 = vunpack.c.l.b16 %v718
      %v1423 = vunpack.c.l.b16 %v719
      %v1424 = vunpack.c.l.b16 %v720
      %v1425 = vunpack.c.l.b16 %v721
      %v1426 = vunpack.c.l.b16 %v722
      %v1427 = vunpack.c.l.b16 %v723
      %v1428 = vunpack.c.l.b16 %v724
      %v1429 = vunpack.c.l.b16 %v725
      %v1430 = vunpack.c.l.b16 %v726
      %v1431 = vunpack.c.l.b16 %v727
      %v1432 = vunpack.c.l.b16 %v728
      %v1433 = vunpack.c.l.b16 %v729
      %v1434 = vunpack.c.l.b16 %v730
      %v1435 = vunpack.c.l.b16 %v731
      %v1436 = vunpack.c.l.b16 %v732
      %v1437 = vunpack.c.l.b16 %v733
      %v1438 = vunpack.c.l.b16 %v734
      %v1439 = vunpack.c.l.b16 %v735
      %v1440 = vunpack.c.l.b16 %v736
      %v1441 = vunpack.c.l.b16 %v737
      %v1442 = vunpack.c.l.b16 %v738
      %v1443 = vunpack.c.l.b16 %v739
      %v1444 = vunpack.c.l.b16 %v740
      %v1445 = vunpack.c.l.b16 %v741
      %v1446 = vunpack.c.l.b16 %v742
      %v1447 = vunpack.c.l.b16 %v743
      %v1448 = vunpack.c.l.b16 %v744
      %v1449 = vunpack.c.l.b16 %v745
      %v1450 = vunpack.c.l.b16 %v746
      %v1451 = vunpack.c.l.b16 %v747
      %v1452 = vunpack.c.l.b16 %v748
      %v1453 = vunpack.c.l.b16 %v749
      %v1454 = vunpack.c.l.b16 %v750
      %v1455 = vunpack.c.l.b16 %v751
      %v1456 = vunpack.c.l.b16 %v752
      %v1457 = vunpack.c.l.b16 %v753
      %v1458 = vunpack.c.l.b16 %v754
      %v1459 = vunpack.c.l.b16 %v755
      %v1460 = vunpack.c.l.b16 %v756
      %v1461 = vunpack.c.l.b16 %v757
      %v1462 = vunpack.c.l.b16 %v758
      %v1463 = vunpack.c.l.b16 %v759
      %v1464 = vunpack.c.l.b16 %v760
      %v1465 = vunpack.c.l.b16 %v761
      %v1466 = vunpack.c.l.b16 %v762
      %v1467 = vunpack.c.l.b16 %v763
      %v1468 = vunpack.c.l.b16 %v764
      %v1469 = vunpack.c.l.b16 %v765
      %v1470 = vunpack.c.l.b16 %v766
      %v1471 = vunpack.c.l.b16 %v767
      %v1472 = vunpack.c.l.b16 %v768
      %v1473 = vunpack.c.l.b16 %v769
      %v1474 = vunpack.c.l.b16 %v770
      %v1475 = vunpack.c.l.b16 %v771
      %v1476 = vunpack.c.l.b16 %v772
      %v1477 = vunpack.c.l.b16 %v773
      %v1478 = vunpack.c.l.b16 %v774
      %v1479 = vunpack.c.l.b16 %v775
      %v1480 = vunpack.c.l.b16 %v776
      %v1481 = vunpack.c.l.b16 %v777
      %v1482 = vunpack.c.l.b16 %v778
      %v1483 = vunpack.c.l.b16 %v779
      %v1484 = vunpack.c.l.b16 %v780
      %v1485 = vunpack.c.l.b16 %v781
      %v1486 = vunpack.c.l.b16 %v782
      %v1487 = vunpack.c.l.b16 %v783
      %v1488 = vunpack.c.l.b16 %v784
      %v1489 = vunpack.c.l.b16 %v785
      %v1490 = vunpack.c.l.b16 %v786
      %v1491 = vunpack.c.l.b16 %v787
      %v1492 = vunpack.c.l.b16 %v788
      %v1493 = vunpack.c.l.b16 %v789
      %v1494 = vunpack.c.l.b16 %v790
      %v1495 = vunpack.c.l.b16 %v791
      %v1496 = vunpack.c.l.b16 %v792
      %v1497 = vunpack.c.l.b16 %v793
      %v1498 = vunpack.c.l.b16 %v794
      %v1499 = vunpack.c.l.b16 %v795
      %v1500 = vunpack.c.l.b16 %v796
      %v1501 = vunpack.c.l.b16 %v797
      %v1502 = vunpack.c.l.b16 %v798
      %v1503 = vunpack.c.l.b16 %v799
      %v1504 = vunpack.c.l.b16 %v800
      %v1505 = vunpack.c.l.b16 %v801
      %v1506 = vunpack.c.l.b16 %v802
      %v1507 = vunpack.c.l.b16 %v803
      %v1508 = vunpack.c.l.b16 %v804
      %v1509 = vunpack.c.l.b16 %v805
      %v1510 = vunpack.c.l.b16 %v806
      %v1511 = vunpack.c.l.b16 %v807
      %v1512 = vunpack.c.l.b16 %v808
      %v1513 = vunpack.c.l.b16 %v809
      %v1514 = vunpack.c.l.b16 %v810
      %v1515 = vunpack.c.l.b16 %v811
      %v1516 = vunpack.c.l.b16 %v812
      %v1517 = vunpack.c.l.b16 %v813
      %v1518 = vunpack.c.l.b16 %v814
      %v1519 = vunpack.c.l.b16 %v815
      %v1520 = vunpack.c.l.b16 %v816
      %v1521 = vunpack.c.l.b16 %v817
      %v1522 = vunpack.c.l.b16 %v818
      %v1523 = vunpack.c.l.b16 %v819
      %v1524 = vunpack.c.l.b16 %v820
      %v1525 = vunpack.c.l.b16 %v821
      %v1526 = vunpack.c.l.b16 %v822
      %v1527 = vunpack.c.l.b16 %v823
      %v1528 = vunpack.c.l.b16 %v824
      %v1529 = vunpack.c.l.b16 %v825
      %v1530 = vunpack.c.l.b16 %v826
      %v1531 = vunpack.c.l.b16 %v827
      %v1532 = vunpack.c.l.b16 %v828
      %v1533 = vunpack.c.l.b16 %v829
      %v1534 = vunpack.c.l.b16 %v830
      %v1535 = vunpack.c.l.b16 %v831
      %v1536 = vunpack.c.l.b16 %v832
      %v1537 = vunpack.c.l.b16 %v833
      %v1538 = vunpack.c.l.b16 %v834
      %v1539 = vunpack.c.l.b16 %v835
      %v1540 = vunpack.c.l.b16 %v836
      %v1541 = vunpack.c.l.b16 %v837
      %v1542 = vunpack.c.l.b16 %v838
      %v1543 = vunpack.c.l.b16 %v839
      %v1544 = vunpack.c.l.b16 %v840
      %v1545 = vunpack.c.l.b16 %v841
      %v1546 = vunpack.c.l.b16 %v842
      %v1547 = vunpack.c.l.b16 %v843
      %v1548 = vunpack.c.l.b16 %v844
      %v1549 = vunpack.c.l.b16 %v845
      %v1550 = vunpack.c.l.b16 %v846
      %v1551 = vunpack.c.l.b16 %v847
      %v1552 = vunpack.c.l.b16 %v848
      %v1553 = vunpack.c.l.b16 %v849
      %v1554 = vunpack.c.l.b16 %v850
      %v1555 = vunpack.c.l.b16 %v851
      %v1556 = vunpack.c.l.b16 %v852
      %v1557 = vunpack.c.l.b16 %v853
      %v1558 = vunpack.c.l.b16 %v854
      %v1559 = vunpack.c.l.b16 %v855
      %v1560 = vunpack.c.l.b16 %v856
      %v1561 = vunpack.c.l.b16 %v857
      %v1562 = vunpack.c.l.b16 %v858
      %v1563 = vunpack.c.l.b16 %v859
      %v1564 = vunpack.c.l.b16 %v860
      %v1565 = vunpack.c.l.b16 %v861
      %v1566 = vunpack.c.l.b16 %v862
      %v1567 = vunpack.c.l.b16 %v863
      %v1568 = vunpack.c.l.b16 %v864
      %v1569 = vunpack.c.l.b16 %v865
      %v1570 = vunpack.c.l.b16 %v866
      %v1571 = vunpack.c.l.b16 %v867
      %v1572 = vunpack.c.l.b16 %v868
      %v1573 = vunpack.c.l.b16 %v869
      %v1574 = vunpack.c.l.b16 %v870
      %v1575 = vpack.c.b16 %v1320, %v1319
      %v1576 = vpack.c.b16 %v1322, %v1321
      %v1577 = vpack.c.b16 %v1324, %v1323
      %v1578 = vpack.c.b16 %v1326, %v1325
      %v1579 = vpack.c.b16 %v1328, %v1327
      %v1580 = vpack.c.b16 %v1330, %v1329
      %v1581 = vpack.c.b16 %v1332, %v1331
      %v1582 = vpack.c.b16 %v1334, %v1333
      %v1583 = vpack.c.b16 %v1336, %v1335
      %v1584 = vpack.c.b16 %v1338, %v1337
      %v1585 = vpack.c.b16 %v1340, %v1339
      %v1586 = vpack.c.b16 %v1342, %v1341
      %v1587 = vpack.c.b16 %v1344, %v1343
      %v1588 = vpack.c.b16 %v1346, %v1345
      %v1589 = vpack.c.b16 %v1348, %v1347
      %v1590 = vpack.c.b16 %v1350, %v1349
      %v1591 = vpack.c.b16 %v1352, %v1351
      %v1592 = vpack.c.b16 %v1354, %v1353
      %v1593 = vpack.c.b16 %v1356, %v1355
      %v1594 = vpack.c.b16 %v1358, %v1357
      %v1595 = vpack.c.b16 %v1360, %v1359
      %v1596 = vpack.c.b16 %v1362, %v1361
      %v1597 = vpack.c.b16 %v1364, %v1363
      %v1598 = vpack.c.b16 %v1366, %v1365
      %v1599 = vpack.c.b16 %v1368, %v1367
      %v1600 = vpack.c.b16 %v1370, %v1369
      %v1601 = vpack.c.b16 %v1372, %v1371
      %v1602 = vpack.c.b16 %v1374, %v1373
      %v1603 = vpack.c.b16 %v1376, %v1375
      %v1604 = vpack.c.b16 %v1378, %v1377
      %v1605 = vpack.c.b16 %v1380, %v1379
      %v1606 = vpack.c.b16 %v1382, %v1381
      %v1607 = vpack.c.b16 %v1384, %v1383
      %v1608 = vpack.c.b16 %v1386, %v1385
      %v1609 = vpack.c.b16 %v1388, %v1387
      %v1610 = vpack.c.b16 %v1390, %v1389
      %v1611 = vpack.c.b16 %v1392, %v1391
      %v1612 = vpack.c.b16 %v1394, %v1393
      %v1613 = vpack.c.b16 %v1396, %v1395
      %v1614 = vpack.c.b16 %v1398, %v1397
      %v1615 = vpack.c.b16 %v1400, %v1399
      %v1616 = vpack.c.b16 %v1402, %v1401
      %v1617 = vpack.c.b16 %v1404, %v1403
      %v1618 = vpack.c.b16 %v1406, %v1405
      %v1619 = vpack.c.b16 %v1408, %v1407
      %v1620 = vpack.c.b16 %v1410, %v1409
      %v1621 = vpack.c.b16 %v1412, %v1411
      %v1622 = vpack.c.b16 %v1414, %v1413
      %v1623 = vpack.c.b16 %v1416, %v1415
      %v1624 = vpack.c.b16 %v1418, %v1417
      %v1625 = vpack.c.b16 %v1420, %v1419
      %v1626 = vpack.c.b16 %v1422, %v1421
      %v1627 = vpack.c.b16 %v1424, %v1423
      %v1628 = vpack.c.b16 %v1426, %v1425
      %v1629 = vpack.c.b16 %v1428, %v1427
      %v1630 = vpack.c.b16 %v1430, %v1429
      %v1631 = vpack.c.b16 %v1432, %v1431
      %v1632 = vpack.c.b16 %v1434, %v1433
      %v1633 = vpack.c.b16 %v1436, %v1435
      %v1634 = vpack.c.b16 %v1438, %v1437
      %v1635 = vpack.c.b16 %v1440, %v1439
      %v1636 = vpack.c.b16 %v1442, %v1441
      %v1637 = vpack.c.b16 %v1444, %v1443
      %v1638 = vpack.c.b16 %v1446, %v1445
      %v1639 = vpack.c.b16 %v1448, %v1447
      %v1640 = vpack.c.b16 %v1450, %v1449
      %v1641 = vpack.c.b16 %v1452, %v1451
      %v1642 = vpack.c.b16 %v1454, %v1453
      %v1643 = vpack.c.b16 %v1456, %v1455
      %v1644 = vpack.c.b16 %v1458, %v1457
      %v1645 = vpack.c.b16 %v1460, %v1459
      %v1646 = vpack.c.b16 %v1462, %v1461
      %v1647 = vpack.c.b16 %v1464, %v1463
      %v1648 = vpack.c.b16 %v1466, %v1465
      %v1649 = vpack.c.b16 %v1468, %v1467
      %v1650 = vpack.c.b16 %v1470, %v1469
      %v1651 = vpack.c.b16 %v1472, %v1471
      %v1652 = vpack.c.b16 %v1474, %v1473
      %v1653 = vpack.c.b16 %v1476, %v1475
      %v1654 = vpack.c.b16 %v1478, %v1477
      %v1655 = vpack.c.b16 %v1480, %v1479
      %v1656 = vpack.c.b16 %v1482, %v1481
      %v1657 = vpack.c.b16 %v1484, %v1483
      %v1658 = vpack.c.b16 %v1486, %v1485
      %v1659 = vpack.c.b16 %v1488, %v1487
      %v1660 = vpack.c.b16 %v1490, %v1489
      %v1661 = vpack.c.b16 %v1492, %v1491
      %v1662 = vpack.c.b16 %v1494, %v1493
      %v1663 = vpack.c.b16 %v1496, %v1495
      %v1664 = vpack.c.b16 %v1498, %v1497
      %v1665 = vpack.c.b16 %v1500, %v1499
      %v1666 = vpack.c.b16 %v1502, %v1501
      %v1667 = vpack.c.b16 %v1504, %v1503
      %v1668 = vpack.c.b16 %v1506, %v1505
      %v1669 = vpack.c.b16 %v1508, %v1507
      %v1670 = vpack.c.b16 %v1510, %v1509
      %v1671 = vpack.c.b16 %v1512, %v1511
      %v1672 = vpack.c.b16 %v1514, %v1513
      %v1673 = vpack.c.b16 %v1516, %v1515
      %v1674 = vpack.c.b16 %v1518, %v1517
      %v1675 = vpack.c.b16 %v1520, %v1519
      %v1676 = vpack.c.b16 %v1522, %v1521
      %v1677 = vpack.c.b16 %v1524, %v1523
      %v1678 = vpack.c.b16 %v1526, %v1525
      %v1679 = vpack.c.b16 %v1528, %v1527
      %v1680 = vpack.c.b16 %v1530, %v1529
      %v1681 = vpack.c.b16 %v1532, %v1531
      %v1682 = vpack.c.b16 %v1534, %v1533
      %v1683 = vpack.c.b16 %v1536, %v1535
      %v1684 = vpack.c.b16 %v1538, %v1537
      %v1685 = vpack.c.b16 %v1540, %v1539
      %v1686 = vpack.c.b16 %v1542, %v1541
      %v1687 = vpack.c.b16 %v1544, %v1543
      %v1688 = vpack.c.b16 %v1546, %v1545
      %v1689 = vpack.c.b16 %v1548, %v1547
      %v1690 = vpack.c.b16 %v1550, %v1549
      %v1691 = vpack.c.b16 %v1552, %v1551
      %v1692 = vpack.c.b16 %v1554, %v1553
      %v1693 = vpack.c.b16 %v1556, %v1555
      %v1694 = vpack.c.b16 %v1558, %v1557
      %v1695 = vpack.c.b16 %v1560, %v1559
      %v1696 = vpack.c.b16 %v1562, %v1561
      %v1697 = vpack.c.b16 %v1564, %v1563
      %v1698 = vpack.c.b16 %v1566, %v1565
      %v1699 = vpack.c.b16 %v1568, %v1567
      %v1700 = vpack.c.b16 %v1570, %v1569
      %v1701 = vpack.c.b16 %v1572, %v1571
      %v1702 = vpack.c.b16 %v1574, %v1573
      %1831 = vmatprep.subr.bf16.mxu0 0
      %1832 = vmatpush1.bf16.msra.mxu0 %v1575
      %1833 = vmatprep.subr.bf16.mxu0 0
      %1834 = vmatpush1.bf16.msra.mxu0 %v1576
      %1835 = vmatprep.subr.bf16.mxu0 0
      %1836 = vmatpush1.bf16.msra.mxu0 %v1577
      %1837 = vmatprep.subr.bf16.mxu0 0
      %1838 = vmatpush1.bf16.msra.mxu0 %v1578
      %1839 = vmatprep.subr.bf16.mxu0 0
      %1840 = vmatpush1.bf16.msra.mxu0 %v1579
      %1841 = vmatprep.subr.bf16.mxu0 0
      %1842 = vmatpush1.bf16.msra.mxu0 %v1580
      %1843 = vmatprep.subr.bf16.mxu0 0
      %1844 = vmatpush1.bf16.msra.mxu0 %v1581
      %1845 = vmatprep.subr.bf16.mxu0 0
      %1846 = vmatpush1.bf16.msra.mxu0 %v1582
      %1847 = vmatprep.subr.bf16.mxu0 0
      %1848 = vmatpush1.bf16.msra.mxu0 %v1583
      %1849 = vmatprep.subr.bf16.mxu0 0
      %1850 = vmatpush1.bf16.msra.mxu0 %v1584
      %1851 = vmatprep.subr.bf16.mxu0 0
      %1852 = vmatpush1.bf16.msra.mxu0 %v1585
      %1853 = vmatprep.subr.bf16.mxu0 0
      %1854 = vmatpush1.bf16.msra.mxu0 %v1586
      %1855 = vmatprep.subr.bf16.mxu0 0
      %1856 = vmatpush1.bf16.msra.mxu0 %v1587
      %1857 = vmatprep.subr.bf16.mxu0 0
      %1858 = vmatpush1.bf16.msra.mxu0 %v1588
      %1859 = vmatprep.subr.bf16.mxu0 0
      %1860 = vmatpush1.bf16.msra.mxu0 %v1589
      %1861 = vmatprep.subr.bf16.mxu0 0
      %1862 = vmatpush1.bf16.msra.mxu0 %v1590
      %1863 = vmatprep.mubr.bf16.mxu0 %v948
      %1864 = vmatmul.mubr.bf16.gmra.mrb[0].mxu0 %v941
      %v1865 = vpop.f32.mrb[0].mxu0
      %v1866 = vadd.f32 0.0, %v1865
      %v1867 = vpop.f32.mrb[0].mxu0
      %v1868 = vpop.f32.mrb[0].mxu0
      %v1869 = vadd.f32 0.0, %v1868
      %v1870 = vpop.f32.mrb[0].mxu0
      %1871 = vdwg.mxu0
      %1872 = vmatprep.subr.bf16.mxu0 0
      %1873 = vmatpush1.bf16.msra.mxu0 %v1591
      %1874 = vmatprep.subr.bf16.mxu0 0
      %1875 = vmatpush1.bf16.msra.mxu0 %v1592
      %1876 = vmatprep.subr.bf16.mxu0 0
      %1877 = vmatpush1.bf16.msra.mxu0 %v1593
      %1878 = vmatprep.subr.bf16.mxu0 0
      %1879 = vmatpush1.bf16.msra.mxu0 %v1594
      %1880 = vmatprep.subr.bf16.mxu0 0
      %1881 = vmatpush1.bf16.msra.mxu0 %v1595
      %1882 = vmatprep.subr.bf16.mxu0 0
      %1883 = vmatpush1.bf16.msra.mxu0 %v1596
      %1884 = vmatprep.subr.bf16.mxu0 0
      %1885 = vmatpush1.bf16.msra.mxu0 %v1597
      %1886 = vmatprep.subr.bf16.mxu0 0
      %1887 = vmatpush1.bf16.msra.mxu0 %v1598
      %1888 = vmatprep.subr.bf16.mxu0 0
      %1889 = vmatpush1.bf16.msra.mxu0 %v1599
      %1890 = vmatprep.subr.bf16.mxu0 0
      %1891 = vmatpush1.bf16.msra.mxu0 %v1600
      %1892 = vmatprep.subr.bf16.mxu0 0
      %1893 = vmatpush1.bf16.msra.mxu0 %v1601
      %1894 = vmatprep.subr.bf16.mxu0 0
      %1895 = vmatpush1.bf16.msra.mxu0 %v1602
      %1896 = vmatprep.subr.bf16.mxu0 0
      %1897 = vmatpush1.bf16.msra.mxu0 %v1603
      %1898 = vmatprep.subr.bf16.mxu0 0
      %1899 = vmatpush1.bf16.msra.mxu0 %v1604
      %1900 = vmatprep.subr.bf16.mxu0 0
      %1901 = vmatpush1.bf16.msra.mxu0 %v1605
      %1902 = vmatprep.subr.bf16.mxu0 0
      %1903 = vmatpush1.bf16.msra.mxu0 %v1606
      %1904 = vmatprep.mubr.bf16.mxu0 %v962
      %1905 = vmatmul.mubr.bf16.gmra.mrb[0].mxu0 %v955
      %v1906 = vpop.f32.mrb[0].mxu0
      %v1907 = vadd.f32 %v1866, %v1906
      %v1908 = vpop.f32.mrb[0].mxu0
      %v1909 = vpop.f32.mrb[0].mxu0
      %v1910 = vadd.f32 %v1869, %v1909
      %v1911 = vpop.f32.mrb[0].mxu0
      %1912 = vdwg.mxu0
      %1913 = vmatprep.subr.bf16.mxu0 0
      %1914 = vmatpush1.bf16.msra.mxu0 %v1607
      %1915 = vmatprep.subr.bf16.mxu0 0
      %1916 = vmatpush1.bf16.msra.mxu0 %v1608
      %1917 = vmatprep.subr.bf16.mxu0 0
      %1918 = vmatpush1.bf16.msra.mxu0 %v1609
      %1919 = vmatprep.subr.bf16.mxu0 0
      %1920 = vmatpush1.bf16.msra.mxu0 %v1610
      %1921 = vmatprep.subr.bf16.mxu0 0
      %1922 = vmatpush1.bf16.msra.mxu0 %v1611
      %1923 = vmatprep.subr.bf16.mxu0 0
      %1924 = vmatpush1.bf16.msra.mxu0 %v1612
      %1925 = vmatprep.subr.bf16.mxu0 0
      %1926 = vmatpush1.bf16.msra.mxu0 %v1613
      %1927 = vmatprep.subr.bf16.mxu0 0
      %1928 = vmatpush1.bf16.msra.mxu0 %v1614
      %1929 = vmatprep.subr.bf16.mxu0 0
      %1930 = vmatpush1.bf16.msra.mxu0 %v1615
      %1931 = vmatprep.subr.bf16.mxu0 0
      %1932 = vmatpush1.bf16.msra.mxu0 %v1616
      %1933 = vmatprep.subr.bf16.mxu0 0
      %1934 = vmatpush1.bf16.msra.mxu0 %v1617
      %1935 = vmatprep.subr.bf16.mxu0 0
      %1936 = vmatpush1.bf16.msra.mxu0 %v1618
      %1937 = vmatprep.subr.bf16.mxu0 0
      %1938 = vmatpush1.bf16.msra.mxu0 %v1619
      %1939 = vmatprep.subr.bf16.mxu0 0
      %1940 = vmatpush1.bf16.msra.mxu0 %v1620
      %1941 = vmatprep.subr.bf16.mxu0 0
      %1942 = vmatpush1.bf16.msra.mxu0 %v1621
      %1943 = vmatprep.subr.bf16.mxu0 0
      %1944 = vmatpush1.bf16.msra.mxu0 %v1622
      %1945 = vmatprep.mubr.bf16.mxu0 %v976
      %1946 = vmatmul.mubr.bf16.gmra.mrb[0].mxu0 %v969
      %v1947 = vpop.f32.mrb[0].mxu0
      %v1948 = vadd.f32 %v1907, %v1947
      %v1949 = vpop.f32.mrb[0].mxu0
      %v1950 = vpop.f32.mrb[0].mxu0
      %v1951 = vadd.f32 %v1910, %v1950
      %v1952 = vpop.f32.mrb[0].mxu0
      %1953 = vdwg.mxu0
      %1954 = vmatprep.subr.bf16.mxu0 0
      %1955 = vmatpush1.bf16.msra.mxu0 %v1623
      %1956 = vmatprep.subr.bf16.mxu0 0
      %1957 = vmatpush1.bf16.msra.mxu0 %v1624
      %1958 = vmatprep.subr.bf16.mxu0 0
      %1959 = vmatpush1.bf16.msra.mxu0 %v1625
      %1960 = vmatprep.subr.bf16.mxu0 0
      %1961 = vmatpush1.bf16.msra.mxu0 %v1626
      %1962 = vmatprep.subr.bf16.mxu0 0
      %1963 = vmatpush1.bf16.msra.mxu0 %v1627
      %1964 = vmatprep.subr.bf16.mxu0 0
      %1965 = vmatpush1.bf16.msra.mxu0 %v1628
      %1966 = vmatprep.subr.bf16.mxu0 0
      %1967 = vmatpush1.bf16.msra.mxu0 %v1629
      %1968 = vmatprep.subr.bf16.mxu0 0
      %1969 = vmatpush1.bf16.msra.mxu0 %v1630
      %1970 = vmatprep.subr.bf16.mxu0 0
      %1971 = vmatpush1.bf16.msra.mxu0 %v1631
      %1972 = vmatprep.subr.bf16.mxu0 0
      %1973 = vmatpush1.bf16.msra.mxu0 %v1632
      %1974 = vmatprep.subr.bf16.mxu0 0
      %1975 = vmatpush1.bf16.msra.mxu0 %v1633
      %1976 = vmatprep.subr.bf16.mxu0 0
      %1977 = vmatpush1.bf16.msra.mxu0 %v1634
      %1978 = vmatprep.subr.bf16.mxu0 0
      %1979 = vmatpush1.bf16.msra.mxu0 %v1635
      %1980 = vmatprep.subr.bf16.mxu0 0
      %1981 = vmatpush1.bf16.msra.mxu0 %v1636
      %1982 = vmatprep.subr.bf16.mxu0 0
      %1983 = vmatpush1.bf16.msra.mxu0 %v1637
      %1984 = vmatprep.subr.bf16.mxu0 0
      %1985 = vmatpush1.bf16.msra.mxu0 %v1638
      %1986 = vmatprep.mubr.bf16.mxu0 %v990
      %1987 = vmatmul.mubr.bf16.gmra.mrb[0].mxu0 %v983
      %v1988 = vpop.f32.mrb[0].mxu0
      %v1989 = vadd.f32 %v1948, %v1988
      %v1990 = vpop.f32.mrb[0].mxu0
      %v1991 = vpop.f32.mrb[0].mxu0
      %v1992 = vadd.f32 %v1951, %v1991
      %v1993 = vpop.f32.mrb[0].mxu0
      %1994 = vdwg.mxu0
      %1995 = vmatprep.subr.bf16.mxu0 0
      %1996 = vmatpush1.bf16.msra.mxu0 %v1639
      %1997 = vmatprep.subr.bf16.mxu0 0
      %1998 = vmatpush1.bf16.msra.mxu0 %v1640
      %1999 = vmatprep.subr.bf16.mxu0 0
      %2000 = vmatpush1.bf16.msra.mxu0 %v1641
      %2001 = vmatprep.subr.bf16.mxu0 0
      %2002 = vmatpush1.bf16.msra.mxu0 %v1642
      %2003 = vmatprep.subr.bf16.mxu0 0
      %2004 = vmatpush1.bf16.msra.mxu0 %v1643
      %2005 = vmatprep.subr.bf16.mxu0 0
      %2006 = vmatpush1.bf16.msra.mxu0 %v1644
      %2007 = vmatprep.subr.bf16.mxu0 0
      %2008 = vmatpush1.bf16.msra.mxu0 %v1645
      %2009 = vmatprep.subr.bf16.mxu0 0
      %2010 = vmatpush1.bf16.msra.mxu0 %v1646
      %2011 = vmatprep.subr.bf16.mxu0 0
      %2012 = vmatpush1.bf16.msra.mxu0 %v1647
      %2013 = vmatprep.subr.bf16.mxu0 0
      %2014 = vmatpush1.bf16.msra.mxu0 %v1648
      %2015 = vmatprep.subr.bf16.mxu0 0
      %2016 = vmatpush1.bf16.msra.mxu0 %v1649
      %2017 = vmatprep.subr.bf16.mxu0 0
      %2018 = vmatpush1.bf16.msra.mxu0 %v1650
      %2019 = vmatprep.subr.bf16.mxu0 0
      %2020 = vmatpush1.bf16.msra.mxu0 %v1651
      %2021 = vmatprep.subr.bf16.mxu0 0
      %2022 = vmatpush1.bf16.msra.mxu0 %v1652
      %2023 = vmatprep.subr.bf16.mxu0 0
      %2024 = vmatpush1.bf16.msra.mxu0 %v1653
      %2025 = vmatprep.subr.bf16.mxu0 0
      %2026 = vmatpush1.bf16.msra.mxu0 %v1654
      %2027 = vmatprep.mubr.bf16.mxu0 %v1004
      %2028 = vmatmul.mubr.bf16.gmra.mrb[0].mxu0 %v997
      %v2029 = vpop.f32.mrb[0].mxu0
      %v2030 = vadd.f32 %v1989, %v2029
      %v2031 = vpop.f32.mrb[0].mxu0
      %v2032 = vpop.f32.mrb[0].mxu0
      %v2033 = vadd.f32 %v1992, %v2032
      %v2034 = vpop.f32.mrb[0].mxu0
      %2035 = vdwg.mxu0
      %2036 = vmatprep.subr.bf16.mxu0 0
      %2037 = vmatpush1.bf16.msra.mxu0 %v1655
      %2038 = vmatprep.subr.bf16.mxu0 0
      %2039 = vmatpush1.bf16.msra.mxu0 %v1656
      %2040 = vmatprep.subr.bf16.mxu0 0
      %2041 = vmatpush1.bf16.msra.mxu0 %v1657
      %2042 = vmatprep.subr.bf16.mxu0 0
      %2043 = vmatpush1.bf16.msra.mxu0 %v1658
      %2044 = vmatprep.subr.bf16.mxu0 0
      %2045 = vmatpush1.bf16.msra.mxu0 %v1659
      %2046 = vmatprep.subr.bf16.mxu0 0
      %2047 = vmatpush1.bf16.msra.mxu0 %v1660
      %2048 = vmatprep.subr.bf16.mxu0 0
      %2049 = vmatpush1.bf16.msra.mxu0 %v1661
      %2050 = vmatprep.subr.bf16.mxu0 0
      %2051 = vmatpush1.bf16.msra.mxu0 %v1662
      %2052 = vmatprep.subr.bf16.mxu0 0
      %2053 = vmatpush1.bf16.msra.mxu0 %v1663
      %2054 = vmatprep.subr.bf16.mxu0 0
      %2055 = vmatpush1.bf16.msra.mxu0 %v1664
      %2056 = vmatprep.subr.bf16.mxu0 0
      %2057 = vmatpush1.bf16.msra.mxu0 %v1665
      %2058 = vmatprep.subr.bf16.mxu0 0
      %2059 = vmatpush1.bf16.msra.mxu0 %v1666
      %2060 = vmatprep.subr.bf16.mxu0 0
      %2061 = vmatpush1.bf16.msra.mxu0 %v1667
      %2062 = vmatprep.subr.bf16.mxu0 0
      %2063 = vmatpush1.bf16.msra.mxu0 %v1668
      %2064 = vmatprep.subr.bf16.mxu0 0
      %2065 = vmatpush1.bf16.msra.mxu0 %v1669
      %2066 = vmatprep.subr.bf16.mxu0 0
      %2067 = vmatpush1.bf16.msra.mxu0 %v1670
      %2068 = vmatprep.mubr.bf16.mxu0 %v1018
      %2069 = vmatmul.mubr.bf16.gmra.mrb[0].mxu0 %v1011
      %v2070 = vpop.f32.mrb[0].mxu0
      %v2071 = vadd.f32 %v2030, %v2070
      %v2072 = vpop.f32.mrb[0].mxu0
      %v2073 = vpop.f32.mrb[0].mxu0
      %v2074 = vadd.f32 %v2033, %v2073
      %v2075 = vpop.f32.mrb[0].mxu0
      %2076 = vdwg.mxu0
      %2077 = vmatprep.subr.bf16.mxu0 0
      %2078 = vmatpush1.bf16.msra.mxu0 %v1671
      %2079 = vmatprep.subr.bf16.mxu0 0
      %2080 = vmatpush1.bf16.msra.mxu0 %v1672
      %2081 = vmatprep.subr.bf16.mxu0 0
      %2082 = vmatpush1.bf16.msra.mxu0 %v1673
      %2083 = vmatprep.subr.bf16.mxu0 0
      %2084 = vmatpush1.bf16.msra.mxu0 %v1674
      %2085 = vmatprep.subr.bf16.mxu0 0
      %2086 = vmatpush1.bf16.msra.mxu0 %v1675
      %2087 = vmatprep.subr.bf16.mxu0 0
      %2088 = vmatpush1.bf16.msra.mxu0 %v1676
      %2089 = vmatprep.subr.bf16.mxu0 0
      %2090 = vmatpush1.bf16.msra.mxu0 %v1677
      %2091 = vmatprep.subr.bf16.mxu0 0
      %2092 = vmatpush1.bf16.msra.mxu0 %v1678
      %2093 = vmatprep.subr.bf16.mxu0 0
      %2094 = vmatpush1.bf16.msra.mxu0 %v1679
      %2095 = vmatprep.subr.bf16.mxu0 0
      %2096 = vmatpush1.bf16.msra.mxu0 %v1680
      %2097 = vmatprep.subr.bf16.mxu0 0
      %2098 = vmatpush1.bf16.msra.mxu0 %v1681
      %2099 = vmatprep.subr.bf16.mxu0 0
      %2100 = vmatpush1.bf16.msra.mxu0 %v1682
      %2101 = vmatprep.subr.bf16.mxu0 0
      %2102 = vmatpush1.bf16.msra.mxu0 %v1683
      %2103 = vmatprep.subr.bf16.mxu0 0
      %2104 = vmatpush1.bf16.msra.mxu0 %v1684
      %2105 = vmatprep.subr.bf16.mxu0 0
      %2106 = vmatpush1.bf16.msra.mxu0 %v1685
      %2107 = vmatprep.subr.bf16.mxu0 0
      %2108 = vmatpush1.bf16.msra.mxu0 %v1686
      %2109 = vmatprep.mubr.bf16.mxu0 %v1032
      %2110 = vmatmul.mubr.bf16.gmra.mrb[0].mxu0 %v1025
      %v2111 = vpop.f32.mrb[0].mxu0
      %v2112 = vadd.f32 %v2071, %v2111
      %v2113 = vpop.f32.mrb[0].mxu0
      %v2114 = vpop.f32.mrb[0].mxu0
      %v2115 = vadd.f32 %v2074, %v2114
      %v2116 = vpop.f32.mrb[0].mxu0
      %2117 = vdwg.mxu0
      %2118 = vmatprep.subr.bf16.mxu0 0
      %2119 = vmatpush1.bf16.msra.mxu0 %v1687
      %2120 = vmatprep.subr.bf16.mxu0 0
      %2121 = vmatpush1.bf16.msra.mxu0 %v1688
      %2122 = vmatprep.subr.bf16.mxu0 0
      %2123 = vmatpush1.bf16.msra.mxu0 %v1689
      %2124 = vmatprep.subr.bf16.mxu0 0
      %2125 = vmatpush1.bf16.msra.mxu0 %v1690
      %2126 = vmatprep.subr.bf16.mxu0 0
      %2127 = vmatpush1.bf16.msra.mxu0 %v1691
      %2128 = vmatprep.subr.bf16.mxu0 0
      %2129 = vmatpush1.bf16.msra.mxu0 %v1692
      %2130 = vmatprep.subr.bf16.mxu0 0
      %2131 = vmatpush1.bf16.msra.mxu0 %v1693
      %2132 = vmatprep.subr.bf16.mxu0 0
      %2133 = vmatpush1.bf16.msra.mxu0 %v1694
      %2134 = vmatprep.subr.bf16.mxu0 0
      %2135 = vmatpush1.bf16.msra.mxu0 %v1695
      %2136 = vmatprep.subr.bf16.mxu0 0
      %2137 = vmatpush1.bf16.msra.mxu0 %v1696
      %2138 = vmatprep.subr.bf16.mxu0 0
      %2139 = vmatpush1.bf16.msra.mxu0 %v1697
      %2140 = vmatprep.subr.bf16.mxu0 0
      %2141 = vmatpush1.bf16.msra.mxu0 %v1698
      %2142 = vmatprep.subr.bf16.mxu0 0
      %2143 = vmatpush1.bf16.msra.mxu0 %v1699
      %2144 = vmatprep.subr.bf16.mxu0 0
      %2145 = vmatpush1.bf16.msra.mxu0 %v1700
      %2146 = vmatprep.subr.bf16.mxu0 0
      %2147 = vmatpush1.bf16.msra.mxu0 %v1701
      %2148 = vmatprep.subr.bf16.mxu0 0
      %2149 = vmatpush1.bf16.msra.mxu0 %v1702
      %2150 = vmatprep.mubr.bf16.mxu0 %v1046
      %2151 = vmatmul.mubr.bf16.gmra.mrb[0].mxu0 %v1039
      %v2152 = vpop.f32.mrb[0].mxu0
      %v2153 = vadd.f32 %v2112, %v2152
      %v2154 = vpop.f32.mrb[0].mxu0
      %v2155 = vpop.f32.mrb[0].mxu0
      %v2156 = vadd.f32 %v2115, %v2155
      %v2157 = vpop.f32.mrb[0].mxu0
      %2158 = vdwg.mxu0
      %v2431 = vunpack.c.l.b16 %v358
      %v2432 = vunpack.c.l.b16 %v359
      %v2433 = vunpack.c.l.b16 %v360
      %v2434 = vunpack.c.l.b16 %v361
      %v2435 = vunpack.c.l.b16 %v362
      %v2436 = vunpack.c.l.b16 %v363
      %v2437 = vunpack.c.l.b16 %v364
      %v2438 = vunpack.c.l.b16 %v365
      %v2439 = vunpack.c.l.b16 %v366
      %v2440 = vunpack.c.l.b16 %v367
      %v2441 = vunpack.c.l.b16 %v368
      %v2442 = vunpack.c.l.b16 %v369
      %v2443 = vunpack.c.l.b16 %v370
      %v2444 = vunpack.c.l.b16 %v371
      %v2445 = vunpack.c.l.b16 %v372
      %v2446 = vunpack.c.l.b16 %v373
      %v2447 = vunpack.c.l.b16 %v374
      %v2448 = vunpack.c.l.b16 %v375
      %v2449 = vunpack.c.l.b16 %v376
      %v2450 = vunpack.c.l.b16 %v377
      %v2451 = vunpack.c.l.b16 %v378
      %v2452 = vunpack.c.l.b16 %v379
      %v2453 = vunpack.c.l.b16 %v380
      %v2454 = vunpack.c.l.b16 %v381
      %v2455 = vunpack.c.l.b16 %v382
      %v2456 = vunpack.c.l.b16 %v383
      %v2457 = vunpack.c.l.b16 %v384
      %v2458 = vunpack.c.l.b16 %v385
      %v2459 = vunpack.c.l.b16 %v386
      %v2460 = vunpack.c.l.b16 %v387
      %v2461 = vunpack.c.l.b16 %v388
      %v2462 = vunpack.c.l.b16 %v389
      %v2463 = vunpack.c.l.b16 %v390
      %v2464 = vunpack.c.l.b16 %v391
      %v2465 = vunpack.c.l.b16 %v392
      %v2466 = vunpack.c.l.b16 %v393
      %v2467 = vunpack.c.l.b16 %v394
      %v2468 = vunpack.c.l.b16 %v395
      %v2469 = vunpack.c.l.b16 %v396
      %v2470 = vunpack.c.l.b16 %v397
      %v2471 = vunpack.c.l.b16 %v398
      %v2472 = vunpack.c.l.b16 %v399
      %v2473 = vunpack.c.l.b16 %v400
      %v2474 = vunpack.c.l.b16 %v401
      %v2475 = vunpack.c.l.b16 %v402
      %v2476 = vunpack.c.l.b16 %v403
      %v2477 = vunpack.c.l.b16 %v404
      %v2478 = vunpack.c.l.b16 %v405
      %v2479 = vunpack.c.l.b16 %v406
      %v2480 = vunpack.c.l.b16 %v407
      %v2481 = vunpack.c.l.b16 %v408
      %v2482 = vunpack.c.l.b16 %v409
      %v2483 = vunpack.c.l.b16 %v410
      %v2484 = vunpack.c.l.b16 %v411
      %v2485 = vunpack.c.l.b16 %v412
      %v2486 = vunpack.c.l.b16 %v413
      %v2487 = vunpack.c.l.b16 %v414
      %v2488 = vunpack.c.l.b16 %v415
      %v2489 = vunpack.c.l.b16 %v416
      %v2490 = vunpack.c.l.b16 %v417
      %v2491 = vunpack.c.l.b16 %v418
      %v2492 = vunpack.c.l.b16 %v419
      %v2493 = vunpack.c.l.b16 %v420
      %v2494 = vunpack.c.l.b16 %v421
      %v2495 = vunpack.c.l.b16 %v422
      %v2496 = vunpack.c.l.b16 %v423
      %v2497 = vunpack.c.l.b16 %v424
      %v2498 = vunpack.c.l.b16 %v425
      %v2499 = vunpack.c.l.b16 %v426
      %v2500 = vunpack.c.l.b16 %v427
      %v2501 = vunpack.c.l.b16 %v428
      %v2502 = vunpack.c.l.b16 %v429
      %v2503 = vunpack.c.l.b16 %v430
      %v2504 = vunpack.c.l.b16 %v431
      %v2505 = vunpack.c.l.b16 %v432
      %v2506 = vunpack.c.l.b16 %v433
      %v2507 = vunpack.c.l.b16 %v434
      %v2508 = vunpack.c.l.b16 %v435
      %v2509 = vunpack.c.l.b16 %v436
      %v2510 = vunpack.c.l.b16 %v437
      %v2511 = vunpack.c.l.b16 %v438
      %v2512 = vunpack.c.l.b16 %v439
      %v2513 = vunpack.c.l.b16 %v440
      %v2514 = vunpack.c.l.b16 %v441
      %v2515 = vunpack.c.l.b16 %v442
      %v2516 = vunpack.c.l.b16 %v443
      %v2517 = vunpack.c.l.b16 %v444
      %v2518 = vunpack.c.l.b16 %v445
      %v2519 = vunpack.c.l.b16 %v446
      %v2520 = vunpack.c.l.b16 %v447
      %v2521 = vunpack.c.l.b16 %v448
      %v2522 = vunpack.c.l.b16 %v449
      %v2523 = vunpack.c.l.b16 %v450
      %v2524 = vunpack.c.l.b16 %v451
      %v2525 = vunpack.c.l.b16 %v452
      %v2526 = vunpack.c.l.b16 %v453
      %v2527 = vunpack.c.l.b16 %v454
      %v2528 = vunpack.c.l.b16 %v455
      %v2529 = vunpack.c.l.b16 %v456
      %v2530 = vunpack.c.l.b16 %v457
      %v2531 = vunpack.c.l.b16 %v458
      %v2532 = vunpack.c.l.b16 %v459
      %v2533 = vunpack.c.l.b16 %v460
      %v2534 = vunpack.c.l.b16 %v461
      %v2535 = vunpack.c.l.b16 %v462
      %v2536 = vunpack.c.l.b16 %v463
      %v2537 = vunpack.c.l.b16 %v464
      %v2538 = vunpack.c.l.b16 %v465
      %v2539 = vunpack.c.l.b16 %v466
      %v2540 = vunpack.c.l.b16 %v467
      %v2541 = vunpack.c.l.b16 %v468
      %v2542 = vunpack.c.l.b16 %v469
      %v2543 = vunpack.c.l.b16 %v470
      %v2544 = vunpack.c.l.b16 %v471
      %v2545 = vunpack.c.l.b16 %v472
      %v2546 = vunpack.c.l.b16 %v473
      %v2547 = vunpack.c.l.b16 %v474
      %v2548 = vunpack.c.l.b16 %v475
      %v2549 = vunpack.c.l.b16 %v476
      %v2550 = vunpack.c.l.b16 %v477
      %v2551 = vunpack.c.l.b16 %v478
      %v2552 = vunpack.c.l.b16 %v479
      %v2553 = vunpack.c.l.b16 %v480
      %v2554 = vunpack.c.l.b16 %v481
      %v2555 = vunpack.c.l.b16 %v482
      %v2556 = vunpack.c.l.b16 %v483
      %v2557 = vunpack.c.l.b16 %v484
      %v2558 = vunpack.c.l.b16 %v485
      %v2559 = vunpack.c.l.b16 %v486
      %v2560 = vunpack.c.l.b16 %v487
      %v2561 = vunpack.c.l.b16 %v488
      %v2562 = vunpack.c.l.b16 %v489
      %v2563 = vunpack.c.l.b16 %v490
      %v2564 = vunpack.c.l.b16 %v491
      %v2565 = vunpack.c.l.b16 %v492
      %v2566 = vunpack.c.l.b16 %v493
      %v2567 = vunpack.c.l.b16 %v494
      %v2568 = vunpack.c.l.b16 %v495
      %v2569 = vunpack.c.l.b16 %v496
      %v2570 = vunpack.c.l.b16 %v497
      %v2571 = vunpack.c.l.b16 %v498
      %v2572 = vunpack.c.l.b16 %v499
      %v2573 = vunpack.c.l.b16 %v500
      %v2574 = vunpack.c.l.b16 %v501
      %v2575 = vunpack.c.l.b16 %v502
      %v2576 = vunpack.c.l.b16 %v503
      %v2577 = vunpack.c.l.b16 %v504
      %v2578 = vunpack.c.l.b16 %v505
      %v2579 = vunpack.c.l.b16 %v506
      %v2580 = vunpack.c.l.b16 %v507
      %v2581 = vunpack.c.l.b16 %v508
      %v2582 = vunpack.c.l.b16 %v509
      %v2583 = vunpack.c.l.b16 %v510
      %v2584 = vunpack.c.l.b16 %v511
      %v2585 = vunpack.c.l.b16 %v512
      %v2586 = vunpack.c.l.b16 %v513
      %v2587 = vunpack.c.l.b16 %v514
      %v2588 = vunpack.c.l.b16 %v515
      %v2589 = vunpack.c.l.b16 %v516
      %v2590 = vunpack.c.l.b16 %v517
      %v2591 = vunpack.c.l.b16 %v518
      %v2592 = vunpack.c.l.b16 %v519
      %v2593 = vunpack.c.l.b16 %v520
      %v2594 = vunpack.c.l.b16 %v521
      %v2595 = vunpack.c.l.b16 %v522
      %v2596 = vunpack.c.l.b16 %v523
      %v2597 = vunpack.c.l.b16 %v524
      %v2598 = vunpack.c.l.b16 %v525
      %v2599 = vunpack.c.l.b16 %v526
      %v2600 = vunpack.c.l.b16 %v527
      %v2601 = vunpack.c.l.b16 %v528
      %v2602 = vunpack.c.l.b16 %v529
      %v2603 = vunpack.c.l.b16 %v530
      %v2604 = vunpack.c.l.b16 %v531
      %v2605 = vunpack.c.l.b16 %v532
      %v2606 = vunpack.c.l.b16 %v533
      %v2607 = vunpack.c.l.b16 %v534
      %v2608 = vunpack.c.l.b16 %v535
      %v2609 = vunpack.c.l.b16 %v536
      %v2610 = vunpack.c.l.b16 %v537
      %v2611 = vunpack.c.l.b16 %v538
      %v2612 = vunpack.c.l.b16 %v539
      %v2613 = vunpack.c.l.b16 %v540
      %v2614 = vunpack.c.l.b16 %v541
      %v2615 = vunpack.c.l.b16 %v542
      %v2616 = vunpack.c.l.b16 %v543
      %v2617 = vunpack.c.l.b16 %v544
      %v2618 = vunpack.c.l.b16 %v545
      %v2619 = vunpack.c.l.b16 %v546
      %v2620 = vunpack.c.l.b16 %v547
      %v2621 = vunpack.c.l.b16 %v548
      %v2622 = vunpack.c.l.b16 %v549
      %v2623 = vunpack.c.l.b16 %v550
      %v2624 = vunpack.c.l.b16 %v551
      %v2625 = vunpack.c.l.b16 %v552
      %v2626 = vunpack.c.l.b16 %v553
      %v2627 = vunpack.c.l.b16 %v554
      %v2628 = vunpack.c.l.b16 %v555
      %v2629 = vunpack.c.l.b16 %v556
      %v2630 = vunpack.c.l.b16 %v557
      %v2631 = vunpack.c.l.b16 %v558
      %v2632 = vunpack.c.l.b16 %v559
      %v2633 = vunpack.c.l.b16 %v560
      %v2634 = vunpack.c.l.b16 %v561
      %v2635 = vunpack.c.l.b16 %v562
      %v2636 = vunpack.c.l.b16 %v563
      %v2637 = vunpack.c.l.b16 %v564
      %v2638 = vunpack.c.l.b16 %v565
      %v2639 = vunpack.c.l.b16 %v566
      %v2640 = vunpack.c.l.b16 %v567
      %v2641 = vunpack.c.l.b16 %v568
      %v2642 = vunpack.c.l.b16 %v569
      %v2643 = vunpack.c.l.b16 %v570
      %v2644 = vunpack.c.l.b16 %v571
      %v2645 = vunpack.c.l.b16 %v572
      %v2646 = vunpack.c.l.b16 %v573
      %v2647 = vunpack.c.l.b16 %v574
      %v2648 = vunpack.c.l.b16 %v575
      %v2649 = vunpack.c.l.b16 %v576
      %v2650 = vunpack.c.l.b16 %v577
      %v2651 = vunpack.c.l.b16 %v578
      %v2652 = vunpack.c.l.b16 %v579
      %v2653 = vunpack.c.l.b16 %v580
      %v2654 = vunpack.c.l.b16 %v581
      %v2655 = vunpack.c.l.b16 %v582
      %v2656 = vunpack.c.l.b16 %v583
      %v2657 = vunpack.c.l.b16 %v584
      %v2658 = vunpack.c.l.b16 %v585
      %v2659 = vunpack.c.l.b16 %v586
      %v2660 = vunpack.c.l.b16 %v587
      %v2661 = vunpack.c.l.b16 %v588
      %v2662 = vunpack.c.l.b16 %v589
      %v2663 = vunpack.c.l.b16 %v590
      %v2664 = vunpack.c.l.b16 %v591
      %v2665 = vunpack.c.l.b16 %v592
      %v2666 = vunpack.c.l.b16 %v593
      %v2667 = vunpack.c.l.b16 %v594
      %v2668 = vunpack.c.l.b16 %v595
      %v2669 = vunpack.c.l.b16 %v596
      %v2670 = vunpack.c.l.b16 %v597
      %v2671 = vunpack.c.l.b16 %v598
      %v2672 = vunpack.c.l.b16 %v599
      %v2673 = vunpack.c.l.b16 %v600
      %v2674 = vunpack.c.l.b16 %v601
      %v2675 = vunpack.c.l.b16 %v602
      %v2676 = vunpack.c.l.b16 %v603
      %v2677 = vunpack.c.l.b16 %v604
      %v2678 = vunpack.c.l.b16 %v605
      %v2679 = vunpack.c.l.b16 %v606
      %v2680 = vunpack.c.l.b16 %v607
      %v2681 = vunpack.c.l.b16 %v608
      %v2682 = vunpack.c.l.b16 %v609
      %v2683 = vunpack.c.l.b16 %v610
      %v2684 = vunpack.c.l.b16 %v611
      %v2685 = vunpack.c.l.b16 %v612
      %v2686 = vunpack.c.l.b16 %v613
      %v2687 = vpack.c.b16 %v2432, %v2431
      %v2688 = vpack.c.b16 %v2434, %v2433
      %v2689 = vpack.c.b16 %v2436, %v2435
      %v2690 = vpack.c.b16 %v2438, %v2437
      %v2691 = vpack.c.b16 %v2440, %v2439
      %v2692 = vpack.c.b16 %v2442, %v2441
      %v2693 = vpack.c.b16 %v2444, %v2443
      %v2694 = vpack.c.b16 %v2446, %v2445
      %v2695 = vpack.c.b16 %v2448, %v2447
      %v2696 = vpack.c.b16 %v2450, %v2449
      %v2697 = vpack.c.b16 %v2452, %v2451
      %v2698 = vpack.c.b16 %v2454, %v2453
      %v2699 = vpack.c.b16 %v2456, %v2455
      %v2700 = vpack.c.b16 %v2458, %v2457
      %v2701 = vpack.c.b16 %v2460, %v2459
      %v2702 = vpack.c.b16 %v2462, %v2461
      %v2703 = vpack.c.b16 %v2464, %v2463
      %v2704 = vpack.c.b16 %v2466, %v2465
      %v2705 = vpack.c.b16 %v2468, %v2467
      %v2706 = vpack.c.b16 %v2470, %v2469
      %v2707 = vpack.c.b16 %v2472, %v2471
      %v2708 = vpack.c.b16 %v2474, %v2473
      %v2709 = vpack.c.b16 %v2476, %v2475
      %v2710 = vpack.c.b16 %v2478, %v2477
      %v2711 = vpack.c.b16 %v2480, %v2479
      %v2712 = vpack.c.b16 %v2482, %v2481
      %v2713 = vpack.c.b16 %v2484, %v2483
      %v2714 = vpack.c.b16 %v2486, %v2485
      %v2715 = vpack.c.b16 %v2488, %v2487
      %v2716 = vpack.c.b16 %v2490, %v2489
      %v2717 = vpack.c.b16 %v2492, %v2491
      %v2718 = vpack.c.b16 %v2494, %v2493
      %v2719 = vpack.c.b16 %v2496, %v2495
      %v2720 = vpack.c.b16 %v2498, %v2497
      %v2721 = vpack.c.b16 %v2500, %v2499
      %v2722 = vpack.c.b16 %v2502, %v2501
      %v2723 = vpack.c.b16 %v2504, %v2503
      %v2724 = vpack.c.b16 %v2506, %v2505
      %v2725 = vpack.c.b16 %v2508, %v2507
      %v2726 = vpack.c.b16 %v2510, %v2509
      %v2727 = vpack.c.b16 %v2512, %v2511
      %v2728 = vpack.c.b16 %v2514, %v2513
      %v2729 = vpack.c.b16 %v2516, %v2515
      %v2730 = vpack.c.b16 %v2518, %v2517
      %v2731 = vpack.c.b16 %v2520, %v2519
      %v2732 = vpack.c.b16 %v2522, %v2521
      %v2733 = vpack.c.b16 %v2524, %v2523
      %v2734 = vpack.c.b16 %v2526, %v2525
      %v2735 = vpack.c.b16 %v2528, %v2527
      %v2736 = vpack.c.b16 %v2530, %v2529
      %v2737 = vpack.c.b16 %v2532, %v2531
      %v2738 = vpack.c.b16 %v2534, %v2533
      %v2739 = vpack.c.b16 %v2536, %v2535
      %v2740 = vpack.c.b16 %v2538, %v2537
      %v2741 = vpack.c.b16 %v2540, %v2539
      %v2742 = vpack.c.b16 %v2542, %v2541
      %v2743 = vpack.c.b16 %v2544, %v2543
      %v2744 = vpack.c.b16 %v2546, %v2545
      %v2745 = vpack.c.b16 %v2548, %v2547
      %v2746 = vpack.c.b16 %v2550, %v2549
      %v2747 = vpack.c.b16 %v2552, %v2551
      %v2748 = vpack.c.b16 %v2554, %v2553
      %v2749 = vpack.c.b16 %v2556, %v2555
      %v2750 = vpack.c.b16 %v2558, %v2557
      %v2751 = vpack.c.b16 %v2560, %v2559
      %v2752 = vpack.c.b16 %v2562, %v2561
      %v2753 = vpack.c.b16 %v2564, %v2563
      %v2754 = vpack.c.b16 %v2566, %v2565
      %v2755 = vpack.c.b16 %v2568, %v2567
      %v2756 = vpack.c.b16 %v2570, %v2569
      %v2757 = vpack.c.b16 %v2572, %v2571
      %v2758 = vpack.c.b16 %v2574, %v2573
      %v2759 = vpack.c.b16 %v2576, %v2575
      %v2760 = vpack.c.b16 %v2578, %v2577
      %v2761 = vpack.c.b16 %v2580, %v2579
      %v2762 = vpack.c.b16 %v2582, %v2581
      %v2763 = vpack.c.b16 %v2584, %v2583
      %v2764 = vpack.c.b16 %v2586, %v2585
      %v2765 = vpack.c.b16 %v2588, %v2587
      %v2766 = vpack.c.b16 %v2590, %v2589
      %v2767 = vpack.c.b16 %v2592, %v2591
      %v2768 = vpack.c.b16 %v2594, %v2593
      %v2769 = vpack.c.b16 %v2596, %v2595
      %v2770 = vpack.c.b16 %v2598, %v2597
      %v2771 = vpack.c.b16 %v2600, %v2599
      %v2772 = vpack.c.b16 %v2602, %v2601
      %v2773 = vpack.c.b16 %v2604, %v2603
      %v2774 = vpack.c.b16 %v2606, %v2605
      %v2775 = vpack.c.b16 %v2608, %v2607
      %v2776 = vpack.c.b16 %v2610, %v2609
      %v2777 = vpack.c.b16 %v2612, %v2611
      %v2778 = vpack.c.b16 %v2614, %v2613
      %v2779 = vpack.c.b16 %v2616, %v2615
      %v2780 = vpack.c.b16 %v2618, %v2617
      %v2781 = vpack.c.b16 %v2620, %v2619
      %v2782 = vpack.c.b16 %v2622, %v2621
      %v2783 = vpack.c.b16 %v2624, %v2623
      %v2784 = vpack.c.b16 %v2626, %v2625
      %v2785 = vpack.c.b16 %v2628, %v2627
      %v2786 = vpack.c.b16 %v2630, %v2629
      %v2787 = vpack.c.b16 %v2632, %v2631
      %v2788 = vpack.c.b16 %v2634, %v2633
      %v2789 = vpack.c.b16 %v2636, %v2635
      %v2790 = vpack.c.b16 %v2638, %v2637
      %v2791 = vpack.c.b16 %v2640, %v2639
      %v2792 = vpack.c.b16 %v2642, %v2641
      %v2793 = vpack.c.b16 %v2644, %v2643
      %v2794 = vpack.c.b16 %v2646, %v2645
      %v2795 = vpack.c.b16 %v2648, %v2647
      %v2796 = vpack.c.b16 %v2650, %v2649
      %v2797 = vpack.c.b16 %v2652, %v2651
      %v2798 = vpack.c.b16 %v2654, %v2653
      %v2799 = vpack.c.b16 %v2656, %v2655
      %v2800 = vpack.c.b16 %v2658, %v2657
      %v2801 = vpack.c.b16 %v2660, %v2659
      %v2802 = vpack.c.b16 %v2662, %v2661
      %v2803 = vpack.c.b16 %v2664, %v2663
      %v2804 = vpack.c.b16 %v2666, %v2665
      %v2805 = vpack.c.b16 %v2668, %v2667
      %v2806 = vpack.c.b16 %v2670, %v2669
      %v2807 = vpack.c.b16 %v2672, %v2671
      %v2808 = vpack.c.b16 %v2674, %v2673
      %v2809 = vpack.c.b16 %v2676, %v2675
      %v2810 = vpack.c.b16 %v2678, %v2677
      %v2811 = vpack.c.b16 %v2680, %v2679
      %v2812 = vpack.c.b16 %v2682, %v2681
      %v2813 = vpack.c.b16 %v2684, %v2683
      %v2814 = vpack.c.b16 %v2686, %v2685
      %2943 = vmatprep.subr.bf16.mxu0 0
      %2944 = vmatpush1.bf16.msra.mxu0 %v2687
      %2945 = vmatprep.subr.bf16.mxu0 0
      %2946 = vmatpush1.bf16.msra.mxu0 %v2688
      %2947 = vmatprep.subr.bf16.mxu0 0
      %2948 = vmatpush1.bf16.msra.mxu0 %v2689
      %2949 = vmatprep.subr.bf16.mxu0 0
      %2950 = vmatpush1.bf16.msra.mxu0 %v2690
      %2951 = vmatprep.subr.bf16.mxu0 0
      %2952 = vmatpush1.bf16.msra.mxu0 %v2691
      %2953 = vmatprep.subr.bf16.mxu0 0
      %2954 = vmatpush1.bf16.msra.mxu0 %v2692
      %2955 = vmatprep.subr.bf16.mxu0 0
      %2956 = vmatpush1.bf16.msra.mxu0 %v2693
      %2957 = vmatprep.subr.bf16.mxu0 0
      %2958 = vmatpush1.bf16.msra.mxu0 %v2694
      %2959 = vmatprep.subr.bf16.mxu0 0
      %2960 = vmatpush1.bf16.msra.mxu0 %v2695
      %2961 = vmatprep.subr.bf16.mxu0 0
      %2962 = vmatpush1.bf16.msra.mxu0 %v2696
      %2963 = vmatprep.subr.bf16.mxu0 0
      %2964 = vmatpush1.bf16.msra.mxu0 %v2697
      %2965 = vmatprep.subr.bf16.mxu0 0
      %2966 = vmatpush1.bf16.msra.mxu0 %v2698
      %2967 = vmatprep.subr.bf16.mxu0 0
      %2968 = vmatpush1.bf16.msra.mxu0 %v2699
      %2969 = vmatprep.subr.bf16.mxu0 0
      %2970 = vmatpush1.bf16.msra.mxu0 %v2700
      %2971 = vmatprep.subr.bf16.mxu0 0
      %2972 = vmatpush1.bf16.msra.mxu0 %v2701
      %2973 = vmatprep.subr.bf16.mxu0 0
      %2974 = vmatpush1.bf16.msra.mxu0 %v2702
      %2975 = vmatprep.mubr.bf16.mxu0 %v920
      %2976 = vmatmul.mubr.bf16.gmra.mrb[0].mxu0 %v919
      %v2977 = vpop.f32.mrb[0].mxu0
      %v2978 = vadd.f32 %v2153, %v2977
      %v2979 = vpop.f32.mrb[0].mxu0
      %v2980 = vpop.f32.mrb[0].mxu0
      %v2981 = vadd.f32 %v2156, %v2980
      %v2982 = vpop.f32.mrb[0].mxu0
      %2983 = vdwg.mxu0
      %2984 = vmatprep.subr.bf16.mxu0 0
      %2985 = vmatpush1.bf16.msra.mxu0 %v2703
      %2986 = vmatprep.subr.bf16.mxu0 0
      %2987 = vmatpush1.bf16.msra.mxu0 %v2704
      %2988 = vmatprep.subr.bf16.mxu0 0
      %2989 = vmatpush1.bf16.msra.mxu0 %v2705
      %2990 = vmatprep.subr.bf16.mxu0 0
      %2991 = vmatpush1.bf16.msra.mxu0 %v2706
      %2992 = vmatprep.subr.bf16.mxu0 0
      %2993 = vmatpush1.bf16.msra.mxu0 %v2707
      %2994 = vmatprep.subr.bf16.mxu0 0
      %2995 = vmatpush1.bf16.msra.mxu0 %v2708
      %2996 = vmatprep.subr.bf16.mxu0 0
      %2997 = vmatpush1.bf16.msra.mxu0 %v2709
      %2998 = vmatprep.subr.bf16.mxu0 0
      %2999 = vmatpush1.bf16.msra.mxu0 %v2710
      %3000 = vmatprep.subr.bf16.mxu0 0
      %3001 = vmatpush1.bf16.msra.mxu0 %v2711
      %3002 = vmatprep.subr.bf16.mxu0 0
      %3003 = vmatpush1.bf16.msra.mxu0 %v2712
      %3004 = vmatprep.subr.bf16.mxu0 0
      %3005 = vmatpush1.bf16.msra.mxu0 %v2713
      %3006 = vmatprep.subr.bf16.mxu0 0
      %3007 = vmatpush1.bf16.msra.mxu0 %v2714
      %3008 = vmatprep.subr.bf16.mxu0 0
      %3009 = vmatpush1.bf16.msra.mxu0 %v2715
      %3010 = vmatprep.subr.bf16.mxu0 0
      %3011 = vmatpush1.bf16.msra.mxu0 %v2716
      %3012 = vmatprep.subr.bf16.mxu0 0
      %3013 = vmatpush1.bf16.msra.mxu0 %v2717
      %3014 = vmatprep.subr.bf16.mxu0 0
      %3015 = vmatpush1.bf16.msra.mxu0 %v2718
      %3016 = vmatprep.mubr.bf16.mxu0 %v922
      %3017 = vmatmul.mubr.bf16.gmra.mrb[0].mxu0 %v921
      %v3018 = vpop.f32.mrb[0].mxu0
      %v3019 = vadd.f32 %v2978, %v3018
      %v3020 = vpop.f32.mrb[0].mxu0
      %v3021 = vpop.f32.mrb[0].mxu0
      %v3022 = vadd.f32 %v2981, %v3021
      %v3023 = vpop.f32.mrb[0].mxu0
      %3024 = vdwg.mxu0
      %3025 = vmatprep.subr.bf16.mxu0 0
      %3026 = vmatpush1.bf16.msra.mxu0 %v2719
      %3027 = vmatprep.subr.bf16.mxu0 0
      %3028 = vmatpush1.bf16.msra.mxu0 %v2720
      %3029 = vmatprep.subr.bf16.mxu0 0
      %3030 = vmatpush1.bf16.msra.mxu0 %v2721
      %3031 = vmatprep.subr.bf16.mxu0 0
      %3032 = vmatpush1.bf16.msra.mxu0 %v2722
      %3033 = vmatprep.subr.bf16.mxu0 0
      %3034 = vmatpush1.bf16.msra.mxu0 %v2723
      %3035 = vmatprep.subr.bf16.mxu0 0
      %3036 = vmatpush1.bf16.msra.mxu0 %v2724
      %3037 = vmatprep.subr.bf16.mxu0 0
      %3038 = vmatpush1.bf16.msra.mxu0 %v2725
      %3039 = vmatprep.subr.bf16.mxu0 0
      %3040 = vmatpush1.bf16.msra.mxu0 %v2726
      %3041 = vmatprep.subr.bf16.mxu0 0
      %3042 = vmatpush1.bf16.msra.mxu0 %v2727
      %3043 = vmatprep.subr.bf16.mxu0 0
      %3044 = vmatpush1.bf16.msra.mxu0 %v2728
      %3045 = vmatprep.subr.bf16.mxu0 0
      %3046 = vmatpush1.bf16.msra.mxu0 %v2729
      %3047 = vmatprep.subr.bf16.mxu0 0
      %3048 = vmatpush1.bf16.msra.mxu0 %v2730
      %3049 = vmatprep.subr.bf16.mxu0 0
      %3050 = vmatpush1.bf16.msra.mxu0 %v2731
      %3051 = vmatprep.subr.bf16.mxu0 0
      %3052 = vmatpush1.bf16.msra.mxu0 %v2732
      %3053 = vmatprep.subr.bf16.mxu0 0
      %3054 = vmatpush1.bf16.msra.mxu0 %v2733
      %3055 = vmatprep.subr.bf16.mxu0 0
      %3056 = vmatpush1.bf16.msra.mxu0 %v2734
      %3057 = vmatprep.mubr.bf16.mxu0 %v924
      %3058 = vmatmul.mubr.bf16.gmra.mrb[0].mxu0 %v923
      %v3059 = vpop.f32.mrb[0].mxu0
      %v3060 = vadd.f32 %v3019, %v3059
      %v3061 = vpop.f32.mrb[0].mxu0
      %v3062 = vpop.f32.mrb[0].mxu0
      %v3063 = vadd.f32 %v3022, %v3062
      %v3064 = vpop.f32.mrb[0].mxu0
      %3065 = vdwg.mxu0
      %3066 = vmatprep.subr.bf16.mxu0 0
      %3067 = vmatpush1.bf16.msra.mxu0 %v2735
      %3068 = vmatprep.subr.bf16.mxu0 0
      %3069 = vmatpush1.bf16.msra.mxu0 %v2736
      %3070 = vmatprep.subr.bf16.mxu0 0
      %3071 = vmatpush1.bf16.msra.mxu0 %v2737
      %3072 = vmatprep.subr.bf16.mxu0 0
      %3073 = vmatpush1.bf16.msra.mxu0 %v2738
      %3074 = vmatprep.subr.bf16.mxu0 0
      %3075 = vmatpush1.bf16.msra.mxu0 %v2739
      %3076 = vmatprep.subr.bf16.mxu0 0
      %3077 = vmatpush1.bf16.msra.mxu0 %v2740
      %3078 = vmatprep.subr.bf16.mxu0 0
      %3079 = vmatpush1.bf16.msra.mxu0 %v2741
      %3080 = vmatprep.subr.bf16.mxu0 0
      %3081 = vmatpush1.bf16.msra.mxu0 %v2742
      %3082 = vmatprep.subr.bf16.mxu0 0
      %3083 = vmatpush1.bf16.msra.mxu0 %v2743
      %3084 = vmatprep.subr.bf16.mxu0 0
      %3085 = vmatpush1.bf16.msra.mxu0 %v2744
      %3086 = vmatprep.subr.bf16.mxu0 0
      %3087 = vmatpush1.bf16.msra.mxu0 %v2745
      %3088 = vmatprep.subr.bf16.mxu0 0
      %3089 = vmatpush1.bf16.msra.mxu0 %v2746
      %3090 = vmatprep.subr.bf16.mxu0 0
      %3091 = vmatpush1.bf16.msra.mxu0 %v2747
      %3092 = vmatprep.subr.bf16.mxu0 0
      %3093 = vmatpush1.bf16.msra.mxu0 %v2748
      %3094 = vmatprep.subr.bf16.mxu0 0
      %3095 = vmatpush1.bf16.msra.mxu0 %v2749
      %3096 = vmatprep.subr.bf16.mxu0 0
      %3097 = vmatpush1.bf16.msra.mxu0 %v2750
      %3098 = vmatprep.mubr.bf16.mxu0 %v926
      %3099 = vmatmul.mubr.bf16.gmra.mrb[0].mxu0 %v925
      %v3100 = vpop.f32.mrb[0].mxu0
      %v3101 = vadd.f32 %v3060, %v3100
      %v3102 = vpop.f32.mrb[0].mxu0
      %v3103 = vpop.f32.mrb[0].mxu0
      %v3104 = vadd.f32 %v3063, %v3103
      %v3105 = vpop.f32.mrb[0].mxu0
      %3106 = vdwg.mxu0
      %3107 = vmatprep.subr.bf16.mxu0 0
      %3108 = vmatpush1.bf16.msra.mxu0 %v2751
      %3109 = vmatprep.subr.bf16.mxu0 0
      %3110 = vmatpush1.bf16.msra.mxu0 %v2752
      %3111 = vmatprep.subr.bf16.mxu0 0
      %3112 = vmatpush1.bf16.msra.mxu0 %v2753
      %3113 = vmatprep.subr.bf16.mxu0 0
      %3114 = vmatpush1.bf16.msra.mxu0 %v2754
      %3115 = vmatprep.subr.bf16.mxu0 0
      %3116 = vmatpush1.bf16.msra.mxu0 %v2755
      %3117 = vmatprep.subr.bf16.mxu0 0
      %3118 = vmatpush1.bf16.msra.mxu0 %v2756
      %3119 = vmatprep.subr.bf16.mxu0 0
      %3120 = vmatpush1.bf16.msra.mxu0 %v2757
      %3121 = vmatprep.subr.bf16.mxu0 0
      %3122 = vmatpush1.bf16.msra.mxu0 %v2758
      %3123 = vmatprep.subr.bf16.mxu0 0
      %3124 = vmatpush1.bf16.msra.mxu0 %v2759
      %3125 = vmatprep.subr.bf16.mxu0 0
      %3126 = vmatpush1.bf16.msra.mxu0 %v2760
      %3127 = vmatprep.subr.bf16.mxu0 0
      %3128 = vmatpush1.bf16.msra.mxu0 %v2761
      %3129 = vmatprep.subr.bf16.mxu0 0
      %3130 = vmatpush1.bf16.msra.mxu0 %v2762
      %3131 = vmatprep.subr.bf16.mxu0 0
      %3132 = vmatpush1.bf16.msra.mxu0 %v2763
      %3133 = vmatprep.subr.bf16.mxu0 0
      %3134 = vmatpush1.bf16.msra.mxu0 %v2764
      %3135 = vmatprep.subr.bf16.mxu0 0
      %3136 = vmatpush1.bf16.msra.mxu0 %v2765
      %3137 = vmatprep.subr.bf16.mxu0 0
      %3138 = vmatpush1.bf16.msra.mxu0 %v2766
      %3139 = vmatprep.mubr.bf16.mxu0 %v928
      %3140 = vmatmul.mubr.bf16.gmra.mrb[0].mxu0 %v927
      %v3141 = vpop.f32.mrb[0].mxu0
      %v3142 = vadd.f32 %v3101, %v3141
      %v3143 = vpop.f32.mrb[0].mxu0
      %v3144 = vpop.f32.mrb[0].mxu0
      %v3145 = vadd.f32 %v3104, %v3144
      %v3146 = vpop.f32.mrb[0].mxu0
      %3147 = vdwg.mxu0
      %3148 = vmatprep.subr.bf16.mxu0 0
      %3149 = vmatpush1.bf16.msra.mxu0 %v2767
      %3150 = vmatprep.subr.bf16.mxu0 0
      %3151 = vmatpush1.bf16.msra.mxu0 %v2768
      %3152 = vmatprep.subr.bf16.mxu0 0
      %3153 = vmatpush1.bf16.msra.mxu0 %v2769
      %3154 = vmatprep.subr.bf16.mxu0 0
      %3155 = vmatpush1.bf16.msra.mxu0 %v2770
      %3156 = vmatprep.subr.bf16.mxu0 0
      %3157 = vmatpush1.bf16.msra.mxu0 %v2771
      %3158 = vmatprep.subr.bf16.mxu0 0
      %3159 = vmatpush1.bf16.msra.mxu0 %v2772
      %3160 = vmatprep.subr.bf16.mxu0 0
      %3161 = vmatpush1.bf16.msra.mxu0 %v2773
      %3162 = vmatprep.subr.bf16.mxu0 0
      %3163 = vmatpush1.bf16.msra.mxu0 %v2774
      %3164 = vmatprep.subr.bf16.mxu0 0
      %3165 = vmatpush1.bf16.msra.mxu0 %v2775
      %3166 = vmatprep.subr.bf16.mxu0 0
      %3167 = vmatpush1.bf16.msra.mxu0 %v2776
      %3168 = vmatprep.subr.bf16.mxu0 0
      %3169 = vmatpush1.bf16.msra.mxu0 %v2777
      %3170 = vmatprep.subr.bf16.mxu0 0
      %3171 = vmatpush1.bf16.msra.mxu0 %v2778
      %3172 = vmatprep.subr.bf16.mxu0 0
      %3173 = vmatpush1.bf16.msra.mxu0 %v2779
      %3174 = vmatprep.subr.bf16.mxu0 0
      %3175 = vmatpush1.bf16.msra.mxu0 %v2780
      %3176 = vmatprep.subr.bf16.mxu0 0
      %3177 = vmatpush1.bf16.msra.mxu0 %v2781
      %3178 = vmatprep.subr.bf16.mxu0 0
      %3179 = vmatpush1.bf16.msra.mxu0 %v2782
      %3180 = vmatprep.mubr.bf16.mxu0 %v930
      %3181 = vmatmul.mubr.bf16.gmra.mrb[0].mxu0 %v929
      %v3182 = vpop.f32.mrb[0].mxu0
      %v3183 = vadd.f32 %v3142, %v3182
      %v3184 = vpop.f32.mrb[0].mxu0
      %v3185 = vpop.f32.mrb[0].mxu0
      %v3186 = vadd.f32 %v3145, %v3185
      %v3187 = vpop.f32.mrb[0].mxu0
      %3188 = vdwg.mxu0
      %3189 = vmatprep.subr.bf16.mxu0 0
      %3190 = vmatpush1.bf16.msra.mxu0 %v2783
      %3191 = vmatprep.subr.bf16.mxu0 0
      %3192 = vmatpush1.bf16.msra.mxu0 %v2784
      %3193 = vmatprep.subr.bf16.mxu0 0
      %3194 = vmatpush1.bf16.msra.mxu0 %v2785
      %3195 = vmatprep.subr.bf16.mxu0 0
      %3196 = vmatpush1.bf16.msra.mxu0 %v2786
      %3197 = vmatprep.subr.bf16.mxu0 0
      %3198 = vmatpush1.bf16.msra.mxu0 %v2787
      %3199 = vmatprep.subr.bf16.mxu0 0
      %3200 = vmatpush1.bf16.msra.mxu0 %v2788
      %3201 = vmatprep.subr.bf16.mxu0 0
      %3202 = vmatpush1.bf16.msra.mxu0 %v2789
      %3203 = vmatprep.subr.bf16.mxu0 0
      %3204 = vmatpush1.bf16.msra.mxu0 %v2790
      %3205 = vmatprep.subr.bf16.mxu0 0
      %3206 = vmatpush1.bf16.msra.mxu0 %v2791
      %3207 = vmatprep.subr.bf16.mxu0 0
      %3208 = vmatpush1.bf16.msra.mxu0 %v2792
      %3209 = vmatprep.subr.bf16.mxu0 0
      %3210 = vmatpush1.bf16.msra.mxu0 %v2793
      %3211 = vmatprep.subr.bf16.mxu0 0
      %3212 = vmatpush1.bf16.msra.mxu0 %v2794
      %3213 = vmatprep.subr.bf16.mxu0 0
      %3214 = vmatpush1.bf16.msra.mxu0 %v2795
      %3215 = vmatprep.subr.bf16.mxu0 0
      %3216 = vmatpush1.bf16.msra.mxu0 %v2796
      %3217 = vmatprep.subr.bf16.mxu0 0
      %3218 = vmatpush1.bf16.msra.mxu0 %v2797
      %3219 = vmatprep.subr.bf16.mxu0 0
      %3220 = vmatpush1.bf16.msra.mxu0 %v2798
      %3221 = vmatprep.mubr.bf16.mxu0 %v932
      %3222 = vmatmul.mubr.bf16.gmra.mrb[0].mxu0 %v931
      %v3223 = vpop.f32.mrb[0].mxu0
      %v3224 = vadd.f32 %v3183, %v3223
      %v3225 = vpop.f32.mrb[0].mxu0
      %v3226 = vpop.f32.mrb[0].mxu0
      %v3227 = vadd.f32 %v3186, %v3226
      %v3228 = vpop.f32.mrb[0].mxu0
      %3229 = vdwg.mxu0
      %3230 = vmatprep.subr.bf16.mxu0 0
      %3231 = vmatpush1.bf16.msra.mxu0 %v2799
      %3232 = vmatprep.subr.bf16.mxu0 0
      %3233 = vmatpush1.bf16.msra.mxu0 %v2800
      %3234 = vmatprep.subr.bf16.mxu0 0
      %3235 = vmatpush1.bf16.msra.mxu0 %v2801
      %3236 = vmatprep.subr.bf16.mxu0 0
      %3237 = vmatpush1.bf16.msra.mxu0 %v2802
      %3238 = vmatprep.subr.bf16.mxu0 0
      %3239 = vmatpush1.bf16.msra.mxu0 %v2803
      %3240 = vmatprep.subr.bf16.mxu0 0
      %3241 = vmatpush1.bf16.msra.mxu0 %v2804
      %3242 = vmatprep.subr.bf16.mxu0 0
      %3243 = vmatpush1.bf16.msra.mxu0 %v2805
      %3244 = vmatprep.subr.bf16.mxu0 0
      %3245 = vmatpush1.bf16.msra.mxu0 %v2806
      %3246 = vmatprep.subr.bf16.mxu0 0
      %3247 = vmatpush1.bf16.msra.mxu0 %v2807
      %3248 = vmatprep.subr.bf16.mxu0 0
      %3249 = vmatpush1.bf16.msra.mxu0 %v2808
      %3250 = vmatprep.subr.bf16.mxu0 0
      %3251 = vmatpush1.bf16.msra.mxu0 %v2809
      %3252 = vmatprep.subr.bf16.mxu0 0
      %3253 = vmatpush1.bf16.msra.mxu0 %v2810
      %3254 = vmatprep.subr.bf16.mxu0 0
      %3255 = vmatpush1.bf16.msra.mxu0 %v2811
      %3256 = vmatprep.subr.bf16.mxu0 0
      %3257 = vmatpush1.bf16.msra.mxu0 %v2812
      %3258 = vmatprep.subr.bf16.mxu0 0
      %3259 = vmatpush1.bf16.msra.mxu0 %v2813
      %3260 = vmatprep.subr.bf16.mxu0 0
      %3261 = vmatpush1.bf16.msra.mxu0 %v2814
      %3262 = vmatprep.mubr.bf16.mxu0 %v934
      %3263 = vmatmul.mubr.bf16.gmra.mrb[0].mxu0 %v933
      %v3264 = vpop.f32.mrb[0].mxu0
      %v3265 = vadd.f32 %v3224, %v3264
      %v3266 = vpop.f32.mrb[0].mxu0
      %v3267 = vpop.f32.mrb[0].mxu0
      %v3268 = vadd.f32 %v3227, %v3267
      %v3269 = vpop.f32.mrb[0].mxu0
      %3270 = vdwg.mxu0
      %v3271 = vld [vmem:[%s332] sm:$0xcc]
      %v3272 = vld [vmem:[%s332 + $0x8] sm:$0xcc]
      %v3273 = vld [vmem:[%s332 + $0x10] sm:$0xcc]
      %v3274 = vld [vmem:[%s332 + $0x18] sm:$0xcc]
      %v3275 = vld [vmem:[%s332 + $0x20] sm:$0xcc]
      %v3276 = vld [vmem:[%s332 + $0x28] sm:$0xcc]
      %v3277 = vld [vmem:[%s332 + $0x30] sm:$0xcc]
      %v3278 = vld [vmem:[%s332 + $0x38] sm:$0xcc]
      %v3279 = vld [vmem:[%s332 + $0x40] sm:$0xff]
      %v3280 = vld [vmem:[%s332 + $0x48] sm:$0xff]
      %v3281 = vld [vmem:[%s332 + $0x50] sm:$0xff]
      %v3282 = vld [vmem:[%s332 + $0x58] sm:$0xff]
      %v3283 = vld [vmem:[%s332 + $0x60] sm:$0xff]
      %v3284 = vld [vmem:[%s332 + $0x68] sm:$0xff]
      %v3285 = vld [vmem:[%s332 + $0x70] sm:$0xff]
      %v3286 = vld [vmem:[%s332 + $0x78] sm:$0xff]
      %s3287 = scalar_lea.vmem %s1, 2048
      %v3288 = vld [vmem:[%s3287] sm:$0xf]
      %v3289 = vld [vmem:[%s3287 + $0x4] sm:$0xf]
      %v3290 = vld [vmem:[%s3287 + $0x8] sm:$0xf]
      %v3291 = vld [vmem:[%s3287 + $0xc] sm:$0xf]
      %v3292 = vld [vmem:[%s3287 + $0x10] sm:$0xf]
      %v3293 = vld [vmem:[%s3287 + $0x14] sm:$0xf]
      %v3294 = vld [vmem:[%s3287 + $0x18] sm:$0xf]
      %v3295 = vld [vmem:[%s3287 + $0x1c] sm:$0xf]
      %v3296 = vld [vmem:[%s3287 + $0x20] sm:$0xf]
      %v3297 = vld [vmem:[%s3287 + $0x24] sm:$0xf]
      %v3298 = vld [vmem:[%s3287 + $0x28] sm:$0xf]
      %v3299 = vld [vmem:[%s3287 + $0x2c] sm:$0xf]
      %v3300 = vld [vmem:[%s3287 + $0x30] sm:$0xf]
      %v3301 = vld [vmem:[%s3287 + $0x34] sm:$0xf]
      %v3302 = vld [vmem:[%s3287 + $0x38] sm:$0xf]
      %v3303 = vld [vmem:[%s3287 + $0x3c] sm:$0xf]
      %v3304 = vld [vmem:[%s3287 + $0x40] sm:$0xf]
      %v3305 = vld [vmem:[%s3287 + $0x44] sm:$0xf]
      %v3306 = vld [vmem:[%s3287 + $0x48] sm:$0xf]
      %v3307 = vld [vmem:[%s3287 + $0x4c] sm:$0xf]
      %v3308 = vld [vmem:[%s3287 + $0x50] sm:$0xf]
      %v3309 = vld [vmem:[%s3287 + $0x54] sm:$0xf]
      %v3310 = vld [vmem:[%s3287 + $0x58] sm:$0xf]
      %v3311 = vld [vmem:[%s3287 + $0x5c] sm:$0xf]
      %v3312 = vld [vmem:[%s3287 + $0x60] sm:$0xf]
      %v3313 = vld [vmem:[%s3287 + $0x64] sm:$0xf]
      %v3314 = vld [vmem:[%s3287 + $0x68] sm:$0xf]
      %v3315 = vld [vmem:[%s3287 + $0x6c] sm:$0xf]
      %v3316 = vld [vmem:[%s3287 + $0x70] sm:$0xf]
      %v3317 = vld [vmem:[%s3287 + $0x74] sm:$0xf]
      %v3318 = vld [vmem:[%s3287 + $0x78] sm:$0xf]
      %v3319 = vld [vmem:[%s3287 + $0x7c] sm:$0xf]
      %v3320 = vld [vmem:[%s3287 + $0x80] sm:$0xf]
      %v3321 = vld [vmem:[%s3287 + $0x84] sm:$0xf]
      %v3322 = vld [vmem:[%s3287 + $0x88] sm:$0xf]
      %v3323 = vld [vmem:[%s3287 + $0x8c] sm:$0xf]
      %v3324 = vld [vmem:[%s3287 + $0x90] sm:$0xf]
      %v3325 = vld [vmem:[%s3287 + $0x94] sm:$0xf]
      %v3326 = vld [vmem:[%s3287 + $0x98] sm:$0xf]
      %v3327 = vld [vmem:[%s3287 + $0x9c] sm:$0xf]
      %v3328 = vld [vmem:[%s3287 + $0xa0] sm:$0xf]
      %v3329 = vld [vmem:[%s3287 + $0xa4] sm:$0xf]
      %v3330 = vld [vmem:[%s3287 + $0xa8] sm:$0xf]
      %v3331 = vld [vmem:[%s3287 + $0xac] sm:$0xf]
      %v3332 = vld [vmem:[%s3287 + $0xb0] sm:$0xf]
      %v3333 = vld [vmem:[%s3287 + $0xb4] sm:$0xf]
      %v3334 = vld [vmem:[%s3287 + $0xb8] sm:$0xf]
      %v3335 = vld [vmem:[%s3287 + $0xbc] sm:$0xf]
      %v3336 = vld [vmem:[%s3287 + $0xc0] sm:$0xf]
      %v3337 = vld [vmem:[%s3287 + $0xc4] sm:$0xf]
      %v3338 = vld [vmem:[%s3287 + $0xc8] sm:$0xf]
      %v3339 = vld [vmem:[%s3287 + $0xcc] sm:$0xf]
      %v3340 = vld [vmem:[%s3287 + $0xd0] sm:$0xf]
      %v3341 = vld [vmem:[%s3287 + $0xd4] sm:$0xf]
      %v3342 = vld [vmem:[%s3287 + $0xd8] sm:$0xf]
      %v3343 = vld [vmem:[%s3287 + $0xdc] sm:$0xf]
      %v3344 = vld [vmem:[%s3287 + $0xe0] sm:$0xf]
      %v3345 = vld [vmem:[%s3287 + $0xe4] sm:$0xf]
      %v3346 = vld [vmem:[%s3287 + $0xe8] sm:$0xf]
      %v3347 = vld [vmem:[%s3287 + $0xec] sm:$0xf]
      %v3348 = vld [vmem:[%s3287 + $0xf0] sm:$0xf]
      %v3349 = vld [vmem:[%s3287 + $0xf4] sm:$0xf]
      %v3350 = vld [vmem:[%s3287 + $0xf8] sm:$0xf]
      %v3351 = vld [vmem:[%s3287 + $0xfc] sm:$0xf]
      %v3352 = vld [vmem:[%s3287 + $0x100] sm:$0xf]
      %v3353 = vld [vmem:[%s3287 + $0x104] sm:$0xf]
      %v3354 = vld [vmem:[%s3287 + $0x108] sm:$0xf]
      %v3355 = vld [vmem:[%s3287 + $0x10c] sm:$0xf]
      %v3356 = vld [vmem:[%s3287 + $0x110] sm:$0xf]
      %v3357 = vld [vmem:[%s3287 + $0x114] sm:$0xf]
      %v3358 = vld [vmem:[%s3287 + $0x118] sm:$0xf]
      %v3359 = vld [vmem:[%s3287 + $0x11c] sm:$0xf]
      %v3360 = vld [vmem:[%s3287 + $0x120] sm:$0xf]
      %v3361 = vld [vmem:[%s3287 + $0x124] sm:$0xf]
      %v3362 = vld [vmem:[%s3287 + $0x128] sm:$0xf]
      %v3363 = vld [vmem:[%s3287 + $0x12c] sm:$0xf]
      %v3364 = vld [vmem:[%s3287 + $0x130] sm:$0xf]
      %v3365 = vld [vmem:[%s3287 + $0x134] sm:$0xf]
      %v3366 = vld [vmem:[%s3287 + $0x138] sm:$0xf]
      %v3367 = vld [vmem:[%s3287 + $0x13c] sm:$0xf]
      %v3368 = vld [vmem:[%s3287 + $0x140] sm:$0xf]
      %v3369 = vld [vmem:[%s3287 + $0x144] sm:$0xf]
      %v3370 = vld [vmem:[%s3287 + $0x148] sm:$0xf]
      %v3371 = vld [vmem:[%s3287 + $0x14c] sm:$0xf]
      %v3372 = vld [vmem:[%s3287 + $0x150] sm:$0xf]
      %v3373 = vld [vmem:[%s3287 + $0x154] sm:$0xf]
      %v3374 = vld [vmem:[%s3287 + $0x158] sm:$0xf]
      %v3375 = vld [vmem:[%s3287 + $0x15c] sm:$0xf]
      %v3376 = vld [vmem:[%s3287 + $0x160] sm:$0xf]
      %v3377 = vld [vmem:[%s3287 + $0x164] sm:$0xf]
      %v3378 = vld [vmem:[%s3287 + $0x168] sm:$0xf]
      %v3379 = vld [vmem:[%s3287 + $0x16c] sm:$0xf]
      %v3380 = vld [vmem:[%s3287 + $0x170] sm:$0xf]
      %v3381 = vld [vmem:[%s3287 + $0x174] sm:$0xf]
      %v3382 = vld [vmem:[%s3287 + $0x178] sm:$0xf]
      %v3383 = vld [vmem:[%s3287 + $0x17c] sm:$0xf]
      %v3384 = vld [vmem:[%s3287 + $0x180] sm:$0xf]
      %v3385 = vld [vmem:[%s3287 + $0x184] sm:$0xf]
      %v3386 = vld [vmem:[%s3287 + $0x188] sm:$0xf]
      %v3387 = vld [vmem:[%s3287 + $0x18c] sm:$0xf]
      %v3388 = vld [vmem:[%s3287 + $0x190] sm:$0xf]
      %v3389 = vld [vmem:[%s3287 + $0x194] sm:$0xf]
      %v3390 = vld [vmem:[%s3287 + $0x198] sm:$0xf]
      %v3391 = vld [vmem:[%s3287 + $0x19c] sm:$0xf]
      %v3392 = vld [vmem:[%s3287 + $0x1a0] sm:$0xf]
      %v3393 = vld [vmem:[%s3287 + $0x1a4] sm:$0xf]
      %v3394 = vld [vmem:[%s3287 + $0x1a8] sm:$0xf]
      %v3395 = vld [vmem:[%s3287 + $0x1ac] sm:$0xf]
      %v3396 = vld [vmem:[%s3287 + $0x1b0] sm:$0xf]
      %v3397 = vld [vmem:[%s3287 + $0x1b4] sm:$0xf]
      %v3398 = vld [vmem:[%s3287 + $0x1b8] sm:$0xf]
      %v3399 = vld [vmem:[%s3287 + $0x1bc] sm:$0xf]
      %v3400 = vld [vmem:[%s3287 + $0x1c0] sm:$0xf]
      %v3401 = vld [vmem:[%s3287 + $0x1c4] sm:$0xf]
      %v3402 = vld [vmem:[%s3287 + $0x1c8] sm:$0xf]
      %v3403 = vld [vmem:[%s3287 + $0x1cc] sm:$0xf]
      %v3404 = vld [vmem:[%s3287 + $0x1d0] sm:$0xf]
      %v3405 = vld [vmem:[%s3287 + $0x1d4] sm:$0xf]
      %v3406 = vld [vmem:[%s3287 + $0x1d8] sm:$0xf]
      %v3407 = vld [vmem:[%s3287 + $0x1dc] sm:$0xf]
      %v3408 = vld [vmem:[%s3287 + $0x1e0] sm:$0xf]
      %v3409 = vld [vmem:[%s3287 + $0x1e4] sm:$0xf]
      %v3410 = vld [vmem:[%s3287 + $0x1e8] sm:$0xf]
      %v3411 = vld [vmem:[%s3287 + $0x1ec] sm:$0xf]
      %v3412 = vld [vmem:[%s3287 + $0x1f0] sm:$0xf]
      %v3413 = vld [vmem:[%s3287 + $0x1f4] sm:$0xf]
      %v3414 = vld [vmem:[%s3287 + $0x1f8] sm:$0xf]
      %v3415 = vld [vmem:[%s3287 + $0x1fc] sm:$0xf]
      %v3416 = vld [vmem:[%s3287 + $0x200] sm:$0xf]
      %v3417 = vld [vmem:[%s3287 + $0x204] sm:$0xf]
      %v3418 = vld [vmem:[%s3287 + $0x208] sm:$0xf]
      %v3419 = vld [vmem:[%s3287 + $0x20c] sm:$0xf]
      %v3420 = vld [vmem:[%s3287 + $0x210] sm:$0xf]
      %v3421 = vld [vmem:[%s3287 + $0x214] sm:$0xf]
      %v3422 = vld [vmem:[%s3287 + $0x218] sm:$0xf]
      %v3423 = vld [vmem:[%s3287 + $0x21c] sm:$0xf]
      %v3424 = vld [vmem:[%s3287 + $0x220] sm:$0xf]
      %v3425 = vld [vmem:[%s3287 + $0x224] sm:$0xf]
      %v3426 = vld [vmem:[%s3287 + $0x228] sm:$0xf]
      %v3427 = vld [vmem:[%s3287 + $0x22c] sm:$0xf]
      %v3428 = vld [vmem:[%s3287 + $0x230] sm:$0xf]
      %v3429 = vld [vmem:[%s3287 + $0x234] sm:$0xf]
      %v3430 = vld [vmem:[%s3287 + $0x238] sm:$0xf]
      %v3431 = vld [vmem:[%s3287 + $0x23c] sm:$0xf]
      %v3432 = vld [vmem:[%s3287 + $0x240] sm:$0xf]
      %v3433 = vld [vmem:[%s3287 + $0x244] sm:$0xf]
      %v3434 = vld [vmem:[%s3287 + $0x248] sm:$0xf]
      %v3435 = vld [vmem:[%s3287 + $0x24c] sm:$0xf]
      %v3436 = vld [vmem:[%s3287 + $0x250] sm:$0xf]
      %v3437 = vld [vmem:[%s3287 + $0x254] sm:$0xf]
      %v3438 = vld [vmem:[%s3287 + $0x258] sm:$0xf]
      %v3439 = vld [vmem:[%s3287 + $0x25c] sm:$0xf]
      %v3440 = vld [vmem:[%s3287 + $0x260] sm:$0xf]
      %v3441 = vld [vmem:[%s3287 + $0x264] sm:$0xf]
      %v3442 = vld [vmem:[%s3287 + $0x268] sm:$0xf]
      %v3443 = vld [vmem:[%s3287 + $0x26c] sm:$0xf]
      %v3444 = vld [vmem:[%s3287 + $0x270] sm:$0xf]
      %v3445 = vld [vmem:[%s3287 + $0x274] sm:$0xf]
      %v3446 = vld [vmem:[%s3287 + $0x278] sm:$0xf]
      %v3447 = vld [vmem:[%s3287 + $0x27c] sm:$0xf]
      %v3448 = vld [vmem:[%s3287 + $0x280] sm:$0xf]
      %v3449 = vld [vmem:[%s3287 + $0x284] sm:$0xf]
      %v3450 = vld [vmem:[%s3287 + $0x288] sm:$0xf]
      %v3451 = vld [vmem:[%s3287 + $0x28c] sm:$0xf]
      %v3452 = vld [vmem:[%s3287 + $0x290] sm:$0xf]
      %v3453 = vld [vmem:[%s3287 + $0x294] sm:$0xf]
      %v3454 = vld [vmem:[%s3287 + $0x298] sm:$0xf]
      %v3455 = vld [vmem:[%s3287 + $0x29c] sm:$0xf]
      %v3456 = vld [vmem:[%s3287 + $0x2a0] sm:$0xf]
      %v3457 = vld [vmem:[%s3287 + $0x2a4] sm:$0xf]
      %v3458 = vld [vmem:[%s3287 + $0x2a8] sm:$0xf]
      %v3459 = vld [vmem:[%s3287 + $0x2ac] sm:$0xf]
      %v3460 = vld [vmem:[%s3287 + $0x2b0] sm:$0xf]
      %v3461 = vld [vmem:[%s3287 + $0x2b4] sm:$0xf]
      %v3462 = vld [vmem:[%s3287 + $0x2b8] sm:$0xf]
      %v3463 = vld [vmem:[%s3287 + $0x2bc] sm:$0xf]
      %v3464 = vld [vmem:[%s3287 + $0x2c0] sm:$0xf]
      %v3465 = vld [vmem:[%s3287 + $0x2c4] sm:$0xf]
      %v3466 = vld [vmem:[%s3287 + $0x2c8] sm:$0xf]
      %v3467 = vld [vmem:[%s3287 + $0x2cc] sm:$0xf]
      %v3468 = vld [vmem:[%s3287 + $0x2d0] sm:$0xf]
      %v3469 = vld [vmem:[%s3287 + $0x2d4] sm:$0xf]
      %v3470 = vld [vmem:[%s3287 + $0x2d8] sm:$0xf]
      %v3471 = vld [vmem:[%s3287 + $0x2dc] sm:$0xf]
      %v3472 = vld [vmem:[%s3287 + $0x2e0] sm:$0xf]
      %v3473 = vld [vmem:[%s3287 + $0x2e4] sm:$0xf]
      %v3474 = vld [vmem:[%s3287 + $0x2e8] sm:$0xf]
      %v3475 = vld [vmem:[%s3287 + $0x2ec] sm:$0xf]
      %v3476 = vld [vmem:[%s3287 + $0x2f0] sm:$0xf]
      %v3477 = vld [vmem:[%s3287 + $0x2f4] sm:$0xf]
      %v3478 = vld [vmem:[%s3287 + $0x2f8] sm:$0xf]
      %v3479 = vld [vmem:[%s3287 + $0x2fc] sm:$0xf]
      %v3480 = vld [vmem:[%s3287 + $0x300] sm:$0xf]
      %v3481 = vld [vmem:[%s3287 + $0x304] sm:$0xf]
      %v3482 = vld [vmem:[%s3287 + $0x308] sm:$0xf]
      %v3483 = vld [vmem:[%s3287 + $0x30c] sm:$0xf]
      %v3484 = vld [vmem:[%s3287 + $0x310] sm:$0xf]
      %v3485 = vld [vmem:[%s3287 + $0x314] sm:$0xf]
      %v3486 = vld [vmem:[%s3287 + $0x318] sm:$0xf]
      %v3487 = vld [vmem:[%s3287 + $0x31c] sm:$0xf]
      %v3488 = vld [vmem:[%s3287 + $0x320] sm:$0xf]
      %v3489 = vld [vmem:[%s3287 + $0x324] sm:$0xf]
      %v3490 = vld [vmem:[%s3287 + $0x328] sm:$0xf]
      %v3491 = vld [vmem:[%s3287 + $0x32c] sm:$0xf]
      %v3492 = vld [vmem:[%s3287 + $0x330] sm:$0xf]
      %v3493 = vld [vmem:[%s3287 + $0x334] sm:$0xf]
      %v3494 = vld [vmem:[%s3287 + $0x338] sm:$0xf]
      %v3495 = vld [vmem:[%s3287 + $0x33c] sm:$0xf]
      %v3496 = vld [vmem:[%s3287 + $0x340] sm:$0xf]
      %v3497 = vld [vmem:[%s3287 + $0x344] sm:$0xf]
      %v3498 = vld [vmem:[%s3287 + $0x348] sm:$0xf]
      %v3499 = vld [vmem:[%s3287 + $0x34c] sm:$0xf]
      %v3500 = vld [vmem:[%s3287 + $0x350] sm:$0xf]
      %v3501 = vld [vmem:[%s3287 + $0x354] sm:$0xf]
      %v3502 = vld [vmem:[%s3287 + $0x358] sm:$0xf]
      %v3503 = vld [vmem:[%s3287 + $0x35c] sm:$0xf]
      %v3504 = vld [vmem:[%s3287 + $0x360] sm:$0xf]
      %v3505 = vld [vmem:[%s3287 + $0x364] sm:$0xf]
      %v3506 = vld [vmem:[%s3287 + $0x368] sm:$0xf]
      %v3507 = vld [vmem:[%s3287 + $0x36c] sm:$0xf]
      %v3508 = vld [vmem:[%s3287 + $0x370] sm:$0xf]
      %v3509 = vld [vmem:[%s3287 + $0x374] sm:$0xf]
      %v3510 = vld [vmem:[%s3287 + $0x378] sm:$0xf]
      %v3511 = vld [vmem:[%s3287 + $0x37c] sm:$0xf]
      %v3512 = vld [vmem:[%s3287 + $0x380] sm:$0xf]
      %v3513 = vld [vmem:[%s3287 + $0x384] sm:$0xf]
      %v3514 = vld [vmem:[%s3287 + $0x388] sm:$0xf]
      %v3515 = vld [vmem:[%s3287 + $0x38c] sm:$0xf]
      %v3516 = vld [vmem:[%s3287 + $0x390] sm:$0xf]
      %v3517 = vld [vmem:[%s3287 + $0x394] sm:$0xf]
      %v3518 = vld [vmem:[%s3287 + $0x398] sm:$0xf]
      %v3519 = vld [vmem:[%s3287 + $0x39c] sm:$0xf]
      %v3520 = vld [vmem:[%s3287 + $0x3a0] sm:$0xf]
      %v3521 = vld [vmem:[%s3287 + $0x3a4] sm:$0xf]
      %v3522 = vld [vmem:[%s3287 + $0x3a8] sm:$0xf]
      %v3523 = vld [vmem:[%s3287 + $0x3ac] sm:$0xf]
      %v3524 = vld [vmem:[%s3287 + $0x3b0] sm:$0xf]
      %v3525 = vld [vmem:[%s3287 + $0x3b4] sm:$0xf]
      %v3526 = vld [vmem:[%s3287 + $0x3b8] sm:$0xf]
      %v3527 = vld [vmem:[%s3287 + $0x3bc] sm:$0xf]
      %v3528 = vld [vmem:[%s3287 + $0x3c0] sm:$0xf]
      %v3529 = vld [vmem:[%s3287 + $0x3c4] sm:$0xf]
      %v3530 = vld [vmem:[%s3287 + $0x3c8] sm:$0xf]
      %v3531 = vld [vmem:[%s3287 + $0x3cc] sm:$0xf]
      %v3532 = vld [vmem:[%s3287 + $0x3d0] sm:$0xf]
      %v3533 = vld [vmem:[%s3287 + $0x3d4] sm:$0xf]
      %v3534 = vld [vmem:[%s3287 + $0x3d8] sm:$0xf]
      %v3535 = vld [vmem:[%s3287 + $0x3dc] sm:$0xf]
      %v3536 = vld [vmem:[%s3287 + $0x3e0] sm:$0xf]
      %v3537 = vld [vmem:[%s3287 + $0x3e4] sm:$0xf]
      %v3538 = vld [vmem:[%s3287 + $0x3e8] sm:$0xf]
      %v3539 = vld [vmem:[%s3287 + $0x3ec] sm:$0xf]
      %v3540 = vld [vmem:[%s3287 + $0x3f0] sm:$0xf]
      %v3541 = vld [vmem:[%s3287 + $0x3f4] sm:$0xf]
      %v3542 = vld [vmem:[%s3287 + $0x3f8] sm:$0xf]
      %v3543 = vld [vmem:[%s3287 + $0x3fc] sm:$0xf]
      %v3560 = vunpack.c.l.b16 %v3271
      %v3561 = vunpack.c.h.b16 %v3271
      %v3562 = vunpack.c.l.b16 %v3272
      %v3563 = vunpack.c.h.b16 %v3272
      %v3564 = vunpack.c.l.b16 %v3273
      %v3565 = vunpack.c.h.b16 %v3273
      %v3566 = vunpack.c.l.b16 %v3274
      %v3567 = vunpack.c.h.b16 %v3274
      %v3568 = vunpack.c.l.b16 %v3275
      %v3569 = vunpack.c.h.b16 %v3275
      %v3570 = vunpack.c.l.b16 %v3276
      %v3571 = vunpack.c.h.b16 %v3276
      %v3572 = vunpack.c.l.b16 %v3277
      %v3573 = vunpack.c.h.b16 %v3277
      %v3574 = vunpack.c.l.b16 %v3278
      %v3575 = vunpack.c.h.b16 %v3278
      %v3576 = vunpack.c.l.b16 %v3279
      %v3577 = vunpack.c.h.b16 %v3279
      %v3578 = vunpack.c.l.b16 %v3280
      %v3579 = vunpack.c.h.b16 %v3280
      %v3580 = vunpack.c.l.b16 %v3281
      %v3581 = vunpack.c.h.b16 %v3281
      %v3582 = vunpack.c.l.b16 %v3282
      %v3583 = vunpack.c.h.b16 %v3282
      %v3584 = vunpack.c.l.b16 %v3283
      %v3585 = vunpack.c.h.b16 %v3283
      %v3586 = vunpack.c.l.b16 %v3284
      %v3587 = vunpack.c.h.b16 %v3284
      %v3588 = vunpack.c.l.b16 %v3285
      %v3589 = vunpack.c.h.b16 %v3285
      %v3590 = vunpack.c.l.b16 %v3286
      %v3591 = vunpack.c.h.b16 %v3286
      %v3592 = vpack.c.b16 %v3576, %v3560
      %v3593 = vpack.c.b16 %v3577, %v3561
      %v3594 = vpack.c.b16 %v3578, %v3562
      %v3595 = vpack.c.b16 %v3579, %v3563
      %v3596 = vpack.c.b16 %v3580, %v3564
      %v3597 = vpack.c.b16 %v3581, %v3565
      %v3598 = vpack.c.b16 %v3582, %v3566
      %v3599 = vpack.c.b16 %v3583, %v3567
      %v3600 = vpack.c.b16 %v3584, %v3568
      %v3601 = vpack.c.b16 %v3585, %v3569
      %v3602 = vpack.c.b16 %v3586, %v3570
      %v3603 = vpack.c.b16 %v3587, %v3571
      %v3604 = vpack.c.b16 %v3588, %v3572
      %v3605 = vpack.c.b16 %v3589, %v3573
      %v3606 = vpack.c.b16 %v3590, %v3574
      %v3607 = vpack.c.b16 %v3591, %v3575
      %v3608 = vrot.slane %v3592, 2
      %v3609 = vrot.slane %v3593, 2
      %v3610 = vrot.slane %v3594, 2
      %v3611 = vrot.slane %v3595, 2
      %v3612 = vrot.slane %v3596, 2
      %v3613 = vrot.slane %v3597, 2
      %v3614 = vrot.slane %v3598, 2
      %v3615 = vrot.slane %v3599, 2
      %v3616 = vrot.slane %v3600, 2
      %v3617 = vrot.slane %v3601, 2
      %v3618 = vrot.slane %v3602, 2
      %v3619 = vrot.slane %v3603, 2
      %v3620 = vrot.slane %v3604, 2
      %v3621 = vrot.slane %v3605, 2
      %v3622 = vrot.slane %v3606, 2
      %v3623 = vrot.slane %v3607, 2
      %v3896 = vunpack.c.l.b16 %v3288
      %v3897 = vunpack.c.l.b16 %v3289
      %v3898 = vunpack.c.l.b16 %v3290
      %v3899 = vunpack.c.l.b16 %v3291
      %v3900 = vunpack.c.l.b16 %v3292
      %v3901 = vunpack.c.l.b16 %v3293
      %v3902 = vunpack.c.l.b16 %v3294
      %v3903 = vunpack.c.l.b16 %v3295
      %v3904 = vunpack.c.l.b16 %v3296
      %v3905 = vunpack.c.l.b16 %v3297
      %v3906 = vunpack.c.l.b16 %v3298
      %v3907 = vunpack.c.l.b16 %v3299
      %v3908 = vunpack.c.l.b16 %v3300
      %v3909 = vunpack.c.l.b16 %v3301
      %v3910 = vunpack.c.l.b16 %v3302
      %v3911 = vunpack.c.l.b16 %v3303
      %v3912 = vunpack.c.l.b16 %v3304
      %v3913 = vunpack.c.l.b16 %v3305
      %v3914 = vunpack.c.l.b16 %v3306
      %v3915 = vunpack.c.l.b16 %v3307
      %v3916 = vunpack.c.l.b16 %v3308
      %v3917 = vunpack.c.l.b16 %v3309
      %v3918 = vunpack.c.l.b16 %v3310
      %v3919 = vunpack.c.l.b16 %v3311
      %v3920 = vunpack.c.l.b16 %v3312
      %v3921 = vunpack.c.l.b16 %v3313
      %v3922 = vunpack.c.l.b16 %v3314
      %v3923 = vunpack.c.l.b16 %v3315
      %v3924 = vunpack.c.l.b16 %v3316
      %v3925 = vunpack.c.l.b16 %v3317
      %v3926 = vunpack.c.l.b16 %v3318
      %v3927 = vunpack.c.l.b16 %v3319
      %v3928 = vunpack.c.l.b16 %v3320
      %v3929 = vunpack.c.l.b16 %v3321
      %v3930 = vunpack.c.l.b16 %v3322
      %v3931 = vunpack.c.l.b16 %v3323
      %v3932 = vunpack.c.l.b16 %v3324
      %v3933 = vunpack.c.l.b16 %v3325
      %v3934 = vunpack.c.l.b16 %v3326
      %v3935 = vunpack.c.l.b16 %v3327
      %v3936 = vunpack.c.l.b16 %v3328
      %v3937 = vunpack.c.l.b16 %v3329
      %v3938 = vunpack.c.l.b16 %v3330
      %v3939 = vunpack.c.l.b16 %v3331
      %v3940 = vunpack.c.l.b16 %v3332
      %v3941 = vunpack.c.l.b16 %v3333
      %v3942 = vunpack.c.l.b16 %v3334
      %v3943 = vunpack.c.l.b16 %v3335
      %v3944 = vunpack.c.l.b16 %v3336
      %v3945 = vunpack.c.l.b16 %v3337
      %v3946 = vunpack.c.l.b16 %v3338
      %v3947 = vunpack.c.l.b16 %v3339
      %v3948 = vunpack.c.l.b16 %v3340
      %v3949 = vunpack.c.l.b16 %v3341
      %v3950 = vunpack.c.l.b16 %v3342
      %v3951 = vunpack.c.l.b16 %v3343
      %v3952 = vunpack.c.l.b16 %v3344
      %v3953 = vunpack.c.l.b16 %v3345
      %v3954 = vunpack.c.l.b16 %v3346
      %v3955 = vunpack.c.l.b16 %v3347
      %v3956 = vunpack.c.l.b16 %v3348
      %v3957 = vunpack.c.l.b16 %v3349
      %v3958 = vunpack.c.l.b16 %v3350
      %v3959 = vunpack.c.l.b16 %v3351
      %v3960 = vunpack.c.l.b16 %v3352
      %v3961 = vunpack.c.l.b16 %v3353
      %v3962 = vunpack.c.l.b16 %v3354
      %v3963 = vunpack.c.l.b16 %v3355
      %v3964 = vunpack.c.l.b16 %v3356
      %v3965 = vunpack.c.l.b16 %v3357
      %v3966 = vunpack.c.l.b16 %v3358
      %v3967 = vunpack.c.l.b16 %v3359
      %v3968 = vunpack.c.l.b16 %v3360
      %v3969 = vunpack.c.l.b16 %v3361
      %v3970 = vunpack.c.l.b16 %v3362
      %v3971 = vunpack.c.l.b16 %v3363
      %v3972 = vunpack.c.l.b16 %v3364
      %v3973 = vunpack.c.l.b16 %v3365
      %v3974 = vunpack.c.l.b16 %v3366
      %v3975 = vunpack.c.l.b16 %v3367
      %v3976 = vunpack.c.l.b16 %v3368
      %v3977 = vunpack.c.l.b16 %v3369
      %v3978 = vunpack.c.l.b16 %v3370
      %v3979 = vunpack.c.l.b16 %v3371
      %v3980 = vunpack.c.l.b16 %v3372
      %v3981 = vunpack.c.l.b16 %v3373
      %v3982 = vunpack.c.l.b16 %v3374
      %v3983 = vunpack.c.l.b16 %v3375
      %v3984 = vunpack.c.l.b16 %v3376
      %v3985 = vunpack.c.l.b16 %v3377
      %v3986 = vunpack.c.l.b16 %v3378
      %v3987 = vunpack.c.l.b16 %v3379
      %v3988 = vunpack.c.l.b16 %v3380
      %v3989 = vunpack.c.l.b16 %v3381
      %v3990 = vunpack.c.l.b16 %v3382
      %v3991 = vunpack.c.l.b16 %v3383
      %v3992 = vunpack.c.l.b16 %v3384
      %v3993 = vunpack.c.l.b16 %v3385
      %v3994 = vunpack.c.l.b16 %v3386
      %v3995 = vunpack.c.l.b16 %v3387
      %v3996 = vunpack.c.l.b16 %v3388
      %v3997 = vunpack.c.l.b16 %v3389
      %v3998 = vunpack.c.l.b16 %v3390
      %v3999 = vunpack.c.l.b16 %v3391
      %v4000 = vunpack.c.l.b16 %v3392
      %v4001 = vunpack.c.l.b16 %v3393
      %v4002 = vunpack.c.l.b16 %v3394
      %v4003 = vunpack.c.l.b16 %v3395
      %v4004 = vunpack.c.l.b16 %v3396
      %v4005 = vunpack.c.l.b16 %v3397
      %v4006 = vunpack.c.l.b16 %v3398
      %v4007 = vunpack.c.l.b16 %v3399
      %v4008 = vunpack.c.l.b16 %v3400
      %v4009 = vunpack.c.l.b16 %v3401
      %v4010 = vunpack.c.l.b16 %v3402
      %v4011 = vunpack.c.l.b16 %v3403
      %v4012 = vunpack.c.l.b16 %v3404
      %v4013 = vunpack.c.l.b16 %v3405
      %v4014 = vunpack.c.l.b16 %v3406
      %v4015 = vunpack.c.l.b16 %v3407
      %v4016 = vunpack.c.l.b16 %v3408
      %v4017 = vunpack.c.l.b16 %v3409
      %v4018 = vunpack.c.l.b16 %v3410
      %v4019 = vunpack.c.l.b16 %v3411
      %v4020 = vunpack.c.l.b16 %v3412
      %v4021 = vunpack.c.l.b16 %v3413
      %v4022 = vunpack.c.l.b16 %v3414
      %v4023 = vunpack.c.l.b16 %v3415
      %v4024 = vunpack.c.l.b16 %v3416
      %v4025 = vunpack.c.l.b16 %v3417
      %v4026 = vunpack.c.l.b16 %v3418
      %v4027 = vunpack.c.l.b16 %v3419
      %v4028 = vunpack.c.l.b16 %v3420
      %v4029 = vunpack.c.l.b16 %v3421
      %v4030 = vunpack.c.l.b16 %v3422
      %v4031 = vunpack.c.l.b16 %v3423
      %v4032 = vunpack.c.l.b16 %v3424
      %v4033 = vunpack.c.l.b16 %v3425
      %v4034 = vunpack.c.l.b16 %v3426
      %v4035 = vunpack.c.l.b16 %v3427
      %v4036 = vunpack.c.l.b16 %v3428
      %v4037 = vunpack.c.l.b16 %v3429
      %v4038 = vunpack.c.l.b16 %v3430
      %v4039 = vunpack.c.l.b16 %v3431
      %v4040 = vunpack.c.l.b16 %v3432
      %v4041 = vunpack.c.l.b16 %v3433
      %v4042 = vunpack.c.l.b16 %v3434
      %v4043 = vunpack.c.l.b16 %v3435
      %v4044 = vunpack.c.l.b16 %v3436
      %v4045 = vunpack.c.l.b16 %v3437
      %v4046 = vunpack.c.l.b16 %v3438
      %v4047 = vunpack.c.l.b16 %v3439
      %v4048 = vunpack.c.l.b16 %v3440
      %v4049 = vunpack.c.l.b16 %v3441
      %v4050 = vunpack.c.l.b16 %v3442
      %v4051 = vunpack.c.l.b16 %v3443
      %v4052 = vunpack.c.l.b16 %v3444
      %v4053 = vunpack.c.l.b16 %v3445
      %v4054 = vunpack.c.l.b16 %v3446
      %v4055 = vunpack.c.l.b16 %v3447
      %v4056 = vunpack.c.l.b16 %v3448
      %v4057 = vunpack.c.l.b16 %v3449
      %v4058 = vunpack.c.l.b16 %v3450
      %v4059 = vunpack.c.l.b16 %v3451
      %v4060 = vunpack.c.l.b16 %v3452
      %v4061 = vunpack.c.l.b16 %v3453
      %v4062 = vunpack.c.l.b16 %v3454
      %v4063 = vunpack.c.l.b16 %v3455
      %v4064 = vunpack.c.l.b16 %v3456
      %v4065 = vunpack.c.l.b16 %v3457
      %v4066 = vunpack.c.l.b16 %v3458
      %v4067 = vunpack.c.l.b16 %v3459
      %v4068 = vunpack.c.l.b16 %v3460
      %v4069 = vunpack.c.l.b16 %v3461
      %v4070 = vunpack.c.l.b16 %v3462
      %v4071 = vunpack.c.l.b16 %v3463
      %v4072 = vunpack.c.l.b16 %v3464
      %v4073 = vunpack.c.l.b16 %v3465
      %v4074 = vunpack.c.l.b16 %v3466
      %v4075 = vunpack.c.l.b16 %v3467
      %v4076 = vunpack.c.l.b16 %v3468
      %v4077 = vunpack.c.l.b16 %v3469
      %v4078 = vunpack.c.l.b16 %v3470
      %v4079 = vunpack.c.l.b16 %v3471
      %v4080 = vunpack.c.l.b16 %v3472
      %v4081 = vunpack.c.l.b16 %v3473
      %v4082 = vunpack.c.l.b16 %v3474
      %v4083 = vunpack.c.l.b16 %v3475
      %v4084 = vunpack.c.l.b16 %v3476
      %v4085 = vunpack.c.l.b16 %v3477
      %v4086 = vunpack.c.l.b16 %v3478
      %v4087 = vunpack.c.l.b16 %v3479
      %v4088 = vunpack.c.l.b16 %v3480
      %v4089 = vunpack.c.l.b16 %v3481
      %v4090 = vunpack.c.l.b16 %v3482
      %v4091 = vunpack.c.l.b16 %v3483
      %v4092 = vunpack.c.l.b16 %v3484
      %v4093 = vunpack.c.l.b16 %v3485
      %v4094 = vunpack.c.l.b16 %v3486
      %v4095 = vunpack.c.l.b16 %v3487
      %v4096 = vunpack.c.l.b16 %v3488
      %v4097 = vunpack.c.l.b16 %v3489
      %v4098 = vunpack.c.l.b16 %v3490
      %v4099 = vunpack.c.l.b16 %v3491
      %v4100 = vunpack.c.l.b16 %v3492
      %v4101 = vunpack.c.l.b16 %v3493
      %v4102 = vunpack.c.l.b16 %v3494
      %v4103 = vunpack.c.l.b16 %v3495
      %v4104 = vunpack.c.l.b16 %v3496
      %v4105 = vunpack.c.l.b16 %v3497
      %v4106 = vunpack.c.l.b16 %v3498
      %v4107 = vunpack.c.l.b16 %v3499
      %v4108 = vunpack.c.l.b16 %v3500
      %v4109 = vunpack.c.l.b16 %v3501
      %v4110 = vunpack.c.l.b16 %v3502
      %v4111 = vunpack.c.l.b16 %v3503
      %v4112 = vunpack.c.l.b16 %v3504
      %v4113 = vunpack.c.l.b16 %v3505
      %v4114 = vunpack.c.l.b16 %v3506
      %v4115 = vunpack.c.l.b16 %v3507
      %v4116 = vunpack.c.l.b16 %v3508
      %v4117 = vunpack.c.l.b16 %v3509
      %v4118 = vunpack.c.l.b16 %v3510
      %v4119 = vunpack.c.l.b16 %v3511
      %v4120 = vunpack.c.l.b16 %v3512
      %v4121 = vunpack.c.l.b16 %v3513
      %v4122 = vunpack.c.l.b16 %v3514
      %v4123 = vunpack.c.l.b16 %v3515
      %v4124 = vunpack.c.l.b16 %v3516
      %v4125 = vunpack.c.l.b16 %v3517
      %v4126 = vunpack.c.l.b16 %v3518
      %v4127 = vunpack.c.l.b16 %v3519
      %v4128 = vunpack.c.l.b16 %v3520
      %v4129 = vunpack.c.l.b16 %v3521
      %v4130 = vunpack.c.l.b16 %v3522
      %v4131 = vunpack.c.l.b16 %v3523
      %v4132 = vunpack.c.l.b16 %v3524
      %v4133 = vunpack.c.l.b16 %v3525
      %v4134 = vunpack.c.l.b16 %v3526
      %v4135 = vunpack.c.l.b16 %v3527
      %v4136 = vunpack.c.l.b16 %v3528
      %v4137 = vunpack.c.l.b16 %v3529
      %v4138 = vunpack.c.l.b16 %v3530
      %v4139 = vunpack.c.l.b16 %v3531
      %v4140 = vunpack.c.l.b16 %v3532
      %v4141 = vunpack.c.l.b16 %v3533
      %v4142 = vunpack.c.l.b16 %v3534
      %v4143 = vunpack.c.l.b16 %v3535
      %v4144 = vunpack.c.l.b16 %v3536
      %v4145 = vunpack.c.l.b16 %v3537
      %v4146 = vunpack.c.l.b16 %v3538
      %v4147 = vunpack.c.l.b16 %v3539
      %v4148 = vunpack.c.l.b16 %v3540
      %v4149 = vunpack.c.l.b16 %v3541
      %v4150 = vunpack.c.l.b16 %v3542
      %v4151 = vunpack.c.l.b16 %v3543
      %v4152 = vpack.c.b16 %v3897, %v3896
      %v4153 = vpack.c.b16 %v3899, %v3898
      %v4154 = vpack.c.b16 %v3901, %v3900
      %v4155 = vpack.c.b16 %v3903, %v3902
      %v4156 = vpack.c.b16 %v3905, %v3904
      %v4157 = vpack.c.b16 %v3907, %v3906
      %v4158 = vpack.c.b16 %v3909, %v3908
      %v4159 = vpack.c.b16 %v3911, %v3910
      %v4160 = vpack.c.b16 %v3913, %v3912
      %v4161 = vpack.c.b16 %v3915, %v3914
      %v4162 = vpack.c.b16 %v3917, %v3916
      %v4163 = vpack.c.b16 %v3919, %v3918
      %v4164 = vpack.c.b16 %v3921, %v3920
      %v4165 = vpack.c.b16 %v3923, %v3922
      %v4166 = vpack.c.b16 %v3925, %v3924
      %v4167 = vpack.c.b16 %v3927, %v3926
      %v4168 = vpack.c.b16 %v3929, %v3928
      %v4169 = vpack.c.b16 %v3931, %v3930
      %v4170 = vpack.c.b16 %v3933, %v3932
      %v4171 = vpack.c.b16 %v3935, %v3934
      %v4172 = vpack.c.b16 %v3937, %v3936
      %v4173 = vpack.c.b16 %v3939, %v3938
      %v4174 = vpack.c.b16 %v3941, %v3940
      %v4175 = vpack.c.b16 %v3943, %v3942
      %v4176 = vpack.c.b16 %v3945, %v3944
      %v4177 = vpack.c.b16 %v3947, %v3946
      %v4178 = vpack.c.b16 %v3949, %v3948
      %v4179 = vpack.c.b16 %v3951, %v3950
      %v4180 = vpack.c.b16 %v3953, %v3952
      %v4181 = vpack.c.b16 %v3955, %v3954
      %v4182 = vpack.c.b16 %v3957, %v3956
      %v4183 = vpack.c.b16 %v3959, %v3958
      %v4184 = vpack.c.b16 %v3961, %v3960
      %v4185 = vpack.c.b16 %v3963, %v3962
      %v4186 = vpack.c.b16 %v3965, %v3964
      %v4187 = vpack.c.b16 %v3967, %v3966
      %v4188 = vpack.c.b16 %v3969, %v3968
      %v4189 = vpack.c.b16 %v3971, %v3970
      %v4190 = vpack.c.b16 %v3973, %v3972
      %v4191 = vpack.c.b16 %v3975, %v3974
      %v4192 = vpack.c.b16 %v3977, %v3976
      %v4193 = vpack.c.b16 %v3979, %v3978
      %v4194 = vpack.c.b16 %v3981, %v3980
      %v4195 = vpack.c.b16 %v3983, %v3982
      %v4196 = vpack.c.b16 %v3985, %v3984
      %v4197 = vpack.c.b16 %v3987, %v3986
      %v4198 = vpack.c.b16 %v3989, %v3988
      %v4199 = vpack.c.b16 %v3991, %v3990
      %v4200 = vpack.c.b16 %v3993, %v3992
      %v4201 = vpack.c.b16 %v3995, %v3994
      %v4202 = vpack.c.b16 %v3997, %v3996
      %v4203 = vpack.c.b16 %v3999, %v3998
      %v4204 = vpack.c.b16 %v4001, %v4000
      %v4205 = vpack.c.b16 %v4003, %v4002
      %v4206 = vpack.c.b16 %v4005, %v4004
      %v4207 = vpack.c.b16 %v4007, %v4006
      %v4208 = vpack.c.b16 %v4009, %v4008
      %v4209 = vpack.c.b16 %v4011, %v4010
      %v4210 = vpack.c.b16 %v4013, %v4012
      %v4211 = vpack.c.b16 %v4015, %v4014
      %v4212 = vpack.c.b16 %v4017, %v4016
      %v4213 = vpack.c.b16 %v4019, %v4018
      %v4214 = vpack.c.b16 %v4021, %v4020
      %v4215 = vpack.c.b16 %v4023, %v4022
      %v4216 = vpack.c.b16 %v4025, %v4024
      %v4217 = vpack.c.b16 %v4027, %v4026
      %v4218 = vpack.c.b16 %v4029, %v4028
      %v4219 = vpack.c.b16 %v4031, %v4030
      %v4220 = vpack.c.b16 %v4033, %v4032
      %v4221 = vpack.c.b16 %v4035, %v4034
      %v4222 = vpack.c.b16 %v4037, %v4036
      %v4223 = vpack.c.b16 %v4039, %v4038
      %v4224 = vpack.c.b16 %v4041, %v4040
      %v4225 = vpack.c.b16 %v4043, %v4042
      %v4226 = vpack.c.b16 %v4045, %v4044
      %v4227 = vpack.c.b16 %v4047, %v4046
      %v4228 = vpack.c.b16 %v4049, %v4048
      %v4229 = vpack.c.b16 %v4051, %v4050
      %v4230 = vpack.c.b16 %v4053, %v4052
      %v4231 = vpack.c.b16 %v4055, %v4054
      %v4232 = vpack.c.b16 %v4057, %v4056
      %v4233 = vpack.c.b16 %v4059, %v4058
      %v4234 = vpack.c.b16 %v4061, %v4060
      %v4235 = vpack.c.b16 %v4063, %v4062
      %v4236 = vpack.c.b16 %v4065, %v4064
      %v4237 = vpack.c.b16 %v4067, %v4066
      %v4238 = vpack.c.b16 %v4069, %v4068
      %v4239 = vpack.c.b16 %v4071, %v4070
      %v4240 = vpack.c.b16 %v4073, %v4072
      %v4241 = vpack.c.b16 %v4075, %v4074
      %v4242 = vpack.c.b16 %v4077, %v4076
      %v4243 = vpack.c.b16 %v4079, %v4078
      %v4244 = vpack.c.b16 %v4081, %v4080
      %v4245 = vpack.c.b16 %v4083, %v4082
      %v4246 = vpack.c.b16 %v4085, %v4084
      %v4247 = vpack.c.b16 %v4087, %v4086
      %v4248 = vpack.c.b16 %v4089, %v4088
      %v4249 = vpack.c.b16 %v4091, %v4090
      %v4250 = vpack.c.b16 %v4093, %v4092
      %v4251 = vpack.c.b16 %v4095, %v4094
      %v4252 = vpack.c.b16 %v4097, %v4096
      %v4253 = vpack.c.b16 %v4099, %v4098
      %v4254 = vpack.c.b16 %v4101, %v4100
      %v4255 = vpack.c.b16 %v4103, %v4102
      %v4256 = vpack.c.b16 %v4105, %v4104
      %v4257 = vpack.c.b16 %v4107, %v4106
      %v4258 = vpack.c.b16 %v4109, %v4108
      %v4259 = vpack.c.b16 %v4111, %v4110
      %v4260 = vpack.c.b16 %v4113, %v4112
      %v4261 = vpack.c.b16 %v4115, %v4114
      %v4262 = vpack.c.b16 %v4117, %v4116
      %v4263 = vpack.c.b16 %v4119, %v4118
      %v4264 = vpack.c.b16 %v4121, %v4120
      %v4265 = vpack.c.b16 %v4123, %v4122
      %v4266 = vpack.c.b16 %v4125, %v4124
      %v4267 = vpack.c.b16 %v4127, %v4126
      %v4268 = vpack.c.b16 %v4129, %v4128
      %v4269 = vpack.c.b16 %v4131, %v4130
      %v4270 = vpack.c.b16 %v4133, %v4132
      %v4271 = vpack.c.b16 %v4135, %v4134
      %v4272 = vpack.c.b16 %v4137, %v4136
      %v4273 = vpack.c.b16 %v4139, %v4138
      %v4274 = vpack.c.b16 %v4141, %v4140
      %v4275 = vpack.c.b16 %v4143, %v4142
      %v4276 = vpack.c.b16 %v4145, %v4144
      %v4277 = vpack.c.b16 %v4147, %v4146
      %v4278 = vpack.c.b16 %v4149, %v4148
      %v4279 = vpack.c.b16 %v4151, %v4150
      %4408 = vmatprep.subr.bf16.mxu0 0
      %4409 = vmatpush1.bf16.msra.mxu0 %v4152
      %4410 = vmatprep.subr.bf16.mxu0 0
      %4411 = vmatpush1.bf16.msra.mxu0 %v4153
      %4412 = vmatprep.subr.bf16.mxu0 0
      %4413 = vmatpush1.bf16.msra.mxu0 %v4154
      %4414 = vmatprep.subr.bf16.mxu0 0
      %4415 = vmatpush1.bf16.msra.mxu0 %v4155
      %4416 = vmatprep.subr.bf16.mxu0 0
      %4417 = vmatpush1.bf16.msra.mxu0 %v4156
      %4418 = vmatprep.subr.bf16.mxu0 0
      %4419 = vmatpush1.bf16.msra.mxu0 %v4157
      %4420 = vmatprep.subr.bf16.mxu0 0
      %4421 = vmatpush1.bf16.msra.mxu0 %v4158
      %4422 = vmatprep.subr.bf16.mxu0 0
      %4423 = vmatpush1.bf16.msra.mxu0 %v4159
      %4424 = vmatprep.subr.bf16.mxu0 0
      %4425 = vmatpush1.bf16.msra.mxu0 %v4160
      %4426 = vmatprep.subr.bf16.mxu0 0
      %4427 = vmatpush1.bf16.msra.mxu0 %v4161
      %4428 = vmatprep.subr.bf16.mxu0 0
      %4429 = vmatpush1.bf16.msra.mxu0 %v4162
      %4430 = vmatprep.subr.bf16.mxu0 0
      %4431 = vmatpush1.bf16.msra.mxu0 %v4163
      %4432 = vmatprep.subr.bf16.mxu0 0
      %4433 = vmatpush1.bf16.msra.mxu0 %v4164
      %4434 = vmatprep.subr.bf16.mxu0 0
      %4435 = vmatpush1.bf16.msra.mxu0 %v4165
      %4436 = vmatprep.subr.bf16.mxu0 0
      %4437 = vmatpush1.bf16.msra.mxu0 %v4166
      %4438 = vmatprep.subr.bf16.mxu0 0
      %4439 = vmatpush1.bf16.msra.mxu0 %v4167
      %4440 = vmatprep.mubr.bf16.mxu0 %v3609
      %4441 = vmatmul.mubr.bf16.gmra.mrb[0].mxu0 %v3608
      %v4442 = vpop.f32.mrb[0].mxu0
      %v4443 = vadd.f32 0.0, %v4442
      %v4444 = vpop.f32.mrb[0].mxu0
      %v4445 = vpop.f32.mrb[0].mxu0
      %v4446 = vadd.f32 0.0, %v4445
      %v4447 = vpop.f32.mrb[0].mxu0
      %4448 = vdwg.mxu0
      %4449 = vmatprep.subr.bf16.mxu0 0
      %4450 = vmatpush1.bf16.msra.mxu0 %v4168
      %4451 = vmatprep.subr.bf16.mxu0 0
      %4452 = vmatpush1.bf16.msra.mxu0 %v4169
      %4453 = vmatprep.subr.bf16.mxu0 0
      %4454 = vmatpush1.bf16.msra.mxu0 %v4170
      %4455 = vmatprep.subr.bf16.mxu0 0
      %4456 = vmatpush1.bf16.msra.mxu0 %v4171
      %4457 = vmatprep.subr.bf16.mxu0 0
      %4458 = vmatpush1.bf16.msra.mxu0 %v4172
      %4459 = vmatprep.subr.bf16.mxu0 0
      %4460 = vmatpush1.bf16.msra.mxu0 %v4173
      %4461 = vmatprep.subr.bf16.mxu0 0
      %4462 = vmatpush1.bf16.msra.mxu0 %v4174
      %4463 = vmatprep.subr.bf16.mxu0 0
      %4464 = vmatpush1.bf16.msra.mxu0 %v4175
      %4465 = vmatprep.subr.bf16.mxu0 0
      %4466 = vmatpush1.bf16.msra.mxu0 %v4176
      %4467 = vmatprep.subr.bf16.mxu0 0
      %4468 = vmatpush1.bf16.msra.mxu0 %v4177
      %4469 = vmatprep.subr.bf16.mxu0 0
      %4470 = vmatpush1.bf16.msra.mxu0 %v4178
      %4471 = vmatprep.subr.bf16.mxu0 0
      %4472 = vmatpush1.bf16.msra.mxu0 %v4179
      %4473 = vmatprep.subr.bf16.mxu0 0
      %4474 = vmatpush1.bf16.msra.mxu0 %v4180
      %4475 = vmatprep.subr.bf16.mxu0 0
      %4476 = vmatpush1.bf16.msra.mxu0 %v4181
      %4477 = vmatprep.subr.bf16.mxu0 0
      %4478 = vmatpush1.bf16.msra.mxu0 %v4182
      %4479 = vmatprep.subr.bf16.mxu0 0
      %4480 = vmatpush1.bf16.msra.mxu0 %v4183
      %4481 = vmatprep.mubr.bf16.mxu0 %v3611
      %4482 = vmatmul.mubr.bf16.gmra.mrb[0].mxu0 %v3610
      %v4483 = vpop.f32.mrb[0].mxu0
      %v4484 = vadd.f32 %v4443, %v4483
      %v4485 = vpop.f32.mrb[0].mxu0
      %v4486 = vpop.f32.mrb[0].mxu0
      %v4487 = vadd.f32 %v4446, %v4486
      %v4488 = vpop.f32.mrb[0].mxu0
      %4489 = vdwg.mxu0
      %4490 = vmatprep.subr.bf16.mxu0 0
      %4491 = vmatpush1.bf16.msra.mxu0 %v4184
      %4492 = vmatprep.subr.bf16.mxu0 0
      %4493 = vmatpush1.bf16.msra.mxu0 %v4185
      %4494 = vmatprep.subr.bf16.mxu0 0
      %4495 = vmatpush1.bf16.msra.mxu0 %v4186
      %4496 = vmatprep.subr.bf16.mxu0 0
      %4497 = vmatpush1.bf16.msra.mxu0 %v4187
      %4498 = vmatprep.subr.bf16.mxu0 0
      %4499 = vmatpush1.bf16.msra.mxu0 %v4188
      %4500 = vmatprep.subr.bf16.mxu0 0
      %4501 = vmatpush1.bf16.msra.mxu0 %v4189
      %4502 = vmatprep.subr.bf16.mxu0 0
      %4503 = vmatpush1.bf16.msra.mxu0 %v4190
      %4504 = vmatprep.subr.bf16.mxu0 0
      %4505 = vmatpush1.bf16.msra.mxu0 %v4191
      %4506 = vmatprep.subr.bf16.mxu0 0
      %4507 = vmatpush1.bf16.msra.mxu0 %v4192
      %4508 = vmatprep.subr.bf16.mxu0 0
      %4509 = vmatpush1.bf16.msra.mxu0 %v4193
      %4510 = vmatprep.subr.bf16.mxu0 0
      %4511 = vmatpush1.bf16.msra.mxu0 %v4194
      %4512 = vmatprep.subr.bf16.mxu0 0
      %4513 = vmatpush1.bf16.msra.mxu0 %v4195
      %4514 = vmatprep.subr.bf16.mxu0 0
      %4515 = vmatpush1.bf16.msra.mxu0 %v4196
      %4516 = vmatprep.subr.bf16.mxu0 0
      %4517 = vmatpush1.bf16.msra.mxu0 %v4197
      %4518 = vmatprep.subr.bf16.mxu0 0
      %4519 = vmatpush1.bf16.msra.mxu0 %v4198
      %4520 = vmatprep.subr.bf16.mxu0 0
      %4521 = vmatpush1.bf16.msra.mxu0 %v4199
      %4522 = vmatprep.mubr.bf16.mxu0 %v3613
      %4523 = vmatmul.mubr.bf16.gmra.mrb[0].mxu0 %v3612
      %v4524 = vpop.f32.mrb[0].mxu0
      %v4525 = vadd.f32 %v4484, %v4524
      %v4526 = vpop.f32.mrb[0].mxu0
      %v4527 = vpop.f32.mrb[0].mxu0
      %v4528 = vadd.f32 %v4487, %v4527
      %v4529 = vpop.f32.mrb[0].mxu0
      %4530 = vdwg.mxu0
      %4531 = vmatprep.subr.bf16.mxu0 0
      %4532 = vmatpush1.bf16.msra.mxu0 %v4200
      %4533 = vmatprep.subr.bf16.mxu0 0
      %4534 = vmatpush1.bf16.msra.mxu0 %v4201
      %4535 = vmatprep.subr.bf16.mxu0 0
      %4536 = vmatpush1.bf16.msra.mxu0 %v4202
      %4537 = vmatprep.subr.bf16.mxu0 0
      %4538 = vmatpush1.bf16.msra.mxu0 %v4203
      %4539 = vmatprep.subr.bf16.mxu0 0
      %4540 = vmatpush1.bf16.msra.mxu0 %v4204
      %4541 = vmatprep.subr.bf16.mxu0 0
      %4542 = vmatpush1.bf16.msra.mxu0 %v4205
      %4543 = vmatprep.subr.bf16.mxu0 0
      %4544 = vmatpush1.bf16.msra.mxu0 %v4206
      %4545 = vmatprep.subr.bf16.mxu0 0
      %4546 = vmatpush1.bf16.msra.mxu0 %v4207
      %4547 = vmatprep.subr.bf16.mxu0 0
      %4548 = vmatpush1.bf16.msra.mxu0 %v4208
      %4549 = vmatprep.subr.bf16.mxu0 0
      %4550 = vmatpush1.bf16.msra.mxu0 %v4209
      %4551 = vmatprep.subr.bf16.mxu0 0
      %4552 = vmatpush1.bf16.msra.mxu0 %v4210
      %4553 = vmatprep.subr.bf16.mxu0 0
      %4554 = vmatpush1.bf16.msra.mxu0 %v4211
      %4555 = vmatprep.subr.bf16.mxu0 0
      %4556 = vmatpush1.bf16.msra.mxu0 %v4212
      %4557 = vmatprep.subr.bf16.mxu0 0
      %4558 = vmatpush1.bf16.msra.mxu0 %v4213
      %4559 = vmatprep.subr.bf16.mxu0 0
      %4560 = vmatpush1.bf16.msra.mxu0 %v4214
      %4561 = vmatprep.subr.bf16.mxu0 0
      %4562 = vmatpush1.bf16.msra.mxu0 %v4215
      %4563 = vmatprep.mubr.bf16.mxu0 %v3615
      %4564 = vmatmul.mubr.bf16.gmra.mrb[0].mxu0 %v3614
      %v4565 = vpop.f32.mrb[0].mxu0
      %v4566 = vadd.f32 %v4525, %v4565
      %v4567 = vpop.f32.mrb[0].mxu0
      %v4568 = vpop.f32.mrb[0].mxu0
      %v4569 = vadd.f32 %v4528, %v4568
      %v4570 = vpop.f32.mrb[0].mxu0
      %4571 = vdwg.mxu0
      %4572 = vmatprep.subr.bf16.mxu0 0
      %4573 = vmatpush1.bf16.msra.mxu0 %v4216
      %4574 = vmatprep.subr.bf16.mxu0 0
      %4575 = vmatpush1.bf16.msra.mxu0 %v4217
      %4576 = vmatprep.subr.bf16.mxu0 0
      %4577 = vmatpush1.bf16.msra.mxu0 %v4218
      %4578 = vmatprep.subr.bf16.mxu0 0
      %4579 = vmatpush1.bf16.msra.mxu0 %v4219
      %4580 = vmatprep.subr.bf16.mxu0 0
      %4581 = vmatpush1.bf16.msra.mxu0 %v4220
      %4582 = vmatprep.subr.bf16.mxu0 0
      %4583 = vmatpush1.bf16.msra.mxu0 %v4221
      %4584 = vmatprep.subr.bf16.mxu0 0
      %4585 = vmatpush1.bf16.msra.mxu0 %v4222
      %4586 = vmatprep.subr.bf16.mxu0 0
      %4587 = vmatpush1.bf16.msra.mxu0 %v4223
      %4588 = vmatprep.subr.bf16.mxu0 0
      %4589 = vmatpush1.bf16.msra.mxu0 %v4224
      %4590 = vmatprep.subr.bf16.mxu0 0
      %4591 = vmatpush1.bf16.msra.mxu0 %v4225
      %4592 = vmatprep.subr.bf16.mxu0 0
      %4593 = vmatpush1.bf16.msra.mxu0 %v4226
      %4594 = vmatprep.subr.bf16.mxu0 0
      %4595 = vmatpush1.bf16.msra.mxu0 %v4227
      %4596 = vmatprep.subr.bf16.mxu0 0
      %4597 = vmatpush1.bf16.msra.mxu0 %v4228
      %4598 = vmatprep.subr.bf16.mxu0 0
      %4599 = vmatpush1.bf16.msra.mxu0 %v4229
      %4600 = vmatprep.subr.bf16.mxu0 0
      %4601 = vmatpush1.bf16.msra.mxu0 %v4230
      %4602 = vmatprep.subr.bf16.mxu0 0
      %4603 = vmatpush1.bf16.msra.mxu0 %v4231
      %4604 = vmatprep.mubr.bf16.mxu0 %v3617
      %4605 = vmatmul.mubr.bf16.gmra.mrb[0].mxu0 %v3616
      %v4606 = vpop.f32.mrb[0].mxu0
      %v4607 = vadd.f32 %v4566, %v4606
      %v4608 = vpop.f32.mrb[0].mxu0
      %v4609 = vpop.f32.mrb[0].mxu0
      %v4610 = vadd.f32 %v4569, %v4609
      %v4611 = vpop.f32.mrb[0].mxu0
      %4612 = vdwg.mxu0
      %4613 = vmatprep.subr.bf16.mxu0 0
      %4614 = vmatpush1.bf16.msra.mxu0 %v4232
      %4615 = vmatprep.subr.bf16.mxu0 0
      %4616 = vmatpush1.bf16.msra.mxu0 %v4233
      %4617 = vmatprep.subr.bf16.mxu0 0
      %4618 = vmatpush1.bf16.msra.mxu0 %v4234
      %4619 = vmatprep.subr.bf16.mxu0 0
      %4620 = vmatpush1.bf16.msra.mxu0 %v4235
      %4621 = vmatprep.subr.bf16.mxu0 0
      %4622 = vmatpush1.bf16.msra.mxu0 %v4236
      %4623 = vmatprep.subr.bf16.mxu0 0
      %4624 = vmatpush1.bf16.msra.mxu0 %v4237
      %4625 = vmatprep.subr.bf16.mxu0 0
      %4626 = vmatpush1.bf16.msra.mxu0 %v4238
      %4627 = vmatprep.subr.bf16.mxu0 0
      %4628 = vmatpush1.bf16.msra.mxu0 %v4239
      %4629 = vmatprep.subr.bf16.mxu0 0
      %4630 = vmatpush1.bf16.msra.mxu0 %v4240
      %4631 = vmatprep.subr.bf16.mxu0 0
      %4632 = vmatpush1.bf16.msra.mxu0 %v4241
      %4633 = vmatprep.subr.bf16.mxu0 0
      %4634 = vmatpush1.bf16.msra.mxu0 %v4242
      %4635 = vmatprep.subr.bf16.mxu0 0
      %4636 = vmatpush1.bf16.msra.mxu0 %v4243
      %4637 = vmatprep.subr.bf16.mxu0 0
      %4638 = vmatpush1.bf16.msra.mxu0 %v4244
      %4639 = vmatprep.subr.bf16.mxu0 0
      %4640 = vmatpush1.bf16.msra.mxu0 %v4245
      %4641 = vmatprep.subr.bf16.mxu0 0
      %4642 = vmatpush1.bf16.msra.mxu0 %v4246
      %4643 = vmatprep.subr.bf16.mxu0 0
      %4644 = vmatpush1.bf16.msra.mxu0 %v4247
      %4645 = vmatprep.mubr.bf16.mxu0 %v3619
      %4646 = vmatmul.mubr.bf16.gmra.mrb[0].mxu0 %v3618
      %v4647 = vpop.f32.mrb[0].mxu0
      %v4648 = vadd.f32 %v4607, %v4647
      %v4649 = vpop.f32.mrb[0].mxu0
      %v4650 = vpop.f32.mrb[0].mxu0
      %v4651 = vadd.f32 %v4610, %v4650
      %v4652 = vpop.f32.mrb[0].mxu0
      %4653 = vdwg.mxu0
      %4654 = vmatprep.subr.bf16.mxu0 0
      %4655 = vmatpush1.bf16.msra.mxu0 %v4248
      %4656 = vmatprep.subr.bf16.mxu0 0
      %4657 = vmatpush1.bf16.msra.mxu0 %v4249
      %4658 = vmatprep.subr.bf16.mxu0 0
      %4659 = vmatpush1.bf16.msra.mxu0 %v4250
      %4660 = vmatprep.subr.bf16.mxu0 0
      %4661 = vmatpush1.bf16.msra.mxu0 %v4251
      %4662 = vmatprep.subr.bf16.mxu0 0
      %4663 = vmatpush1.bf16.msra.mxu0 %v4252
      %4664 = vmatprep.subr.bf16.mxu0 0
      %4665 = vmatpush1.bf16.msra.mxu0 %v4253
      %4666 = vmatprep.subr.bf16.mxu0 0
      %4667 = vmatpush1.bf16.msra.mxu0 %v4254
      %4668 = vmatprep.subr.bf16.mxu0 0
      %4669 = vmatpush1.bf16.msra.mxu0 %v4255
      %4670 = vmatprep.subr.bf16.mxu0 0
      %4671 = vmatpush1.bf16.msra.mxu0 %v4256
      %4672 = vmatprep.subr.bf16.mxu0 0
      %4673 = vmatpush1.bf16.msra.mxu0 %v4257
      %4674 = vmatprep.subr.bf16.mxu0 0
      %4675 = vmatpush1.bf16.msra.mxu0 %v4258
      %4676 = vmatprep.subr.bf16.mxu0 0
      %4677 = vmatpush1.bf16.msra.mxu0 %v4259
      %4678 = vmatprep.subr.bf16.mxu0 0
      %4679 = vmatpush1.bf16.msra.mxu0 %v4260
      %4680 = vmatprep.subr.bf16.mxu0 0
      %4681 = vmatpush1.bf16.msra.mxu0 %v4261
      %4682 = vmatprep.subr.bf16.mxu0 0
      %4683 = vmatpush1.bf16.msra.mxu0 %v4262
      %4684 = vmatprep.subr.bf16.mxu0 0
      %4685 = vmatpush1.bf16.msra.mxu0 %v4263
      %4686 = vmatprep.mubr.bf16.mxu0 %v3621
      %4687 = vmatmul.mubr.bf16.gmra.mrb[0].mxu0 %v3620
      %v4688 = vpop.f32.mrb[0].mxu0
      %v4689 = vadd.f32 %v4648, %v4688
      %v4690 = vpop.f32.mrb[0].mxu0
      %v4691 = vpop.f32.mrb[0].mxu0
      %v4692 = vadd.f32 %v4651, %v4691
      %v4693 = vpop.f32.mrb[0].mxu0
      %4694 = vdwg.mxu0
      %4695 = vmatprep.subr.bf16.mxu0 0
      %4696 = vmatpush1.bf16.msra.mxu0 %v4264
      %4697 = vmatprep.subr.bf16.mxu0 0
      %4698 = vmatpush1.bf16.msra.mxu0 %v4265
      %4699 = vmatprep.subr.bf16.mxu0 0
      %4700 = vmatpush1.bf16.msra.mxu0 %v4266
      %4701 = vmatprep.subr.bf16.mxu0 0
      %4702 = vmatpush1.bf16.msra.mxu0 %v4267
      %4703 = vmatprep.subr.bf16.mxu0 0
      %4704 = vmatpush1.bf16.msra.mxu0 %v4268
      %4705 = vmatprep.subr.bf16.mxu0 0
      %4706 = vmatpush1.bf16.msra.mxu0 %v4269
      %4707 = vmatprep.subr.bf16.mxu0 0
      %4708 = vmatpush1.bf16.msra.mxu0 %v4270
      %4709 = vmatprep.subr.bf16.mxu0 0
      %4710 = vmatpush1.bf16.msra.mxu0 %v4271
      %4711 = vmatprep.subr.bf16.mxu0 0
      %4712 = vmatpush1.bf16.msra.mxu0 %v4272
      %4713 = vmatprep.subr.bf16.mxu0 0
      %4714 = vmatpush1.bf16.msra.mxu0 %v4273
      %4715 = vmatprep.subr.bf16.mxu0 0
      %4716 = vmatpush1.bf16.msra.mxu0 %v4274
      %4717 = vmatprep.subr.bf16.mxu0 0
      %4718 = vmatpush1.bf16.msra.mxu0 %v4275
      %4719 = vmatprep.subr.bf16.mxu0 0
      %4720 = vmatpush1.bf16.msra.mxu0 %v4276
      %4721 = vmatprep.subr.bf16.mxu0 0
      %4722 = vmatpush1.bf16.msra.mxu0 %v4277
      %4723 = vmatprep.subr.bf16.mxu0 0
      %4724 = vmatpush1.bf16.msra.mxu0 %v4278
      %4725 = vmatprep.subr.bf16.mxu0 0
      %4726 = vmatpush1.bf16.msra.mxu0 %v4279
      %4727 = vmatprep.mubr.bf16.mxu0 %v3623
      %4728 = vmatmul.mubr.bf16.gmra.mrb[0].mxu0 %v3622
      %v4729 = vpop.f32.mrb[0].mxu0
      %v4730 = vadd.f32 %v4689, %v4729
      %v4731 = vpop.f32.mrb[0].mxu0
      %v4732 = vpop.f32.mrb[0].mxu0
      %v4733 = vadd.f32 %v4692, %v4732
      %v4734 = vpop.f32.mrb[0].mxu0
      %4735 = vdwg.mxu0
      %v4736 = vadd.f32 %v3265, %v4730
      %v4737 = vadd.f32 %v3268, %v4733
      %s4738 = scalar_lea.vmem %s1, 3072
      %v4739 = vld [vmem:[%s4738] sm:$0xf]
      %v4740 = vld [vmem:[%s4738 + $0x4] sm:$0xf]
      %v4741 = vld [vmem:[%s4738 + $0x8] sm:$0xf]
      %v4742 = vld [vmem:[%s4738 + $0xc] sm:$0xf]
      %v4743 = vld [vmem:[%s4738 + $0x10] sm:$0xf]
      %v4744 = vld [vmem:[%s4738 + $0x14] sm:$0xf]
      %v4745 = vld [vmem:[%s4738 + $0x18] sm:$0xf]
      %v4746 = vld [vmem:[%s4738 + $0x1c] sm:$0xf]
      %v4747 = vld [vmem:[%s4738 + $0x20] sm:$0xf]
      %v4748 = vld [vmem:[%s4738 + $0x24] sm:$0xf]
      %v4749 = vld [vmem:[%s4738 + $0x28] sm:$0xf]
      %v4750 = vld [vmem:[%s4738 + $0x2c] sm:$0xf]
      %v4751 = vld [vmem:[%s4738 + $0x30] sm:$0xf]
      %v4752 = vld [vmem:[%s4738 + $0x34] sm:$0xf]
      %v4753 = vld [vmem:[%s4738 + $0x38] sm:$0xf]
      %v4754 = vld [vmem:[%s4738 + $0x3c] sm:$0xf]
      %v4755 = vld [vmem:[%s4738 + $0x40] sm:$0xf]
      %v4756 = vld [vmem:[%s4738 + $0x44] sm:$0xf]
      %v4757 = vld [vmem:[%s4738 + $0x48] sm:$0xf]
      %v4758 = vld [vmem:[%s4738 + $0x4c] sm:$0xf]
      %v4759 = vld [vmem:[%s4738 + $0x50] sm:$0xf]
      %v4760 = vld [vmem:[%s4738 + $0x54] sm:$0xf]
      %v4761 = vld [vmem:[%s4738 + $0x58] sm:$0xf]
      %v4762 = vld [vmem:[%s4738 + $0x5c] sm:$0xf]
      %v4763 = vld [vmem:[%s4738 + $0x60] sm:$0xf]
      %v4764 = vld [vmem:[%s4738 + $0x64] sm:$0xf]
      %v4765 = vld [vmem:[%s4738 + $0x68] sm:$0xf]
      %v4766 = vld [vmem:[%s4738 + $0x6c] sm:$0xf]
      %v4767 = vld [vmem:[%s4738 + $0x70] sm:$0xf]
      %v4768 = vld [vmem:[%s4738 + $0x74] sm:$0xf]
      %v4769 = vld [vmem:[%s4738 + $0x78] sm:$0xf]
      %v4770 = vld [vmem:[%s4738 + $0x7c] sm:$0xf]
      %v4771 = vld [vmem:[%s4738 + $0x80] sm:$0xf]
      %v4772 = vld [vmem:[%s4738 + $0x84] sm:$0xf]
      %v4773 = vld [vmem:[%s4738 + $0x88] sm:$0xf]
      %v4774 = vld [vmem:[%s4738 + $0x8c] sm:$0xf]
      %v4775 = vld [vmem:[%s4738 + $0x90] sm:$0xf]
      %v4776 = vld [vmem:[%s4738 + $0x94] sm:$0xf]
      %v4777 = vld [vmem:[%s4738 + $0x98] sm:$0xf]
      %v4778 = vld [vmem:[%s4738 + $0x9c] sm:$0xf]
      %v4779 = vld [vmem:[%s4738 + $0xa0] sm:$0xf]
      %v4780 = vld [vmem:[%s4738 + $0xa4] sm:$0xf]
      %v4781 = vld [vmem:[%s4738 + $0xa8] sm:$0xf]
      %v4782 = vld [vmem:[%s4738 + $0xac] sm:$0xf]
      %v4783 = vld [vmem:[%s4738 + $0xb0] sm:$0xf]
      %v4784 = vld [vmem:[%s4738 + $0xb4] sm:$0xf]
      %v4785 = vld [vmem:[%s4738 + $0xb8] sm:$0xf]
      %v4786 = vld [vmem:[%s4738 + $0xbc] sm:$0xf]
      %v4787 = vld [vmem:[%s4738 + $0xc0] sm:$0xf]
      %v4788 = vld [vmem:[%s4738 + $0xc4] sm:$0xf]
      %v4789 = vld [vmem:[%s4738 + $0xc8] sm:$0xf]
      %v4790 = vld [vmem:[%s4738 + $0xcc] sm:$0xf]
      %v4791 = vld [vmem:[%s4738 + $0xd0] sm:$0xf]
      %v4792 = vld [vmem:[%s4738 + $0xd4] sm:$0xf]
      %v4793 = vld [vmem:[%s4738 + $0xd8] sm:$0xf]
      %v4794 = vld [vmem:[%s4738 + $0xdc] sm:$0xf]
      %v4795 = vld [vmem:[%s4738 + $0xe0] sm:$0xf]
      %v4796 = vld [vmem:[%s4738 + $0xe4] sm:$0xf]
      %v4797 = vld [vmem:[%s4738 + $0xe8] sm:$0xf]
      %v4798 = vld [vmem:[%s4738 + $0xec] sm:$0xf]
      %v4799 = vld [vmem:[%s4738 + $0xf0] sm:$0xf]
      %v4800 = vld [vmem:[%s4738 + $0xf4] sm:$0xf]
      %v4801 = vld [vmem:[%s4738 + $0xf8] sm:$0xf]
      %v4802 = vld [vmem:[%s4738 + $0xfc] sm:$0xf]
      %v4803 = vld [vmem:[%s4738 + $0x100] sm:$0xf]
      %v4804 = vld [vmem:[%s4738 + $0x104] sm:$0xf]
      %v4805 = vld [vmem:[%s4738 + $0x108] sm:$0xf]
      %v4806 = vld [vmem:[%s4738 + $0x10c] sm:$0xf]
      %v4807 = vld [vmem:[%s4738 + $0x110] sm:$0xf]
      %v4808 = vld [vmem:[%s4738 + $0x114] sm:$0xf]
      %v4809 = vld [vmem:[%s4738 + $0x118] sm:$0xf]
      %v4810 = vld [vmem:[%s4738 + $0x11c] sm:$0xf]
      %v4811 = vld [vmem:[%s4738 + $0x120] sm:$0xf]
      %v4812 = vld [vmem:[%s4738 + $0x124] sm:$0xf]
      %v4813 = vld [vmem:[%s4738 + $0x128] sm:$0xf]
      %v4814 = vld [vmem:[%s4738 + $0x12c] sm:$0xf]
      %v4815 = vld [vmem:[%s4738 + $0x130] sm:$0xf]
      %v4816 = vld [vmem:[%s4738 + $0x134] sm:$0xf]
      %v4817 = vld [vmem:[%s4738 + $0x138] sm:$0xf]
      %v4818 = vld [vmem:[%s4738 + $0x13c] sm:$0xf]
      %v4819 = vld [vmem:[%s4738 + $0x140] sm:$0xf]
      %v4820 = vld [vmem:[%s4738 + $0x144] sm:$0xf]
      %v4821 = vld [vmem:[%s4738 + $0x148] sm:$0xf]
      %v4822 = vld [vmem:[%s4738 + $0x14c] sm:$0xf]
      %v4823 = vld [vmem:[%s4738 + $0x150] sm:$0xf]
      %v4824 = vld [vmem:[%s4738 + $0x154] sm:$0xf]
      %v4825 = vld [vmem:[%s4738 + $0x158] sm:$0xf]
      %v4826 = vld [vmem:[%s4738 + $0x15c] sm:$0xf]
      %v4827 = vld [vmem:[%s4738 + $0x160] sm:$0xf]
      %v4828 = vld [vmem:[%s4738 + $0x164] sm:$0xf]
      %v4829 = vld [vmem:[%s4738 + $0x168] sm:$0xf]
      %v4830 = vld [vmem:[%s4738 + $0x16c] sm:$0xf]
      %v4831 = vld [vmem:[%s4738 + $0x170] sm:$0xf]
      %v4832 = vld [vmem:[%s4738 + $0x174] sm:$0xf]
      %v4833 = vld [vmem:[%s4738 + $0x178] sm:$0xf]
      %v4834 = vld [vmem:[%s4738 + $0x17c] sm:$0xf]
      %v4835 = vld [vmem:[%s4738 + $0x180] sm:$0xf]
      %v4836 = vld [vmem:[%s4738 + $0x184] sm:$0xf]
      %v4837 = vld [vmem:[%s4738 + $0x188] sm:$0xf]
      %v4838 = vld [vmem:[%s4738 + $0x18c] sm:$0xf]
      %v4839 = vld [vmem:[%s4738 + $0x190] sm:$0xf]
      %v4840 = vld [vmem:[%s4738 + $0x194] sm:$0xf]
      %v4841 = vld [vmem:[%s4738 + $0x198] sm:$0xf]
      %v4842 = vld [vmem:[%s4738 + $0x19c] sm:$0xf]
      %v4843 = vld [vmem:[%s4738 + $0x1a0] sm:$0xf]
      %v4844 = vld [vmem:[%s4738 + $0x1a4] sm:$0xf]
      %v4845 = vld [vmem:[%s4738 + $0x1a8] sm:$0xf]
      %v4846 = vld [vmem:[%s4738 + $0x1ac] sm:$0xf]
      %v4847 = vld [vmem:[%s4738 + $0x1b0] sm:$0xf]
      %v4848 = vld [vmem:[%s4738 + $0x1b4] sm:$0xf]
      %v4849 = vld [vmem:[%s4738 + $0x1b8] sm:$0xf]
      %v4850 = vld [vmem:[%s4738 + $0x1bc] sm:$0xf]
      %v4851 = vld [vmem:[%s4738 + $0x1c0] sm:$0xf]
      %v4852 = vld [vmem:[%s4738 + $0x1c4] sm:$0xf]
      %v4853 = vld [vmem:[%s4738 + $0x1c8] sm:$0xf]
      %v4854 = vld [vmem:[%s4738 + $0x1cc] sm:$0xf]
      %v4855 = vld [vmem:[%s4738 + $0x1d0] sm:$0xf]
      %v4856 = vld [vmem:[%s4738 + $0x1d4] sm:$0xf]
      %v4857 = vld [vmem:[%s4738 + $0x1d8] sm:$0xf]
      %v4858 = vld [vmem:[%s4738 + $0x1dc] sm:$0xf]
      %v4859 = vld [vmem:[%s4738 + $0x1e0] sm:$0xf]
      %v4860 = vld [vmem:[%s4738 + $0x1e4] sm:$0xf]
      %v4861 = vld [vmem:[%s4738 + $0x1e8] sm:$0xf]
      %v4862 = vld [vmem:[%s4738 + $0x1ec] sm:$0xf]
      %v4863 = vld [vmem:[%s4738 + $0x1f0] sm:$0xf]
      %v4864 = vld [vmem:[%s4738 + $0x1f4] sm:$0xf]
      %v4865 = vld [vmem:[%s4738 + $0x1f8] sm:$0xf]
      %v4866 = vld [vmem:[%s4738 + $0x1fc] sm:$0xf]
      %v4867 = vld [vmem:[%s4738 + $0x200] sm:$0xf]
      %v4868 = vld [vmem:[%s4738 + $0x204] sm:$0xf]
      %v4869 = vld [vmem:[%s4738 + $0x208] sm:$0xf]
      %v4870 = vld [vmem:[%s4738 + $0x20c] sm:$0xf]
      %v4871 = vld [vmem:[%s4738 + $0x210] sm:$0xf]
      %v4872 = vld [vmem:[%s4738 + $0x214] sm:$0xf]
      %v4873 = vld [vmem:[%s4738 + $0x218] sm:$0xf]
      %v4874 = vld [vmem:[%s4738 + $0x21c] sm:$0xf]
      %v4875 = vld [vmem:[%s4738 + $0x220] sm:$0xf]
      %v4876 = vld [vmem:[%s4738 + $0x224] sm:$0xf]
      %v4877 = vld [vmem:[%s4738 + $0x228] sm:$0xf]
      %v4878 = vld [vmem:[%s4738 + $0x22c] sm:$0xf]
      %v4879 = vld [vmem:[%s4738 + $0x230] sm:$0xf]
      %v4880 = vld [vmem:[%s4738 + $0x234] sm:$0xf]
      %v4881 = vld [vmem:[%s4738 + $0x238] sm:$0xf]
      %v4882 = vld [vmem:[%s4738 + $0x23c] sm:$0xf]
      %v4883 = vld [vmem:[%s4738 + $0x240] sm:$0xf]
      %v4884 = vld [vmem:[%s4738 + $0x244] sm:$0xf]
      %v4885 = vld [vmem:[%s4738 + $0x248] sm:$0xf]
      %v4886 = vld [vmem:[%s4738 + $0x24c] sm:$0xf]
      %v4887 = vld [vmem:[%s4738 + $0x250] sm:$0xf]
      %v4888 = vld [vmem:[%s4738 + $0x254] sm:$0xf]
      %v4889 = vld [vmem:[%s4738 + $0x258] sm:$0xf]
      %v4890 = vld [vmem:[%s4738 + $0x25c] sm:$0xf]
      %v4891 = vld [vmem:[%s4738 + $0x260] sm:$0xf]
      %v4892 = vld [vmem:[%s4738 + $0x264] sm:$0xf]
      %v4893 = vld [vmem:[%s4738 + $0x268] sm:$0xf]
      %v4894 = vld [vmem:[%s4738 + $0x26c] sm:$0xf]
      %v4895 = vld [vmem:[%s4738 + $0x270] sm:$0xf]
      %v4896 = vld [vmem:[%s4738 + $0x274] sm:$0xf]
      %v4897 = vld [vmem:[%s4738 + $0x278] sm:$0xf]
      %v4898 = vld [vmem:[%s4738 + $0x27c] sm:$0xf]
      %v4899 = vld [vmem:[%s4738 + $0x280] sm:$0xf]
      %v4900 = vld [vmem:[%s4738 + $0x284] sm:$0xf]
      %v4901 = vld [vmem:[%s4738 + $0x288] sm:$0xf]
      %v4902 = vld [vmem:[%s4738 + $0x28c] sm:$0xf]
      %v4903 = vld [vmem:[%s4738 + $0x290] sm:$0xf]
      %v4904 = vld [vmem:[%s4738 + $0x294] sm:$0xf]
      %v4905 = vld [vmem:[%s4738 + $0x298] sm:$0xf]
      %v4906 = vld [vmem:[%s4738 + $0x29c] sm:$0xf]
      %v4907 = vld [vmem:[%s4738 + $0x2a0] sm:$0xf]
      %v4908 = vld [vmem:[%s4738 + $0x2a4] sm:$0xf]
      %v4909 = vld [vmem:[%s4738 + $0x2a8] sm:$0xf]
      %v4910 = vld [vmem:[%s4738 + $0x2ac] sm:$0xf]
      %v4911 = vld [vmem:[%s4738 + $0x2b0] sm:$0xf]
      %v4912 = vld [vmem:[%s4738 + $0x2b4] sm:$0xf]
      %v4913 = vld [vmem:[%s4738 + $0x2b8] sm:$0xf]
      %v4914 = vld [vmem:[%s4738 + $0x2bc] sm:$0xf]
      %v4915 = vld [vmem:[%s4738 + $0x2c0] sm:$0xf]
      %v4916 = vld [vmem:[%s4738 + $0x2c4] sm:$0xf]
      %v4917 = vld [vmem:[%s4738 + $0x2c8] sm:$0xf]
      %v4918 = vld [vmem:[%s4738 + $0x2cc] sm:$0xf]
      %v4919 = vld [vmem:[%s4738 + $0x2d0] sm:$0xf]
      %v4920 = vld [vmem:[%s4738 + $0x2d4] sm:$0xf]
      %v4921 = vld [vmem:[%s4738 + $0x2d8] sm:$0xf]
      %v4922 = vld [vmem:[%s4738 + $0x2dc] sm:$0xf]
      %v4923 = vld [vmem:[%s4738 + $0x2e0] sm:$0xf]
      %v4924 = vld [vmem:[%s4738 + $0x2e4] sm:$0xf]
      %v4925 = vld [vmem:[%s4738 + $0x2e8] sm:$0xf]
      %v4926 = vld [vmem:[%s4738 + $0x2ec] sm:$0xf]
      %v4927 = vld [vmem:[%s4738 + $0x2f0] sm:$0xf]
      %v4928 = vld [vmem:[%s4738 + $0x2f4] sm:$0xf]
      %v4929 = vld [vmem:[%s4738 + $0x2f8] sm:$0xf]
      %v4930 = vld [vmem:[%s4738 + $0x2fc] sm:$0xf]
      %v4931 = vld [vmem:[%s4738 + $0x300] sm:$0xf]
      %v4932 = vld [vmem:[%s4738 + $0x304] sm:$0xf]
      %v4933 = vld [vmem:[%s4738 + $0x308] sm:$0xf]
      %v4934 = vld [vmem:[%s4738 + $0x30c] sm:$0xf]
      %v4935 = vld [vmem:[%s4738 + $0x310] sm:$0xf]
      %v4936 = vld [vmem:[%s4738 + $0x314] sm:$0xf]
      %v4937 = vld [vmem:[%s4738 + $0x318] sm:$0xf]
      %v4938 = vld [vmem:[%s4738 + $0x31c] sm:$0xf]
      %v4939 = vld [vmem:[%s4738 + $0x320] sm:$0xf]
      %v4940 = vld [vmem:[%s4738 + $0x324] sm:$0xf]
      %v4941 = vld [vmem:[%s4738 + $0x328] sm:$0xf]
      %v4942 = vld [vmem:[%s4738 + $0x32c] sm:$0xf]
      %v4943 = vld [vmem:[%s4738 + $0x330] sm:$0xf]
      %v4944 = vld [vmem:[%s4738 + $0x334] sm:$0xf]
      %v4945 = vld [vmem:[%s4738 + $0x338] sm:$0xf]
      %v4946 = vld [vmem:[%s4738 + $0x33c] sm:$0xf]
      %v4947 = vld [vmem:[%s4738 + $0x340] sm:$0xf]
      %v4948 = vld [vmem:[%s4738 + $0x344] sm:$0xf]
      %v4949 = vld [vmem:[%s4738 + $0x348] sm:$0xf]
      %v4950 = vld [vmem:[%s4738 + $0x34c] sm:$0xf]
      %v4951 = vld [vmem:[%s4738 + $0x350] sm:$0xf]
      %v4952 = vld [vmem:[%s4738 + $0x354] sm:$0xf]
      %v4953 = vld [vmem:[%s4738 + $0x358] sm:$0xf]
      %v4954 = vld [vmem:[%s4738 + $0x35c] sm:$0xf]
      %v4955 = vld [vmem:[%s4738 + $0x360] sm:$0xf]
      %v4956 = vld [vmem:[%s4738 + $0x364] sm:$0xf]
      %v4957 = vld [vmem:[%s4738 + $0x368] sm:$0xf]
      %v4958 = vld [vmem:[%s4738 + $0x36c] sm:$0xf]
      %v4959 = vld [vmem:[%s4738 + $0x370] sm:$0xf]
      %v4960 = vld [vmem:[%s4738 + $0x374] sm:$0xf]
      %v4961 = vld [vmem:[%s4738 + $0x378] sm:$0xf]
      %v4962 = vld [vmem:[%s4738 + $0x37c] sm:$0xf]
      %v4963 = vld [vmem:[%s4738 + $0x380] sm:$0xf]
      %v4964 = vld [vmem:[%s4738 + $0x384] sm:$0xf]
      %v4965 = vld [vmem:[%s4738 + $0x388] sm:$0xf]
      %v4966 = vld [vmem:[%s4738 + $0x38c] sm:$0xf]
      %v4967 = vld [vmem:[%s4738 + $0x390] sm:$0xf]
      %v4968 = vld [vmem:[%s4738 + $0x394] sm:$0xf]
      %v4969 = vld [vmem:[%s4738 + $0x398] sm:$0xf]
      %v4970 = vld [vmem:[%s4738 + $0x39c] sm:$0xf]
      %v4971 = vld [vmem:[%s4738 + $0x3a0] sm:$0xf]
      %v4972 = vld [vmem:[%s4738 + $0x3a4] sm:$0xf]
      %v4973 = vld [vmem:[%s4738 + $0x3a8] sm:$0xf]
      %v4974 = vld [vmem:[%s4738 + $0x3ac] sm:$0xf]
      %v4975 = vld [vmem:[%s4738 + $0x3b0] sm:$0xf]
      %v4976 = vld [vmem:[%s4738 + $0x3b4] sm:$0xf]
      %v4977 = vld [vmem:[%s4738 + $0x3b8] sm:$0xf]
      %v4978 = vld [vmem:[%s4738 + $0x3bc] sm:$0xf]
      %v4979 = vld [vmem:[%s4738 + $0x3c0] sm:$0xf]
      %v4980 = vld [vmem:[%s4738 + $0x3c4] sm:$0xf]
      %v4981 = vld [vmem:[%s4738 + $0x3c8] sm:$0xf]
      %v4982 = vld [vmem:[%s4738 + $0x3cc] sm:$0xf]
      %v4983 = vld [vmem:[%s4738 + $0x3d0] sm:$0xf]
      %v4984 = vld [vmem:[%s4738 + $0x3d4] sm:$0xf]
      %v4985 = vld [vmem:[%s4738 + $0x3d8] sm:$0xf]
      %v4986 = vld [vmem:[%s4738 + $0x3dc] sm:$0xf]
      %v4987 = vld [vmem:[%s4738 + $0x3e0] sm:$0xf]
      %v4988 = vld [vmem:[%s4738 + $0x3e4] sm:$0xf]
      %v4989 = vld [vmem:[%s4738 + $0x3e8] sm:$0xf]
      %v4990 = vld [vmem:[%s4738 + $0x3ec] sm:$0xf]
      %v4991 = vld [vmem:[%s4738 + $0x3f0] sm:$0xf]
      %v4992 = vld [vmem:[%s4738 + $0x3f4] sm:$0xf]
      %v4993 = vld [vmem:[%s4738 + $0x3f8] sm:$0xf]
      %v4994 = vld [vmem:[%s4738 + $0x3fc] sm:$0xf]
      %v4996 = vshrl.u32 %v3592, 16
      %v4998 = vrot.slane %v4996, 2
      %v4999 = vshll.u32 %v3592, 16
      %v5001 = vrot.slane %v4999, 3
      %v5002 = vor.u32 %v4998, %v5001
      %v5004 = vshrl.u32 %v3593, 16
      %v5006 = vrot.slane %v5004, 2
      %v5007 = vshll.u32 %v3593, 16
      %v5009 = vrot.slane %v5007, 3
      %v5010 = vor.u32 %v5006, %v5009
      %v5012 = vshrl.u32 %v3594, 16
      %v5014 = vrot.slane %v5012, 2
      %v5015 = vshll.u32 %v3594, 16
      %v5017 = vrot.slane %v5015, 3
      %v5018 = vor.u32 %v5014, %v5017
      %v5020 = vshrl.u32 %v3595, 16
      %v5022 = vrot.slane %v5020, 2
      %v5023 = vshll.u32 %v3595, 16
      %v5025 = vrot.slane %v5023, 3
      %v5026 = vor.u32 %v5022, %v5025
      %v5028 = vshrl.u32 %v3596, 16
      %v5030 = vrot.slane %v5028, 2
      %v5031 = vshll.u32 %v3596, 16
      %v5033 = vrot.slane %v5031, 3
      %v5034 = vor.u32 %v5030, %v5033
      %v5036 = vshrl.u32 %v3597, 16
      %v5038 = vrot.slane %v5036, 2
      %v5039 = vshll.u32 %v3597, 16
      %v5041 = vrot.slane %v5039, 3
      %v5042 = vor.u32 %v5038, %v5041
      %v5044 = vshrl.u32 %v3598, 16
      %v5046 = vrot.slane %v5044, 2
      %v5047 = vshll.u32 %v3598, 16
      %v5049 = vrot.slane %v5047, 3
      %v5050 = vor.u32 %v5046, %v5049
      %v5052 = vshrl.u32 %v3599, 16
      %v5054 = vrot.slane %v5052, 2
      %v5055 = vshll.u32 %v3599, 16
      %v5057 = vrot.slane %v5055, 3
      %v5058 = vor.u32 %v5054, %v5057
      %v5060 = vshrl.u32 %v3600, 16
      %v5062 = vrot.slane %v5060, 2
      %v5063 = vshll.u32 %v3600, 16
      %v5065 = vrot.slane %v5063, 3
      %v5066 = vor.u32 %v5062, %v5065
      %v5068 = vshrl.u32 %v3601, 16
      %v5070 = vrot.slane %v5068, 2
      %v5071 = vshll.u32 %v3601, 16
      %v5073 = vrot.slane %v5071, 3
      %v5074 = vor.u32 %v5070, %v5073
      %v5076 = vshrl.u32 %v3602, 16
      %v5078 = vrot.slane %v5076, 2
      %v5079 = vshll.u32 %v3602, 16
      %v5081 = vrot.slane %v5079, 3
      %v5082 = vor.u32 %v5078, %v5081
      %v5084 = vshrl.u32 %v3603, 16
      %v5086 = vrot.slane %v5084, 2
      %v5087 = vshll.u32 %v3603, 16
      %v5089 = vrot.slane %v5087, 3
      %v5090 = vor.u32 %v5086, %v5089
      %v5092 = vshrl.u32 %v3604, 16
      %v5094 = vrot.slane %v5092, 2
      %v5095 = vshll.u32 %v3604, 16
      %v5097 = vrot.slane %v5095, 3
      %v5098 = vor.u32 %v5094, %v5097
      %v5100 = vshrl.u32 %v3605, 16
      %v5102 = vrot.slane %v5100, 2
      %v5103 = vshll.u32 %v3605, 16
      %v5105 = vrot.slane %v5103, 3
      %v5106 = vor.u32 %v5102, %v5105
      %v5108 = vshrl.u32 %v3606, 16
      %v5110 = vrot.slane %v5108, 2
      %v5111 = vshll.u32 %v3606, 16
      %v5113 = vrot.slane %v5111, 3
      %v5114 = vor.u32 %v5110, %v5113
      %v5116 = vshrl.u32 %v3607, 16
      %v5118 = vrot.slane %v5116, 2
      %v5119 = vshll.u32 %v3607, 16
      %v5121 = vrot.slane %v5119, 3
      %v5122 = vor.u32 %v5118, %v5121
      %v5395 = vunpack.c.l.b16 %v4739
      %v5396 = vunpack.c.l.b16 %v4740
      %v5397 = vunpack.c.l.b16 %v4741
      %v5398 = vunpack.c.l.b16 %v4742
      %v5399 = vunpack.c.l.b16 %v4743
      %v5400 = vunpack.c.l.b16 %v4744
      %v5401 = vunpack.c.l.b16 %v4745
      %v5402 = vunpack.c.l.b16 %v4746
      %v5403 = vunpack.c.l.b16 %v4747
      %v5404 = vunpack.c.l.b16 %v4748
      %v5405 = vunpack.c.l.b16 %v4749
      %v5406 = vunpack.c.l.b16 %v4750
      %v5407 = vunpack.c.l.b16 %v4751
      %v5408 = vunpack.c.l.b16 %v4752
      %v5409 = vunpack.c.l.b16 %v4753
      %v5410 = vunpack.c.l.b16 %v4754
      %v5411 = vunpack.c.l.b16 %v4755
      %v5412 = vunpack.c.l.b16 %v4756
      %v5413 = vunpack.c.l.b16 %v4757
      %v5414 = vunpack.c.l.b16 %v4758
      %v5415 = vunpack.c.l.b16 %v4759
      %v5416 = vunpack.c.l.b16 %v4760
      %v5417 = vunpack.c.l.b16 %v4761
      %v5418 = vunpack.c.l.b16 %v4762
      %v5419 = vunpack.c.l.b16 %v4763
      %v5420 = vunpack.c.l.b16 %v4764
      %v5421 = vunpack.c.l.b16 %v4765
      %v5422 = vunpack.c.l.b16 %v4766
      %v5423 = vunpack.c.l.b16 %v4767
      %v5424 = vunpack.c.l.b16 %v4768
      %v5425 = vunpack.c.l.b16 %v4769
      %v5426 = vunpack.c.l.b16 %v4770
      %v5427 = vunpack.c.l.b16 %v4771
      %v5428 = vunpack.c.l.b16 %v4772
      %v5429 = vunpack.c.l.b16 %v4773
      %v5430 = vunpack.c.l.b16 %v4774
      %v5431 = vunpack.c.l.b16 %v4775
      %v5432 = vunpack.c.l.b16 %v4776
      %v5433 = vunpack.c.l.b16 %v4777
      %v5434 = vunpack.c.l.b16 %v4778
      %v5435 = vunpack.c.l.b16 %v4779
      %v5436 = vunpack.c.l.b16 %v4780
      %v5437 = vunpack.c.l.b16 %v4781
      %v5438 = vunpack.c.l.b16 %v4782
      %v5439 = vunpack.c.l.b16 %v4783
      %v5440 = vunpack.c.l.b16 %v4784
      %v5441 = vunpack.c.l.b16 %v4785
      %v5442 = vunpack.c.l.b16 %v4786
      %v5443 = vunpack.c.l.b16 %v4787
      %v5444 = vunpack.c.l.b16 %v4788
      %v5445 = vunpack.c.l.b16 %v4789
      %v5446 = vunpack.c.l.b16 %v4790
      %v5447 = vunpack.c.l.b16 %v4791
      %v5448 = vunpack.c.l.b16 %v4792
      %v5449 = vunpack.c.l.b16 %v4793
      %v5450 = vunpack.c.l.b16 %v4794
      %v5451 = vunpack.c.l.b16 %v4795
      %v5452 = vunpack.c.l.b16 %v4796
      %v5453 = vunpack.c.l.b16 %v4797
      %v5454 = vunpack.c.l.b16 %v4798
      %v5455 = vunpack.c.l.b16 %v4799
      %v5456 = vunpack.c.l.b16 %v4800
      %v5457 = vunpack.c.l.b16 %v4801
      %v5458 = vunpack.c.l.b16 %v4802
      %v5459 = vunpack.c.l.b16 %v4803
      %v5460 = vunpack.c.l.b16 %v4804
      %v5461 = vunpack.c.l.b16 %v4805
      %v5462 = vunpack.c.l.b16 %v4806
      %v5463 = vunpack.c.l.b16 %v4807
      %v5464 = vunpack.c.l.b16 %v4808
      %v5465 = vunpack.c.l.b16 %v4809
      %v5466 = vunpack.c.l.b16 %v4810
      %v5467 = vunpack.c.l.b16 %v4811
      %v5468 = vunpack.c.l.b16 %v4812
      %v5469 = vunpack.c.l.b16 %v4813
      %v5470 = vunpack.c.l.b16 %v4814
      %v5471 = vunpack.c.l.b16 %v4815
      %v5472 = vunpack.c.l.b16 %v4816
      %v5473 = vunpack.c.l.b16 %v4817
      %v5474 = vunpack.c.l.b16 %v4818
      %v5475 = vunpack.c.l.b16 %v4819
      %v5476 = vunpack.c.l.b16 %v4820
      %v5477 = vunpack.c.l.b16 %v4821
      %v5478 = vunpack.c.l.b16 %v4822
      %v5479 = vunpack.c.l.b16 %v4823
      %v5480 = vunpack.c.l.b16 %v4824
      %v5481 = vunpack.c.l.b16 %v4825
      %v5482 = vunpack.c.l.b16 %v4826
      %v5483 = vunpack.c.l.b16 %v4827
      %v5484 = vunpack.c.l.b16 %v4828
      %v5485 = vunpack.c.l.b16 %v4829
      %v5486 = vunpack.c.l.b16 %v4830
      %v5487 = vunpack.c.l.b16 %v4831
      %v5488 = vunpack.c.l.b16 %v4832
      %v5489 = vunpack.c.l.b16 %v4833
      %v5490 = vunpack.c.l.b16 %v4834
      %v5491 = vunpack.c.l.b16 %v4835
      %v5492 = vunpack.c.l.b16 %v4836
      %v5493 = vunpack.c.l.b16 %v4837
      %v5494 = vunpack.c.l.b16 %v4838
      %v5495 = vunpack.c.l.b16 %v4839
      %v5496 = vunpack.c.l.b16 %v4840
      %v5497 = vunpack.c.l.b16 %v4841
      %v5498 = vunpack.c.l.b16 %v4842
      %v5499 = vunpack.c.l.b16 %v4843
      %v5500 = vunpack.c.l.b16 %v4844
      %v5501 = vunpack.c.l.b16 %v4845
      %v5502 = vunpack.c.l.b16 %v4846
      %v5503 = vunpack.c.l.b16 %v4847
      %v5504 = vunpack.c.l.b16 %v4848
      %v5505 = vunpack.c.l.b16 %v4849
      %v5506 = vunpack.c.l.b16 %v4850
      %v5507 = vunpack.c.l.b16 %v4851
      %v5508 = vunpack.c.l.b16 %v4852
      %v5509 = vunpack.c.l.b16 %v4853
      %v5510 = vunpack.c.l.b16 %v4854
      %v5511 = vunpack.c.l.b16 %v4855
      %v5512 = vunpack.c.l.b16 %v4856
      %v5513 = vunpack.c.l.b16 %v4857
      %v5514 = vunpack.c.l.b16 %v4858
      %v5515 = vunpack.c.l.b16 %v4859
      %v5516 = vunpack.c.l.b16 %v4860
      %v5517 = vunpack.c.l.b16 %v4861
      %v5518 = vunpack.c.l.b16 %v4862
      %v5519 = vunpack.c.l.b16 %v4863
      %v5520 = vunpack.c.l.b16 %v4864
      %v5521 = vunpack.c.l.b16 %v4865
      %v5522 = vunpack.c.l.b16 %v4866
      %v5523 = vunpack.c.l.b16 %v4867
      %v5524 = vunpack.c.l.b16 %v4868
      %v5525 = vunpack.c.l.b16 %v4869
      %v5526 = vunpack.c.l.b16 %v4870
      %v5527 = vunpack.c.l.b16 %v4871
      %v5528 = vunpack.c.l.b16 %v4872
      %v5529 = vunpack.c.l.b16 %v4873
      %v5530 = vunpack.c.l.b16 %v4874
      %v5531 = vunpack.c.l.b16 %v4875
      %v5532 = vunpack.c.l.b16 %v4876
      %v5533 = vunpack.c.l.b16 %v4877
      %v5534 = vunpack.c.l.b16 %v4878
      %v5535 = vunpack.c.l.b16 %v4879
      %v5536 = vunpack.c.l.b16 %v4880
      %v5537 = vunpack.c.l.b16 %v4881
      %v5538 = vunpack.c.l.b16 %v4882
      %v5539 = vunpack.c.l.b16 %v4883
      %v5540 = vunpack.c.l.b16 %v4884
      %v5541 = vunpack.c.l.b16 %v4885
      %v5542 = vunpack.c.l.b16 %v4886
      %v5543 = vunpack.c.l.b16 %v4887
      %v5544 = vunpack.c.l.b16 %v4888
      %v5545 = vunpack.c.l.b16 %v4889
      %v5546 = vunpack.c.l.b16 %v4890
      %v5547 = vunpack.c.l.b16 %v4891
      %v5548 = vunpack.c.l.b16 %v4892
      %v5549 = vunpack.c.l.b16 %v4893
      %v5550 = vunpack.c.l.b16 %v4894
      %v5551 = vunpack.c.l.b16 %v4895
      %v5552 = vunpack.c.l.b16 %v4896
      %v5553 = vunpack.c.l.b16 %v4897
      %v5554 = vunpack.c.l.b16 %v4898
      %v5555 = vunpack.c.l.b16 %v4899
      %v5556 = vunpack.c.l.b16 %v4900
      %v5557 = vunpack.c.l.b16 %v4901
      %v5558 = vunpack.c.l.b16 %v4902
      %v5559 = vunpack.c.l.b16 %v4903
      %v5560 = vunpack.c.l.b16 %v4904
      %v5561 = vunpack.c.l.b16 %v4905
      %v5562 = vunpack.c.l.b16 %v4906
      %v5563 = vunpack.c.l.b16 %v4907
      %v5564 = vunpack.c.l.b16 %v4908
      %v5565 = vunpack.c.l.b16 %v4909
      %v5566 = vunpack.c.l.b16 %v4910
      %v5567 = vunpack.c.l.b16 %v4911
      %v5568 = vunpack.c.l.b16 %v4912
      %v5569 = vunpack.c.l.b16 %v4913
      %v5570 = vunpack.c.l.b16 %v4914
      %v5571 = vunpack.c.l.b16 %v4915
      %v5572 = vunpack.c.l.b16 %v4916
      %v5573 = vunpack.c.l.b16 %v4917
      %v5574 = vunpack.c.l.b16 %v4918
      %v5575 = vunpack.c.l.b16 %v4919
      %v5576 = vunpack.c.l.b16 %v4920
      %v5577 = vunpack.c.l.b16 %v4921
      %v5578 = vunpack.c.l.b16 %v4922
      %v5579 = vunpack.c.l.b16 %v4923
      %v5580 = vunpack.c.l.b16 %v4924
      %v5581 = vunpack.c.l.b16 %v4925
      %v5582 = vunpack.c.l.b16 %v4926
      %v5583 = vunpack.c.l.b16 %v4927
      %v5584 = vunpack.c.l.b16 %v4928
      %v5585 = vunpack.c.l.b16 %v4929
      %v5586 = vunpack.c.l.b16 %v4930
      %v5587 = vunpack.c.l.b16 %v4931
      %v5588 = vunpack.c.l.b16 %v4932
      %v5589 = vunpack.c.l.b16 %v4933
      %v5590 = vunpack.c.l.b16 %v4934
      %v5591 = vunpack.c.l.b16 %v4935
      %v5592 = vunpack.c.l.b16 %v4936
      %v5593 = vunpack.c.l.b16 %v4937
      %v5594 = vunpack.c.l.b16 %v4938
      %v5595 = vunpack.c.l.b16 %v4939
      %v5596 = vunpack.c.l.b16 %v4940
      %v5597 = vunpack.c.l.b16 %v4941
      %v5598 = vunpack.c.l.b16 %v4942
      %v5599 = vunpack.c.l.b16 %v4943
      %v5600 = vunpack.c.l.b16 %v4944
      %v5601 = vunpack.c.l.b16 %v4945
      %v5602 = vunpack.c.l.b16 %v4946
      %v5603 = vunpack.c.l.b16 %v4947
      %v5604 = vunpack.c.l.b16 %v4948
      %v5605 = vunpack.c.l.b16 %v4949
      %v5606 = vunpack.c.l.b16 %v4950
      %v5607 = vunpack.c.l.b16 %v4951
      %v5608 = vunpack.c.l.b16 %v4952
      %v5609 = vunpack.c.l.b16 %v4953
      %v5610 = vunpack.c.l.b16 %v4954
      %v5611 = vunpack.c.l.b16 %v4955
      %v5612 = vunpack.c.l.b16 %v4956
      %v5613 = vunpack.c.l.b16 %v4957
      %v5614 = vunpack.c.l.b16 %v4958
      %v5615 = vunpack.c.l.b16 %v4959
      %v5616 = vunpack.c.l.b16 %v4960
      %v5617 = vunpack.c.l.b16 %v4961
      %v5618 = vunpack.c.l.b16 %v4962
      %v5619 = vunpack.c.l.b16 %v4963
      %v5620 = vunpack.c.l.b16 %v4964
      %v5621 = vunpack.c.l.b16 %v4965
      %v5622 = vunpack.c.l.b16 %v4966
      %v5623 = vunpack.c.l.b16 %v4967
      %v5624 = vunpack.c.l.b16 %v4968
      %v5625 = vunpack.c.l.b16 %v4969
      %v5626 = vunpack.c.l.b16 %v4970
      %v5627 = vunpack.c.l.b16 %v4971
      %v5628 = vunpack.c.l.b16 %v4972
      %v5629 = vunpack.c.l.b16 %v4973
      %v5630 = vunpack.c.l.b16 %v4974
      %v5631 = vunpack.c.l.b16 %v4975
      %v5632 = vunpack.c.l.b16 %v4976
      %v5633 = vunpack.c.l.b16 %v4977
      %v5634 = vunpack.c.l.b16 %v4978
      %v5635 = vunpack.c.l.b16 %v4979
      %v5636 = vunpack.c.l.b16 %v4980
      %v5637 = vunpack.c.l.b16 %v4981
      %v5638 = vunpack.c.l.b16 %v4982
      %v5639 = vunpack.c.l.b16 %v4983
      %v5640 = vunpack.c.l.b16 %v4984
      %v5641 = vunpack.c.l.b16 %v4985
      %v5642 = vunpack.c.l.b16 %v4986
      %v5643 = vunpack.c.l.b16 %v4987
      %v5644 = vunpack.c.l.b16 %v4988
      %v5645 = vunpack.c.l.b16 %v4989
      %v5646 = vunpack.c.l.b16 %v4990
      %v5647 = vunpack.c.l.b16 %v4991
      %v5648 = vunpack.c.l.b16 %v4992
      %v5649 = vunpack.c.l.b16 %v4993
      %v5650 = vunpack.c.l.b16 %v4994
      %v5651 = vpack.c.b16 %v5396, %v5395
      %v5652 = vpack.c.b16 %v5398, %v5397
      %v5653 = vpack.c.b16 %v5400, %v5399
      %v5654 = vpack.c.b16 %v5402, %v5401
      %v5655 = vpack.c.b16 %v5404, %v5403
      %v5656 = vpack.c.b16 %v5406, %v5405
      %v5657 = vpack.c.b16 %v5408, %v5407
      %v5658 = vpack.c.b16 %v5410, %v5409
      %v5659 = vpack.c.b16 %v5412, %v5411
      %v5660 = vpack.c.b16 %v5414, %v5413
      %v5661 = vpack.c.b16 %v5416, %v5415
      %v5662 = vpack.c.b16 %v5418, %v5417
      %v5663 = vpack.c.b16 %v5420, %v5419
      %v5664 = vpack.c.b16 %v5422, %v5421
      %v5665 = vpack.c.b16 %v5424, %v5423
      %v5666 = vpack.c.b16 %v5426, %v5425
      %v5667 = vpack.c.b16 %v5428, %v5427
      %v5668 = vpack.c.b16 %v5430, %v5429
      %v5669 = vpack.c.b16 %v5432, %v5431
      %v5670 = vpack.c.b16 %v5434, %v5433
      %v5671 = vpack.c.b16 %v5436, %v5435
      %v5672 = vpack.c.b16 %v5438, %v5437
      %v5673 = vpack.c.b16 %v5440, %v5439
      %v5674 = vpack.c.b16 %v5442, %v5441
      %v5675 = vpack.c.b16 %v5444, %v5443
      %v5676 = vpack.c.b16 %v5446, %v5445
      %v5677 = vpack.c.b16 %v5448, %v5447
      %v5678 = vpack.c.b16 %v5450, %v5449
      %v5679 = vpack.c.b16 %v5452, %v5451
      %v5680 = vpack.c.b16 %v5454, %v5453
      %v5681 = vpack.c.b16 %v5456, %v5455
      %v5682 = vpack.c.b16 %v5458, %v5457
      %v5683 = vpack.c.b16 %v5460, %v5459
      %v5684 = vpack.c.b16 %v5462, %v5461
      %v5685 = vpack.c.b16 %v5464, %v5463
      %v5686 = vpack.c.b16 %v5466, %v5465
      %v5687 = vpack.c.b16 %v5468, %v5467
      %v5688 = vpack.c.b16 %v5470, %v5469
      %v5689 = vpack.c.b16 %v5472, %v5471
      %v5690 = vpack.c.b16 %v5474, %v5473
      %v5691 = vpack.c.b16 %v5476, %v5475
      %v5692 = vpack.c.b16 %v5478, %v5477
      %v5693 = vpack.c.b16 %v5480, %v5479
      %v5694 = vpack.c.b16 %v5482, %v5481
      %v5695 = vpack.c.b16 %v5484, %v5483
      %v5696 = vpack.c.b16 %v5486, %v5485
      %v5697 = vpack.c.b16 %v5488, %v5487
      %v5698 = vpack.c.b16 %v5490, %v5489
      %v5699 = vpack.c.b16 %v5492, %v5491
      %v5700 = vpack.c.b16 %v5494, %v5493
      %v5701 = vpack.c.b16 %v5496, %v5495
      %v5702 = vpack.c.b16 %v5498, %v5497
      %v5703 = vpack.c.b16 %v5500, %v5499
      %v5704 = vpack.c.b16 %v5502, %v5501
      %v5705 = vpack.c.b16 %v5504, %v5503
      %v5706 = vpack.c.b16 %v5506, %v5505
      %v5707 = vpack.c.b16 %v5508, %v5507
      %v5708 = vpack.c.b16 %v5510, %v5509
      %v5709 = vpack.c.b16 %v5512, %v5511
      %v5710 = vpack.c.b16 %v5514, %v5513
      %v5711 = vpack.c.b16 %v5516, %v5515
      %v5712 = vpack.c.b16 %v5518, %v5517
      %v5713 = vpack.c.b16 %v5520, %v5519
      %v5714 = vpack.c.b16 %v5522, %v5521
      %v5715 = vpack.c.b16 %v5524, %v5523
      %v5716 = vpack.c.b16 %v5526, %v5525
      %v5717 = vpack.c.b16 %v5528, %v5527
      %v5718 = vpack.c.b16 %v5530, %v5529
      %v5719 = vpack.c.b16 %v5532, %v5531
      %v5720 = vpack.c.b16 %v5534, %v5533
      %v5721 = vpack.c.b16 %v5536, %v5535
      %v5722 = vpack.c.b16 %v5538, %v5537
      %v5723 = vpack.c.b16 %v5540, %v5539
      %v5724 = vpack.c.b16 %v5542, %v5541
      %v5725 = vpack.c.b16 %v5544, %v5543
      %v5726 = vpack.c.b16 %v5546, %v5545
      %v5727 = vpack.c.b16 %v5548, %v5547
      %v5728 = vpack.c.b16 %v5550, %v5549
      %v5729 = vpack.c.b16 %v5552, %v5551
      %v5730 = vpack.c.b16 %v5554, %v5553
      %v5731 = vpack.c.b16 %v5556, %v5555
      %v5732 = vpack.c.b16 %v5558, %v5557
      %v5733 = vpack.c.b16 %v5560, %v5559
      %v5734 = vpack.c.b16 %v5562, %v5561
      %v5735 = vpack.c.b16 %v5564, %v5563
      %v5736 = vpack.c.b16 %v5566, %v5565
      %v5737 = vpack.c.b16 %v5568, %v5567
      %v5738 = vpack.c.b16 %v5570, %v5569
      %v5739 = vpack.c.b16 %v5572, %v5571
      %v5740 = vpack.c.b16 %v5574, %v5573
      %v5741 = vpack.c.b16 %v5576, %v5575
      %v5742 = vpack.c.b16 %v5578, %v5577
      %v5743 = vpack.c.b16 %v5580, %v5579
      %v5744 = vpack.c.b16 %v5582, %v5581
      %v5745 = vpack.c.b16 %v5584, %v5583
      %v5746 = vpack.c.b16 %v5586, %v5585
      %v5747 = vpack.c.b16 %v5588, %v5587
      %v5748 = vpack.c.b16 %v5590, %v5589
      %v5749 = vpack.c.b16 %v5592, %v5591
      %v5750 = vpack.c.b16 %v5594, %v5593
      %v5751 = vpack.c.b16 %v5596, %v5595
      %v5752 = vpack.c.b16 %v5598, %v5597
      %v5753 = vpack.c.b16 %v5600, %v5599
      %v5754 = vpack.c.b16 %v5602, %v5601
      %v5755 = vpack.c.b16 %v5604, %v5603
      %v5756 = vpack.c.b16 %v5606, %v5605
      %v5757 = vpack.c.b16 %v5608, %v5607
      %v5758 = vpack.c.b16 %v5610, %v5609
      %v5759 = vpack.c.b16 %v5612, %v5611
      %v5760 = vpack.c.b16 %v5614, %v5613
      %v5761 = vpack.c.b16 %v5616, %v5615
      %v5762 = vpack.c.b16 %v5618, %v5617
      %v5763 = vpack.c.b16 %v5620, %v5619
      %v5764 = vpack.c.b16 %v5622, %v5621
      %v5765 = vpack.c.b16 %v5624, %v5623
      %v5766 = vpack.c.b16 %v5626, %v5625
      %v5767 = vpack.c.b16 %v5628, %v5627
      %v5768 = vpack.c.b16 %v5630, %v5629
      %v5769 = vpack.c.b16 %v5632, %v5631
      %v5770 = vpack.c.b16 %v5634, %v5633
      %v5771 = vpack.c.b16 %v5636, %v5635
      %v5772 = vpack.c.b16 %v5638, %v5637
      %v5773 = vpack.c.b16 %v5640, %v5639
      %v5774 = vpack.c.b16 %v5642, %v5641
      %v5775 = vpack.c.b16 %v5644, %v5643
      %v5776 = vpack.c.b16 %v5646, %v5645
      %v5777 = vpack.c.b16 %v5648, %v5647
      %v5778 = vpack.c.b16 %v5650, %v5649
      %5907 = vmatprep.subr.bf16.mxu0 0
      %5908 = vmatpush1.bf16.msra.mxu0 %v5651
      %5909 = vmatprep.subr.bf16.mxu0 0
      %5910 = vmatpush1.bf16.msra.mxu0 %v5652
      %5911 = vmatprep.subr.bf16.mxu0 0
      %5912 = vmatpush1.bf16.msra.mxu0 %v5653
      %5913 = vmatprep.subr.bf16.mxu0 0
      %5914 = vmatpush1.bf16.msra.mxu0 %v5654
      %5915 = vmatprep.subr.bf16.mxu0 0
      %5916 = vmatpush1.bf16.msra.mxu0 %v5655
      %5917 = vmatprep.subr.bf16.mxu0 0
      %5918 = vmatpush1.bf16.msra.mxu0 %v5656
      %5919 = vmatprep.subr.bf16.mxu0 0
      %5920 = vmatpush1.bf16.msra.mxu0 %v5657
      %5921 = vmatprep.subr.bf16.mxu0 0
      %5922 = vmatpush1.bf16.msra.mxu0 %v5658
      %5923 = vmatprep.subr.bf16.mxu0 0
      %5924 = vmatpush1.bf16.msra.mxu0 %v5659
      %5925 = vmatprep.subr.bf16.mxu0 0
      %5926 = vmatpush1.bf16.msra.mxu0 %v5660
      %5927 = vmatprep.subr.bf16.mxu0 0
      %5928 = vmatpush1.bf16.msra.mxu0 %v5661
      %5929 = vmatprep.subr.bf16.mxu0 0
      %5930 = vmatpush1.bf16.msra.mxu0 %v5662
      %5931 = vmatprep.subr.bf16.mxu0 0
      %5932 = vmatpush1.bf16.msra.mxu0 %v5663
      %5933 = vmatprep.subr.bf16.mxu0 0
      %5934 = vmatpush1.bf16.msra.mxu0 %v5664
      %5935 = vmatprep.subr.bf16.mxu0 0
      %5936 = vmatpush1.bf16.msra.mxu0 %v5665
      %5937 = vmatprep.subr.bf16.mxu0 0
      %5938 = vmatpush1.bf16.msra.mxu0 %v5666
      %5939 = vmatprep.mubr.bf16.mxu0 %v5010
      %5940 = vmatmul.mubr.bf16.gmra.mrb[0].mxu0 %v5002
      %v5941 = vpop.f32.mrb[0].mxu0
      %v5942 = vadd.f32 0.0, %v5941
      %v5943 = vpop.f32.mrb[0].mxu0
      %v5944 = vpop.f32.mrb[0].mxu0
      %v5945 = vadd.f32 0.0, %v5944
      %v5946 = vpop.f32.mrb[0].mxu0
      %5947 = vdwg.mxu0
      %5948 = vmatprep.subr.bf16.mxu0 0
      %5949 = vmatpush1.bf16.msra.mxu0 %v5667
      %5950 = vmatprep.subr.bf16.mxu0 0
      %5951 = vmatpush1.bf16.msra.mxu0 %v5668
      %5952 = vmatprep.subr.bf16.mxu0 0
      %5953 = vmatpush1.bf16.msra.mxu0 %v5669
      %5954 = vmatprep.subr.bf16.mxu0 0
      %5955 = vmatpush1.bf16.msra.mxu0 %v5670
      %5956 = vmatprep.subr.bf16.mxu0 0
      %5957 = vmatpush1.bf16.msra.mxu0 %v5671
      %5958 = vmatprep.subr.bf16.mxu0 0
      %5959 = vmatpush1.bf16.msra.mxu0 %v5672
      %5960 = vmatprep.subr.bf16.mxu0 0
      %5961 = vmatpush1.bf16.msra.mxu0 %v5673
      %5962 = vmatprep.subr.bf16.mxu0 0
      %5963 = vmatpush1.bf16.msra.mxu0 %v5674
      %5964 = vmatprep.subr.bf16.mxu0 0
      %5965 = vmatpush1.bf16.msra.mxu0 %v5675
      %5966 = vmatprep.subr.bf16.mxu0 0
      %5967 = vmatpush1.bf16.msra.mxu0 %v5676
      %5968 = vmatprep.subr.bf16.mxu0 0
      %5969 = vmatpush1.bf16.msra.mxu0 %v5677
      %5970 = vmatprep.subr.bf16.mxu0 0
      %5971 = vmatpush1.bf16.msra.mxu0 %v5678
      %5972 = vmatprep.subr.bf16.mxu0 0
      %5973 = vmatpush1.bf16.msra.mxu0 %v5679
      %5974 = vmatprep.subr.bf16.mxu0 0
      %5975 = vmatpush1.bf16.msra.mxu0 %v5680
      %5976 = vmatprep.subr.bf16.mxu0 0
      %5977 = vmatpush1.bf16.msra.mxu0 %v5681
      %5978 = vmatprep.subr.bf16.mxu0 0
      %5979 = vmatpush1.bf16.msra.mxu0 %v5682
      %5980 = vmatprep.mubr.bf16.mxu0 %v5026
      %5981 = vmatmul.mubr.bf16.gmra.mrb[0].mxu0 %v5018
      %v5982 = vpop.f32.mrb[0].mxu0
      %v5983 = vadd.f32 %v5942, %v5982
      %v5984 = vpop.f32.mrb[0].mxu0
      %v5985 = vpop.f32.mrb[0].mxu0
      %v5986 = vadd.f32 %v5945, %v5985
      %v5987 = vpop.f32.mrb[0].mxu0
      %5988 = vdwg.mxu0
      %5989 = vmatprep.subr.bf16.mxu0 0
      %5990 = vmatpush1.bf16.msra.mxu0 %v5683
      %5991 = vmatprep.subr.bf16.mxu0 0
      %5992 = vmatpush1.bf16.msra.mxu0 %v5684
      %5993 = vmatprep.subr.bf16.mxu0 0
      %5994 = vmatpush1.bf16.msra.mxu0 %v5685
      %5995 = vmatprep.subr.bf16.mxu0 0
      %5996 = vmatpush1.bf16.msra.mxu0 %v5686
      %5997 = vmatprep.subr.bf16.mxu0 0
      %5998 = vmatpush1.bf16.msra.mxu0 %v5687
      %5999 = vmatprep.subr.bf16.mxu0 0
      %6000 = vmatpush1.bf16.msra.mxu0 %v5688
      %6001 = vmatprep.subr.bf16.mxu0 0
      %6002 = vmatpush1.bf16.msra.mxu0 %v5689
      %6003 = vmatprep.subr.bf16.mxu0 0
      %6004 = vmatpush1.bf16.msra.mxu0 %v5690
      %6005 = vmatprep.subr.bf16.mxu0 0
      %6006 = vmatpush1.bf16.msra.mxu0 %v5691
      %6007 = vmatprep.subr.bf16.mxu0 0
      %6008 = vmatpush1.bf16.msra.mxu0 %v5692
      %6009 = vmatprep.subr.bf16.mxu0 0
      %6010 = vmatpush1.bf16.msra.mxu0 %v5693
      %6011 = vmatprep.subr.bf16.mxu0 0
      %6012 = vmatpush1.bf16.msra.mxu0 %v5694
      %6013 = vmatprep.subr.bf16.mxu0 0
      %6014 = vmatpush1.bf16.msra.mxu0 %v5695
      %6015 = vmatprep.subr.bf16.mxu0 0
      %6016 = vmatpush1.bf16.msra.mxu0 %v5696
      %6017 = vmatprep.subr.bf16.mxu0 0
      %6018 = vmatpush1.bf16.msra.mxu0 %v5697
      %6019 = vmatprep.subr.bf16.mxu0 0
      %6020 = vmatpush1.bf16.msra.mxu0 %v5698
      %6021 = vmatprep.mubr.bf16.mxu0 %v5042
      %6022 = vmatmul.mubr.bf16.gmra.mrb[0].mxu0 %v5034
      %v6023 = vpop.f32.mrb[0].mxu0
      %v6024 = vadd.f32 %v5983, %v6023
      %v6025 = vpop.f32.mrb[0].mxu0
      %v6026 = vpop.f32.mrb[0].mxu0
      %v6027 = vadd.f32 %v5986, %v6026
      %v6028 = vpop.f32.mrb[0].mxu0
      %6029 = vdwg.mxu0
      %6030 = vmatprep.subr.bf16.mxu0 0
      %6031 = vmatpush1.bf16.msra.mxu0 %v5699
      %6032 = vmatprep.subr.bf16.mxu0 0
      %6033 = vmatpush1.bf16.msra.mxu0 %v5700
      %6034 = vmatprep.subr.bf16.mxu0 0
      %6035 = vmatpush1.bf16.msra.mxu0 %v5701
      %6036 = vmatprep.subr.bf16.mxu0 0
      %6037 = vmatpush1.bf16.msra.mxu0 %v5702
      %6038 = vmatprep.subr.bf16.mxu0 0
      %6039 = vmatpush1.bf16.msra.mxu0 %v5703
      %6040 = vmatprep.subr.bf16.mxu0 0
      %6041 = vmatpush1.bf16.msra.mxu0 %v5704
      %6042 = vmatprep.subr.bf16.mxu0 0
      %6043 = vmatpush1.bf16.msra.mxu0 %v5705
      %6044 = vmatprep.subr.bf16.mxu0 0
      %6045 = vmatpush1.bf16.msra.mxu0 %v5706
      %6046 = vmatprep.subr.bf16.mxu0 0
      %6047 = vmatpush1.bf16.msra.mxu0 %v5707
      %6048 = vmatprep.subr.bf16.mxu0 0
      %6049 = vmatpush1.bf16.msra.mxu0 %v5708
      %6050 = vmatprep.subr.bf16.mxu0 0
      %6051 = vmatpush1.bf16.msra.mxu0 %v5709
      %6052 = vmatprep.subr.bf16.mxu0 0
      %6053 = vmatpush1.bf16.msra.mxu0 %v5710
      %6054 = vmatprep.subr.bf16.mxu0 0
      %6055 = vmatpush1.bf16.msra.mxu0 %v5711
      %6056 = vmatprep.subr.bf16.mxu0 0
      %6057 = vmatpush1.bf16.msra.mxu0 %v5712
      %6058 = vmatprep.subr.bf16.mxu0 0
      %6059 = vmatpush1.bf16.msra.mxu0 %v5713
      %6060 = vmatprep.subr.bf16.mxu0 0
      %6061 = vmatpush1.bf16.msra.mxu0 %v5714
      %6062 = vmatprep.mubr.bf16.mxu0 %v5058
      %6063 = vmatmul.mubr.bf16.gmra.mrb[0].mxu0 %v5050
      %v6064 = vpop.f32.mrb[0].mxu0
      %v6065 = vadd.f32 %v6024, %v6064
      %v6066 = vpop.f32.mrb[0].mxu0
      %v6067 = vpop.f32.mrb[0].mxu0
      %v6068 = vadd.f32 %v6027, %v6067
      %v6069 = vpop.f32.mrb[0].mxu0
      %6070 = vdwg.mxu0
      %6071 = vmatprep.subr.bf16.mxu0 0
      %6072 = vmatpush1.bf16.msra.mxu0 %v5715
      %6073 = vmatprep.subr.bf16.mxu0 0
      %6074 = vmatpush1.bf16.msra.mxu0 %v5716
      %6075 = vmatprep.subr.bf16.mxu0 0
      %6076 = vmatpush1.bf16.msra.mxu0 %v5717
      %6077 = vmatprep.subr.bf16.mxu0 0
      %6078 = vmatpush1.bf16.msra.mxu0 %v5718
      %6079 = vmatprep.subr.bf16.mxu0 0
      %6080 = vmatpush1.bf16.msra.mxu0 %v5719
      %6081 = vmatprep.subr.bf16.mxu0 0
      %6082 = vmatpush1.bf16.msra.mxu0 %v5720
      %6083 = vmatprep.subr.bf16.mxu0 0
      %6084 = vmatpush1.bf16.msra.mxu0 %v5721
      %6085 = vmatprep.subr.bf16.mxu0 0
      %6086 = vmatpush1.bf16.msra.mxu0 %v5722
      %6087 = vmatprep.subr.bf16.mxu0 0
      %6088 = vmatpush1.bf16.msra.mxu0 %v5723
      %6089 = vmatprep.subr.bf16.mxu0 0
      %6090 = vmatpush1.bf16.msra.mxu0 %v5724
      %6091 = vmatprep.subr.bf16.mxu0 0
      %6092 = vmatpush1.bf16.msra.mxu0 %v5725
      %6093 = vmatprep.subr.bf16.mxu0 0
      %6094 = vmatpush1.bf16.msra.mxu0 %v5726
      %6095 = vmatprep.subr.bf16.mxu0 0
      %6096 = vmatpush1.bf16.msra.mxu0 %v5727
      %6097 = vmatprep.subr.bf16.mxu0 0
      %6098 = vmatpush1.bf16.msra.mxu0 %v5728
      %6099 = vmatprep.subr.bf16.mxu0 0
      %6100 = vmatpush1.bf16.msra.mxu0 %v5729
      %6101 = vmatprep.subr.bf16.mxu0 0
      %6102 = vmatpush1.bf16.msra.mxu0 %v5730
      %6103 = vmatprep.mubr.bf16.mxu0 %v5074
      %6104 = vmatmul.mubr.bf16.gmra.mrb[0].mxu0 %v5066
      %v6105 = vpop.f32.mrb[0].mxu0
      %v6106 = vadd.f32 %v6065, %v6105
      %v6107 = vpop.f32.mrb[0].mxu0
      %v6108 = vpop.f32.mrb[0].mxu0
      %v6109 = vadd.f32 %v6068, %v6108
      %v6110 = vpop.f32.mrb[0].mxu0
      %6111 = vdwg.mxu0
      %6112 = vmatprep.subr.bf16.mxu0 0
      %6113 = vmatpush1.bf16.msra.mxu0 %v5731
      %6114 = vmatprep.subr.bf16.mxu0 0
      %6115 = vmatpush1.bf16.msra.mxu0 %v5732
      %6116 = vmatprep.subr.bf16.mxu0 0
      %6117 = vmatpush1.bf16.msra.mxu0 %v5733
      %6118 = vmatprep.subr.bf16.mxu0 0
      %6119 = vmatpush1.bf16.msra.mxu0 %v5734
      %6120 = vmatprep.subr.bf16.mxu0 0
      %6121 = vmatpush1.bf16.msra.mxu0 %v5735
      %6122 = vmatprep.subr.bf16.mxu0 0
      %6123 = vmatpush1.bf16.msra.mxu0 %v5736
      %6124 = vmatprep.subr.bf16.mxu0 0
      %6125 = vmatpush1.bf16.msra.mxu0 %v5737
      %6126 = vmatprep.subr.bf16.mxu0 0
      %6127 = vmatpush1.bf16.msra.mxu0 %v5738
      %6128 = vmatprep.subr.bf16.mxu0 0
      %6129 = vmatpush1.bf16.msra.mxu0 %v5739
      %6130 = vmatprep.subr.bf16.mxu0 0
      %6131 = vmatpush1.bf16.msra.mxu0 %v5740
      %6132 = vmatprep.subr.bf16.mxu0 0
      %6133 = vmatpush1.bf16.msra.mxu0 %v5741
      %6134 = vmatprep.subr.bf16.mxu0 0
      %6135 = vmatpush1.bf16.msra.mxu0 %v5742
      %6136 = vmatprep.subr.bf16.mxu0 0
      %6137 = vmatpush1.bf16.msra.mxu0 %v5743
      %6138 = vmatprep.subr.bf16.mxu0 0
      %6139 = vmatpush1.bf16.msra.mxu0 %v5744
      %6140 = vmatprep.subr.bf16.mxu0 0
      %6141 = vmatpush1.bf16.msra.mxu0 %v5745
      %6142 = vmatprep.subr.bf16.mxu0 0
      %6143 = vmatpush1.bf16.msra.mxu0 %v5746
      %6144 = vmatprep.mubr.bf16.mxu0 %v5090
      %6145 = vmatmul.mubr.bf16.gmra.mrb[0].mxu0 %v5082
      %v6146 = vpop.f32.mrb[0].mxu0
      %v6147 = vadd.f32 %v6106, %v6146
      %v6148 = vpop.f32.mrb[0].mxu0
      %v6149 = vpop.f32.mrb[0].mxu0
      %v6150 = vadd.f32 %v6109, %v6149
      %v6151 = vpop.f32.mrb[0].mxu0
      %6152 = vdwg.mxu0
      %6153 = vmatprep.subr.bf16.mxu0 0
      %6154 = vmatpush1.bf16.msra.mxu0 %v5747
      %6155 = vmatprep.subr.bf16.mxu0 0
      %6156 = vmatpush1.bf16.msra.mxu0 %v5748
      %6157 = vmatprep.subr.bf16.mxu0 0
      %6158 = vmatpush1.bf16.msra.mxu0 %v5749
      %6159 = vmatprep.subr.bf16.mxu0 0
      %6160 = vmatpush1.bf16.msra.mxu0 %v5750
      %6161 = vmatprep.subr.bf16.mxu0 0
      %6162 = vmatpush1.bf16.msra.mxu0 %v5751
      %6163 = vmatprep.subr.bf16.mxu0 0
      %6164 = vmatpush1.bf16.msra.mxu0 %v5752
      %6165 = vmatprep.subr.bf16.mxu0 0
      %6166 = vmatpush1.bf16.msra.mxu0 %v5753
      %6167 = vmatprep.subr.bf16.mxu0 0
      %6168 = vmatpush1.bf16.msra.mxu0 %v5754
      %6169 = vmatprep.subr.bf16.mxu0 0
      %6170 = vmatpush1.bf16.msra.mxu0 %v5755
      %6171 = vmatprep.subr.bf16.mxu0 0
      %6172 = vmatpush1.bf16.msra.mxu0 %v5756
      %6173 = vmatprep.subr.bf16.mxu0 0
      %6174 = vmatpush1.bf16.msra.mxu0 %v5757
      %6175 = vmatprep.subr.bf16.mxu0 0
      %6176 = vmatpush1.bf16.msra.mxu0 %v5758
      %6177 = vmatprep.subr.bf16.mxu0 0
      %6178 = vmatpush1.bf16.msra.mxu0 %v5759
      %6179 = vmatprep.subr.bf16.mxu0 0
      %6180 = vmatpush1.bf16.msra.mxu0 %v5760
      %6181 = vmatprep.subr.bf16.mxu0 0
      %6182 = vmatpush1.bf16.msra.mxu0 %v5761
      %6183 = vmatprep.subr.bf16.mxu0 0
      %6184 = vmatpush1.bf16.msra.mxu0 %v5762
      %6185 = vmatprep.mubr.bf16.mxu0 %v5106
      %6186 = vmatmul.mubr.bf16.gmra.mrb[0].mxu0 %v5098
      %v6187 = vpop.f32.mrb[0].mxu0
      %v6188 = vadd.f32 %v6147, %v6187
      %v6189 = vpop.f32.mrb[0].mxu0
      %v6190 = vpop.f32.mrb[0].mxu0
      %v6191 = vadd.f32 %v6150, %v6190
      %v6192 = vpop.f32.mrb[0].mxu0
      %6193 = vdwg.mxu0
      %6194 = vmatprep.subr.bf16.mxu0 0
      %6195 = vmatpush1.bf16.msra.mxu0 %v5763
      %6196 = vmatprep.subr.bf16.mxu0 0
      %6197 = vmatpush1.bf16.msra.mxu0 %v5764
      %6198 = vmatprep.subr.bf16.mxu0 0
      %6199 = vmatpush1.bf16.msra.mxu0 %v5765
      %6200 = vmatprep.subr.bf16.mxu0 0
      %6201 = vmatpush1.bf16.msra.mxu0 %v5766
      %6202 = vmatprep.subr.bf16.mxu0 0
      %6203 = vmatpush1.bf16.msra.mxu0 %v5767
      %6204 = vmatprep.subr.bf16.mxu0 0
      %6205 = vmatpush1.bf16.msra.mxu0 %v5768
      %6206 = vmatprep.subr.bf16.mxu0 0
      %6207 = vmatpush1.bf16.msra.mxu0 %v5769
      %6208 = vmatprep.subr.bf16.mxu0 0
      %6209 = vmatpush1.bf16.msra.mxu0 %v5770
      %6210 = vmatprep.subr.bf16.mxu0 0
      %6211 = vmatpush1.bf16.msra.mxu0 %v5771
      %6212 = vmatprep.subr.bf16.mxu0 0
      %6213 = vmatpush1.bf16.msra.mxu0 %v5772
      %6214 = vmatprep.subr.bf16.mxu0 0
      %6215 = vmatpush1.bf16.msra.mxu0 %v5773
      %6216 = vmatprep.subr.bf16.mxu0 0
      %6217 = vmatpush1.bf16.msra.mxu0 %v5774
      %6218 = vmatprep.subr.bf16.mxu0 0
      %6219 = vmatpush1.bf16.msra.mxu0 %v5775
      %6220 = vmatprep.subr.bf16.mxu0 0
      %6221 = vmatpush1.bf16.msra.mxu0 %v5776
      %6222 = vmatprep.subr.bf16.mxu0 0
      %6223 = vmatpush1.bf16.msra.mxu0 %v5777
      %6224 = vmatprep.subr.bf16.mxu0 0
      %6225 = vmatpush1.bf16.msra.mxu0 %v5778
      %6226 = vmatprep.mubr.bf16.mxu0 %v5122
      %6227 = vmatmul.mubr.bf16.gmra.mrb[0].mxu0 %v5114
      %v6228 = vpop.f32.mrb[0].mxu0
      %v6229 = vadd.f32 %v6188, %v6228
      %v6230 = vpop.f32.mrb[0].mxu0
      %v6231 = vpop.f32.mrb[0].mxu0
      %v6232 = vadd.f32 %v6191, %v6231
      %v6233 = vpop.f32.mrb[0].mxu0
      %6234 = vdwg.mxu0
      %v6235 = vadd.f32 %v4736, %v6229
      %v6236 = vadd.f32 %v4737, %v6232
      %v6237 = vld [vmem:[%s2] sm:$0x1]
      %v6238 = vld [vmem:[%s3] sm:$0x1]
      %vm6239 = vcmask 785408
      %v6240 = vsel %vm6239, %v6235, 0.0
      %6241 = vadd.xlane.f32.xlu0 %v6240
      %v6242 = vpop.xlane.xlu0 %6241
      %vm6243 = vcmask 780288
      %v6244 = vsel %vm6243, %v6236, 0.0
      %6245 = vadd.xlane.f32.xlu0 %v6244
      %v6246 = vpop.xlane.xlu0 %6245
      %v6247 = vmul.f32 %v6242, 0.010416667
      %v6248 = vmul.f32 %v6246, 0.010416667
      %v6249 = vmul.f32 %v6235, %v6235
      %v6250 = vmul.f32 %v6236, %v6236
      %v6251 = vsel %vm6239, %v6249, 0.0
      %6252 = vadd.xlane.f32.xlu0 %v6251
      %v6253 = vpop.xlane.xlu0 %6252
      %v6254 = vsel %vm6243, %v6250, 0.0
      %6255 = vadd.xlane.f32.xlu0 %v6254
      %v6256 = vpop.xlane.xlu0 %6255
      %v6257 = vmul.f32 %v6253, 0.010416667
      %v6258 = vmul.f32 %v6256, 0.010416667
      %v6259 = vmul.f32 %v6247, %v6247
      %v6260 = vmul.f32 %v6248, %v6248
      %v6261 = vsub.f32 %v6257, %v6259
      %v6262 = vsub.f32 %v6258, %v6260
      %v6263 = vmax.f32 %v6261, 0.0
      %v6264 = vmax.f32 %v6262, 0.0
      %v6265 = vsub.f32 %v6235, %v6247
      %v6266 = vsub.f32 %v6236, %v6248
      %v6267 = vadd.f32 %v6263, 1e-06
      %v6268 = vadd.f32 %v6264, 1e-06
      %v6269 = vrsqrt.pop %v6267
      %v6270 = vrsqrt.pop %v6268
      %v6272 = vlaneseq
      %v6273 = vshrl.u32 %v6272, 7
      %v6274 = vsub.s32 0, %v6273
      %v6275 = vrot.slane %v6237, %v6274
      %v6277 = vmul.f32 %v6269, %v6275
      %v6278 = vmul.f32 %v6270, %v6275
      %v6279 = vmul.f32 %v6265, %v6277
      %v6280 = vmul.f32 %v6266, %v6278
      %v6282 = vlaneseq
      %v6283 = vshrl.u32 %v6282, 7
      %v6284 = vsub.s32 0, %v6283
      %v6285 = vrot.slane %v6238, %v6284
      %v6287 = vadd.f32 %v6279, %v6285
      %v6288 = vadd.f32 %v6280, %v6285
      %v6289 = vmul.f32 %v6287, 0.5
      %v6290 = vmul.f32 %v6288, 0.5
      %v6291 = vmul.f32 %v6287, 0.70710677
      %v6292 = vmul.f32 %v6288, 0.70710677
      %v6293 = verf.f32.pop %v6291
      %v6294 = verf.f32.pop %v6292
      %v6295 = vadd.f32 %v6293, 1.0
      %v6296 = vadd.f32 %v6294, 1.0
      %v6297 = vmul.f32 %v6289, %v6295
      %v6298 = vmul.f32 %v6290, %v6296
      %v6299 = vpack.c.bf16 %v6298, %v6297
      %v6300 = vld [vmem:[%s4] sm:$0xff]
      %v6301 = vld [vmem:[%s4 + $0x8] sm:$0xff]
      %v6302 = vld [vmem:[%s4 + $0x10] sm:$0xff]
      %v6303 = vld [vmem:[%s4 + $0x18] sm:$0xff]
      %v6304 = vld [vmem:[%s4 + $0x20] sm:$0xff]
      %v6305 = vld [vmem:[%s4 + $0x28] sm:$0xff]
      %v6306 = vld [vmem:[%s4 + $0x30] sm:$0xff]
      %v6307 = vld [vmem:[%s4 + $0x38] sm:$0xff]
      %v6308 = vld [vmem:[%s4 + $0x40] sm:$0xff]
      %v6309 = vld [vmem:[%s4 + $0x48] sm:$0xff]
      %v6310 = vld [vmem:[%s4 + $0x50] sm:$0xff]
      %v6311 = vld [vmem:[%s4 + $0x58] sm:$0xff]
      %v6324 = vunpack.c.l.b16 %v6300
      %v6325 = vunpack.c.h.b16 %v6300
      %v6326 = vunpack.c.l.b16 %v6301
      %v6327 = vunpack.c.h.b16 %v6301
      %v6328 = vunpack.c.l.b16 %v6302
      %v6329 = vunpack.c.h.b16 %v6302
      %v6330 = vunpack.c.l.b16 %v6303
      %v6331 = vunpack.c.h.b16 %v6303
      %v6332 = vunpack.c.l.b16 %v6304
      %v6333 = vunpack.c.h.b16 %v6304
      %v6334 = vunpack.c.l.b16 %v6305
      %v6335 = vunpack.c.h.b16 %v6305
      %v6336 = vunpack.c.l.b16 %v6306
      %v6337 = vunpack.c.h.b16 %v6306
      %v6338 = vunpack.c.l.b16 %v6307
      %v6339 = vunpack.c.h.b16 %v6307
      %v6340 = vunpack.c.l.b16 %v6308
      %v6341 = vunpack.c.h.b16 %v6308
      %v6342 = vunpack.c.l.b16 %v6309
      %v6343 = vunpack.c.h.b16 %v6309
      %v6344 = vunpack.c.l.b16 %v6310
      %v6345 = vunpack.c.h.b16 %v6310
      %v6346 = vunpack.c.l.b16 %v6311
      %v6347 = vunpack.c.h.b16 %v6311
      %v6348 = vpack.c.b16 %v6326, %v6324
      %v6349 = vpack.c.b16 %v6327, %v6325
      %v6350 = vpack.c.b16 %v6330, %v6328
      %v6351 = vpack.c.b16 %v6331, %v6329
      %v6352 = vpack.c.b16 %v6334, %v6332
      %v6353 = vpack.c.b16 %v6335, %v6333
      %v6354 = vpack.c.b16 %v6338, %v6336
      %v6355 = vpack.c.b16 %v6339, %v6337
      %v6356 = vpack.c.b16 %v6342, %v6340
      %v6357 = vpack.c.b16 %v6343, %v6341
      %v6358 = vpack.c.b16 %v6346, %v6344
      %v6359 = vpack.c.b16 %v6347, %v6345
      %v6373 = vsel %vm6239, %v6299, 0
      %6375 = vmatprep.subr.bf16.mxu0 %v6349
      %6376 = vmatpush1.bf16.msra.mxu0 %v6348
      %6377 = vmatprep.subr.bf16.mxu0 %v6351
      %6378 = vmatpush1.bf16.msra.mxu0 %v6350
      %6379 = vmatprep.subr.bf16.mxu0 %v6353
      %6380 = vmatpush1.bf16.msra.mxu0 %v6352
      %6381 = vmatprep.subr.bf16.mxu0 %v6355
      %6382 = vmatpush1.bf16.msra.mxu0 %v6354
      %6383 = vmatprep.subr.bf16.mxu0 %v6357
      %6384 = vmatpush1.bf16.msra.mxu0 %v6356
      %6385 = vmatprep.subr.bf16.mxu0 %v6359
      %6386 = vmatpush1.bf16.msra.mxu0 %v6358
      %6387 = vmatprep.subr.bf16.mxu0 0
      %6388 = vmatpush1.bf16.msra.mxu0 0
      %6389 = vmatprep.subr.bf16.mxu0 0
      %6390 = vmatpush1.bf16.msra.mxu0 0
      %6391 = vmatprep.subr.bf16.mxu0 0
      %6392 = vmatpush1.bf16.msra.mxu0 0
      %6393 = vmatprep.subr.bf16.mxu0 0
      %6394 = vmatpush1.bf16.msra.mxu0 0
      %6395 = vmatprep.subr.bf16.mxu0 0
      %6396 = vmatpush1.bf16.msra.mxu0 0
      %6397 = vmatprep.subr.bf16.mxu0 0
      %6398 = vmatpush1.bf16.msra.mxu0 0
      %6399 = vmatprep.subr.bf16.mxu0 0
      %6400 = vmatpush1.bf16.msra.mxu0 0
      %6401 = vmatprep.subr.bf16.mxu0 0
      %6402 = vmatpush1.bf16.msra.mxu0 0
      %6403 = vmatprep.subr.bf16.mxu0 0
      %6404 = vmatpush1.bf16.msra.mxu0 0
      %6405 = vmatprep.subr.bf16.mxu0 0
      %6406 = vmatpush1.bf16.msra.mxu0 0
      %6407 = vmatprep.mubr.bf16.mxu0 0
      %6408 = vmatmul.mubr.bf16.gmra.mrb[0].mxu0 %v6373
      %v6409 = vpop.f32.mrb[0].mxu0
      %v6410 = vadd.f32 0.0, %v6409
      %v6411 = vpop.f32.mrb[0].mxu0
      %v6412 = vadd.f32 0.0, %v6411
      %v6413 = vpop.f32.mrb[0].mxu0
      %v6414 = vadd.f32 0.0, %v6413
      %v6415 = vpop.f32.mrb[0].mxu0
      %v6416 = vadd.f32 0.0, %v6415
      %6417 = vdwg.mxu0
      %v6418 = vld [vmem:[%s5] sm:$0x3]
      %v6419 = vld [vmem:[%s6] sm:$0x3]
      %vm6420 = vcmask 523264
      %v6421 = vsel %vm6420, %v6412, 0.0
      %v6422 = vadd.f32 %v6410, %v6421
      %6423 = vadd.xlane.f32.xlu0 %v6422
      %v6424 = vpop.xlane.xlu0 %6423
      %vm6425 = vcmask 1042432
      %v6426 = vsel %vm6425, %v6414, 0.0
      %vm6427 = vcmask 518144
      %v6428 = vsel %vm6427, %v6416, 0.0
      %v6429 = vadd.f32 %v6426, %v6428
      %6430 = vadd.xlane.f32.xlu0 %v6429
      %v6431 = vpop.xlane.xlu0 %6430
      %v6432 = vmul.f32 %v6424, 0.0052083335
      %v6433 = vmul.f32 %v6431, 0.0052083335
      %v6434 = vmul.f32 %v6410, %v6410
      %v6435 = vmul.f32 %v6412, %v6412
      %v6436 = vmul.f32 %v6414, %v6414
      %v6437 = vmul.f32 %v6416, %v6416
      %v6438 = vsel %vm6420, %v6435, 0.0
      %v6439 = vadd.f32 %v6434, %v6438
      %6440 = vadd.xlane.f32.xlu0 %v6439
      %v6441 = vpop.xlane.xlu0 %6440
      %v6442 = vsel %vm6425, %v6436, 0.0
      %v6443 = vsel %vm6427, %v6437, 0.0
      %v6444 = vadd.f32 %v6442, %v6443
      %6445 = vadd.xlane.f32.xlu0 %v6444
      %v6446 = vpop.xlane.xlu0 %6445
      %v6447 = vmul.f32 %v6441, 0.0052083335
      %v6448 = vmul.f32 %v6446, 0.0052083335
      %v6449 = vmul.f32 %v6432, %v6432
      %v6450 = vmul.f32 %v6433, %v6433
      %v6451 = vsub.f32 %v6447, %v6449
      %v6452 = vsub.f32 %v6448, %v6450
      %v6453 = vmax.f32 %v6451, 0.0
      %v6454 = vmax.f32 %v6452, 0.0
      %v6455 = vsub.f32 %v6410, %v6432
      %v6456 = vsub.f32 %v6412, %v6432
      %v6457 = vsub.f32 %v6414, %v6433
      %v6458 = vsub.f32 %v6416, %v6433
      %v6459 = vadd.f32 %v6453, 1e-05
      %v6460 = vadd.f32 %v6454, 1e-05
      %v6461 = vrsqrt.pop %v6459
      %v6462 = vrsqrt.pop %v6460
      %v6464 = vlaneseq
      %v6465 = vshrl.u32 %v6464, 7
      %v6466 = vsub.s32 0, %v6465
      %v6467 = vrot.slane %v6418, %v6466
      %v6468 = vlaneseq
      %v6469 = vshrl.u32 %v6468, 7
      %v6470 = vsub.s32 1, %v6469
      %v6471 = vrot.slane %v6418, %v6470
      %v6474 = vmul.f32 %v6461, %v6467
      %v6475 = vmul.f32 %v6461, %v6471
      %v6476 = vmul.f32 %v6462, %v6467
      %v6477 = vmul.f32 %v6462, %v6471
      %v6478 = vmul.f32 %v6455, %v6474
      %v6479 = vmul.f32 %v6456, %v6475
      %v6480 = vmul.f32 %v6457, %v6476
      %v6481 = vmul.f32 %v6458, %v6477
      %v6483 = vlaneseq
      %v6484 = vshrl.u32 %v6483, 7
      %v6485 = vsub.s32 0, %v6484
      %v6486 = vrot.slane %v6419, %v6485
      %v6487 = vlaneseq
      %v6488 = vshrl.u32 %v6487, 7
      %v6489 = vsub.s32 1, %v6488
      %v6490 = vrot.slane %v6419, %v6489
      %v6493 = vadd.f32 %v6478, %v6486
      %v6494 = vadd.f32 %v6479, %v6490
      %v6495 = vadd.f32 %v6480, %v6486
      %v6496 = vadd.f32 %v6481, %v6490
      %v6497 = vmul.f32 %v6493, 0.5
      %v6498 = vmul.f32 %v6494, 0.5
      %v6499 = vmul.f32 %v6495, 0.5
      %v6500 = vmul.f32 %v6496, 0.5
      %v6501 = vmul.f32 %v6493, 0.70710677
      %v6502 = vmul.f32 %v6494, 0.70710677
      %v6503 = vmul.f32 %v6495, 0.70710677
      %v6504 = vmul.f32 %v6496, 0.70710677
      %v6505 = verf.f32.pop %v6501
      %v6506 = verf.f32.pop %v6502
      %v6507 = verf.f32.pop %v6503
      %v6508 = verf.f32.pop %v6504
      %v6509 = vadd.f32 %v6505, 1.0
      %v6510 = vadd.f32 %v6506, 1.0
      %v6511 = vadd.f32 %v6507, 1.0
      %v6512 = vadd.f32 %v6508, 1.0
      %v6513 = vmul.f32 %v6497, %v6509
      %v6514 = vmul.f32 %v6498, %v6510
      %v6515 = vmul.f32 %v6499, %v6511
      %v6516 = vmul.f32 %v6500, %v6512
      %v6517 = vpack.c.bf16 %v6515, %v6513
      %v6518 = vpack.c.bf16 %v6516, %v6514
      %v6519 = vld [vmem:[%s7] sm:$0xff]
      %v6520 = vld [vmem:[%s7 + $0x8] sm:$0xf]
      %v6521 = vld [vmem:[%s7 + $0xc] sm:$0xff]
      %v6522 = vld [vmem:[%s7 + $0x14] sm:$0xf]
      %v6523 = vld [vmem:[%s7 + $0x18] sm:$0xff]
      %v6524 = vld [vmem:[%s7 + $0x20] sm:$0xf]
      %v6525 = vld [vmem:[%s7 + $0x24] sm:$0xff]
      %v6526 = vld [vmem:[%s7 + $0x2c] sm:$0xf]
      %v6527 = vld [vmem:[%s7 + $0x30] sm:$0xff]
      %v6528 = vld [vmem:[%s7 + $0x38] sm:$0xf]
      %v6529 = vld [vmem:[%s7 + $0x3c] sm:$0xff]
      %v6530 = vld [vmem:[%s7 + $0x44] sm:$0xf]
      %v6531 = vld [vmem:[%s7 + $0x48] sm:$0xff]
      %v6532 = vld [vmem:[%s7 + $0x50] sm:$0xf]
      %v6533 = vld [vmem:[%s7 + $0x54] sm:$0xff]
      %v6534 = vld [vmem:[%s7 + $0x5c] sm:$0xf]
      %v6535 = vld [vmem:[%s7 + $0x60] sm:$0xff]
      %v6536 = vld [vmem:[%s7 + $0x68] sm:$0xf]
      %v6537 = vld [vmem:[%s7 + $0x6c] sm:$0xff]
      %v6538 = vld [vmem:[%s7 + $0x74] sm:$0xf]
      %v6539 = vld [vmem:[%s7 + $0x78] sm:$0xff]
      %v6540 = vld [vmem:[%s7 + $0x80] sm:$0xf]
      %v6541 = vld [vmem:[%s7 + $0x84] sm:$0xff]
      %v6542 = vld [vmem:[%s7 + $0x8c] sm:$0xf]
      %v6543 = vld [vmem:[%s7 + $0x90] sm:$0xff]
      %v6544 = vld [vmem:[%s7 + $0x98] sm:$0xf]
      %v6545 = vld [vmem:[%s7 + $0x9c] sm:$0xff]
      %v6546 = vld [vmem:[%s7 + $0xa4] sm:$0xf]
      %v6547 = vld [vmem:[%s7 + $0xa8] sm:$0xff]
      %v6548 = vld [vmem:[%s7 + $0xb0] sm:$0xf]
      %v6549 = vld [vmem:[%s7 + $0xb4] sm:$0xff]
      %v6550 = vld [vmem:[%s7 + $0xbc] sm:$0xf]
      %v6551 = vld [vmem:[%s7 + $0xc0] sm:$0xff]
      %v6552 = vld [vmem:[%s7 + $0xc8] sm:$0xf]
      %v6553 = vld [vmem:[%s7 + $0xcc] sm:$0xff]
      %v6554 = vld [vmem:[%s7 + $0xd4] sm:$0xf]
      %v6555 = vld [vmem:[%s7 + $0xd8] sm:$0xff]
      %v6556 = vld [vmem:[%s7 + $0xe0] sm:$0xf]
      %v6557 = vld [vmem:[%s7 + $0xe4] sm:$0xff]
      %v6558 = vld [vmem:[%s7 + $0xec] sm:$0xf]
      %v6559 = vld [vmem:[%s7 + $0xf0] sm:$0xff]
      %v6560 = vld [vmem:[%s7 + $0xf8] sm:$0xf]
      %v6561 = vld [vmem:[%s7 + $0xfc] sm:$0xff]
      %v6562 = vld [vmem:[%s7 + $0x104] sm:$0xf]
      %v6563 = vld [vmem:[%s7 + $0x108] sm:$0xff]
      %v6564 = vld [vmem:[%s7 + $0x110] sm:$0xf]
      %v6565 = vld [vmem:[%s7 + $0x114] sm:$0xff]
      %v6566 = vld [vmem:[%s7 + $0x11c] sm:$0xf]
      %v6567 = vld [vmem:[%s8] sm:$0x7]
      %v6569 = vlaneseq
      %v6570 = vshrl.u32 %v6569, 7
      %v6571 = vsub.s32 0, %v6570
      %v6572 = vrot.slane %v6567, %v6571
      %v6573 = vlaneseq
      %v6574 = vshrl.u32 %v6573, 7
      %v6575 = vsub.s32 1, %v6574
      %v6576 = vrot.slane %v6567, %v6575
      %v6577 = vlaneseq
      %v6578 = vshrl.u32 %v6577, 7
      %v6579 = vsub.s32 2, %v6578
      %v6580 = vrot.slane %v6567, %v6579
      %v6632 = vunpack.c.l.b16 %v6519
      %v6633 = vunpack.c.h.b16 %v6519
      %v6634 = vunpack.c.l.b16 %v6520
      %v6635 = vunpack.c.l.b16 %v6521
      %v6636 = vunpack.c.h.b16 %v6521
      %v6637 = vunpack.c.l.b16 %v6522
      %v6638 = vunpack.c.l.b16 %v6523
      %v6639 = vunpack.c.h.b16 %v6523
      %v6640 = vunpack.c.l.b16 %v6524
      %v6641 = vunpack.c.l.b16 %v6525
      %v6642 = vunpack.c.h.b16 %v6525
      %v6643 = vunpack.c.l.b16 %v6526
      %v6644 = vunpack.c.l.b16 %v6527
      %v6645 = vunpack.c.h.b16 %v6527
      %v6646 = vunpack.c.l.b16 %v6528
      %v6647 = vunpack.c.l.b16 %v6529
      %v6648 = vunpack.c.h.b16 %v6529
      %v6649 = vunpack.c.l.b16 %v6530
      %v6650 = vunpack.c.l.b16 %v6531
      %v6651 = vunpack.c.h.b16 %v6531
      %v6652 = vunpack.c.l.b16 %v6532
      %v6653 = vunpack.c.l.b16 %v6533
      %v6654 = vunpack.c.h.b16 %v6533
      %v6655 = vunpack.c.l.b16 %v6534
      %v6656 = vunpack.c.l.b16 %v6535
      %v6657 = vunpack.c.h.b16 %v6535
      %v6658 = vunpack.c.l.b16 %v6536
      %v6659 = vunpack.c.l.b16 %v6537
      %v6660 = vunpack.c.h.b16 %v6537
      %v6661 = vunpack.c.l.b16 %v6538
      %v6662 = vunpack.c.l.b16 %v6539
      %v6663 = vunpack.c.h.b16 %v6539
      %v6664 = vunpack.c.l.b16 %v6540
      %v6665 = vunpack.c.l.b16 %v6541
      %v6666 = vunpack.c.h.b16 %v6541
      %v6667 = vunpack.c.l.b16 %v6542
      %v6668 = vunpack.c.l.b16 %v6543
      %v6669 = vunpack.c.h.b16 %v6543
      %v6670 = vunpack.c.l.b16 %v6544
      %v6671 = vunpack.c.l.b16 %v6545
      %v6672 = vunpack.c.h.b16 %v6545
      %v6673 = vunpack.c.l.b16 %v6546
      %v6674 = vunpack.c.l.b16 %v6547
      %v6675 = vunpack.c.h.b16 %v6547
      %v6676 = vunpack.c.l.b16 %v6548
      %v6677 = vunpack.c.l.b16 %v6549
      %v6678 = vunpack.c.h.b16 %v6549
      %v6679 = vunpack.c.l.b16 %v6550
      %v6680 = vunpack.c.l.b16 %v6551
      %v6681 = vunpack.c.h.b16 %v6551
      %v6682 = vunpack.c.l.b16 %v6552
      %v6683 = vunpack.c.l.b16 %v6553
      %v6684 = vunpack.c.h.b16 %v6553
      %v6685 = vunpack.c.l.b16 %v6554
      %v6686 = vunpack.c.l.b16 %v6555
      %v6687 = vunpack.c.h.b16 %v6555
      %v6688 = vunpack.c.l.b16 %v6556
      %v6689 = vunpack.c.l.b16 %v6557
      %v6690 = vunpack.c.h.b16 %v6557
      %v6691 = vunpack.c.l.b16 %v6558
      %v6692 = vunpack.c.l.b16 %v6559
      %v6693 = vunpack.c.h.b16 %v6559
      %v6694 = vunpack.c.l.b16 %v6560
      %v6695 = vunpack.c.l.b16 %v6561
      %v6696 = vunpack.c.h.b16 %v6561
      %v6697 = vunpack.c.l.b16 %v6562
      %v6698 = vunpack.c.l.b16 %v6563
      %v6699 = vunpack.c.h.b16 %v6563
      %v6700 = vunpack.c.l.b16 %v6564
      %v6701 = vunpack.c.l.b16 %v6565
      %v6702 = vunpack.c.h.b16 %v6565
      %v6703 = vunpack.c.l.b16 %v6566
      %v6704 = vpack.c.b16 %v6635, %v6632
      %v6705 = vpack.c.b16 %v6636, %v6633
      %v6706 = vpack.c.b16 %v6637, %v6634
      %v6707 = vpack.c.b16 %v6641, %v6638
      %v6708 = vpack.c.b16 %v6642, %v6639
      %v6709 = vpack.c.b16 %v6643, %v6640
      %v6710 = vpack.c.b16 %v6647, %v6644
      %v6711 = vpack.c.b16 %v6648, %v6645
      %v6712 = vpack.c.b16 %v6649, %v6646
      %v6713 = vpack.c.b16 %v6653, %v6650
      %v6714 = vpack.c.b16 %v6654, %v6651
      %v6715 = vpack.c.b16 %v6655, %v6652
      %v6716 = vpack.c.b16 %v6659, %v6656
      %v6717 = vpack.c.b16 %v6660, %v6657
      %v6718 = vpack.c.b16 %v6661, %v6658
      %v6719 = vpack.c.b16 %v6665, %v6662
      %v6720 = vpack.c.b16 %v6666, %v6663
      %v6721 = vpack.c.b16 %v6667, %v6664
      %v6722 = vpack.c.b16 %v6671, %v6668
      %v6723 = vpack.c.b16 %v6672, %v6669
      %v6724 = vpack.c.b16 %v6673, %v6670
      %v6725 = vpack.c.b16 %v6677, %v6674
      %v6726 = vpack.c.b16 %v6678, %v6675
      %v6727 = vpack.c.b16 %v6679, %v6676
      %v6728 = vpack.c.b16 %v6683, %v6680
      %v6729 = vpack.c.b16 %v6684, %v6681
      %v6730 = vpack.c.b16 %v6685, %v6682
      %v6731 = vpack.c.b16 %v6689, %v6686
      %v6732 = vpack.c.b16 %v6690, %v6687
      %v6733 = vpack.c.b16 %v6691, %v6688
      %v6734 = vpack.c.b16 %v6695, %v6692
      %v6735 = vpack.c.b16 %v6696, %v6693
      %v6736 = vpack.c.b16 %v6697, %v6694
      %v6737 = vpack.c.b16 %v6701, %v6698
      %v6738 = vpack.c.b16 %v6702, %v6699
      %v6739 = vpack.c.b16 %v6703, %v6700
      %v6777 = vsel %vm6420, %v6518, 0
      %6779 = vmatprep.subr.bf16.mxu0 %v6705
      %6780 = vmatpush1.bf16.msra.mxu0 %v6704
      %6781 = vmatprep.subr.bf16.mxu0 %v6708
      %6782 = vmatpush1.bf16.msra.mxu0 %v6707
      %6783 = vmatprep.subr.bf16.mxu0 %v6711
      %6784 = vmatpush1.bf16.msra.mxu0 %v6710
      %6785 = vmatprep.subr.bf16.mxu0 %v6714
      %6786 = vmatpush1.bf16.msra.mxu0 %v6713
      %6787 = vmatprep.subr.bf16.mxu0 %v6717
      %6788 = vmatpush1.bf16.msra.mxu0 %v6716
      %6789 = vmatprep.subr.bf16.mxu0 %v6720
      %6790 = vmatpush1.bf16.msra.mxu0 %v6719
      %6791 = vmatprep.subr.bf16.mxu0 %v6723
      %6792 = vmatpush1.bf16.msra.mxu0 %v6722
      %6793 = vmatprep.subr.bf16.mxu0 %v6726
      %6794 = vmatpush1.bf16.msra.mxu0 %v6725
      %6795 = vmatprep.subr.bf16.mxu0 %v6729
      %6796 = vmatpush1.bf16.msra.mxu0 %v6728
      %6797 = vmatprep.subr.bf16.mxu0 %v6732
      %6798 = vmatpush1.bf16.msra.mxu0 %v6731
      %6799 = vmatprep.subr.bf16.mxu0 %v6735
      %6800 = vmatpush1.bf16.msra.mxu0 %v6734
      %6801 = vmatprep.subr.bf16.mxu0 %v6738
      %6802 = vmatpush1.bf16.msra.mxu0 %v6737
      %6803 = vmatprep.subr.bf16.mxu0 0
      %6804 = vmatpush1.bf16.msra.mxu0 0
      %6805 = vmatprep.subr.bf16.mxu0 0
      %6806 = vmatpush1.bf16.msra.mxu0 0
      %6807 = vmatprep.subr.bf16.mxu0 0
      %6808 = vmatpush1.bf16.msra.mxu0 0
      %6809 = vmatprep.subr.bf16.mxu0 0
      %6810 = vmatpush1.bf16.msra.mxu0 0
      %6811 = vmatprep.mubr.bf16.mxu0 %v6777
      %6812 = vmatmul.mubr.bf16.gmra.mrb[0].mxu0 %v6517
      %v6813 = vpop.f32.mrb[0].mxu0
      %v6814 = vadd.f32 %v6572, %v6813
      %v6815 = vpop.f32.mrb[0].mxu0
      %v6816 = vadd.f32 %v6576, %v6815
      %v6817 = vpop.f32.mrb[0].mxu0
      %v6818 = vadd.f32 %v6572, %v6817
      %v6819 = vpop.f32.mrb[0].mxu0
      %v6820 = vadd.f32 %v6576, %v6819
      %6821 = vdwg.mxu0
      %6822 = vmatprep.subr.bf16.mxu0 0
      %6823 = vmatpush1.bf16.msra.mxu0 %v6706
      %6824 = vmatprep.subr.bf16.mxu0 0
      %6825 = vmatpush1.bf16.msra.mxu0 %v6709
      %6826 = vmatprep.subr.bf16.mxu0 0
      %6827 = vmatpush1.bf16.msra.mxu0 %v6712
      %6828 = vmatprep.subr.bf16.mxu0 0
      %6829 = vmatpush1.bf16.msra.mxu0 %v6715
      %6830 = vmatprep.subr.bf16.mxu0 0
      %6831 = vmatpush1.bf16.msra.mxu0 %v6718
      %6832 = vmatprep.subr.bf16.mxu0 0
      %6833 = vmatpush1.bf16.msra.mxu0 %v6721
      %6834 = vmatprep.subr.bf16.mxu0 0
      %6835 = vmatpush1.bf16.msra.mxu0 %v6724
      %6836 = vmatprep.subr.bf16.mxu0 0
      %6837 = vmatpush1.bf16.msra.mxu0 %v6727
      %6838 = vmatprep.subr.bf16.mxu0 0
      %6839 = vmatpush1.bf16.msra.mxu0 %v6730
      %6840 = vmatprep.subr.bf16.mxu0 0
      %6841 = vmatpush1.bf16.msra.mxu0 %v6733
      %6842 = vmatprep.subr.bf16.mxu0 0
      %6843 = vmatpush1.bf16.msra.mxu0 %v6736
      %6844 = vmatprep.subr.bf16.mxu0 0
      %6845 = vmatpush1.bf16.msra.mxu0 %v6739
      %6846 = vmatprep.subr.bf16.mxu0 0
      %6847 = vmatpush1.bf16.msra.mxu0 0
      %6848 = vmatprep.subr.bf16.mxu0 0
      %6849 = vmatpush1.bf16.msra.mxu0 0
      %6850 = vmatprep.subr.bf16.mxu0 0
      %6851 = vmatpush1.bf16.msra.mxu0 0
      %6852 = vmatprep.subr.bf16.mxu0 0
      %6853 = vmatpush1.bf16.msra.mxu0 0
      %6854 = vmatprep.mubr.bf16.mxu0 %v6777
      %6855 = vmatmul.mubr.bf16.gmra.mrb[0].mxu0 %v6517
      %v6856 = vpop.f32.mrb[0].mxu0
      %v6857 = vadd.f32 %v6580, %v6856
      %v6858 = vpop.f32.mrb[0].mxu0
      %v6859 = vpop.f32.mrb[0].mxu0
      %v6860 = vadd.f32 %v6580, %v6859
      %v6861 = vpop.f32.mrb[0].mxu0
      %6862 = vdwg.mxu0
      %6863 = vst [vmem:[%s339] sm:$0xff] 0.0
      %6864 = vst [vmem:[%s339 + $0x8] sm:$0xff] 0.0
      %6865 = vst [vmem:[%s339 + $0x10] sm:$0xff] 0.0
      %6866 = vst [vmem:[%s339 + $0x18] sm:$0xff] 0.0
      %6867 = vst [vmem:[%s339 + $0x20] sm:$0xff] 0.0
      %6868 = vst [vmem:[%s339 + $0x28] sm:$0xff] 0.0
      %6869 = vst [vmem:[%s339] sm:$0xff] %v6814
      %6870 = vst [vmem:[%s339 + $0x8] sm:$0xff] %v6816
      %6871 = vst [vmem:[%s339 + $0x10] sm:$0xff] %v6857
      %6872 = vst [vmem:[%s339 + $0x18] sm:$0x7] %v6818
      %6873 = vst [vmem:[%s339 + $0x20] sm:$0x7] %v6820
      %6874 = vst [vmem:[%s339 + $0x28] sm:$0x7] %v6860
      %s6875 = smul.u32 2, %s20
      %p6876 = scmp.lt.s32.totalorder %s6875, 3
      %s6877 = scalar_select %p6876, %s6875, 3
      %s6878 = smul.addr %s6877, 3
      %s6879 = smul.addr %s6878, 8
      %s6880 = scalar_lea.vmem %s9, %s6879
      // Predicated region
      $region57: #{encoder_forward.3} parent=55 // pred_check
        %p6881 = pneg %p232
      $region58: #{encoder_forward.3} parent=55 // pred_check_branch
        %6883 = sbr.rel (%p6881) target = $region60
      $region59: #{encoder_forward.3} parent=55 // pred_region
        %s6884 = smul.u32 2, %s20
      $region60: #{encoder_forward.3} parent=55 // pred_fallthru
        _
    $region56: #{encoder_forward.3} parent=5 // pred_fallthru
      _
    %p6885 = scmp.le.s32.totalorder 2, %s15
    // Predicated region
    $region61: #{encoder_forward.3} parent=5 // pred_check
      %p6886 = pneg %p6885
    $region62: #{encoder_forward.3} parent=5 // pred_check_branch
      %6888 = sbr.rel (%p6886) target = $region64
    $region63: #{encoder_forward.3} parent=5 // pred_region
      %s6889 = ssub.s32 %s15, 2
      // Predicated region
      $region65: #{encoder_forward.3} parent=63 // pred_check
        %p6890 = pneg %p238
      $region66: #{encoder_forward.3} parent=63 // pred_check_branch
        %6892 = sbr.rel (%p6890) target = $region68
      $region67: #{encoder_forward.3} parent=63 // pred_region
        %s6893 = smul.u32 2, %s21
        %p6894 = scmp.lt.s32.totalorder %s6893, 3
        %s6895 = scalar_select %p6894, %s6893, 3
        %s6896 = smul.addr %s6895, 3
        %s6897 = smul.addr %s6896, 8
        %s6898 = scalar_lea.vmem %s9, %s6897
      $region68: #{encoder_forward.3} parent=63 // pred_fallthru
        _
    $region64: #{encoder_forward.3} parent=5 // pred_fallthru
      _
  $region6: #{encoder_forward.3} parent=0 // loop_footer
    %s19 = sadd.s32 1, %s15
  $region7: #{encoder_forward.3} parent=0 // loop_footer_branch
    %14 = sbr.rel target = $region3
  $region8: #{encoder_forward.3} parent=0 // loop_exit
    _

</llo_original>
